<compile_context>
chip_gen: v7x
topology: tpu7x:2x2x1
jax: 0.10.0
libtpu: 0.0.40
codegen_flags: <defaults>
</compile_context>

<pallas_src>
import functools

import numpy as np
import jax
import jax.numpy as jnp
from jax.experimental import pallas as pl
from jax.experimental.pallas import tpu as pltpu


# ----------------------------------------------------------------------------
# Fused Res_SP_block kernel (grid over batch, everything lane-dense)
# ----------------------------------------------------------------------------
def _res_sp_block_kernel(*refs, H, W, cout, has_shortcut):
    if has_shortcut:
        (x_ref, w1a, w1c, w1b, t1v, w2a, w2c, w2b, t2v,
         mavg, msel, wsa, ebc, satv, sctv,
         o_ref, xpad, hpad, ppad) = refs
    else:
        (x_ref, w1a, w1c, w1b, t1v, w2a, w2c, w2b, t2v,
         mavg, msel, wsa, ebc, satv,
         o_ref, xpad, hpad, ppad) = refs

    f32 = jnp.float32
    WC = W * cout

    xr = x_ref[0]                                   # (H, W*Cin), lane-dense

    # --- vertical halo only; horizontal zero-padding is implicit in the
    #     banded weight matrices (out-of-range taps simply have zero rows).
    zero_xrow = jnp.zeros((1, xpad.shape[1]), f32)
    xpad[0:1, :] = zero_xrow
    xpad[H + 1:H + 2, :] = zero_xrow
    xpad[1:H + 1, :] = xr

    # --- conv1 (3x3, pad 1): 3 per-ky banded matmuls; BN1 scale folded into
    #     the weights; shortcut 1x1 conv + BN fused into the center-tap dot.
    wide = jnp.dot(xr, w1c[...], preferred_element_type=f32)
    if has_shortcut:
        h1 = wide[:, :WC]
        residual = wide[:, WC:] + sctv[...]
    else:
        h1 = wide
        residual = xr                               # Cin == Cout
    h1 = h1 + jnp.dot(xpad[0:H, :], w1a[...], preferred_element_type=f32)
    h1 = h1 + jnp.dot(xpad[2:H + 2, :], w1b[...], preferred_element_type=f32)
    h1 = jnp.maximum(h1 + t1v[...], 0.0)            # + BN1 shift, ReLU

    # --- conv2 (3x3, pad 1), BN2 scale folded into weights.
    zero_hrow = jnp.zeros((1, WC), f32)
    hpad[0:1, :] = zero_hrow
    hpad[H + 1:H + 2, :] = zero_hrow
    hpad[1:H + 1, :] = h1
    h2 = jnp.dot(h1, w2c[...], preferred_element_type=f32)          # ky = 1
    h2 = h2 + jnp.dot(hpad[0:H, :], w2a[...], preferred_element_type=f32)
    h2 = h2 + jnp.dot(hpad[2:H + 2, :], w2b[...], preferred_element_type=f32)
    h2 = h2 + t2v[...]

    # --- spatial-attention pooling: channel mean via matmul, channel max via
    #     a log2(Cout)-step lane-roll (XLU) tree; both packed into a planar
    #     [avg | max] (H, 2W) tile with tiny selection matmuls.
    mt = h2
    d = 1
    while d < cout:
        mt = jnp.maximum(mt, pltpu.roll(mt, shift=d, axis=1))
        d *= 2
    # mt[:, x*Cout + Cout - 1] now holds max over channels of pixel x.
    pooled = (jnp.dot(h2, mavg[...], preferred_element_type=f32)
              + jnp.dot(mt, msel[...], preferred_element_type=f32))  # (H, 2W)

    ppad[0:3, :] = jnp.zeros((3, 2 * W), f32)
    ppad[H + 3:H + 6, :] = jnp.zeros((3, 2 * W), f32)
    ppad[3:H + 3, :] = pooled

    # --- 7x7 (2 -> 1) SA conv as 7 per-ky banded matmuls, then sigmoid (EUP)
    #     and BN(1) (scale folded into the channel-broadcast matrix ebc).
    sa = jnp.dot(ppad[0:H, :], wsa[0], preferred_element_type=f32)
    for ky in range(1, 7):
        sa = sa + jnp.dot(ppad[ky:ky + H, :], wsa[ky],
                          preferred_element_type=f32)
    sa = jax.nn.sigmoid(sa)                          # (H, W)
    sa_dense = jnp.dot(sa, ebc[...], preferred_element_type=f32) + satv[...]

    # --- fuse: relu(sa * out + residual), stored lane-dense (1, H, W*Cout).
    o_ref[...] = jnp.maximum(sa_dense * h2 + residual, 0.0)[None, :, :]


# ----------------------------------------------------------------------------
# Host-side weight preparation: banded matrices (horizontal padding baked in),
# BN-scale folding, pooling / broadcast matrices.  Runs once, outside jit.
# ----------------------------------------------------------------------------
def prepare_res_sp_block(p, H, W):
    w1 = np.asarray(p["w1"])                  # (3, 3, Cin, Cout) HWIO
    w2 = np.asarray(p["w2"])                  # (3, 3, Cout, Cout)
    Cin, Cout = int(w1.shape[2]), int(w1.shape[3])
    assert Cout & (Cout - 1) == 0, "lane-roll max tree needs power-of-two Cout"
    WC = W * Cout
    has_shortcut = "sc_w" in p
    if not has_shortcut:
        assert Cin == Cout, "identity shortcut requires Cin == Cout"

    s1 = np.asarray(p["s1"]).reshape(Cout)
    t1 = np.asarray(p["t1"]).reshape(Cout)
    s2 = np.asarray(p["s2"]).reshape(Cout)
    t2 = np.asarray(p["t2"]).reshape(Cout)
    s1_cols = np.tile(s1, W)
    s2_cols = np.tile(s2, W)

    def band(wk, cin, cout, pad):
        # wk: (KX, cin, cout) -> (W*cin, W*cout) banded matrix with implicit
        # zero-padding in x (out-of-range taps are simply absent).
        KX = wk.shape[0]
        m = np.zeros((W * cin, W * cout), np.float32)
        for xo in range(W):
            for kx in range(KX):
                xi = xo + kx - pad
                if 0 <= xi < W:
                    m[xi * cin:(xi + 1) * cin, xo * cout:(xo + 1) * cout] = wk[kx]
        return m

    w1bands = [band(w1[ky], Cin, Cout, 1) * s1_cols[None, :] for ky in range(3)]
    w2bands = [band(w2[ky], Cout, Cout, 1) * s2_cols[None, :] for ky in range(3)]

    w1c = w1bands[1]
    if has_shortcut:
        scw = np.asarray(p["sc_w"]).reshape(Cin, Cout)
        scs = np.asarray(p["sc_s"]).reshape(Cout)
        sct = np.asarray(p["sc_t"]).reshape(Cout)
        wsc = np.zeros((W * Cin, WC), np.float32)
        for x in range(W):
            wsc[x * Cin:(x + 1) * Cin, x * Cout:(x + 1) * Cout] = scw * scs[None, :]
        w1c = np.concatenate([w1bands[1], wsc], axis=1)    # (W*Cin, 2*WC)

    # pooling matrices: mean extraction and max-lane selection -> planar (2W)
    mavg = np.zeros((WC, 2 * W), np.float32)
    msel = np.zeros((WC, 2 * W), np.float32)
    for x in range(W):
        mavg[x * Cout:(x + 1) * Cout, x] = 1.0 / Cout
        msel[x * Cout + Cout - 1, W + x] = 1.0

    # 7x7 SA conv banded matrices on the planar [avg | max] layout
    saw = np.asarray(p["sa_w"])               # (7, 7, 2, 1)
    wsa = np.zeros((7, 2 * W, W), np.float32)
    for ky in range(7):
        for xo in range(W):
            for kx in range(7):
                xi = xo + kx - 3
                if 0 <= xi < W:
                    wsa[ky, xi, xo] = saw[ky, kx, 0, 0]
                    wsa[ky, W + xi, xo] = saw[ky, kx, 1, 0]

    sa_s = float(np.asarray(p["sa_s"]).reshape(()))
    sa_t = float(np.asarray(p["sa_t"]).reshape(()))
    ebc = np.zeros((W, WC), np.float32)       # per-pixel -> per-channel bcast
    for x in range(W):
        ebc[x, x * Cout:(x + 1) * Cout] = sa_s        # BN(1) scale folded in

    kp = {
        "cin": Cin, "cout": Cout, "has_shortcut": has_shortcut,
        "w1a": jnp.asarray(w1bands[0]), "w1c": jnp.asarray(w1c),
        "w1b": jnp.asarray(w1bands[2]),
        "t1v": jnp.asarray(np.tile(t1, W)[None, :]),
        "w2a": jnp.asarray(w2bands[0]), "w2c": jnp.asarray(w2bands[1]),
        "w2b": jnp.asarray(w2bands[2]),
        "t2v": jnp.asarray(np.tile(t2, W)[None, :]),
        "mavg": jnp.asarray(mavg), "msel": jnp.asarray(msel),
        "wsa": jnp.asarray(wsa), "ebc": jnp.asarray(ebc),
        "satv": jnp.asarray(np.full((1, WC), sa_t, np.float32)),
    }
    if has_shortcut:
        kp["sctv"] = jnp.asarray(np.tile(sct, W)[None, :])
    return kp


def res_sp_block_apply(x_nhwc, kp):
    """x_nhwc: (N, H, W, Cin) f32; kp: prepared params from prepare_res_sp_block."""
    N, H, W, Cin = x_nhwc.shape
    assert Cin == kp["cin"]
    Cout = kp["cout"]
    WC = W * Cout
    has_shortcut = kp["has_shortcut"]

    x = x_nhwc.reshape(N, H, W * Cin)                 # lane-dense input

    operands = [x, kp["w1a"], kp["w1c"], kp["w1b"], kp["t1v"],
                kp["w2a"], kp["w2c"], kp["w2b"], kp["t2v"],
                kp["mavg"], kp["msel"], kp["wsa"], kp["ebc"], kp["satv"]]
    if has_shortcut:
        operands.append(kp["sctv"])

    def _const_spec(a):
        nd = a.ndim
        return pl.BlockSpec(a.shape, lambda n, _nd=nd: (0,) * _nd)

    in_specs = [pl.BlockSpec((1, H, W * Cin), lambda n: (n, 0, 0))]
    in_specs += [_const_spec(a) for a in operands[1:]]

    kernel = functools.partial(_res_sp_block_kernel, H=H, W=W, cout=Cout,
                               has_shortcut=has_shortcut)

    out = pl.pallas_call(
        kernel,
        out_shape=jax.ShapeDtypeStruct((N, H, WC), jnp.float32),
        grid=(N,),
        in_specs=in_specs,
        out_specs=pl.BlockSpec((1, H, WC), lambda n: (n, 0, 0)),
        scratch_shapes=[
            pltpu.VMEM((H + 2, W * Cin), jnp.float32),    # row-padded x
            pltpu.VMEM((H + 2, WC), jnp.float32),         # row-padded conv1 out
            pltpu.VMEM((H + 6, 2 * W), jnp.float32),      # row-padded [avg|max]
        ],
        compiler_params=pltpu.CompilerParams(
            dimension_semantics=("parallel",)),           # 2 TCs on v7x
    )(*operands)
    return out.reshape(N, H, W, Cout)


# ----------------------------------------------------------------------------
# Parameter construction (deterministic, synthetic; BN folded for eval mode)
# ----------------------------------------------------------------------------
_BN_EPS = 1e-5


def _conv_init(key, k, cin, cout, bias=True):
    kw, kb = jax.random.split(key)
    fan_in = k * k * cin
    w = jax.random.normal(kw, (k, k, cin, cout), jnp.float32) / np.sqrt(fan_in)
    b = (jax.random.normal(kb, (cout,), jnp.float32) * 0.01) if bias \
        else jnp.zeros((cout,), jnp.float32)
    return w, b


def _bn_fold(key, c, conv_bias):
    """Fold eval-mode BatchNorm (gamma, beta, running stats) + conv bias into
    a per-channel (scale, shift):  BN(conv(x) + b) = conv(x)*s + t."""
    k1, k2, k3, k4 = jax.random.split(key, 4)
    gamma = jax.random.uniform(k1, (c,), jnp.float32, 0.8, 1.2)
    beta = jax.random.normal(k2, (c,), jnp.float32) * 0.05
    mean = jax.random.normal(k3, (c,), jnp.float32) * 0.05
    var = jax.random.uniform(k4, (c,), jnp.float32, 0.9, 1.1)
    s = gamma / jnp.sqrt(var + _BN_EPS)
    t = beta - mean * s + conv_bias * s
    return s.reshape(1, c), t.reshape(1, c)


def make_res_sp_block(key, cin, cout):
    keys = jax.random.split(key, 8)
    w1, b1 = _conv_init(keys[0], 3, cin, cout)
    s1, t1 = _bn_fold(keys[1], cout, b1)
    w2, b2 = _conv_init(keys[2], 3, cout, cout)
    s2, t2 = _bn_fold(keys[3], cout, b2)
    p = {"w1": w1, "s1": s1, "t1": t1, "w2": w2, "s2": s2, "t2": t2}
    if cin != cout:                       # shortcut = Conv2d(1x1) + BN
        scw, scb = _conv_init(keys[4], 1, cin, cout)
        scs, sct = _bn_fold(keys[5], cout, scb)
        p["sc_w"], p["sc_s"], p["sc_t"] = scw, scs, sct
    # SpatialAttention: Conv2d(2, 1, 7, padding=3, bias=False) -> sigmoid -> BN(1)
    sa_w, _ = _conv_init(keys[6], 7, 2, 1, bias=False)
    sa_s, sa_t = _bn_fold(keys[7], 1, jnp.zeros((1,), jnp.float32))
    p["sa_w"], p["sa_s"], p["sa_t"] = sa_w, sa_s, sa_t
    return p


# ----------------------------------------------------------------------------
# Pure-JAX (XLA) reference for correctness checking
# ----------------------------------------------------------------------------
def _conv_nhwc(x, w, pad):
    return jax.lax.conv_general_dilated(
        x, w, window_strides=(1, 1), padding=[(pad, pad), (pad, pad)],
        dimension_numbers=("NHWC", "HWIO", "NHWC"),
        precision=jax.lax.Precision.HIGHEST)


def res_sp_block_reference(x, p):
    def bn(y, s, t):
        return y * s.reshape(1, 1, 1, -1) + t.reshape(1, 1, 1, -1)

    residual = bn(_conv_nhwc(x, p["sc_w"], 0), p["sc_s"], p["sc_t"]) \
        if "sc_w" in p else x
    out = jnp.maximum(bn(_conv_nhwc(x, p["w1"], 1), p["s1"], p["t1"]), 0.0)
    out = bn(_conv_nhwc(out, p["w2"], 1), p["s2"], p["t2"])
    pooled = jnp.concatenate([out.mean(-1, keepdims=True),
                              out.max(-1, keepdims=True)], axis=-1)
    sa = _conv_nhwc(pooled, p["sa_w"], 3)
    sa = bn(jax.nn.sigmoid(sa), p["sa_s"], p["sa_t"])
    return jnp.maximum(sa * out + residual, 0.0)


# ----------------------------------------------------------------------------
# Main
# ----------------------------------------------------------------------------
if __name__ == "__main__":
    key = jax.random.PRNGKey(0)
    kp1, kp2, kx = jax.random.split(key, 3)

    # Equivalent PyTorch NCHW input shape: (2, 4, 16, 16); NHWC here.
    N, H, W, Cin, Cout = 2, 16, 16, 4, 16
    x = jax.random.normal(kx, (N, H, W, Cin), jnp.float32)

    block_a = make_res_sp_block(kp1, Cin, Cout)    # has 1x1-conv shortcut
    block_b = make_res_sp_block(kp2, Cout, Cout)   # identity shortcut

    kp_a = prepare_res_sp_block(block_a, H, W)
    kp_b = prepare_res_sp_block(block_b, H, W)

    fwd = jax.jit(lambda xx: res_sp_block_apply(
        res_sp_block_apply(xx, kp_a), kp_b))
    out = jax.block_until_ready(fwd(x))
    assert out.shape == (N, H, W, Cout) and out.dtype == jnp.float32

    ref = res_sp_block_reference(res_sp_block_reference(x, block_a), block_b)
    err = float(jnp.max(jnp.abs(out - ref)))
    assert err < 2e-4, f"max |pallas - reference| = {err}"

    print("KERNEL_OK")
</pallas_src>

<mosaic_0001>
module attributes {stable_mosaic.version = 11 : i64} {
  func.func @_res_sp_block_kernel(%arg0: i32, %arg1: memref<1x16x64xf32, #tpu.memory_space<vmem>>, %arg2: memref<64x256xf32, #tpu.memory_space<vmem>>, %arg3: memref<64x512xf32, #tpu.memory_space<vmem>>, %arg4: memref<64x256xf32, #tpu.memory_space<vmem>>, %arg5: memref<1x256xf32, #tpu.memory_space<vmem>>, %arg6: memref<256x256xf32, #tpu.memory_space<vmem>>, %arg7: memref<256x256xf32, #tpu.memory_space<vmem>>, %arg8: memref<256x256xf32, #tpu.memory_space<vmem>>, %arg9: memref<1x256xf32, #tpu.memory_space<vmem>>, %arg10: memref<256x32xf32, #tpu.memory_space<vmem>>, %arg11: memref<256x32xf32, #tpu.memory_space<vmem>>, %arg12: memref<7x32x16xf32, #tpu.memory_space<vmem>>, %arg13: memref<16x256xf32, #tpu.memory_space<vmem>>, %arg14: memref<1x256xf32, #tpu.memory_space<vmem>>, %arg15: memref<1x256xf32, #tpu.memory_space<vmem>>, %arg16: memref<1x16x256xf32, #tpu.memory_space<vmem>>, %arg17: memref<18x64xf32, #tpu.memory_space<vmem>>, %arg18: memref<18x256xf32, #tpu.memory_space<vmem>>, %arg19: memref<22x32xf32, #tpu.memory_space<vmem>>) attributes {dimension_semantics = [#tpu.dimension_semantics<parallel>], iteration_bounds = array<i64: 2>, scalar_prefetch = 0 : i64, scratch_operands = 3 : i64, tpu.core_type = #tpu.core_type<tc>, window_params = [{transform_indices = @transform_0, window_bounds = array<i64: 1, 16, 64>}, {pipeline_mode = #tpu.pipeline_mode<synchronous>, transform_indices = @transform_1, window_bounds = array<i64: 64, 256>}, {pipeline_mode = #tpu.pipeline_mode<synchronous>, transform_indices = @transform_2, window_bounds = array<i64: 64, 512>}, {pipeline_mode = #tpu.pipeline_mode<synchronous>, transform_indices = @transform_3, window_bounds = array<i64: 64, 256>}, {pipeline_mode = #tpu.pipeline_mode<synchronous>, transform_indices = @transform_4, window_bounds = array<i64: 1, 256>}, {pipeline_mode = #tpu.pipeline_mode<synchronous>, transform_indices = @transform_5, window_bounds = array<i64: 256, 256>}, {pipeline_mode = #tpu.pipeline_mode<synchronous>, transform_indices = @transform_6, window_bounds = array<i64: 256, 256>}, {pipeline_mode = #tpu.pipeline_mode<synchronous>, transform_indices = @transform_7, window_bounds = array<i64: 256, 256>}, {pipeline_mode = #tpu.pipeline_mode<synchronous>, transform_indices = @transform_8, window_bounds = array<i64: 1, 256>}, {pipeline_mode = #tpu.pipeline_mode<synchronous>, transform_indices = @transform_9, window_bounds = array<i64: 256, 32>}, {pipeline_mode = #tpu.pipeline_mode<synchronous>, transform_indices = @transform_10, window_bounds = array<i64: 256, 32>}, {pipeline_mode = #tpu.pipeline_mode<synchronous>, transform_indices = @transform_11, window_bounds = array<i64: 7, 32, 16>}, {pipeline_mode = #tpu.pipeline_mode<synchronous>, transform_indices = @transform_12, window_bounds = array<i64: 16, 256>}, {pipeline_mode = #tpu.pipeline_mode<synchronous>, transform_indices = @transform_13, window_bounds = array<i64: 1, 256>}, {pipeline_mode = #tpu.pipeline_mode<synchronous>, transform_indices = @transform_14, window_bounds = array<i64: 1, 256>}, {transform_indices = @transform_15, window_bounds = array<i64: 1, 16, 256>}]} {
    %c0 = arith.constant 0 : index
    %c0_0 = arith.constant 0 : index
    %c0_1 = arith.constant 0 : index
    %0 = vector.load %arg1[%c0, %c0_0, %c0_1] : memref<1x16x64xf32, #tpu.memory_space<vmem>>, vector<1x16x64xf32>
    %1 = vector.shape_cast %0 : vector<1x16x64xf32> to vector<16x64xf32>
    %cst = arith.constant 0.000000e+00 : f32
    %2 = vector.broadcast %cst : f32 to vector<1x64xf32>
    %c0_2 = arith.constant 0 : index
    %c0_3 = arith.constant 0 : index
    %3 = vector.load %arg17[%c0_2, %c0_3] : memref<18x64xf32, #tpu.memory_space<vmem>>, vector<1x64xf32>
    tpu.vector_store %arg17[%c0_2, %c0_3], %2 {strides = array<i32>} : memref<18x64xf32, #tpu.memory_space<vmem>>, vector<1x64xf32>,
    %c17 = arith.constant 17 : index
    %c0_4 = arith.constant 0 : index
    %4 = vector.load %arg17[%c17, %c0_4] : memref<18x64xf32, #tpu.memory_space<vmem>>, vector<1x64xf32>
    tpu.vector_store %arg17[%c17, %c0_4], %2 {strides = array<i32>} : memref<18x64xf32, #tpu.memory_space<vmem>>, vector<1x64xf32>,
    %c1 = arith.constant 1 : index
    %c0_5 = arith.constant 0 : index
    %5 = vector.load %arg17[%c1, %c0_5] : memref<18x64xf32, #tpu.memory_space<vmem>>, vector<16x64xf32>
    tpu.vector_store %arg17[%c1, %c0_5], %1 {strides = array<i32>} : memref<18x64xf32, #tpu.memory_space<vmem>>, vector<16x64xf32>,
    %c0_6 = arith.constant 0 : index
    %c0_7 = arith.constant 0 : index
    %6 = vector.load %arg3[%c0_6, %c0_7] : memref<64x512xf32, #tpu.memory_space<vmem>>, vector<64x512xf32>
    %cst_8 = arith.constant dense<0.000000e+00> : vector<16x512xf32>
    %7 = tpu.matmul %1, %6, %cst_8 {dimension_numbers = #tpu.dot_dimension_numbers<[1], [0], [0], [1], [0, 0, 1, 1], [], []>} : vector<16x64xf32>, vector<64x512xf32>, vector<16x512xf32> -> vector<16x512xf32>
    %8 = vector.extract_strided_slice %7 {offsets = [0, 0], sizes = [16, 256], strides = [1, 1]} : vector<16x512xf32> to vector<16x256xf32>
    %9 = vector.extract_strided_slice %7 {offsets = [0, 256], sizes = [16, 256], strides = [1, 1]} : vector<16x512xf32> to vector<16x256xf32>
    %c0_9 = arith.constant 0 : index
    %c0_10 = arith.constant 0 : index
    %10 = vector.load %arg15[%c0_9, %c0_10] : memref<1x256xf32, #tpu.memory_space<vmem>>, vector<1x256xf32>
    %11 = vector.broadcast %10 : vector<1x256xf32> to vector<16x256xf32>
    %12 = arith.addf %9, %11 : vector<16x256xf32>
    %c0_11 = arith.constant 0 : index
    %c0_12 = arith.constant 0 : index
    %13 = vector.load %arg17[%c0_11, %c0_12] : memref<18x64xf32, #tpu.memory_space<vmem>>, vector<16x64xf32>
    %c0_13 = arith.constant 0 : index
    %c0_14 = arith.constant 0 : index
    %14 = vector.load %arg2[%c0_13, %c0_14] : memref<64x256xf32, #tpu.memory_space<vmem>>, vector<64x256xf32>
    %cst_15 = arith.constant dense<0.000000e+00> : vector<16x256xf32>
    %15 = tpu.matmul %13, %14, %cst_15 {dimension_numbers = #tpu.dot_dimension_numbers<[1], [0], [0], [1], [0, 0, 1, 1], [], []>} : vector<16x64xf32>, vector<64x256xf32>, vector<16x256xf32> -> vector<16x256xf32>
    %16 = arith.addf %8, %15 : vector<16x256xf32>
    %c2 = arith.constant 2 : index
    %c0_16 = arith.constant 0 : index
    %17 = vector.load %arg17[%c2, %c0_16] : memref<18x64xf32, #tpu.memory_space<vmem>>, vector<16x64xf32>
    %c0_17 = arith.constant 0 : index
    %c0_18 = arith.constant 0 : index
    %18 = vector.load %arg4[%c0_17, %c0_18] : memref<64x256xf32, #tpu.memory_space<vmem>>, vector<64x256xf32>
    %cst_19 = arith.constant dense<0.000000e+00> : vector<16x256xf32>
    %19 = tpu.matmul %17, %18, %cst_19 {dimension_numbers = #tpu.dot_dimension_numbers<[1], [0], [0], [1], [0, 0, 1, 1], [], []>} : vector<16x64xf32>, vector<64x256xf32>, vector<16x256xf32> -> vector<16x256xf32>
    %20 = arith.addf %16, %19 : vector<16x256xf32>
    %c0_20 = arith.constant 0 : index
    %c0_21 = arith.constant 0 : index
    %21 = vector.load %arg5[%c0_20, %c0_21] : memref<1x256xf32, #tpu.memory_space<vmem>>, vector<1x256xf32>
    %22 = vector.broadcast %21 : vector<1x256xf32> to vector<16x256xf32>
    %23 = arith.addf %20, %22 : vector<16x256xf32>
    %cst_22 = arith.constant 0.000000e+00 : f32
    %24 = vector.broadcast %cst_22 : f32 to vector<16x256xf32>
    %25 = arith.maximumf %23, %24 : vector<16x256xf32>
    %cst_23 = arith.constant 0.000000e+00 : f32
    %26 = vector.broadcast %cst_23 : f32 to vector<1x256xf32>
    %c0_24 = arith.constant 0 : index
    %c0_25 = arith.constant 0 : index
    %27 = vector.load %arg18[%c0_24, %c0_25] : memref<18x256xf32, #tpu.memory_space<vmem>>, vector<1x256xf32>
    tpu.vector_store %arg18[%c0_24, %c0_25], %26 {strides = array<i32>} : memref<18x256xf32, #tpu.memory_space<vmem>>, vector<1x256xf32>,
    %c17_26 = arith.constant 17 : index
    %c0_27 = arith.constant 0 : index
    %28 = vector.load %arg18[%c17_26, %c0_27] : memref<18x256xf32, #tpu.memory_space<vmem>>, vector<1x256xf32>
    tpu.vector_store %arg18[%c17_26, %c0_27], %26 {strides = array<i32>} : memref<18x256xf32, #tpu.memory_space<vmem>>, vector<1x256xf32>,
    %c1_28 = arith.constant 1 : index
    %c0_29 = arith.constant 0 : index
    %29 = vector.load %arg18[%c1_28, %c0_29] : memref<18x256xf32, #tpu.memory_space<vmem>>, vector<16x256xf32>
    tpu.vector_store %arg18[%c1_28, %c0_29], %25 {strides = array<i32>} : memref<18x256xf32, #tpu.memory_space<vmem>>, vector<16x256xf32>,
    %c0_30 = arith.constant 0 : index
    %c0_31 = arith.constant 0 : index
    %30 = vector.load %arg7[%c0_30, %c0_31] : memref<256x256xf32, #tpu.memory_space<vmem>>, vector<256x256xf32>
    %cst_32 = arith.constant dense<0.000000e+00> : vector<16x256xf32>
    %31 = tpu.matmul %25, %30, %cst_32 {dimension_numbers = #tpu.dot_dimension_numbers<[1], [0], [0], [1], [0, 0, 1, 1], [], []>} : vector<16x256xf32>, vector<256x256xf32>, vector<16x256xf32> -> vector<16x256xf32>
    %c0_33 = arith.constant 0 : index
    %c0_34 = arith.constant 0 : index
    %32 = vector.load %arg18[%c0_33, %c0_34] : memref<18x256xf32, #tpu.memory_space<vmem>>, vector<16x256xf32>
    %c0_35 = arith.constant 0 : index
    %c0_36 = arith.constant 0 : index
    %33 = vector.load %arg6[%c0_35, %c0_36] : memref<256x256xf32, #tpu.memory_space<vmem>>, vector<256x256xf32>
    %cst_37 = arith.constant dense<0.000000e+00> : vector<16x256xf32>
    %34 = tpu.matmul %32, %33, %cst_37 {dimension_numbers = #tpu.dot_dimension_numbers<[1], [0], [0], [1], [0, 0, 1, 1], [], []>} : vector<16x256xf32>, vector<256x256xf32>, vector<16x256xf32> -> vector<16x256xf32>
    %35 = arith.addf %31, %34 : vector<16x256xf32>
    %c2_38 = arith.constant 2 : index
    %c0_39 = arith.constant 0 : index
    %36 = vector.load %arg18[%c2_38, %c0_39] : memref<18x256xf32, #tpu.memory_space<vmem>>, vector<16x256xf32>
    %c0_40 = arith.constant 0 : index
    %c0_41 = arith.constant 0 : index
    %37 = vector.load %arg8[%c0_40, %c0_41] : memref<256x256xf32, #tpu.memory_space<vmem>>, vector<256x256xf32>
    %cst_42 = arith.constant dense<0.000000e+00> : vector<16x256xf32>
    %38 = tpu.matmul %36, %37, %cst_42 {dimension_numbers = #tpu.dot_dimension_numbers<[1], [0], [0], [1], [0, 0, 1, 1], [], []>} : vector<16x256xf32>, vector<256x256xf32>, vector<16x256xf32> -> vector<16x256xf32>
    %39 = arith.addf %35, %38 : vector<16x256xf32>
    %c0_43 = arith.constant 0 : index
    %c0_44 = arith.constant 0 : index
    %40 = vector.load %arg9[%c0_43, %c0_44] : memref<1x256xf32, #tpu.memory_space<vmem>>, vector<1x256xf32>
    %41 = vector.broadcast %40 : vector<1x256xf32> to vector<16x256xf32>
    %42 = arith.addf %39, %41 : vector<16x256xf32>
    %c1_i32 = arith.constant 1 : i32
    %43 = tpu.dynamic_rotate %42 by %c1_i32 dim 1 : vector<16x256xf32>, i32 -> vector<16x256xf32>
    %44 = arith.maximumf %42, %43 : vector<16x256xf32>
    %c2_i32 = arith.constant 2 : i32
    %45 = tpu.dynamic_rotate %44 by %c2_i32 dim 1 : vector<16x256xf32>, i32 -> vector<16x256xf32>
    %46 = arith.maximumf %44, %45 : vector<16x256xf32>
    %c4_i32 = arith.constant 4 : i32
    %47 = tpu.dynamic_rotate %46 by %c4_i32 dim 1 : vector<16x256xf32>, i32 -> vector<16x256xf32>
    %48 = arith.maximumf %46, %47 : vector<16x256xf32>
    %c8_i32 = arith.constant 8 : i32
    %49 = tpu.dynamic_rotate %48 by %c8_i32 dim 1 : vector<16x256xf32>, i32 -> vector<16x256xf32>
    %50 = arith.maximumf %48, %49 : vector<16x256xf32>
    %c0_45 = arith.constant 0 : index
    %c0_46 = arith.constant 0 : index
    %51 = vector.load %arg10[%c0_45, %c0_46] : memref<256x32xf32, #tpu.memory_space<vmem>>, vector<256x32xf32>
    %cst_47 = arith.constant dense<0.000000e+00> : vector<16x32xf32>
    %52 = tpu.matmul %42, %51, %cst_47 {dimension_numbers = #tpu.dot_dimension_numbers<[1], [0], [0], [1], [0, 0, 1, 1], [], []>} : vector<16x256xf32>, vector<256x32xf32>, vector<16x32xf32> -> vector<16x32xf32>
    %c0_48 = arith.constant 0 : index
    %c0_49 = arith.constant 0 : index
    %53 = vector.load %arg11[%c0_48, %c0_49] : memref<256x32xf32, #tpu.memory_space<vmem>>, vector<256x32xf32>
    %cst_50 = arith.constant dense<0.000000e+00> : vector<16x32xf32>
    %54 = tpu.matmul %50, %53, %cst_50 {dimension_numbers = #tpu.dot_dimension_numbers<[1], [0], [0], [1], [0, 0, 1, 1], [], []>} : vector<16x256xf32>, vector<256x32xf32>, vector<16x32xf32> -> vector<16x32xf32>
    %55 = arith.addf %52, %54 : vector<16x32xf32>
    %cst_51 = arith.constant 0.000000e+00 : f32
    %56 = vector.broadcast %cst_51 : f32 to vector<3x32xf32>
    %c0_52 = arith.constant 0 : index
    %c0_53 = arith.constant 0 : index
    %57 = vector.load %arg19[%c0_52, %c0_53] : memref<22x32xf32, #tpu.memory_space<vmem>>, vector<3x32xf32>
    tpu.vector_store %arg19[%c0_52, %c0_53], %56 {strides = array<i32>} : memref<22x32xf32, #tpu.memory_space<vmem>>, vector<3x32xf32>,
    %cst_54 = arith.constant 0.000000e+00 : f32
    %58 = vector.broadcast %cst_54 : f32 to vector<3x32xf32>
    %c19 = arith.constant 19 : index
    %c0_55 = arith.constant 0 : index
    %59 = vector.load %arg19[%c19, %c0_55] : memref<22x32xf32, #tpu.memory_space<vmem>>, vector<3x32xf32>
    tpu.vector_store %arg19[%c19, %c0_55], %58 {strides = array<i32>} : memref<22x32xf32, #tpu.memory_space<vmem>>, vector<3x32xf32>,
    %c3 = arith.constant 3 : index
    %c0_56 = arith.constant 0 : index
    %60 = vector.load %arg19[%c3, %c0_56] : memref<22x32xf32, #tpu.memory_space<vmem>>, vector<16x32xf32>
    tpu.vector_store %arg19[%c3, %c0_56], %55 {strides = array<i32>} : memref<22x32xf32, #tpu.memory_space<vmem>>, vector<16x32xf32>,
    %c0_57 = arith.constant 0 : index
    %c0_58 = arith.constant 0 : index
    %61 = vector.load %arg19[%c0_57, %c0_58] : memref<22x32xf32, #tpu.memory_space<vmem>>, vector<16x32xf32>
    %c0_59 = arith.constant 0 : index
    %c0_60 = arith.constant 0 : index
    %c0_61 = arith.constant 0 : index
    %62 = vector.load %arg12[%c0_59, %c0_60, %c0_61] : memref<7x32x16xf32, #tpu.memory_space<vmem>>, vector<1x32x16xf32>
    %63 = vector.shape_cast %62 : vector<1x32x16xf32> to vector<32x16xf32>
    %cst_62 = arith.constant dense<0.000000e+00> : vector<16x16xf32>
    %64 = tpu.matmul %61, %63, %cst_62 {dimension_numbers = #tpu.dot_dimension_numbers<[1], [0], [0], [1], [0, 0, 1, 1], [], []>} : vector<16x32xf32>, vector<32x16xf32>, vector<16x16xf32> -> vector<16x16xf32>
    %c1_63 = arith.constant 1 : index
    %c0_64 = arith.constant 0 : index
    %65 = vector.load %arg19[%c1_63, %c0_64] : memref<22x32xf32, #tpu.memory_space<vmem>>, vector<16x32xf32>
    %c1_65 = arith.constant 1 : index
    %c0_66 = arith.constant 0 : index
    %c0_67 = arith.constant 0 : index
    %66 = vector.load %arg12[%c1_65, %c0_66, %c0_67] : memref<7x32x16xf32, #tpu.memory_space<vmem>>, vector<1x32x16xf32>
    %67 = vector.shape_cast %66 : vector<1x32x16xf32> to vector<32x16xf32>
    %cst_68 = arith.constant dense<0.000000e+00> : vector<16x16xf32>
    %68 = tpu.matmul %65, %67, %cst_68 {dimension_numbers = #tpu.dot_dimension_numbers<[1], [0], [0], [1], [0, 0, 1, 1], [], []>} : vector<16x32xf32>, vector<32x16xf32>, vector<16x16xf32> -> vector<16x16xf32>
    %69 = arith.addf %64, %68 : vector<16x16xf32>
    %c2_69 = arith.constant 2 : index
    %c0_70 = arith.constant 0 : index
    %70 = vector.load %arg19[%c2_69, %c0_70] : memref<22x32xf32, #tpu.memory_space<vmem>>, vector<16x32xf32>
    %c2_71 = arith.constant 2 : index
    %c0_72 = arith.constant 0 : index
    %c0_73 = arith.constant 0 : index
    %71 = vector.load %arg12[%c2_71, %c0_72, %c0_73] : memref<7x32x16xf32, #tpu.memory_space<vmem>>, vector<1x32x16xf32>
    %72 = vector.shape_cast %71 : vector<1x32x16xf32> to vector<32x16xf32>
    %cst_74 = arith.constant dense<0.000000e+00> : vector<16x16xf32>
    %73 = tpu.matmul %70, %72, %cst_74 {dimension_numbers = #tpu.dot_dimension_numbers<[1], [0], [0], [1], [0, 0, 1, 1], [], []>} : vector<16x32xf32>, vector<32x16xf32>, vector<16x16xf32> -> vector<16x16xf32>
    %74 = arith.addf %69, %73 : vector<16x16xf32>
    %c3_75 = arith.constant 3 : index
    %c0_76 = arith.constant 0 : index
    %75 = vector.load %arg19[%c3_75, %c0_76] : memref<22x32xf32, #tpu.memory_space<vmem>>, vector<16x32xf32>
    %c3_77 = arith.constant 3 : index
    %c0_78 = arith.constant 0 : index
    %c0_79 = arith.constant 0 : index
    %76 = vector.load %arg12[%c3_77, %c0_78, %c0_79] : memref<7x32x16xf32, #tpu.memory_space<vmem>>, vector<1x32x16xf32>
    %77 = vector.shape_cast %76 : vector<1x32x16xf32> to vector<32x16xf32>
    %cst_80 = arith.constant dense<0.000000e+00> : vector<16x16xf32>
    %78 = tpu.matmul %75, %77, %cst_80 {dimension_numbers = #tpu.dot_dimension_numbers<[1], [0], [0], [1], [0, 0, 1, 1], [], []>} : vector<16x32xf32>, vector<32x16xf32>, vector<16x16xf32> -> vector<16x16xf32>
    %79 = arith.addf %74, %78 : vector<16x16xf32>
    %c4 = arith.constant 4 : index
    %c0_81 = arith.constant 0 : index
    %80 = vector.load %arg19[%c4, %c0_81] : memref<22x32xf32, #tpu.memory_space<vmem>>, vector<16x32xf32>
    %c4_82 = arith.constant 4 : index
    %c0_83 = arith.constant 0 : index
    %c0_84 = arith.constant 0 : index
    %81 = vector.load %arg12[%c4_82, %c0_83, %c0_84] : memref<7x32x16xf32, #tpu.memory_space<vmem>>, vector<1x32x16xf32>
    %82 = vector.shape_cast %81 : vector<1x32x16xf32> to vector<32x16xf32>
    %cst_85 = arith.constant dense<0.000000e+00> : vector<16x16xf32>
    %83 = tpu.matmul %80, %82, %cst_85 {dimension_numbers = #tpu.dot_dimension_numbers<[1], [0], [0], [1], [0, 0, 1, 1], [], []>} : vector<16x32xf32>, vector<32x16xf32>, vector<16x16xf32> -> vector<16x16xf32>
    %84 = arith.addf %79, %83 : vector<16x16xf32>
    %c5 = arith.constant 5 : index
    %c0_86 = arith.constant 0 : index
    %85 = vector.load %arg19[%c5, %c0_86] : memref<22x32xf32, #tpu.memory_space<vmem>>, vector<16x32xf32>
    %c5_87 = arith.constant 5 : index
    %c0_88 = arith.constant 0 : index
    %c0_89 = arith.constant 0 : index
    %86 = vector.load %arg12[%c5_87, %c0_88, %c0_89] : memref<7x32x16xf32, #tpu.memory_space<vmem>>, vector<1x32x16xf32>
    %87 = vector.shape_cast %86 : vector<1x32x16xf32> to vector<32x16xf32>
    %cst_90 = arith.constant dense<0.000000e+00> : vector<16x16xf32>
    %88 = tpu.matmul %85, %87, %cst_90 {dimension_numbers = #tpu.dot_dimension_numbers<[1], [0], [0], [1], [0, 0, 1, 1], [], []>} : vector<16x32xf32>, vector<32x16xf32>, vector<16x16xf32> -> vector<16x16xf32>
    %89 = arith.addf %84, %88 : vector<16x16xf32>
    %c6 = arith.constant 6 : index
    %c0_91 = arith.constant 0 : index
    %90 = vector.load %arg19[%c6, %c0_91] : memref<22x32xf32, #tpu.memory_space<vmem>>, vector<16x32xf32>
    %c6_92 = arith.constant 6 : index
    %c0_93 = arith.constant 0 : index
    %c0_94 = arith.constant 0 : index
    %91 = vector.load %arg12[%c6_92, %c0_93, %c0_94] : memref<7x32x16xf32, #tpu.memory_space<vmem>>, vector<1x32x16xf32>
    %92 = vector.shape_cast %91 : vector<1x32x16xf32> to vector<32x16xf32>
    %cst_95 = arith.constant dense<0.000000e+00> : vector<16x16xf32>
    %93 = tpu.matmul %90, %92, %cst_95 {dimension_numbers = #tpu.dot_dimension_numbers<[1], [0], [0], [1], [0, 0, 1, 1], [], []>} : vector<16x32xf32>, vector<32x16xf32>, vector<16x16xf32> -> vector<16x16xf32>
    %94 = arith.addf %89, %93 : vector<16x16xf32>
    %95 = arith.negf %94 : vector<16x16xf32>
    %96 = math.exp %95 : vector<16x16xf32>
    %cst_96 = arith.constant 1.000000e+00 : f32
    %97 = vector.broadcast %cst_96 : f32 to vector<16x16xf32>
    %98 = arith.addf %97, %96 : vector<16x16xf32>
    %99 = arith.divf %97, %98 : vector<16x16xf32>
    %c0_97 = arith.constant 0 : index
    %c0_98 = arith.constant 0 : index
    %100 = vector.load %arg13[%c0_97, %c0_98] : memref<16x256xf32, #tpu.memory_space<vmem>>, vector<16x256xf32>
    %cst_99 = arith.constant dense<0.000000e+00> : vector<16x256xf32>
    %101 = tpu.matmul %99, %100, %cst_99 {dimension_numbers = #tpu.dot_dimension_numbers<[1], [0], [0], [1], [0, 0, 1, 1], [], []>} : vector<16x16xf32>, vector<16x256xf32>, vector<16x256xf32> -> vector<16x256xf32>
    %c0_100 = arith.constant 0 : index
    %c0_101 = arith.constant 0 : index
    %102 = vector.load %arg14[%c0_100, %c0_101] : memref<1x256xf32, #tpu.memory_space<vmem>>, vector<1x256xf32>
    %103 = vector.broadcast %102 : vector<1x256xf32> to vector<16x256xf32>
    %104 = arith.addf %101, %103 : vector<16x256xf32>
    %105 = arith.mulf %104, %42 : vector<16x256xf32>
    %106 = arith.addf %105, %12 : vector<16x256xf32>
    %cst_102 = arith.constant 0.000000e+00 : f32
    %107 = vector.broadcast %cst_102 : f32 to vector<16x256xf32>
    %108 = arith.maximumf %106, %107 : vector<16x256xf32>
    %109 = vector.shape_cast %108 : vector<16x256xf32> to vector<1x16x256xf32>
    %c0_103 = arith.constant 0 : index
    %c0_104 = arith.constant 0 : index
    %c0_105 = arith.constant 0 : index
    %110 = vector.load %arg16[%c0_103, %c0_104, %c0_105] : memref<1x16x256xf32, #tpu.memory_space<vmem>>, vector<1x16x256xf32>
    tpu.vector_store %arg16[%c0_103, %c0_104, %c0_105], %109 {strides = array<i32>} : memref<1x16x256xf32, #tpu.memory_space<vmem>>, vector<1x16x256xf32>,
    return
  }
  func.func @transform_0(%arg0: i32) -> (i32, i32, i32) {
    %c0_i32 = arith.constant 0 : i32
    %c0_i32_0 = arith.constant 0 : i32
    %c0_i32_1 = arith.constant 0 : i32
    return %arg0, %c0_i32, %c0_i32_0 : i32, i32, i32
  }
  func.func @transform_1(%arg0: i32) -> (i32, i32) {
    %c0_i32 = arith.constant 0 : i32
    %c0_i32_0 = arith.constant 0 : i32
    %c0_i32_1 = arith.constant 0 : i32
    return %c0_i32, %c0_i32_0 : i32, i32
  }
  func.func @transform_2(%arg0: i32) -> (i32, i32) {
    %c0_i32 = arith.constant 0 : i32
    %c0_i32_0 = arith.constant 0 : i32
    %c0_i32_1 = arith.constant 0 : i32
    return %c0_i32, %c0_i32_0 : i32, i32
  }
  func.func @transform_3(%arg0: i32) -> (i32, i32) {
    %c0_i32 = arith.constant 0 : i32
    %c0_i32_0 = arith.constant 0 : i32
    %c0_i32_1 = arith.constant 0 : i32
    return %c0_i32, %c0_i32_0 : i32, i32
  }
  func.func @transform_4(%arg0: i32) -> (i32, i32) {
    %c0_i32 = arith.constant 0 : i32
    %c0_i32_0 = arith.constant 0 : i32
    %c0_i32_1 = arith.constant 0 : i32
    return %c0_i32, %c0_i32_0 : i32, i32
  }
  func.func @transform_5(%arg0: i32) -> (i32, i32) {
    %c0_i32 = arith.constant 0 : i32
    %c0_i32_0 = arith.constant 0 : i32
    %c0_i32_1 = arith.constant 0 : i32
    return %c0_i32, %c0_i32_0 : i32, i32
  }
  func.func @transform_6(%arg0: i32) -> (i32, i32) {
    %c0_i32 = arith.constant 0 : i32
    %c0_i32_0 = arith.constant 0 : i32
    %c0_i32_1 = arith.constant 0 : i32
    return %c0_i32, %c0_i32_0 : i32, i32
  }
  func.func @transform_7(%arg0: i32) -> (i32, i32) {
    %c0_i32 = arith.constant 0 : i32
    %c0_i32_0 = arith.constant 0 : i32
    %c0_i32_1 = arith.constant 0 : i32
    return %c0_i32, %c0_i32_0 : i32, i32
  }
  func.func @transform_8(%arg0: i32) -> (i32, i32) {
    %c0_i32 = arith.constant 0 : i32
    %c0_i32_0 = arith.constant 0 : i32
    %c0_i32_1 = arith.constant 0 : i32
    return %c0_i32, %c0_i32_0 : i32, i32
  }
  func.func @transform_9(%arg0: i32) -> (i32, i32) {
    %c0_i32 = arith.constant 0 : i32
    %c0_i32_0 = arith.constant 0 : i32
    %c0_i32_1 = arith.constant 0 : i32
    return %c0_i32, %c0_i32_0 : i32, i32
  }
  func.func @transform_10(%arg0: i32) -> (i32, i32) {
    %c0_i32 = arith.constant 0 : i32
    %c0_i32_0 = arith.constant 0 : i32
    %c0_i32_1 = arith.constant 0 : i32
    return %c0_i32, %c0_i32_0 : i32, i32
  }
  func.func @transform_11(%arg0: i32) -> (i32, i32, i32) {
    %c0_i32 = arith.constant 0 : i32
    %c0_i32_0 = arith.constant 0 : i32
    %c0_i32_1 = arith.constant 0 : i32
    %c0_i32_2 = arith.constant 0 : i32
    return %c0_i32, %c0_i32_0, %c0_i32_1 : i32, i32, i32
  }
  func.func @transform_12(%arg0: i32) -> (i32, i32) {
    %c0_i32 = arith.constant 0 : i32
    %c0_i32_0 = arith.constant 0 : i32
    %c0_i32_1 = arith.constant 0 : i32
    return %c0_i32, %c0_i32_0 : i32, i32
  }
  func.func @transform_13(%arg0: i32) -> (i32, i32) {
    %c0_i32 = arith.constant 0 : i32
    %c0_i32_0 = arith.constant 0 : i32
    %c0_i32_1 = arith.constant 0 : i32
    return %c0_i32, %c0_i32_0 : i32, i32
  }
  func.func @transform_14(%arg0: i32) -> (i32, i32) {
    %c0_i32 = arith.constant 0 : i32
    %c0_i32_0 = arith.constant 0 : i32
    %c0_i32_1 = arith.constant 0 : i32
    return %c0_i32, %c0_i32_0 : i32, i32
  }
  func.func @transform_15(%arg0: i32) -> (i32, i32, i32) {
    %c0_i32 = arith.constant 0 : i32
    %c0_i32_0 = arith.constant 0 : i32
    %c0_i32_1 = arith.constant 0 : i32
    return %arg0, %c0_i32, %c0_i32_0 : i32, i32, i32
  }
}

module attributes {stable_mosaic.version = 11 : i64} {
  func.func @_res_sp_block_kernel(%arg0: i32, %arg1: memref<1x16x256xf32, #tpu.memory_space<vmem>>, %arg2: memref<256x256xf32, #tpu.memory_space<vmem>>, %arg3: memref<256x256xf32, #tpu.memory_space<vmem>>, %arg4: memref<256x256xf32, #tpu.memory_space<vmem>>, %arg5: memref<1x256xf32, #tpu.memory_space<vmem>>, %arg6: memref<256x256xf32, #tpu.memory_space<vmem>>, %arg7: memref<256x256xf32, #tpu.memory_space<vmem>>, %arg8: memref<256x256xf32, #tpu.memory_space<vmem>>, %arg9: memref<1x256xf32, #tpu.memory_space<vmem>>, %arg10: memref<256x32xf32, #tpu.memory_space<vmem>>, %arg11: memref<256x32xf32, #tpu.memory_space<vmem>>, %arg12: memref<7x32x16xf32, #tpu.memory_space<vmem>>, %arg13: memref<16x256xf32, #tpu.memory_space<vmem>>, %arg14: memref<1x256xf32, #tpu.memory_space<vmem>>, %arg15: memref<1x16x256xf32, #tpu.memory_space<vmem>>, %arg16: memref<18x256xf32, #tpu.memory_space<vmem>>, %arg17: memref<18x256xf32, #tpu.memory_space<vmem>>, %arg18: memref<22x32xf32, #tpu.memory_space<vmem>>) attributes {dimension_semantics = [#tpu.dimension_semantics<parallel>], iteration_bounds = array<i64: 2>, scalar_prefetch = 0 : i64, scratch_operands = 3 : i64, tpu.core_type = #tpu.core_type<tc>, window_params = [{transform_indices = @transform_0, window_bounds = array<i64: 1, 16, 256>}, {pipeline_mode = #tpu.pipeline_mode<synchronous>, transform_indices = @transform_1, window_bounds = array<i64: 256, 256>}, {pipeline_mode = #tpu.pipeline_mode<synchronous>, transform_indices = @transform_2, window_bounds = array<i64: 256, 256>}, {pipeline_mode = #tpu.pipeline_mode<synchronous>, transform_indices = @transform_3, window_bounds = array<i64: 256, 256>}, {pipeline_mode = #tpu.pipeline_mode<synchronous>, transform_indices = @transform_4, window_bounds = array<i64: 1, 256>}, {pipeline_mode = #tpu.pipeline_mode<synchronous>, transform_indices = @transform_5, window_bounds = array<i64: 256, 256>}, {pipeline_mode = #tpu.pipeline_mode<synchronous>, transform_indices = @transform_6, window_bounds = array<i64: 256, 256>}, {pipeline_mode = #tpu.pipeline_mode<synchronous>, transform_indices = @transform_7, window_bounds = array<i64: 256, 256>}, {pipeline_mode = #tpu.pipeline_mode<synchronous>, transform_indices = @transform_8, window_bounds = array<i64: 1, 256>}, {pipeline_mode = #tpu.pipeline_mode<synchronous>, transform_indices = @transform_9, window_bounds = array<i64: 256, 32>}, {pipeline_mode = #tpu.pipeline_mode<synchronous>, transform_indices = @transform_10, window_bounds = array<i64: 256, 32>}, {pipeline_mode = #tpu.pipeline_mode<synchronous>, transform_indices = @transform_11, window_bounds = array<i64: 7, 32, 16>}, {pipeline_mode = #tpu.pipeline_mode<synchronous>, transform_indices = @transform_12, window_bounds = array<i64: 16, 256>}, {pipeline_mode = #tpu.pipeline_mode<synchronous>, transform_indices = @transform_13, window_bounds = array<i64: 1, 256>}, {transform_indices = @transform_14, window_bounds = array<i64: 1, 16, 256>}]} {
    %c0 = arith.constant 0 : index
    %c0_0 = arith.constant 0 : index
    %c0_1 = arith.constant 0 : index
    %0 = vector.load %arg1[%c0, %c0_0, %c0_1] : memref<1x16x256xf32, #tpu.memory_space<vmem>>, vector<1x16x256xf32>
    %1 = vector.shape_cast %0 : vector<1x16x256xf32> to vector<16x256xf32>
    %cst = arith.constant 0.000000e+00 : f32
    %2 = vector.broadcast %cst : f32 to vector<1x256xf32>
    %c0_2 = arith.constant 0 : index
    %c0_3 = arith.constant 0 : index
    %3 = vector.load %arg16[%c0_2, %c0_3] : memref<18x256xf32, #tpu.memory_space<vmem>>, vector<1x256xf32>
    tpu.vector_store %arg16[%c0_2, %c0_3], %2 {strides = array<i32>} : memref<18x256xf32, #tpu.memory_space<vmem>>, vector<1x256xf32>,
    %c17 = arith.constant 17 : index
    %c0_4 = arith.constant 0 : index
    %4 = vector.load %arg16[%c17, %c0_4] : memref<18x256xf32, #tpu.memory_space<vmem>>, vector<1x256xf32>
    tpu.vector_store %arg16[%c17, %c0_4], %2 {strides = array<i32>} : memref<18x256xf32, #tpu.memory_space<vmem>>, vector<1x256xf32>,
    %c1 = arith.constant 1 : index
    %c0_5 = arith.constant 0 : index
    %5 = vector.load %arg16[%c1, %c0_5] : memref<18x256xf32, #tpu.memory_space<vmem>>, vector<16x256xf32>
    tpu.vector_store %arg16[%c1, %c0_5], %1 {strides = array<i32>} : memref<18x256xf32, #tpu.memory_space<vmem>>, vector<16x256xf32>,
    %c0_6 = arith.constant 0 : index
    %c0_7 = arith.constant 0 : index
    %6 = vector.load %arg3[%c0_6, %c0_7] : memref<256x256xf32, #tpu.memory_space<vmem>>, vector<256x256xf32>
    %cst_8 = arith.constant dense<0.000000e+00> : vector<16x256xf32>
    %7 = tpu.matmul %1, %6, %cst_8 {dimension_numbers = #tpu.dot_dimension_numbers<[1], [0], [0], [1], [0, 0, 1, 1], [], []>} : vector<16x256xf32>, vector<256x256xf32>, vector<16x256xf32> -> vector<16x256xf32>
    %c0_9 = arith.constant 0 : index
    %c0_10 = arith.constant 0 : index
    %8 = vector.load %arg16[%c0_9, %c0_10] : memref<18x256xf32, #tpu.memory_space<vmem>>, vector<16x256xf32>
    %c0_11 = arith.constant 0 : index
    %c0_12 = arith.constant 0 : index
    %9 = vector.load %arg2[%c0_11, %c0_12] : memref<256x256xf32, #tpu.memory_space<vmem>>, vector<256x256xf32>
    %cst_13 = arith.constant dense<0.000000e+00> : vector<16x256xf32>
    %10 = tpu.matmul %8, %9, %cst_13 {dimension_numbers = #tpu.dot_dimension_numbers<[1], [0], [0], [1], [0, 0, 1, 1], [], []>} : vector<16x256xf32>, vector<256x256xf32>, vector<16x256xf32> -> vector<16x256xf32>
    %11 = arith.addf %7, %10 : vector<16x256xf32>
    %c2 = arith.constant 2 : index
    %c0_14 = arith.constant 0 : index
    %12 = vector.load %arg16[%c2, %c0_14] : memref<18x256xf32, #tpu.memory_space<vmem>>, vector<16x256xf32>
    %c0_15 = arith.constant 0 : index
    %c0_16 = arith.constant 0 : index
    %13 = vector.load %arg4[%c0_15, %c0_16] : memref<256x256xf32, #tpu.memory_space<vmem>>, vector<256x256xf32>
    %cst_17 = arith.constant dense<0.000000e+00> : vector<16x256xf32>
    %14 = tpu.matmul %12, %13, %cst_17 {dimension_numbers = #tpu.dot_dimension_numbers<[1], [0], [0], [1], [0, 0, 1, 1], [], []>} : vector<16x256xf32>, vector<256x256xf32>, vector<16x256xf32> -> vector<16x256xf32>
    %15 = arith.addf %11, %14 : vector<16x256xf32>
    %c0_18 = arith.constant 0 : index
    %c0_19 = arith.constant 0 : index
    %16 = vector.load %arg5[%c0_18, %c0_19] : memref<1x256xf32, #tpu.memory_space<vmem>>, vector<1x256xf32>
    %17 = vector.broadcast %16 : vector<1x256xf32> to vector<16x256xf32>
    %18 = arith.addf %15, %17 : vector<16x256xf32>
    %cst_20 = arith.constant 0.000000e+00 : f32
    %19 = vector.broadcast %cst_20 : f32 to vector<16x256xf32>
    %20 = arith.maximumf %18, %19 : vector<16x256xf32>
    %cst_21 = arith.constant 0.000000e+00 : f32
    %21 = vector.broadcast %cst_21 : f32 to vector<1x256xf32>
    %c0_22 = arith.constant 0 : index
    %c0_23 = arith.constant 0 : index
    %22 = vector.load %arg17[%c0_22, %c0_23] : memref<18x256xf32, #tpu.memory_space<vmem>>, vector<1x256xf32>
    tpu.vector_store %arg17[%c0_22, %c0_23], %21 {strides = array<i32>} : memref<18x256xf32, #tpu.memory_space<vmem>>, vector<1x256xf32>,
    %c17_24 = arith.constant 17 : index
    %c0_25 = arith.constant 0 : index
    %23 = vector.load %arg17[%c17_24, %c0_25] : memref<18x256xf32, #tpu.memory_space<vmem>>, vector<1x256xf32>
    tpu.vector_store %arg17[%c17_24, %c0_25], %21 {strides = array<i32>} : memref<18x256xf32, #tpu.memory_space<vmem>>, vector<1x256xf32>,
    %c1_26 = arith.constant 1 : index
    %c0_27 = arith.constant 0 : index
    %24 = vector.load %arg17[%c1_26, %c0_27] : memref<18x256xf32, #tpu.memory_space<vmem>>, vector<16x256xf32>
    tpu.vector_store %arg17[%c1_26, %c0_27], %20 {strides = array<i32>} : memref<18x256xf32, #tpu.memory_space<vmem>>, vector<16x256xf32>,
    %c0_28 = arith.constant 0 : index
    %c0_29 = arith.constant 0 : index
    %25 = vector.load %arg7[%c0_28, %c0_29] : memref<256x256xf32, #tpu.memory_space<vmem>>, vector<256x256xf32>
    %cst_30 = arith.constant dense<0.000000e+00> : vector<16x256xf32>
    %26 = tpu.matmul %20, %25, %cst_30 {dimension_numbers = #tpu.dot_dimension_numbers<[1], [0], [0], [1], [0, 0, 1, 1], [], []>} : vector<16x256xf32>, vector<256x256xf32>, vector<16x256xf32> -> vector<16x256xf32>
    %c0_31 = arith.constant 0 : index
    %c0_32 = arith.constant 0 : index
    %27 = vector.load %arg17[%c0_31, %c0_32] : memref<18x256xf32, #tpu.memory_space<vmem>>, vector<16x256xf32>
    %c0_33 = arith.constant 0 : index
    %c0_34 = arith.constant 0 : index
    %28 = vector.load %arg6[%c0_33, %c0_34] : memref<256x256xf32, #tpu.memory_space<vmem>>, vector<256x256xf32>
    %cst_35 = arith.constant dense<0.000000e+00> : vector<16x256xf32>
    %29 = tpu.matmul %27, %28, %cst_35 {dimension_numbers = #tpu.dot_dimension_numbers<[1], [0], [0], [1], [0, 0, 1, 1], [], []>} : vector<16x256xf32>, vector<256x256xf32>, vector<16x256xf32> -> vector<16x256xf32>
    %30 = arith.addf %26, %29 : vector<16x256xf32>
    %c2_36 = arith.constant 2 : index
    %c0_37 = arith.constant 0 : index
    %31 = vector.load %arg17[%c2_36, %c0_37] : memref<18x256xf32, #tpu.memory_space<vmem>>, vector<16x256xf32>
    %c0_38 = arith.constant 0 : index
    %c0_39 = arith.constant 0 : index
    %32 = vector.load %arg8[%c0_38, %c0_39] : memref<256x256xf32, #tpu.memory_space<vmem>>, vector<256x256xf32>
    %cst_40 = arith.constant dense<0.000000e+00> : vector<16x256xf32>
    %33 = tpu.matmul %31, %32, %cst_40 {dimension_numbers = #tpu.dot_dimension_numbers<[1], [0], [0], [1], [0, 0, 1, 1], [], []>} : vector<16x256xf32>, vector<256x256xf32>, vector<16x256xf32> -> vector<16x256xf32>
    %34 = arith.addf %30, %33 : vector<16x256xf32>
    %c0_41 = arith.constant 0 : index
    %c0_42 = arith.constant 0 : index
    %35 = vector.load %arg9[%c0_41, %c0_42] : memref<1x256xf32, #tpu.memory_space<vmem>>, vector<1x256xf32>
    %36 = vector.broadcast %35 : vector<1x256xf32> to vector<16x256xf32>
    %37 = arith.addf %34, %36 : vector<16x256xf32>
    %c1_i32 = arith.constant 1 : i32
    %38 = tpu.dynamic_rotate %37 by %c1_i32 dim 1 : vector<16x256xf32>, i32 -> vector<16x256xf32>
    %39 = arith.maximumf %37, %38 : vector<16x256xf32>
    %c2_i32 = arith.constant 2 : i32
    %40 = tpu.dynamic_rotate %39 by %c2_i32 dim 1 : vector<16x256xf32>, i32 -> vector<16x256xf32>
    %41 = arith.maximumf %39, %40 : vector<16x256xf32>
    %c4_i32 = arith.constant 4 : i32
    %42 = tpu.dynamic_rotate %41 by %c4_i32 dim 1 : vector<16x256xf32>, i32 -> vector<16x256xf32>
    %43 = arith.maximumf %41, %42 : vector<16x256xf32>
    %c8_i32 = arith.constant 8 : i32
    %44 = tpu.dynamic_rotate %43 by %c8_i32 dim 1 : vector<16x256xf32>, i32 -> vector<16x256xf32>
    %45 = arith.maximumf %43, %44 : vector<16x256xf32>
    %c0_43 = arith.constant 0 : index
    %c0_44 = arith.constant 0 : index
    %46 = vector.load %arg10[%c0_43, %c0_44] : memref<256x32xf32, #tpu.memory_space<vmem>>, vector<256x32xf32>
    %cst_45 = arith.constant dense<0.000000e+00> : vector<16x32xf32>
    %47 = tpu.matmul %37, %46, %cst_45 {dimension_numbers = #tpu.dot_dimension_numbers<[1], [0], [0], [1], [0, 0, 1, 1], [], []>} : vector<16x256xf32>, vector<256x32xf32>, vector<16x32xf32> -> vector<16x32xf32>
    %c0_46 = arith.constant 0 : index
    %c0_47 = arith.constant 0 : index
    %48 = vector.load %arg11[%c0_46, %c0_47] : memref<256x32xf32, #tpu.memory_space<vmem>>, vector<256x32xf32>
    %cst_48 = arith.constant dense<0.000000e+00> : vector<16x32xf32>
    %49 = tpu.matmul %45, %48, %cst_48 {dimension_numbers = #tpu.dot_dimension_numbers<[1], [0], [0], [1], [0, 0, 1, 1], [], []>} : vector<16x256xf32>, vector<256x32xf32>, vector<16x32xf32> -> vector<16x32xf32>
    %50 = arith.addf %47, %49 : vector<16x32xf32>
    %cst_49 = arith.constant 0.000000e+00 : f32
    %51 = vector.broadcast %cst_49 : f32 to vector<3x32xf32>
    %c0_50 = arith.constant 0 : index
    %c0_51 = arith.constant 0 : index
    %52 = vector.load %arg18[%c0_50, %c0_51] : memref<22x32xf32, #tpu.memory_space<vmem>>, vector<3x32xf32>
    tpu.vector_store %arg18[%c0_50, %c0_51], %51 {strides = array<i32>} : memref<22x32xf32, #tpu.memory_space<vmem>>, vector<3x32xf32>,
    %cst_52 = arith.constant 0.000000e+00 : f32
    %53 = vector.broadcast %cst_52 : f32 to vector<3x32xf32>
    %c19 = arith.constant 19 : index
    %c0_53 = arith.constant 0 : index
    %54 = vector.load %arg18[%c19, %c0_53] : memref<22x32xf32, #tpu.memory_space<vmem>>, vector<3x32xf32>
    tpu.vector_store %arg18[%c19, %c0_53], %53 {strides = array<i32>} : memref<22x32xf32, #tpu.memory_space<vmem>>, vector<3x32xf32>,
    %c3 = arith.constant 3 : index
    %c0_54 = arith.constant 0 : index
    %55 = vector.load %arg18[%c3, %c0_54] : memref<22x32xf32, #tpu.memory_space<vmem>>, vector<16x32xf32>
    tpu.vector_store %arg18[%c3, %c0_54], %50 {strides = array<i32>} : memref<22x32xf32, #tpu.memory_space<vmem>>, vector<16x32xf32>,
    %c0_55 = arith.constant 0 : index
    %c0_56 = arith.constant 0 : index
    %56 = vector.load %arg18[%c0_55, %c0_56] : memref<22x32xf32, #tpu.memory_space<vmem>>, vector<16x32xf32>
    %c0_57 = arith.constant 0 : index
    %c0_58 = arith.constant 0 : index
    %c0_59 = arith.constant 0 : index
    %57 = vector.load %arg12[%c0_57, %c0_58, %c0_59] : memref<7x32x16xf32, #tpu.memory_space<vmem>>, vector<1x32x16xf32>
    %58 = vector.shape_cast %57 : vector<1x32x16xf32> to vector<32x16xf32>
    %cst_60 = arith.constant dense<0.000000e+00> : vector<16x16xf32>
    %59 = tpu.matmul %56, %58, %cst_60 {dimension_numbers = #tpu.dot_dimension_numbers<[1], [0], [0], [1], [0, 0, 1, 1], [], []>} : vector<16x32xf32>, vector<32x16xf32>, vector<16x16xf32> -> vector<16x16xf32>
    %c1_61 = arith.constant 1 : index
    %c0_62 = arith.constant 0 : index
    %60 = vector.load %arg18[%c1_61, %c0_62] : memref<22x32xf32, #tpu.memory_space<vmem>>, vector<16x32xf32>
    %c1_63 = arith.constant 1 : index
    %c0_64 = arith.constant 0 : index
    %c0_65 = arith.constant 0 : index
    %61 = vector.load %arg12[%c1_63, %c0_64, %c0_65] : memref<7x32x16xf32, #tpu.memory_space<vmem>>, vector<1x32x16xf32>
    %62 = vector.shape_cast %61 : vector<1x32x16xf32> to vector<32x16xf32>
    %cst_66 = arith.constant dense<0.000000e+00> : vector<16x16xf32>
    %63 = tpu.matmul %60, %62, %cst_66 {dimension_numbers = #tpu.dot_dimension_numbers<[1], [0], [0], [1], [0, 0, 1, 1], [], []>} : vector<16x32xf32>, vector<32x16xf32>, vector<16x16xf32> -> vector<16x16xf32>
    %64 = arith.addf %59, %63 : vector<16x16xf32>
    %c2_67 = arith.constant 2 : index
    %c0_68 = arith.constant 0 : index
    %65 = vector.load %arg18[%c2_67, %c0_68] : memref<22x32xf32, #tpu.memory_space<vmem>>, vector<16x32xf32>
    %c2_69 = arith.constant 2 : index
    %c0_70 = arith.constant 0 : index
    %c0_71 = arith.constant 0 : index
    %66 = vector.load %arg12[%c2_69, %c0_70, %c0_71] : memref<7x32x16xf32, #tpu.memory_space<vmem>>, vector<1x32x16xf32>
    %67 = vector.shape_cast %66 : vector<1x32x16xf32> to vector<32x16xf32>
    %cst_72 = arith.constant dense<0.000000e+00> : vector<16x16xf32>
    %68 = tpu.matmul %65, %67, %cst_72 {dimension_numbers = #tpu.dot_dimension_numbers<[1], [0], [0], [1], [0, 0, 1, 1], [], []>} : vector<16x32xf32>, vector<32x16xf32>, vector<16x16xf32> -> vector<16x16xf32>
    %69 = arith.addf %64, %68 : vector<16x16xf32>
    %c3_73 = arith.constant 3 : index
    %c0_74 = arith.constant 0 : index
    %70 = vector.load %arg18[%c3_73, %c0_74] : memref<22x32xf32, #tpu.memory_space<vmem>>, vector<16x32xf32>
    %c3_75 = arith.constant 3 : index
    %c0_76 = arith.constant 0 : index
    %c0_77 = arith.constant 0 : index
    %71 = vector.load %arg12[%c3_75, %c0_76, %c0_77] : memref<7x32x16xf32, #tpu.memory_space<vmem>>, vector<1x32x16xf32>
    %72 = vector.shape_cast %71 : vector<1x32x16xf32> to vector<32x16xf32>
    %cst_78 = arith.constant dense<0.000000e+00> : vector<16x16xf32>
    %73 = tpu.matmul %70, %72, %cst_78 {dimension_numbers = #tpu.dot_dimension_numbers<[1], [0], [0], [1], [0, 0, 1, 1], [], []>} : vector<16x32xf32>, vector<32x16xf32>, vector<16x16xf32> -> vector<16x16xf32>
    %74 = arith.addf %69, %73 : vector<16x16xf32>
    %c4 = arith.constant 4 : index
    %c0_79 = arith.constant 0 : index
    %75 = vector.load %arg18[%c4, %c0_79] : memref<22x32xf32, #tpu.memory_space<vmem>>, vector<16x32xf32>
    %c4_80 = arith.constant 4 : index
    %c0_81 = arith.constant 0 : index
    %c0_82 = arith.constant 0 : index
    %76 = vector.load %arg12[%c4_80, %c0_81, %c0_82] : memref<7x32x16xf32, #tpu.memory_space<vmem>>, vector<1x32x16xf32>
    %77 = vector.shape_cast %76 : vector<1x32x16xf32> to vector<32x16xf32>
    %cst_83 = arith.constant dense<0.000000e+00> : vector<16x16xf32>
    %78 = tpu.matmul %75, %77, %cst_83 {dimension_numbers = #tpu.dot_dimension_numbers<[1], [0], [0], [1], [0, 0, 1, 1], [], []>} : vector<16x32xf32>, vector<32x16xf32>, vector<16x16xf32> -> vector<16x16xf32>
    %79 = arith.addf %74, %78 : vector<16x16xf32>
    %c5 = arith.constant 5 : index
    %c0_84 = arith.constant 0 : index
    %80 = vector.load %arg18[%c5, %c0_84] : memref<22x32xf32, #tpu.memory_space<vmem>>, vector<16x32xf32>
    %c5_85 = arith.constant 5 : index
    %c0_86 = arith.constant 0 : index
    %c0_87 = arith.constant 0 : index
    %81 = vector.load %arg12[%c5_85, %c0_86, %c0_87] : memref<7x32x16xf32, #tpu.memory_space<vmem>>, vector<1x32x16xf32>
    %82 = vector.shape_cast %81 : vector<1x32x16xf32> to vector<32x16xf32>
    %cst_88 = arith.constant dense<0.000000e+00> : vector<16x16xf32>
    %83 = tpu.matmul %80, %82, %cst_88 {dimension_numbers = #tpu.dot_dimension_numbers<[1], [0], [0], [1], [0, 0, 1, 1], [], []>} : vector<16x32xf32>, vector<32x16xf32>, vector<16x16xf32> -> vector<16x16xf32>
    %84 = arith.addf %79, %83 : vector<16x16xf32>
    %c6 = arith.constant 6 : index
    %c0_89 = arith.constant 0 : index
    %85 = vector.load %arg18[%c6, %c0_89] : memref<22x32xf32, #tpu.memory_space<vmem>>, vector<16x32xf32>
    %c6_90 = arith.constant 6 : index
    %c0_91 = arith.constant 0 : index
    %c0_92 = arith.constant 0 : index
    %86 = vector.load %arg12[%c6_90, %c0_91, %c0_92] : memref<7x32x16xf32, #tpu.memory_space<vmem>>, vector<1x32x16xf32>
    %87 = vector.shape_cast %86 : vector<1x32x16xf32> to vector<32x16xf32>
    %cst_93 = arith.constant dense<0.000000e+00> : vector<16x16xf32>
    %88 = tpu.matmul %85, %87, %cst_93 {dimension_numbers = #tpu.dot_dimension_numbers<[1], [0], [0], [1], [0, 0, 1, 1], [], []>} : vector<16x32xf32>, vector<32x16xf32>, vector<16x16xf32> -> vector<16x16xf32>
    %89 = arith.addf %84, %88 : vector<16x16xf32>
    %90 = arith.negf %89 : vector<16x16xf32>
    %91 = math.exp %90 : vector<16x16xf32>
    %cst_94 = arith.constant 1.000000e+00 : f32
    %92 = vector.broadcast %cst_94 : f32 to vector<16x16xf32>
    %93 = arith.addf %92, %91 : vector<16x16xf32>
    %94 = arith.divf %92, %93 : vector<16x16xf32>
    %c0_95 = arith.constant 0 : index
    %c0_96 = arith.constant 0 : index
    %95 = vector.load %arg13[%c0_95, %c0_96] : memref<16x256xf32, #tpu.memory_space<vmem>>, vector<16x256xf32>
    %cst_97 = arith.constant dense<0.000000e+00> : vector<16x256xf32>
    %96 = tpu.matmul %94, %95, %cst_97 {dimension_numbers = #tpu.dot_dimension_numbers<[1], [0], [0], [1], [0, 0, 1, 1], [], []>} : vector<16x16xf32>, vector<16x256xf32>, vector<16x256xf32> -> vector<16x256xf32>
    %c0_98 = arith.constant 0 : index
    %c0_99 = arith.constant 0 : index
    %97 = vector.load %arg14[%c0_98, %c0_99] : memref<1x256xf32, #tpu.memory_space<vmem>>, vector<1x256xf32>
    %98 = vector.broadcast %97 : vector<1x256xf32> to vector<16x256xf32>
    %99 = arith.addf %96, %98 : vector<16x256xf32>
    %100 = arith.mulf %99, %37 : vector<16x256xf32>
    %101 = arith.addf %100, %1 : vector<16x256xf32>
    %cst_100 = arith.constant 0.000000e+00 : f32
    %102 = vector.broadcast %cst_100 : f32 to vector<16x256xf32>
    %103 = arith.maximumf %101, %102 : vector<16x256xf32>
    %104 = vector.shape_cast %103 : vector<16x256xf32> to vector<1x16x256xf32>
    %c0_101 = arith.constant 0 : index
    %c0_102 = arith.constant 0 : index
    %c0_103 = arith.constant 0 : index
    %105 = vector.load %arg15[%c0_101, %c0_102, %c0_103] : memref<1x16x256xf32, #tpu.memory_space<vmem>>, vector<1x16x256xf32>
    tpu.vector_store %arg15[%c0_101, %c0_102, %c0_103], %104 {strides = array<i32>} : memref<1x16x256xf32, #tpu.memory_space<vmem>>, vector<1x16x256xf32>,
    return
  }
  func.func @transform_0(%arg0: i32) -> (i32, i32, i32) {
    %c0_i32 = arith.constant 0 : i32
    %c0_i32_0 = arith.constant 0 : i32
    %c0_i32_1 = arith.constant 0 : i32
    return %arg0, %c0_i32, %c0_i32_0 : i32, i32, i32
  }
  func.func @transform_1(%arg0: i32) -> (i32, i32) {
    %c0_i32 = arith.constant 0 : i32
    %c0_i32_0 = arith.constant 0 : i32
    %c0_i32_1 = arith.constant 0 : i32
    return %c0_i32, %c0_i32_0 : i32, i32
  }
  func.func @transform_2(%arg0: i32) -> (i32, i32) {
    %c0_i32 = arith.constant 0 : i32
    %c0_i32_0 = arith.constant 0 : i32
    %c0_i32_1 = arith.constant 0 : i32
    return %c0_i32, %c0_i32_0 : i32, i32
  }
  func.func @transform_3(%arg0: i32) -> (i32, i32) {
    %c0_i32 = arith.constant 0 : i32
    %c0_i32_0 = arith.constant 0 : i32
    %c0_i32_1 = arith.constant 0 : i32
    return %c0_i32, %c0_i32_0 : i32, i32
  }
  func.func @transform_4(%arg0: i32) -> (i32, i32) {
    %c0_i32 = arith.constant 0 : i32
    %c0_i32_0 = arith.constant 0 : i32
    %c0_i32_1 = arith.constant 0 : i32
    return %c0_i32, %c0_i32_0 : i32, i32
  }
  func.func @transform_5(%arg0: i32) -> (i32, i32) {
    %c0_i32 = arith.constant 0 : i32
    %c0_i32_0 = arith.constant 0 : i32
    %c0_i32_1 = arith.constant 0 : i32
    return %c0_i32, %c0_i32_0 : i32, i32
  }
  func.func @transform_6(%arg0: i32) -> (i32, i32) {
    %c0_i32 = arith.constant 0 : i32
    %c0_i32_0 = arith.constant 0 : i32
    %c0_i32_1 = arith.constant 0 : i32
    return %c0_i32, %c0_i32_0 : i32, i32
  }
  func.func @transform_7(%arg0: i32) -> (i32, i32) {
    %c0_i32 = arith.constant 0 : i32
    %c0_i32_0 = arith.constant 0 : i32
    %c0_i32_1 = arith.constant 0 : i32
    return %c0_i32, %c0_i32_0 : i32, i32
  }
  func.func @transform_8(%arg0: i32) -> (i32, i32) {
    %c0_i32 = arith.constant 0 : i32
    %c0_i32_0 = arith.constant 0 : i32
    %c0_i32_1 = arith.constant 0 : i32
    return %c0_i32, %c0_i32_0 : i32, i32
  }
  func.func @transform_9(%arg0: i32) -> (i32, i32) {
    %c0_i32 = arith.constant 0 : i32
    %c0_i32_0 = arith.constant 0 : i32
    %c0_i32_1 = arith.constant 0 : i32
    return %c0_i32, %c0_i32_0 : i32, i32
  }
  func.func @transform_10(%arg0: i32) -> (i32, i32) {
    %c0_i32 = arith.constant 0 : i32
    %c0_i32_0 = arith.constant 0 : i32
    %c0_i32_1 = arith.constant 0 : i32
    return %c0_i32, %c0_i32_0 : i32, i32
  }
  func.func @transform_11(%arg0: i32) -> (i32, i32, i32) {
    %c0_i32 = arith.constant 0 : i32
    %c0_i32_0 = arith.constant 0 : i32
    %c0_i32_1 = arith.constant 0 : i32
    %c0_i32_2 = arith.constant 0 : i32
    return %c0_i32, %c0_i32_0, %c0_i32_1 : i32, i32, i32
  }
  func.func @transform_12(%arg0: i32) -> (i32, i32) {
    %c0_i32 = arith.constant 0 : i32
    %c0_i32_0 = arith.constant 0 : i32
    %c0_i32_1 = arith.constant 0 : i32
    return %c0_i32, %c0_i32_0 : i32, i32
  }
  func.func @transform_13(%arg0: i32) -> (i32, i32) {
    %c0_i32 = arith.constant 0 : i32
    %c0_i32_0 = arith.constant 0 : i32
    %c0_i32_1 = arith.constant 0 : i32
    return %c0_i32, %c0_i32_0 : i32, i32
  }
  func.func @transform_14(%arg0: i32) -> (i32, i32, i32) {
    %c0_i32 = arith.constant 0 : i32
    %c0_i32_0 = arith.constant 0 : i32
    %c0_i32_1 = arith.constant 0 : i32
    return %arg0, %c0_i32, %c0_i32_0 : i32, i32, i32
  }
}

</mosaic_0001>

<llo_original>
// kernel: _lambda_.3
$region0: #{_lambda_.3}
  #allocation0 [shape = 'u32[]', space=smem, size = 0x4, offset = 0x4, fixed_abs, tag = 'smem constant byte address 0x4 - core index']
  #allocation1 [shape = 'u32[144,128]{1,0:T(1,128)}', space=vmem, size = 0x12000, scoped, tag = 'internal scratch']
  #allocation2 [shape = 'f32[18,256]{1,0:T(8,128)}', space=vmem, size = 0x6000, scoped, tag = 'scratch operand']
  #allocation3 [shape = 'f32[18,256]{1,0:T(8,128)}', space=vmem, size = 0x6000, scoped, tag = 'scratch operand']
  #allocation4 [shape = 'f32[22,32]{1,0:T(8,128)}', space=vmem, size = 0x3000, scoped, tag = 'scratch operand']
  %s0 = inlined_call_operand.vmem [shape: f32[2,16,256], index: 0, kind: input, shape index: {}]
  %s1 = inlined_call_operand.hbm [shape: f32[256,256], index: 1, kind: input, shape index: {}]
  %s2 = inlined_call_operand.vmem [shape: f32[256,256], index: 2, kind: input, shape index: {}]
  %s3 = inlined_call_operand.vmem [shape: f32[256,256], index: 3, kind: input, shape index: {}]
  %s4 = inlined_call_operand.vmem [shape: f32[1,256], index: 4, kind: input, shape index: {}]
  %s5 = inlined_call_operand.vmem [shape: f32[256,256], index: 5, kind: input, shape index: {}]
  %s6 = inlined_call_operand.vmem [shape: f32[256,256], index: 6, kind: input, shape index: {}]
  %s7 = inlined_call_operand.vmem [shape: f32[256,256], index: 7, kind: input, shape index: {}]
  %s8 = inlined_call_operand.vmem [shape: f32[1,256], index: 8, kind: input, shape index: {}]
  %s9 = inlined_call_operand.vmem [shape: f32[256,32], index: 9, kind: input, shape index: {}]
  %s10 = inlined_call_operand.vmem [shape: f32[256,32], index: 10, kind: input, shape index: {}]
  %s11 = inlined_call_operand.vmem [shape: f32[7,32,16], index: 11, kind: input, shape index: {}]
  %s12 = inlined_call_operand.vmem [shape: f32[16,256], index: 12, kind: input, shape index: {}]
  %s13 = inlined_call_operand.vmem [shape: f32[1,256], index: 13, kind: input, shape index: {}]
  %s14 = inlined_call_operand.vmem [shape: f32[2,16,256], index: 14, kind: output, shape index: {}]
  %s15 = sld [smem:[#allocation0]]
  $region93: #{_lambda_.3} parent=0
    _
  %s17 = ssub.s32 1, %s15
  %s18 = scalar_select 0, %s17, %s15
  $region1: #{_lambda_.3} parent=0
    #allocation5 [shape = 'u8[262144]{0}', space=vmem, size = 0x40000, scoped, tag = 'input window, operand 1, single buffered']
    #allocation6 [shape = 's32[2]{0}', space=sflag, size = 0x8, scoped, tag = 'scoped memory for _lambda_.3']
    %19 = vsyncpa [#allocation6], 0
    loop: start=0, step=1, limit=4
    $region2: #{_lambda_.3} parent=1 // loop_pre_header
      _
    $region3: #{_lambda_.3} parent=1 // loop_header
      %s21 = sphi 0, %s25
      %p22 = scmp.ge.s32.totalorder %s21, 4
      %s31 = sphi 0, %s33
      %s34 = sphi 0, %s31
      %s35 = sphi 0, %s34
      %s51 = sphi 0, %s35
      %s55 = sphi 0, %s55
      %s57 = sphi 0, %s55
      %s58 = sphi 0, %s57
      %s72 = sphi 0, %s58
      %s76 = sphi 0, %s76
      %s78 = sphi 0, %s76
      %s79 = sphi 0, %s78
      %s93 = sphi 0, %s79
      %s97 = sphi 0, %s97
      %s99 = sphi 0, %s97
      %s100 = sphi 0, %s99
      %s114 = sphi 0, %s100
      %s118 = sphi 0, %s118
      %s120 = sphi 0, %s118
      %s121 = sphi 0, %s120
      %s135 = sphi 0, %s121
      %s139 = sphi 0, %s139
      %s141 = sphi 0, %s139
      %s142 = sphi 0, %s141
      %s156 = sphi 0, %s142
      %s160 = sphi 0, %s160
      %s162 = sphi 0, %s160
      %s163 = sphi 0, %s162
      %s177 = sphi 0, %s163
      %s181 = sphi 0, %s181
      %s183 = sphi 0, %s181
      %s184 = sphi 0, %s183
      %s198 = sphi 0, %s184
      %s202 = sphi 0, %s202
      %s204 = sphi 0, %s202
      %s205 = sphi 0, %s204
      %s219 = sphi 0, %s205
      %s223 = sphi 0, %s223
      %s225 = sphi 0, %s223
      %s226 = sphi 0, %s225
      %s240 = sphi 0, %s226
      %s244 = sphi 0, %s244
      %s246 = sphi 0, %s244
      %s247 = sphi 0, %s246
      %s261 = sphi 0, %s247
      %s265 = sphi 0, %s265
      %s267 = sphi 0, %s265
      %s268 = sphi 0, %s267
      %s282 = sphi 0, %s268
      %s286 = sphi 0, %s286
      %s288 = sphi 0, %s286
      %s289 = sphi 0, %s288
      %s303 = sphi 0, %s289
      %s307 = sphi 0, %s307
      %s309 = sphi 0, %s307
      %s310 = sphi 0, %s309
      %s324 = sphi 0, %s310
      %s330 = sphi 0, %s332
      %s333 = sphi 0, %s330
      %s334 = sphi 0, %s333
      %s350 = sphi 0, %s334
    $region4: #{_lambda_.3} parent=1 // loop_header_branch
      %24 = sbr.rel (%p22) target = $region8
    $region5: #{_lambda_.3} parent=1 // loop_body
      %s26 = ssub.s32 %s21, 1
      %s27 = ssub.s32 %s21, 2
      %s28 = sadd.s32 %s21, 1
      %s29 = ssub.s32 %s21, %s28
      %p30 = scmp.eq.s32.totalorder %s29, 0
      %s32 = sadd.s32 %s31, 1
      %s33 = scalar_select %p30, %s31, %s32
      %p36 = pneg %p30
      %p37 = scmp.eq.s32.totalorder %s21, 1
      %p38 = por %p36, %p37
      %p39 = scmp.ne.s32.totalorder %s31, %s34
      %p40 = scmp.eq.s32.totalorder %s21, 0
      %p41 = por %p39, %p40
      %p42 = scmp.ne.s32.totalorder %s31, %s34
      %p43 = scmp.eq.s32.totalorder %s26, 1
      %p44 = por %p42, %p43
      %p45 = scmp.ne.s32.totalorder %s34, %s35
      %p46 = scmp.eq.s32.totalorder %s26, 0
      %p47 = por %p45, %p46
      %p48 = scmp.ne.s32.totalorder %s34, %s35
      %p49 = scmp.eq.s32.totalorder %s27, 1
      %p50 = por %p48, %p49
      %p52 = scmp.ne.s32.totalorder %s35, %s51
      %p53 = scmp.eq.s32.totalorder %s27, 0
      %p54 = por %p52, %p53
      %s56 = sadd.s32 %s55, 1
      %p59 = scmp.eq.s32.totalorder %s21, 1
      %p60 = scmp.ne.s32.totalorder %s55, %s57
      %p61 = scmp.eq.s32.totalorder %s21, 0
      %p62 = por %p60, %p61
      %p63 = scmp.ne.s32.totalorder %s55, %s57
      %p64 = scmp.eq.s32.totalorder %s26, 1
      %p65 = por %p63, %p64
      %p66 = scmp.ne.s32.totalorder %s57, %s58
      %p67 = scmp.eq.s32.totalorder %s26, 0
      %p68 = por %p66, %p67
      %p69 = scmp.ne.s32.totalorder %s57, %s58
      %p70 = scmp.eq.s32.totalorder %s27, 1
      %p71 = por %p69, %p70
      %p73 = scmp.ne.s32.totalorder %s58, %s72
      %p74 = scmp.eq.s32.totalorder %s27, 0
      %p75 = por %p73, %p74
      %s77 = sadd.s32 %s76, 1
      %p80 = scmp.eq.s32.totalorder %s21, 1
      %p81 = scmp.ne.s32.totalorder %s76, %s78
      %p82 = scmp.eq.s32.totalorder %s21, 0
      %p83 = por %p81, %p82
      %p84 = scmp.ne.s32.totalorder %s76, %s78
      %p85 = scmp.eq.s32.totalorder %s26, 1
      %p86 = por %p84, %p85
      %p87 = scmp.ne.s32.totalorder %s78, %s79
      %p88 = scmp.eq.s32.totalorder %s26, 0
      %p89 = por %p87, %p88
      %p90 = scmp.ne.s32.totalorder %s78, %s79
      %p91 = scmp.eq.s32.totalorder %s27, 1
      %p92 = por %p90, %p91
      %p94 = scmp.ne.s32.totalorder %s79, %s93
      %p95 = scmp.eq.s32.totalorder %s27, 0
      %p96 = por %p94, %p95
      %s98 = sadd.s32 %s97, 1
      %p101 = scmp.eq.s32.totalorder %s21, 1
      %p102 = scmp.ne.s32.totalorder %s97, %s99
      %p103 = scmp.eq.s32.totalorder %s21, 0
      %p104 = por %p102, %p103
      %p105 = scmp.ne.s32.totalorder %s97, %s99
      %p106 = scmp.eq.s32.totalorder %s26, 1
      %p107 = por %p105, %p106
      %p108 = scmp.ne.s32.totalorder %s99, %s100
      %p109 = scmp.eq.s32.totalorder %s26, 0
      %p110 = por %p108, %p109
      %p111 = scmp.ne.s32.totalorder %s99, %s100
      %p112 = scmp.eq.s32.totalorder %s27, 1
      %p113 = por %p111, %p112
      %p115 = scmp.ne.s32.totalorder %s100, %s114
      %p116 = scmp.eq.s32.totalorder %s27, 0
      %p117 = por %p115, %p116
      %s119 = sadd.s32 %s118, 1
      %p122 = scmp.eq.s32.totalorder %s21, 1
      %p123 = scmp.ne.s32.totalorder %s118, %s120
      %p124 = scmp.eq.s32.totalorder %s21, 0
      %p125 = por %p123, %p124
      %p126 = scmp.ne.s32.totalorder %s118, %s120
      %p127 = scmp.eq.s32.totalorder %s26, 1
      %p128 = por %p126, %p127
      %p129 = scmp.ne.s32.totalorder %s120, %s121
      %p130 = scmp.eq.s32.totalorder %s26, 0
      %p131 = por %p129, %p130
      %p132 = scmp.ne.s32.totalorder %s120, %s121
      %p133 = scmp.eq.s32.totalorder %s27, 1
      %p134 = por %p132, %p133
      %p136 = scmp.ne.s32.totalorder %s121, %s135
      %p137 = scmp.eq.s32.totalorder %s27, 0
      %p138 = por %p136, %p137
      %s140 = sadd.s32 %s139, 1
      %p143 = scmp.eq.s32.totalorder %s21, 1
      %p144 = scmp.ne.s32.totalorder %s139, %s141
      %p145 = scmp.eq.s32.totalorder %s21, 0
      %p146 = por %p144, %p145
      %p147 = scmp.ne.s32.totalorder %s139, %s141
      %p148 = scmp.eq.s32.totalorder %s26, 1
      %p149 = por %p147, %p148
      %p150 = scmp.ne.s32.totalorder %s141, %s142
      %p151 = scmp.eq.s32.totalorder %s26, 0
      %p152 = por %p150, %p151
      %p153 = scmp.ne.s32.totalorder %s141, %s142
      %p154 = scmp.eq.s32.totalorder %s27, 1
      %p155 = por %p153, %p154
      %p157 = scmp.ne.s32.totalorder %s142, %s156
      %p158 = scmp.eq.s32.totalorder %s27, 0
      %p159 = por %p157, %p158
      %s161 = sadd.s32 %s160, 1
      %p164 = scmp.eq.s32.totalorder %s21, 1
      %p165 = scmp.ne.s32.totalorder %s160, %s162
      %p166 = scmp.eq.s32.totalorder %s21, 0
      %p167 = por %p165, %p166
      %p168 = scmp.ne.s32.totalorder %s160, %s162
      %p169 = scmp.eq.s32.totalorder %s26, 1
      %p170 = por %p168, %p169
      %p171 = scmp.ne.s32.totalorder %s162, %s163
      %p172 = scmp.eq.s32.totalorder %s26, 0
      %p173 = por %p171, %p172
      %p174 = scmp.ne.s32.totalorder %s162, %s163
      %p175 = scmp.eq.s32.totalorder %s27, 1
      %p176 = por %p174, %p175
      %p178 = scmp.ne.s32.totalorder %s163, %s177
      %p179 = scmp.eq.s32.totalorder %s27, 0
      %p180 = por %p178, %p179
      %s182 = sadd.s32 %s181, 1
      %p185 = scmp.eq.s32.totalorder %s21, 1
      %p186 = scmp.ne.s32.totalorder %s181, %s183
      %p187 = scmp.eq.s32.totalorder %s21, 0
      %p188 = por %p186, %p187
      %p189 = scmp.ne.s32.totalorder %s181, %s183
      %p190 = scmp.eq.s32.totalorder %s26, 1
      %p191 = por %p189, %p190
      %p192 = scmp.ne.s32.totalorder %s183, %s184
      %p193 = scmp.eq.s32.totalorder %s26, 0
      %p194 = por %p192, %p193
      %p195 = scmp.ne.s32.totalorder %s183, %s184
      %p196 = scmp.eq.s32.totalorder %s27, 1
      %p197 = por %p195, %p196
      %p199 = scmp.ne.s32.totalorder %s184, %s198
      %p200 = scmp.eq.s32.totalorder %s27, 0
      %p201 = por %p199, %p200
      %s203 = sadd.s32 %s202, 1
      %p206 = scmp.eq.s32.totalorder %s21, 1
      %p207 = scmp.ne.s32.totalorder %s202, %s204
      %p208 = scmp.eq.s32.totalorder %s21, 0
      %p209 = por %p207, %p208
      %p210 = scmp.ne.s32.totalorder %s202, %s204
      %p211 = scmp.eq.s32.totalorder %s26, 1
      %p212 = por %p210, %p211
      %p213 = scmp.ne.s32.totalorder %s204, %s205
      %p214 = scmp.eq.s32.totalorder %s26, 0
      %p215 = por %p213, %p214
      %p216 = scmp.ne.s32.totalorder %s204, %s205
      %p217 = scmp.eq.s32.totalorder %s27, 1
      %p218 = por %p216, %p217
      %p220 = scmp.ne.s32.totalorder %s205, %s219
      %p221 = scmp.eq.s32.totalorder %s27, 0
      %p222 = por %p220, %p221
      %s224 = sadd.s32 %s223, 1
      %p227 = scmp.eq.s32.totalorder %s21, 1
      %p228 = scmp.ne.s32.totalorder %s223, %s225
      %p229 = scmp.eq.s32.totalorder %s21, 0
      %p230 = por %p228, %p229
      %p231 = scmp.ne.s32.totalorder %s223, %s225
      %p232 = scmp.eq.s32.totalorder %s26, 1
      %p233 = por %p231, %p232
      %p234 = scmp.ne.s32.totalorder %s225, %s226
      %p235 = scmp.eq.s32.totalorder %s26, 0
      %p236 = por %p234, %p235
      %p237 = scmp.ne.s32.totalorder %s225, %s226
      %p238 = scmp.eq.s32.totalorder %s27, 1
      %p239 = por %p237, %p238
      %p241 = scmp.ne.s32.totalorder %s226, %s240
      %p242 = scmp.eq.s32.totalorder %s27, 0
      %p243 = por %p241, %p242
      %s245 = sadd.s32 %s244, 1
      %p248 = scmp.eq.s32.totalorder %s21, 1
      %p249 = scmp.ne.s32.totalorder %s244, %s246
      %p250 = scmp.eq.s32.totalorder %s21, 0
      %p251 = por %p249, %p250
      %p252 = scmp.ne.s32.totalorder %s244, %s246
      %p253 = scmp.eq.s32.totalorder %s26, 1
      %p254 = por %p252, %p253
      %p255 = scmp.ne.s32.totalorder %s246, %s247
      %p256 = scmp.eq.s32.totalorder %s26, 0
      %p257 = por %p255, %p256
      %p258 = scmp.ne.s32.totalorder %s246, %s247
      %p259 = scmp.eq.s32.totalorder %s27, 1
      %p260 = por %p258, %p259
      %p262 = scmp.ne.s32.totalorder %s247, %s261
      %p263 = scmp.eq.s32.totalorder %s27, 0
      %p264 = por %p262, %p263
      %s266 = sadd.s32 %s265, 1
      %p269 = scmp.eq.s32.totalorder %s21, 1
      %p270 = scmp.ne.s32.totalorder %s265, %s267
      %p271 = scmp.eq.s32.totalorder %s21, 0
      %p272 = por %p270, %p271
      %p273 = scmp.ne.s32.totalorder %s265, %s267
      %p274 = scmp.eq.s32.totalorder %s26, 1
      %p275 = por %p273, %p274
      %p276 = scmp.ne.s32.totalorder %s267, %s268
      %p277 = scmp.eq.s32.totalorder %s26, 0
      %p278 = por %p276, %p277
      %p279 = scmp.ne.s32.totalorder %s267, %s268
      %p280 = scmp.eq.s32.totalorder %s27, 1
      %p281 = por %p279, %p280
      %p283 = scmp.ne.s32.totalorder %s268, %s282
      %p284 = scmp.eq.s32.totalorder %s27, 0
      %p285 = por %p283, %p284
      %s287 = sadd.s32 %s286, 1
      %p290 = scmp.eq.s32.totalorder %s21, 1
      %p291 = scmp.ne.s32.totalorder %s286, %s288
      %p292 = scmp.eq.s32.totalorder %s21, 0
      %p293 = por %p291, %p292
      %p294 = scmp.ne.s32.totalorder %s286, %s288
      %p295 = scmp.eq.s32.totalorder %s26, 1
      %p296 = por %p294, %p295
      %p297 = scmp.ne.s32.totalorder %s288, %s289
      %p298 = scmp.eq.s32.totalorder %s26, 0
      %p299 = por %p297, %p298
      %p300 = scmp.ne.s32.totalorder %s288, %s289
      %p301 = scmp.eq.s32.totalorder %s27, 1
      %p302 = por %p300, %p301
      %p304 = scmp.ne.s32.totalorder %s289, %s303
      %p305 = scmp.eq.s32.totalorder %s27, 0
      %p306 = por %p304, %p305
      %s308 = sadd.s32 %s307, 1
      %p311 = scmp.eq.s32.totalorder %s21, 1
      %p312 = scmp.ne.s32.totalorder %s307, %s309
      %p313 = scmp.eq.s32.totalorder %s21, 0
      %p314 = por %p312, %p313
      %p315 = scmp.ne.s32.totalorder %s307, %s309
      %p316 = scmp.eq.s32.totalorder %s26, 1
      %p317 = por %p315, %p316
      %p318 = scmp.ne.s32.totalorder %s309, %s310
      %p319 = scmp.eq.s32.totalorder %s26, 0
      %p320 = por %p318, %p319
      %p321 = scmp.ne.s32.totalorder %s309, %s310
      %p322 = scmp.eq.s32.totalorder %s27, 1
      %p323 = por %p321, %p322
      %p325 = scmp.ne.s32.totalorder %s310, %s324
      %p326 = scmp.eq.s32.totalorder %s27, 0
      %p327 = por %p325, %p326
      %s328 = ssub.s32 %s21, %s28
      %p329 = scmp.eq.s32.totalorder %s328, 0
      %s331 = sadd.s32 %s330, 1
      %s332 = scalar_select %p329, %s330, %s331
      %p335 = pneg %p329
      %p336 = scmp.eq.s32.totalorder %s21, 1
      %p337 = por %p335, %p336
      %p338 = scmp.ne.s32.totalorder %s330, %s333
      %p339 = scmp.eq.s32.totalorder %s21, 0
      %p340 = por %p338, %p339
      %p341 = scmp.ne.s32.totalorder %s330, %s333
      %p342 = scmp.eq.s32.totalorder %s26, 1
      %p343 = por %p341, %p342
      %p344 = scmp.ne.s32.totalorder %s333, %s334
      %p345 = scmp.eq.s32.totalorder %s26, 0
      %p346 = por %p344, %p345
      %p347 = scmp.ne.s32.totalorder %s333, %s334
      %p348 = scmp.eq.s32.totalorder %s27, 1
      %p349 = por %p347, %p348
      %p351 = scmp.ne.s32.totalorder %s334, %s350
      %p352 = scmp.eq.s32.totalorder %s27, 0
      %p353 = por %p351, %p352
      %p354 = scmp.le.s32.totalorder 1, %s21
      %p355 = scmp.lt.s32.totalorder %s21, 3
      %p356 = pnand %p354, %p355
      %p357 = pneg %p356
      // Predicated region
      $region9: #{_lambda_.3} parent=5 // pred_check
        _
      $region10: #{_lambda_.3} parent=5 // pred_check_branch
        %359 = sbr.rel (%p356) target = $region12
      $region11: #{_lambda_.3} parent=5 // pred_region
        %s360 = ssub.s32 %s21, 1
        // Predicated region
        $region13: #{_lambda_.3} parent=11 // pred_check
          %p361 = pneg %p68
        $region14: #{_lambda_.3} parent=11 // pred_check_branch
          %363 = sbr.rel (%p361) target = $region16
        $region15: #{_lambda_.3} parent=11 // pred_region
          %s365 = ssub.s32 8192, 8192
          %366 = vsyncadd [#allocation6], %s365
          %s367 = sshll.u32 [#allocation5], 4
          %s368 = int_to_ptr.vmem [resolvable:$true] %s367
          %373 = dma.hbm_to_vmem [thread:$0]  %s1, 8192, %s368, [#allocation6], 256, 256, 16
        $region16: #{_lambda_.3} parent=11 // pred_fallthru
          _
        // Predicated region
        $region17: #{_lambda_.3} parent=11 // pred_check
          %p374 = pneg %p89
        $region18: #{_lambda_.3} parent=11 // pred_check_branch
          %376 = sbr.rel (%p374) target = $region20
        $region19: #{_lambda_.3} parent=11 // pred_region
          _
        $region20: #{_lambda_.3} parent=11 // pred_fallthru
          _
        // Predicated region
        $region21: #{_lambda_.3} parent=11 // pred_check
          %p377 = pneg %p110
        $region22: #{_lambda_.3} parent=11 // pred_check_branch
          %379 = sbr.rel (%p377) target = $region24
        $region23: #{_lambda_.3} parent=11 // pred_region
          _
        $region24: #{_lambda_.3} parent=11 // pred_fallthru
          _
        // Predicated region
        $region25: #{_lambda_.3} parent=11 // pred_check
          %p380 = pneg %p131
        $region26: #{_lambda_.3} parent=11 // pred_check_branch
          %382 = sbr.rel (%p380) target = $region28
        $region27: #{_lambda_.3} parent=11 // pred_region
          _
        $region28: #{_lambda_.3} parent=11 // pred_fallthru
          _
        // Predicated region
        $region29: #{_lambda_.3} parent=11 // pred_check
          %p383 = pneg %p152
        $region30: #{_lambda_.3} parent=11 // pred_check_branch
          %385 = sbr.rel (%p383) target = $region32
        $region31: #{_lambda_.3} parent=11 // pred_region
          _
        $region32: #{_lambda_.3} parent=11 // pred_fallthru
          _
        // Predicated region
        $region33: #{_lambda_.3} parent=11 // pred_check
          %p386 = pneg %p173
        $region34: #{_lambda_.3} parent=11 // pred_check_branch
          %388 = sbr.rel (%p386) target = $region36
        $region35: #{_lambda_.3} parent=11 // pred_region
          _
        $region36: #{_lambda_.3} parent=11 // pred_fallthru
          _
        // Predicated region
        $region37: #{_lambda_.3} parent=11 // pred_check
          %p389 = pneg %p194
        $region38: #{_lambda_.3} parent=11 // pred_check_branch
          %391 = sbr.rel (%p389) target = $region40
        $region39: #{_lambda_.3} parent=11 // pred_region
          _
        $region40: #{_lambda_.3} parent=11 // pred_fallthru
          _
        // Predicated region
        $region41: #{_lambda_.3} parent=11 // pred_check
          %p392 = pneg %p215
        $region42: #{_lambda_.3} parent=11 // pred_check_branch
          %394 = sbr.rel (%p392) target = $region44
        $region43: #{_lambda_.3} parent=11 // pred_region
          _
        $region44: #{_lambda_.3} parent=11 // pred_fallthru
          _
        // Predicated region
        $region45: #{_lambda_.3} parent=11 // pred_check
          %p395 = pneg %p236
        $region46: #{_lambda_.3} parent=11 // pred_check_branch
          %397 = sbr.rel (%p395) target = $region48
        $region47: #{_lambda_.3} parent=11 // pred_region
          _
        $region48: #{_lambda_.3} parent=11 // pred_fallthru
          _
        // Predicated region
        $region49: #{_lambda_.3} parent=11 // pred_check
          %p398 = pneg %p257
        $region50: #{_lambda_.3} parent=11 // pred_check_branch
          %400 = sbr.rel (%p398) target = $region52
        $region51: #{_lambda_.3} parent=11 // pred_region
          _
        $region52: #{_lambda_.3} parent=11 // pred_fallthru
          _
        // Predicated region
        $region53: #{_lambda_.3} parent=11 // pred_check
          %p401 = pneg %p278
        $region54: #{_lambda_.3} parent=11 // pred_check_branch
          %403 = sbr.rel (%p401) target = $region56
        $region55: #{_lambda_.3} parent=11 // pred_region
          _
        $region56: #{_lambda_.3} parent=11 // pred_fallthru
          _
        // Predicated region
        $region57: #{_lambda_.3} parent=11 // pred_check
          %p404 = pneg %p299
        $region58: #{_lambda_.3} parent=11 // pred_check_branch
          %406 = sbr.rel (%p404) target = $region60
        $region59: #{_lambda_.3} parent=11 // pred_region
          _
        $region60: #{_lambda_.3} parent=11 // pred_fallthru
          _
        // Predicated region
        $region61: #{_lambda_.3} parent=11 // pred_check
          %p407 = pneg %p320
        $region62: #{_lambda_.3} parent=11 // pred_check_branch
          %409 = sbr.rel (%p407) target = $region64
        $region63: #{_lambda_.3} parent=11 // pred_region
          _
        $region64: #{_lambda_.3} parent=11 // pred_fallthru
          _
      $region12: #{_lambda_.3} parent=5 // pred_fallthru
        _
      %p410 = scmp.lt.s32.totalorder %s21, 2
      // Predicated region
      $region65: #{_lambda_.3} parent=5 // pred_check
        %p411 = pneg %p410
      $region66: #{_lambda_.3} parent=5 // pred_check_branch
        %413 = sbr.rel (%p411) target = $region68
      $region67: #{_lambda_.3} parent=5 // pred_region
        // Predicated region
        $region69: #{_lambda_.3} parent=67 // pred_check
          %p414 = pneg %p41
        $region70: #{_lambda_.3} parent=67 // pred_check_branch
          %416 = sbr.rel (%p414) target = $region72
        $region71: #{_lambda_.3} parent=67 // pred_region
          %p417 = scmp.lt.s32.totalorder %s21, 1
          %s418 = scalar_select %p417, %s21, 1
          %s419 = smul.addr %s418, 4
          %s420 = smul.addr %s419, 8
          %s421 = scalar_lea.vmem %s0, %s420
        $region72: #{_lambda_.3} parent=67 // pred_fallthru
          _
      $region68: #{_lambda_.3} parent=5 // pred_fallthru
        _
      %p422 = scmp.le.s32.totalorder 1, %s21
      %p423 = scmp.lt.s32.totalorder %s21, 3
      %p424 = pnand %p422, %p423
      %p425 = pneg %p424
      // Predicated region
      $region73: #{_lambda_.3} parent=5 // pred_check
        _
      $region74: #{_lambda_.3} parent=5 // pred_check_branch
        %427 = sbr.rel (%p424) target = $region76
      $region75: #{_lambda_.3} parent=5 // pred_region
        %s428 = ssub.s32 %s21, 1
        // Predicated region
        $region77: #{_lambda_.3} parent=75 // pred_check
          %p429 = pneg %p68
        $region78: #{_lambda_.3} parent=75 // pred_check_branch
          %431 = sbr.rel (%p429) target = $region80
        $region79: #{_lambda_.3} parent=75 // pred_region
          %432 = dma.done [#allocation6], 8192
        $region80: #{_lambda_.3} parent=75 // pred_fallthru
          _
        %p433 = scmp.lt.s32.totalorder %s26, 1
        %s434 = scalar_select %p433, %s26, 1
        %s435 = smul.addr %s434, 4
        %s436 = smul.addr %s435, 8
        %s437 = scalar_lea.vmem %s0, %s436
        %p438 = pneg %p47
        %p439 = pneg %p44
        %p440 = pneg %p68
        %p441 = pneg %p65
        %p442 = pneg %p89
        %p443 = pneg %p86
        %p444 = pneg %p110
        %p445 = pneg %p107
        %p446 = pneg %p131
        %p447 = pneg %p128
        %p448 = pneg %p152
        %p449 = pneg %p149
        %p450 = pneg %p173
        %p451 = pneg %p170
        %p452 = pneg %p194
        %p453 = pneg %p191
        %p454 = pneg %p215
        %p455 = pneg %p212
        %p456 = pneg %p236
        %p457 = pneg %p233
        %p458 = pneg %p257
        %p459 = pneg %p254
        %p460 = pneg %p278
        %p461 = pneg %p275
        %p462 = pneg %p299
        %p463 = pneg %p296
        %p464 = pneg %p320
        %p465 = pneg %p317
        %p466 = pneg %p346
        %p467 = pneg %p343
        %p468 = scmp.lt.s32.totalorder %s26, 1
        %s469 = scalar_select %p468, %s26, 1
        %s470 = smul.addr %s469, 4
        %s471 = smul.addr %s470, 8
        %s472 = scalar_lea.vmem %s14, %s471
        %p473 = scmp.lt.s32.totalorder %s26, 1
        %s474 = scalar_select %p473, %s26, 1
        %s475 = smul.addr %s474, 4
        %s476 = smul.addr %s475, 8
        %s477 = scalar_lea.vmem %s0, %s476
        %p478 = scmp.lt.s32.totalorder %s26, 1
        %s479 = scalar_select %p478, %s26, 1
        %s480 = smul.addr %s479, 4
        %s481 = smul.addr %s480, 8
        %s482 = scalar_lea.vmem %s14, %s481
        %v483 = vld [vmem:[%s477] sm:$0xff]
        %v484 = vld [vmem:[%s477 + $0x8] sm:$0xff]
        %v485 = vld [vmem:[%s477 + $0x10] sm:$0xff]
        %v486 = vld [vmem:[%s477 + $0x18] sm:$0xff]
        %v487 = vlaneseq
        %vm488 = vcmp.ge.s32.totalorder %v487, 0
        %vm489 = vcmp.lt.s32.totalorder %v487, 256
        %vm490 = vmand %vm488, %vm489
        %491 = vst.msk [vmem:[#allocation2] ss:$8 sm:$0x3] %vm490, 0.0
        %492 = vst.msk [vmem:[#allocation2] ss:$8 sm:$0x0] %vm490, 0.0
        %s493 = scalar_lea.vmem [#allocation2], 33
        %494 = vst.msk [vmem:[%s493] ss:$8 sm:$0x3] %vm490, 0.0
        %495 = vst.msk [vmem:[%s493] ss:$8 sm:$0x0] %vm490, 0.0
        %vm500 = vcmask 1040384
        %v501 = vrot.slane %v483, 7
        %v502 = vrot.slane %v484, 7
        %v503 = vrot.slane %v485, 7
        %v504 = vsel %vm500, %v501, %v503
        %v505 = vrot.slane %v486, 7
        %v506 = vsel %vm500, %v502, %v505
        %513 = vst [vmem:[#allocation2] sm:$0xfe] %v501
        %514 = vst [vmem:[#allocation2 + $0x8] sm:$0xfe] %v502
        %515 = vst [vmem:[#allocation2 + $0x10] sm:$0xff] %v504
        %516 = vst [vmem:[#allocation2 + $0x18] sm:$0xff] %v506
        %517 = vst [vmem:[#allocation2 + $0x20] sm:$0x1] %v503
        %518 = vst [vmem:[#allocation2 + $0x28] sm:$0x1] %v505
        %v519 = vld [vmem:[%s2] sm:$0xff]
        %v520 = vld [vmem:[%s2 + $0x8] sm:$0xff]
        %v521 = vld [vmem:[%s2 + $0x10] sm:$0xff]
        %v522 = vld [vmem:[%s2 + $0x18] sm:$0xff]
        %v523 = vld [vmem:[%s2 + $0x20] sm:$0xff]
        %v524 = vld [vmem:[%s2 + $0x28] sm:$0xff]
        %v525 = vld [vmem:[%s2 + $0x30] sm:$0xff]
        %v526 = vld [vmem:[%s2 + $0x38] sm:$0xff]
        %v527 = vld [vmem:[%s2 + $0x40] sm:$0xff]
        %v528 = vld [vmem:[%s2 + $0x48] sm:$0xff]
        %v529 = vld [vmem:[%s2 + $0x50] sm:$0xff]
        %v530 = vld [vmem:[%s2 + $0x58] sm:$0xff]
        %v531 = vld [vmem:[%s2 + $0x60] sm:$0xff]
        %v532 = vld [vmem:[%s2 + $0x68] sm:$0xff]
        %v533 = vld [vmem:[%s2 + $0x70] sm:$0xff]
        %v534 = vld [vmem:[%s2 + $0x78] sm:$0xff]
        %v535 = vld [vmem:[%s2 + $0x80] sm:$0xff]
        %v536 = vld [vmem:[%s2 + $0x88] sm:$0xff]
        %v537 = vld [vmem:[%s2 + $0x90] sm:$0xff]
        %v538 = vld [vmem:[%s2 + $0x98] sm:$0xff]
        %v539 = vld [vmem:[%s2 + $0xa0] sm:$0xff]
        %v540 = vld [vmem:[%s2 + $0xa8] sm:$0xff]
        %v541 = vld [vmem:[%s2 + $0xb0] sm:$0xff]
        %v542 = vld [vmem:[%s2 + $0xb8] sm:$0xff]
        %v543 = vld [vmem:[%s2 + $0xc0] sm:$0xff]
        %v544 = vld [vmem:[%s2 + $0xc8] sm:$0xff]
        %v545 = vld [vmem:[%s2 + $0xd0] sm:$0xff]
        %v546 = vld [vmem:[%s2 + $0xd8] sm:$0xff]
        %v547 = vld [vmem:[%s2 + $0xe0] sm:$0xff]
        %v548 = vld [vmem:[%s2 + $0xe8] sm:$0xff]
        %v549 = vld [vmem:[%s2 + $0xf0] sm:$0xff]
        %v550 = vld [vmem:[%s2 + $0xf8] sm:$0xff]
        %v551 = vld [vmem:[%s2 + $0x100] sm:$0xff]
        %v552 = vld [vmem:[%s2 + $0x108] sm:$0xff]
        %v553 = vld [vmem:[%s2 + $0x110] sm:$0xff]
        %v554 = vld [vmem:[%s2 + $0x118] sm:$0xff]
        %v555 = vld [vmem:[%s2 + $0x120] sm:$0xff]
        %v556 = vld [vmem:[%s2 + $0x128] sm:$0xff]
        %v557 = vld [vmem:[%s2 + $0x130] sm:$0xff]
        %v558 = vld [vmem:[%s2 + $0x138] sm:$0xff]
        %v559 = vld [vmem:[%s2 + $0x140] sm:$0xff]
        %v560 = vld [vmem:[%s2 + $0x148] sm:$0xff]
        %v561 = vld [vmem:[%s2 + $0x150] sm:$0xff]
        %v562 = vld [vmem:[%s2 + $0x158] sm:$0xff]
        %v563 = vld [vmem:[%s2 + $0x160] sm:$0xff]
        %v564 = vld [vmem:[%s2 + $0x168] sm:$0xff]
        %v565 = vld [vmem:[%s2 + $0x170] sm:$0xff]
        %v566 = vld [vmem:[%s2 + $0x178] sm:$0xff]
        %v567 = vld [vmem:[%s2 + $0x180] sm:$0xff]
        %v568 = vld [vmem:[%s2 + $0x188] sm:$0xff]
        %v569 = vld [vmem:[%s2 + $0x190] sm:$0xff]
        %v570 = vld [vmem:[%s2 + $0x198] sm:$0xff]
        %v571 = vld [vmem:[%s2 + $0x1a0] sm:$0xff]
        %v572 = vld [vmem:[%s2 + $0x1a8] sm:$0xff]
        %v573 = vld [vmem:[%s2 + $0x1b0] sm:$0xff]
        %v574 = vld [vmem:[%s2 + $0x1b8] sm:$0xff]
        %v575 = vld [vmem:[%s2 + $0x1c0] sm:$0xff]
        %v576 = vld [vmem:[%s2 + $0x1c8] sm:$0xff]
        %v577 = vld [vmem:[%s2 + $0x1d0] sm:$0xff]
        %v578 = vld [vmem:[%s2 + $0x1d8] sm:$0xff]
        %v579 = vld [vmem:[%s2 + $0x1e0] sm:$0xff]
        %v580 = vld [vmem:[%s2 + $0x1e8] sm:$0xff]
        %v581 = vld [vmem:[%s2 + $0x1f0] sm:$0xff]
        %v582 = vld [vmem:[%s2 + $0x1f8] sm:$0xff]
        %v583 = vld [vmem:[#allocation2] sm:$0xff]
        %v584 = vld [vmem:[#allocation2 + $0x8] sm:$0xff]
        %v585 = vld [vmem:[#allocation2 + $0x10] sm:$0xff]
        %v586 = vld [vmem:[#allocation2 + $0x18] sm:$0xff]
        %v587 = vld [vmem:[#allocation5] sm:$0xff]
        %v588 = vld [vmem:[#allocation5 + $0x8] sm:$0xff]
        %v589 = vld [vmem:[#allocation5 + $0x10] sm:$0xff]
        %v590 = vld [vmem:[#allocation5 + $0x18] sm:$0xff]
        %v591 = vld [vmem:[#allocation5 + $0x20] sm:$0xff]
        %v592 = vld [vmem:[#allocation5 + $0x28] sm:$0xff]
        %v593 = vld [vmem:[#allocation5 + $0x30] sm:$0xff]
        %v594 = vld [vmem:[#allocation5 + $0x38] sm:$0xff]
        %v595 = vld [vmem:[#allocation5 + $0x40] sm:$0xff]
        %v596 = vld [vmem:[#allocation5 + $0x48] sm:$0xff]
        %v597 = vld [vmem:[#allocation5 + $0x50] sm:$0xff]
        %v598 = vld [vmem:[#allocation5 + $0x58] sm:$0xff]
        %v599 = vld [vmem:[#allocation5 + $0x60] sm:$0xff]
        %v600 = vld [vmem:[#allocation5 + $0x68] sm:$0xff]
        %v601 = vld [vmem:[#allocation5 + $0x70] sm:$0xff]
        %v602 = vld [vmem:[#allocation5 + $0x78] sm:$0xff]
        %v603 = vld [vmem:[#allocation5 + $0x80] sm:$0xff]
        %v604 = vld [vmem:[#allocation5 + $0x88] sm:$0xff]
        %v605 = vld [vmem:[#allocation5 + $0x90] sm:$0xff]
        %v606 = vld [vmem:[#allocation5 + $0x98] sm:$0xff]
        %v607 = vld [vmem:[#allocation5 + $0xa0] sm:$0xff]
        %v608 = vld [vmem:[#allocation5 + $0xa8] sm:$0xff]
        %v609 = vld [vmem:[#allocation5 + $0xb0] sm:$0xff]
        %v610 = vld [vmem:[#allocation5 + $0xb8] sm:$0xff]
        %v611 = vld [vmem:[#allocation5 + $0xc0] sm:$0xff]
        %v612 = vld [vmem:[#allocation5 + $0xc8] sm:$0xff]
        %v613 = vld [vmem:[#allocation5 + $0xd0] sm:$0xff]
        %v614 = vld [vmem:[#allocation5 + $0xd8] sm:$0xff]
        %v615 = vld [vmem:[#allocation5 + $0xe0] sm:$0xff]
        %v616 = vld [vmem:[#allocation5 + $0xe8] sm:$0xff]
        %v617 = vld [vmem:[#allocation5 + $0xf0] sm:$0xff]
        %v618 = vld [vmem:[#allocation5 + $0xf8] sm:$0xff]
        %v619 = vld [vmem:[#allocation5 + $0x100] sm:$0xff]
        %v620 = vld [vmem:[#allocation5 + $0x108] sm:$0xff]
        %v621 = vld [vmem:[#allocation5 + $0x110] sm:$0xff]
        %v622 = vld [vmem:[#allocation5 + $0x118] sm:$0xff]
        %v623 = vld [vmem:[#allocation5 + $0x120] sm:$0xff]
        %v624 = vld [vmem:[#allocation5 + $0x128] sm:$0xff]
        %v625 = vld [vmem:[#allocation5 + $0x130] sm:$0xff]
        %v626 = vld [vmem:[#allocation5 + $0x138] sm:$0xff]
        %v627 = vld [vmem:[#allocation5 + $0x140] sm:$0xff]
        %v628 = vld [vmem:[#allocation5 + $0x148] sm:$0xff]
        %v629 = vld [vmem:[#allocation5 + $0x150] sm:$0xff]
        %v630 = vld [vmem:[#allocation5 + $0x158] sm:$0xff]
        %v631 = vld [vmem:[#allocation5 + $0x160] sm:$0xff]
        %v632 = vld [vmem:[#allocation5 + $0x168] sm:$0xff]
        %v633 = vld [vmem:[#allocation5 + $0x170] sm:$0xff]
        %v634 = vld [vmem:[#allocation5 + $0x178] sm:$0xff]
        %v635 = vld [vmem:[#allocation5 + $0x180] sm:$0xff]
        %v636 = vld [vmem:[#allocation5 + $0x188] sm:$0xff]
        %v637 = vld [vmem:[#allocation5 + $0x190] sm:$0xff]
        %v638 = vld [vmem:[#allocation5 + $0x198] sm:$0xff]
        %v639 = vld [vmem:[#allocation5 + $0x1a0] sm:$0xff]
        %v640 = vld [vmem:[#allocation5 + $0x1a8] sm:$0xff]
        %v641 = vld [vmem:[#allocation5 + $0x1b0] sm:$0xff]
        %v642 = vld [vmem:[#allocation5 + $0x1b8] sm:$0xff]
        %v643 = vld [vmem:[#allocation5 + $0x1c0] sm:$0xff]
        %v644 = vld [vmem:[#allocation5 + $0x1c8] sm:$0xff]
        %v645 = vld [vmem:[#allocation5 + $0x1d0] sm:$0xff]
        %v646 = vld [vmem:[#allocation5 + $0x1d8] sm:$0xff]
        %v647 = vld [vmem:[#allocation5 + $0x1e0] sm:$0xff]
        %v648 = vld [vmem:[#allocation5 + $0x1e8] sm:$0xff]
        %v649 = vld [vmem:[#allocation5 + $0x1f0] sm:$0xff]
        %v650 = vld [vmem:[#allocation5 + $0x1f8] sm:$0xff]
        %651 = vmatprep.subr.mxu0 %v588
        %652 = vmatpush1.msra.mxu0 %v587
        %653 = vmatprep.subr.mxu0 %v590
        %654 = vmatpush1.msra.mxu0 %v589
        %655 = vmatprep.subr.mxu0 %v592
        %656 = vmatpush1.msra.mxu0 %v591
        %657 = vmatprep.subr.mxu0 %v594
        %658 = vmatpush1.msra.mxu0 %v593
        %659 = vmatprep.subr.mxu0 %v596
        %660 = vmatpush1.msra.mxu0 %v595
        %661 = vmatprep.subr.mxu0 %v598
        %662 = vmatpush1.msra.mxu0 %v597
        %663 = vmatprep.subr.mxu0 %v600
        %664 = vmatpush1.msra.mxu0 %v599
        %665 = vmatprep.subr.mxu0 %v602
        %666 = vmatpush1.msra.mxu0 %v601
        %667 = vmatprep.subr.mxu0 %v604
        %668 = vmatpush1.msra.mxu0 %v603
        %669 = vmatprep.subr.mxu0 %v606
        %670 = vmatpush1.msra.mxu0 %v605
        %671 = vmatprep.subr.mxu0 %v608
        %672 = vmatpush1.msra.mxu0 %v607
        %673 = vmatprep.subr.mxu0 %v610
        %674 = vmatpush1.msra.mxu0 %v609
        %675 = vmatprep.subr.mxu0 %v612
        %676 = vmatpush1.msra.mxu0 %v611
        %677 = vmatprep.subr.mxu0 %v614
        %678 = vmatpush1.msra.mxu0 %v613
        %679 = vmatprep.subr.mxu0 %v616
        %680 = vmatpush1.msra.mxu0 %v615
        %681 = vmatprep.subr.mxu0 %v618
        %682 = vmatpush1.msra.mxu0 %v617
        %683 = vmatprep.subr.mxu0 %v620
        %684 = vmatpush1.msra.mxu0 %v619
        %685 = vmatprep.subr.mxu0 %v622
        %686 = vmatpush1.msra.mxu0 %v621
        %687 = vmatprep.subr.mxu0 %v624
        %688 = vmatpush1.msra.mxu0 %v623
        %689 = vmatprep.subr.mxu0 %v626
        %690 = vmatpush1.msra.mxu0 %v625
        %691 = vmatprep.subr.mxu0 %v628
        %692 = vmatpush1.msra.mxu0 %v627
        %693 = vmatprep.subr.mxu0 %v630
        %694 = vmatpush1.msra.mxu0 %v629
        %695 = vmatprep.subr.mxu0 %v632
        %696 = vmatpush1.msra.mxu0 %v631
        %697 = vmatprep.subr.mxu0 %v634
        %698 = vmatpush1.msra.mxu0 %v633
        %699 = vmatprep.subr.mxu0 %v636
        %700 = vmatpush1.msra.mxu0 %v635
        %701 = vmatprep.subr.mxu0 %v638
        %702 = vmatpush1.msra.mxu0 %v637
        %703 = vmatprep.subr.mxu0 %v640
        %704 = vmatpush1.msra.mxu0 %v639
        %705 = vmatprep.subr.mxu0 %v642
        %706 = vmatpush1.msra.mxu0 %v641
        %707 = vmatprep.subr.mxu0 %v644
        %708 = vmatpush1.msra.mxu0 %v643
        %709 = vmatprep.subr.mxu0 %v646
        %710 = vmatpush1.msra.mxu0 %v645
        %711 = vmatprep.subr.mxu0 %v648
        %712 = vmatpush1.msra.mxu0 %v647
        %713 = vmatprep.subr.mxu0 %v650
        %714 = vmatpush1.msra.mxu0 %v649
        %715 = vmatprep.mubr.f32.mxu0 %v584
        %716 = vmatmul.mubr.f32.gmra.mrb[0].mxu0 %v583
        %v717 = vpop.f32.mrb[0].mxu0
        %v718 = vadd.f32 0.0, %v717
        %v719 = vpop.f32.mrb[0].mxu0
        %v720 = vadd.f32 0.0, %v719
        %721 = vmatprep.mubr.f32.mxu0 %v586
        %722 = vmatmul.mubr.f32.gmra.mrb[0].mxu0 %v585
        %v723 = vpop.f32.mrb[0].mxu0
        %v724 = vadd.f32 0.0, %v723
        %v725 = vpop.f32.mrb[0].mxu0
        %v726 = vadd.f32 0.0, %v725
        %727 = vdwg.mxu0
        %728 = vmatprep.subr.mxu0 %v520
        %729 = vmatpush1.msra.mxu0 %v519
        %730 = vmatprep.subr.mxu0 %v522
        %731 = vmatpush1.msra.mxu0 %v521
        %732 = vmatprep.subr.mxu0 %v524
        %733 = vmatpush1.msra.mxu0 %v523
        %734 = vmatprep.subr.mxu0 %v526
        %735 = vmatpush1.msra.mxu0 %v525
        %736 = vmatprep.subr.mxu0 %v528
        %737 = vmatpush1.msra.mxu0 %v527
        %738 = vmatprep.subr.mxu0 %v530
        %739 = vmatpush1.msra.mxu0 %v529
        %740 = vmatprep.subr.mxu0 %v532
        %741 = vmatpush1.msra.mxu0 %v531
        %742 = vmatprep.subr.mxu0 %v534
        %743 = vmatpush1.msra.mxu0 %v533
        %744 = vmatprep.subr.mxu0 %v536
        %745 = vmatpush1.msra.mxu0 %v535
        %746 = vmatprep.subr.mxu0 %v538
        %747 = vmatpush1.msra.mxu0 %v537
        %748 = vmatprep.subr.mxu0 %v540
        %749 = vmatpush1.msra.mxu0 %v539
        %750 = vmatprep.subr.mxu0 %v542
        %751 = vmatpush1.msra.mxu0 %v541
        %752 = vmatprep.subr.mxu0 %v544
        %753 = vmatpush1.msra.mxu0 %v543
        %754 = vmatprep.subr.mxu0 %v546
        %755 = vmatpush1.msra.mxu0 %v545
        %756 = vmatprep.subr.mxu0 %v548
        %757 = vmatpush1.msra.mxu0 %v547
        %758 = vmatprep.subr.mxu0 %v550
        %759 = vmatpush1.msra.mxu0 %v549
        %760 = vmatprep.subr.mxu0 %v552
        %761 = vmatpush1.msra.mxu0 %v551
        %762 = vmatprep.subr.mxu0 %v554
        %763 = vmatpush1.msra.mxu0 %v553
        %764 = vmatprep.subr.mxu0 %v556
        %765 = vmatpush1.msra.mxu0 %v555
        %766 = vmatprep.subr.mxu0 %v558
        %767 = vmatpush1.msra.mxu0 %v557
        %768 = vmatprep.subr.mxu0 %v560
        %769 = vmatpush1.msra.mxu0 %v559
        %770 = vmatprep.subr.mxu0 %v562
        %771 = vmatpush1.msra.mxu0 %v561
        %772 = vmatprep.subr.mxu0 %v564
        %773 = vmatpush1.msra.mxu0 %v563
        %774 = vmatprep.subr.mxu0 %v566
        %775 = vmatpush1.msra.mxu0 %v565
        %776 = vmatprep.subr.mxu0 %v568
        %777 = vmatpush1.msra.mxu0 %v567
        %778 = vmatprep.subr.mxu0 %v570
        %779 = vmatpush1.msra.mxu0 %v569
        %780 = vmatprep.subr.mxu0 %v572
        %781 = vmatpush1.msra.mxu0 %v571
        %782 = vmatprep.subr.mxu0 %v574
        %783 = vmatpush1.msra.mxu0 %v573
        %784 = vmatprep.subr.mxu0 %v576
        %785 = vmatpush1.msra.mxu0 %v575
        %786 = vmatprep.subr.mxu0 %v578
        %787 = vmatpush1.msra.mxu0 %v577
        %788 = vmatprep.subr.mxu0 %v580
        %789 = vmatpush1.msra.mxu0 %v579
        %790 = vmatprep.subr.mxu0 %v582
        %791 = vmatpush1.msra.mxu0 %v581
        %792 = vmatprep.mubr.f32.mxu0 %v484
        %793 = vmatmul.mubr.f32.gmra.mrb[0].mxu0 %v483
        %v794 = vpop.f32.mrb[0].mxu0
        %v795 = vadd.f32 %v718, %v794
        %v796 = vpop.f32.mrb[0].mxu0
        %v797 = vadd.f32 %v720, %v796
        %798 = vmatprep.mubr.f32.mxu0 %v486
        %799 = vmatmul.mubr.f32.gmra.mrb[0].mxu0 %v485
        %v800 = vpop.f32.mrb[0].mxu0
        %v801 = vadd.f32 %v724, %v800
        %v802 = vpop.f32.mrb[0].mxu0
        %v803 = vadd.f32 %v726, %v802
        %804 = vdwg.mxu0
        %v805 = vld [vmem:[#allocation2] sm:$0xfc]
        %v806 = vld [vmem:[#allocation2 + $0x8] sm:$0xfc]
        %v807 = vld [vmem:[#allocation2 + $0x10] sm:$0xff]
        %v808 = vld [vmem:[#allocation2 + $0x18] sm:$0xff]
        %v809 = vld [vmem:[#allocation2 + $0x20] sm:$0x3]
        %v810 = vld [vmem:[#allocation2 + $0x28] sm:$0x3]
        %v811 = vld [vmem:[%s3] sm:$0xff]
        %v812 = vld [vmem:[%s3 + $0x8] sm:$0xff]
        %v813 = vld [vmem:[%s3 + $0x10] sm:$0xff]
        %v814 = vld [vmem:[%s3 + $0x18] sm:$0xff]
        %v815 = vld [vmem:[%s3 + $0x20] sm:$0xff]
        %v816 = vld [vmem:[%s3 + $0x28] sm:$0xff]
        %v817 = vld [vmem:[%s3 + $0x30] sm:$0xff]
        %v818 = vld [vmem:[%s3 + $0x38] sm:$0xff]
        %v819 = vld [vmem:[%s3 + $0x40] sm:$0xff]
        %v820 = vld [vmem:[%s3 + $0x48] sm:$0xff]
        %v821 = vld [vmem:[%s3 + $0x50] sm:$0xff]
        %v822 = vld [vmem:[%s3 + $0x58] sm:$0xff]
        %v823 = vld [vmem:[%s3 + $0x60] sm:$0xff]
        %v824 = vld [vmem:[%s3 + $0x68] sm:$0xff]
        %v825 = vld [vmem:[%s3 + $0x70] sm:$0xff]
        %v826 = vld [vmem:[%s3 + $0x78] sm:$0xff]
        %v827 = vld [vmem:[%s3 + $0x80] sm:$0xff]
        %v828 = vld [vmem:[%s3 + $0x88] sm:$0xff]
        %v829 = vld [vmem:[%s3 + $0x90] sm:$0xff]
        %v830 = vld [vmem:[%s3 + $0x98] sm:$0xff]
        %v831 = vld [vmem:[%s3 + $0xa0] sm:$0xff]
        %v832 = vld [vmem:[%s3 + $0xa8] sm:$0xff]
        %v833 = vld [vmem:[%s3 + $0xb0] sm:$0xff]
        %v834 = vld [vmem:[%s3 + $0xb8] sm:$0xff]
        %v835 = vld [vmem:[%s3 + $0xc0] sm:$0xff]
        %v836 = vld [vmem:[%s3 + $0xc8] sm:$0xff]
        %v837 = vld [vmem:[%s3 + $0xd0] sm:$0xff]
        %v838 = vld [vmem:[%s3 + $0xd8] sm:$0xff]
        %v839 = vld [vmem:[%s3 + $0xe0] sm:$0xff]
        %v840 = vld [vmem:[%s3 + $0xe8] sm:$0xff]
        %v841 = vld [vmem:[%s3 + $0xf0] sm:$0xff]
        %v842 = vld [vmem:[%s3 + $0xf8] sm:$0xff]
        %v843 = vld [vmem:[%s3 + $0x100] sm:$0xff]
        %v844 = vld [vmem:[%s3 + $0x108] sm:$0xff]
        %v845 = vld [vmem:[%s3 + $0x110] sm:$0xff]
        %v846 = vld [vmem:[%s3 + $0x118] sm:$0xff]
        %v847 = vld [vmem:[%s3 + $0x120] sm:$0xff]
        %v848 = vld [vmem:[%s3 + $0x128] sm:$0xff]
        %v849 = vld [vmem:[%s3 + $0x130] sm:$0xff]
        %v850 = vld [vmem:[%s3 + $0x138] sm:$0xff]
        %v851 = vld [vmem:[%s3 + $0x140] sm:$0xff]
        %v852 = vld [vmem:[%s3 + $0x148] sm:$0xff]
        %v853 = vld [vmem:[%s3 + $0x150] sm:$0xff]
        %v854 = vld [vmem:[%s3 + $0x158] sm:$0xff]
        %v855 = vld [vmem:[%s3 + $0x160] sm:$0xff]
        %v856 = vld [vmem:[%s3 + $0x168] sm:$0xff]
        %v857 = vld [vmem:[%s3 + $0x170] sm:$0xff]
        %v858 = vld [vmem:[%s3 + $0x178] sm:$0xff]
        %v859 = vld [vmem:[%s3 + $0x180] sm:$0xff]
        %v860 = vld [vmem:[%s3 + $0x188] sm:$0xff]
        %v861 = vld [vmem:[%s3 + $0x190] sm:$0xff]
        %v862 = vld [vmem:[%s3 + $0x198] sm:$0xff]
        %v863 = vld [vmem:[%s3 + $0x1a0] sm:$0xff]
        %v864 = vld [vmem:[%s3 + $0x1a8] sm:$0xff]
        %v865 = vld [vmem:[%s3 + $0x1b0] sm:$0xff]
        %v866 = vld [vmem:[%s3 + $0x1b8] sm:$0xff]
        %v867 = vld [vmem:[%s3 + $0x1c0] sm:$0xff]
        %v868 = vld [vmem:[%s3 + $0x1c8] sm:$0xff]
        %v869 = vld [vmem:[%s3 + $0x1d0] sm:$0xff]
        %v870 = vld [vmem:[%s3 + $0x1d8] sm:$0xff]
        %v871 = vld [vmem:[%s3 + $0x1e0] sm:$0xff]
        %v872 = vld [vmem:[%s3 + $0x1e8] sm:$0xff]
        %v873 = vld [vmem:[%s3 + $0x1f0] sm:$0xff]
        %v874 = vld [vmem:[%s3 + $0x1f8] sm:$0xff]
        %vm881 = vcmask 1045504
        %v882 = vrot.slane %v805, 2
        %v883 = vrot.slane %v807, 2
        %v884 = vsel %vm881, %v882, %v883
        %v885 = vrot.slane %v806, 2
        %v886 = vrot.slane %v808, 2
        %v887 = vsel %vm881, %v885, %v886
        %v888 = vrot.slane %v809, 2
        %v889 = vsel %vm881, %v883, %v888
        %v890 = vrot.slane %v810, 2
        %v891 = vsel %vm881, %v886, %v890
        %896 = vmatprep.subr.mxu0 %v812
        %897 = vmatpush1.msra.mxu0 %v811
        %898 = vmatprep.subr.mxu0 %v814
        %899 = vmatpush1.msra.mxu0 %v813
        %900 = vmatprep.subr.mxu0 %v816
        %901 = vmatpush1.msra.mxu0 %v815
        %902 = vmatprep.subr.mxu0 %v818
        %903 = vmatpush1.msra.mxu0 %v817
        %904 = vmatprep.subr.mxu0 %v820
        %905 = vmatpush1.msra.mxu0 %v819
        %906 = vmatprep.subr.mxu0 %v822
        %907 = vmatpush1.msra.mxu0 %v821
        %908 = vmatprep.subr.mxu0 %v824
        %909 = vmatpush1.msra.mxu0 %v823
        %910 = vmatprep.subr.mxu0 %v826
        %911 = vmatpush1.msra.mxu0 %v825
        %912 = vmatprep.subr.mxu0 %v828
        %913 = vmatpush1.msra.mxu0 %v827
        %914 = vmatprep.subr.mxu0 %v830
        %915 = vmatpush1.msra.mxu0 %v829
        %916 = vmatprep.subr.mxu0 %v832
        %917 = vmatpush1.msra.mxu0 %v831
        %918 = vmatprep.subr.mxu0 %v834
        %919 = vmatpush1.msra.mxu0 %v833
        %920 = vmatprep.subr.mxu0 %v836
        %921 = vmatpush1.msra.mxu0 %v835
        %922 = vmatprep.subr.mxu0 %v838
        %923 = vmatpush1.msra.mxu0 %v837
        %924 = vmatprep.subr.mxu0 %v840
        %925 = vmatpush1.msra.mxu0 %v839
        %926 = vmatprep.subr.mxu0 %v842
        %927 = vmatpush1.msra.mxu0 %v841
        %928 = vmatprep.subr.mxu0 %v844
        %929 = vmatpush1.msra.mxu0 %v843
        %930 = vmatprep.subr.mxu0 %v846
        %931 = vmatpush1.msra.mxu0 %v845
        %932 = vmatprep.subr.mxu0 %v848
        %933 = vmatpush1.msra.mxu0 %v847
        %934 = vmatprep.subr.mxu0 %v850
        %935 = vmatpush1.msra.mxu0 %v849
        %936 = vmatprep.subr.mxu0 %v852
        %937 = vmatpush1.msra.mxu0 %v851
        %938 = vmatprep.subr.mxu0 %v854
        %939 = vmatpush1.msra.mxu0 %v853
        %940 = vmatprep.subr.mxu0 %v856
        %941 = vmatpush1.msra.mxu0 %v855
        %942 = vmatprep.subr.mxu0 %v858
        %943 = vmatpush1.msra.mxu0 %v857
        %944 = vmatprep.subr.mxu0 %v860
        %945 = vmatpush1.msra.mxu0 %v859
        %946 = vmatprep.subr.mxu0 %v862
        %947 = vmatpush1.msra.mxu0 %v861
        %948 = vmatprep.subr.mxu0 %v864
        %949 = vmatpush1.msra.mxu0 %v863
        %950 = vmatprep.subr.mxu0 %v866
        %951 = vmatpush1.msra.mxu0 %v865
        %952 = vmatprep.subr.mxu0 %v868
        %953 = vmatpush1.msra.mxu0 %v867
        %954 = vmatprep.subr.mxu0 %v870
        %955 = vmatpush1.msra.mxu0 %v869
        %956 = vmatprep.subr.mxu0 %v872
        %957 = vmatpush1.msra.mxu0 %v871
        %958 = vmatprep.subr.mxu0 %v874
        %959 = vmatpush1.msra.mxu0 %v873
        %960 = vmatprep.mubr.f32.mxu0 %v887
        %961 = vmatmul.mubr.f32.gmra.mrb[0].mxu0 %v884
        %v962 = vpop.f32.mrb[0].mxu0
        %v963 = vadd.f32 0.0, %v962
        %v964 = vpop.f32.mrb[0].mxu0
        %v965 = vadd.f32 0.0, %v964
        %966 = vmatprep.mubr.f32.mxu0 %v891
        %967 = vmatmul.mubr.f32.gmra.mrb[0].mxu0 %v889
        %v968 = vpop.f32.mrb[0].mxu0
        %v969 = vadd.f32 0.0, %v968
        %v970 = vpop.f32.mrb[0].mxu0
        %v971 = vadd.f32 0.0, %v970
        %972 = vdwg.mxu0
        %v973 = vadd.f32 %v795, %v963
        %v974 = vadd.f32 %v797, %v965
        %v975 = vadd.f32 %v801, %v969
        %v976 = vadd.f32 %v803, %v971
        %v977 = vld [vmem:[%s4] sm:$0x3]
        %v979 = vlaneseq
        %v980 = vshrl.u32 %v979, 7
        %v981 = vsub.s32 0, %v980
        %v982 = vrot.slane %v977, %v981
        %v983 = vlaneseq
        %v984 = vshrl.u32 %v983, 7
        %v985 = vsub.s32 1, %v984
        %v986 = vrot.slane %v977, %v985
        %v989 = vadd.f32 %v973, %v982
        %v990 = vadd.f32 %v974, %v986
        %v991 = vadd.f32 %v975, %v982
        %v992 = vadd.f32 %v976, %v986
        %v993 = vmax.f32 %v989, 0.0
        %v994 = vmax.f32 %v990, 0.0
        %v995 = vmax.f32 %v991, 0.0
        %v996 = vmax.f32 %v992, 0.0
        %997 = vst.msk [vmem:[#allocation3] ss:$8 sm:$0x3] %vm490, 0.0
        %998 = vst.msk [vmem:[#allocation3] ss:$8 sm:$0x0] %vm490, 0.0
        %s999 = scalar_lea.vmem [#allocation3], 33
        %1000 = vst.msk [vmem:[%s999] ss:$8 sm:$0x3] %vm490, 0.0
        %1001 = vst.msk [vmem:[%s999] ss:$8 sm:$0x0] %vm490, 0.0
        %v1006 = vrot.slane %v993, 7
        %v1007 = vrot.slane %v994, 7
        %v1008 = vrot.slane %v995, 7
        %v1009 = vsel %vm500, %v1006, %v1008
        %v1010 = vrot.slane %v996, 7
        %v1011 = vsel %vm500, %v1007, %v1010
        %1018 = vst [vmem:[#allocation3] sm:$0xfe] %v1006
        %1019 = vst [vmem:[#allocation3 + $0x8] sm:$0xfe] %v1007
        %1020 = vst [vmem:[#allocation3 + $0x10] sm:$0xff] %v1009
        %1021 = vst [vmem:[#allocation3 + $0x18] sm:$0xff] %v1011
        %1022 = vst [vmem:[#allocation3 + $0x20] sm:$0x1] %v1008
        %1023 = vst [vmem:[#allocation3 + $0x28] sm:$0x1] %v1010
        %v1024 = vld [vmem:[%s6] sm:$0xff]
        %v1025 = vld [vmem:[%s6 + $0x8] sm:$0xff]
        %v1026 = vld [vmem:[%s6 + $0x10] sm:$0xff]
        %v1027 = vld [vmem:[%s6 + $0x18] sm:$0xff]
        %v1028 = vld [vmem:[%s6 + $0x20] sm:$0xff]
        %v1029 = vld [vmem:[%s6 + $0x28] sm:$0xff]
        %v1030 = vld [vmem:[%s6 + $0x30] sm:$0xff]
        %v1031 = vld [vmem:[%s6 + $0x38] sm:$0xff]
        %v1032 = vld [vmem:[%s6 + $0x40] sm:$0xff]
        %v1033 = vld [vmem:[%s6 + $0x48] sm:$0xff]
        %v1034 = vld [vmem:[%s6 + $0x50] sm:$0xff]
        %v1035 = vld [vmem:[%s6 + $0x58] sm:$0xff]
        %v1036 = vld [vmem:[%s6 + $0x60] sm:$0xff]
        %v1037 = vld [vmem:[%s6 + $0x68] sm:$0xff]
        %v1038 = vld [vmem:[%s6 + $0x70] sm:$0xff]
        %v1039 = vld [vmem:[%s6 + $0x78] sm:$0xff]
        %v1040 = vld [vmem:[%s6 + $0x80] sm:$0xff]
        %v1041 = vld [vmem:[%s6 + $0x88] sm:$0xff]
        %v1042 = vld [vmem:[%s6 + $0x90] sm:$0xff]
        %v1043 = vld [vmem:[%s6 + $0x98] sm:$0xff]
        %v1044 = vld [vmem:[%s6 + $0xa0] sm:$0xff]
        %v1045 = vld [vmem:[%s6 + $0xa8] sm:$0xff]
        %v1046 = vld [vmem:[%s6 + $0xb0] sm:$0xff]
        %v1047 = vld [vmem:[%s6 + $0xb8] sm:$0xff]
        %v1048 = vld [vmem:[%s6 + $0xc0] sm:$0xff]
        %v1049 = vld [vmem:[%s6 + $0xc8] sm:$0xff]
        %v1050 = vld [vmem:[%s6 + $0xd0] sm:$0xff]
        %v1051 = vld [vmem:[%s6 + $0xd8] sm:$0xff]
        %v1052 = vld [vmem:[%s6 + $0xe0] sm:$0xff]
        %v1053 = vld [vmem:[%s6 + $0xe8] sm:$0xff]
        %v1054 = vld [vmem:[%s6 + $0xf0] sm:$0xff]
        %v1055 = vld [vmem:[%s6 + $0xf8] sm:$0xff]
        %v1056 = vld [vmem:[%s6 + $0x100] sm:$0xff]
        %v1057 = vld [vmem:[%s6 + $0x108] sm:$0xff]
        %v1058 = vld [vmem:[%s6 + $0x110] sm:$0xff]
        %v1059 = vld [vmem:[%s6 + $0x118] sm:$0xff]
        %v1060 = vld [vmem:[%s6 + $0x120] sm:$0xff]
        %v1061 = vld [vmem:[%s6 + $0x128] sm:$0xff]
        %v1062 = vld [vmem:[%s6 + $0x130] sm:$0xff]
        %v1063 = vld [vmem:[%s6 + $0x138] sm:$0xff]
        %v1064 = vld [vmem:[%s6 + $0x140] sm:$0xff]
        %v1065 = vld [vmem:[%s6 + $0x148] sm:$0xff]
        %v1066 = vld [vmem:[%s6 + $0x150] sm:$0xff]
        %v1067 = vld [vmem:[%s6 + $0x158] sm:$0xff]
        %v1068 = vld [vmem:[%s6 + $0x160] sm:$0xff]
        %v1069 = vld [vmem:[%s6 + $0x168] sm:$0xff]
        %v1070 = vld [vmem:[%s6 + $0x170] sm:$0xff]
        %v1071 = vld [vmem:[%s6 + $0x178] sm:$0xff]
        %v1072 = vld [vmem:[%s6 + $0x180] sm:$0xff]
        %v1073 = vld [vmem:[%s6 + $0x188] sm:$0xff]
        %v1074 = vld [vmem:[%s6 + $0x190] sm:$0xff]
        %v1075 = vld [vmem:[%s6 + $0x198] sm:$0xff]
        %v1076 = vld [vmem:[%s6 + $0x1a0] sm:$0xff]
        %v1077 = vld [vmem:[%s6 + $0x1a8] sm:$0xff]
        %v1078 = vld [vmem:[%s6 + $0x1b0] sm:$0xff]
        %v1079 = vld [vmem:[%s6 + $0x1b8] sm:$0xff]
        %v1080 = vld [vmem:[%s6 + $0x1c0] sm:$0xff]
        %v1081 = vld [vmem:[%s6 + $0x1c8] sm:$0xff]
        %v1082 = vld [vmem:[%s6 + $0x1d0] sm:$0xff]
        %v1083 = vld [vmem:[%s6 + $0x1d8] sm:$0xff]
        %v1084 = vld [vmem:[%s6 + $0x1e0] sm:$0xff]
        %v1085 = vld [vmem:[%s6 + $0x1e8] sm:$0xff]
        %v1086 = vld [vmem:[%s6 + $0x1f0] sm:$0xff]
        %v1087 = vld [vmem:[%s6 + $0x1f8] sm:$0xff]
        %v1088 = vld [vmem:[#allocation3] sm:$0xff]
        %v1089 = vld [vmem:[#allocation3 + $0x8] sm:$0xff]
        %v1090 = vld [vmem:[#allocation3 + $0x10] sm:$0xff]
        %v1091 = vld [vmem:[#allocation3 + $0x18] sm:$0xff]
        %v1092 = vld [vmem:[%s5] sm:$0xff]
        %v1093 = vld [vmem:[%s5 + $0x8] sm:$0xff]
        %v1094 = vld [vmem:[%s5 + $0x10] sm:$0xff]
        %v1095 = vld [vmem:[%s5 + $0x18] sm:$0xff]
        %v1096 = vld [vmem:[%s5 + $0x20] sm:$0xff]
        %v1097 = vld [vmem:[%s5 + $0x28] sm:$0xff]
        %v1098 = vld [vmem:[%s5 + $0x30] sm:$0xff]
        %v1099 = vld [vmem:[%s5 + $0x38] sm:$0xff]
        %v1100 = vld [vmem:[%s5 + $0x40] sm:$0xff]
        %v1101 = vld [vmem:[%s5 + $0x48] sm:$0xff]
        %v1102 = vld [vmem:[%s5 + $0x50] sm:$0xff]
        %v1103 = vld [vmem:[%s5 + $0x58] sm:$0xff]
        %v1104 = vld [vmem:[%s5 + $0x60] sm:$0xff]
        %v1105 = vld [vmem:[%s5 + $0x68] sm:$0xff]
        %v1106 = vld [vmem:[%s5 + $0x70] sm:$0xff]
        %v1107 = vld [vmem:[%s5 + $0x78] sm:$0xff]
        %v1108 = vld [vmem:[%s5 + $0x80] sm:$0xff]
        %v1109 = vld [vmem:[%s5 + $0x88] sm:$0xff]
        %v1110 = vld [vmem:[%s5 + $0x90] sm:$0xff]
        %v1111 = vld [vmem:[%s5 + $0x98] sm:$0xff]
        %v1112 = vld [vmem:[%s5 + $0xa0] sm:$0xff]
        %v1113 = vld [vmem:[%s5 + $0xa8] sm:$0xff]
        %v1114 = vld [vmem:[%s5 + $0xb0] sm:$0xff]
        %v1115 = vld [vmem:[%s5 + $0xb8] sm:$0xff]
        %v1116 = vld [vmem:[%s5 + $0xc0] sm:$0xff]
        %v1117 = vld [vmem:[%s5 + $0xc8] sm:$0xff]
        %v1118 = vld [vmem:[%s5 + $0xd0] sm:$0xff]
        %v1119 = vld [vmem:[%s5 + $0xd8] sm:$0xff]
        %v1120 = vld [vmem:[%s5 + $0xe0] sm:$0xff]
        %v1121 = vld [vmem:[%s5 + $0xe8] sm:$0xff]
        %v1122 = vld [vmem:[%s5 + $0xf0] sm:$0xff]
        %v1123 = vld [vmem:[%s5 + $0xf8] sm:$0xff]
        %v1124 = vld [vmem:[%s5 + $0x100] sm:$0xff]
        %v1125 = vld [vmem:[%s5 + $0x108] sm:$0xff]
        %v1126 = vld [vmem:[%s5 + $0x110] sm:$0xff]
        %v1127 = vld [vmem:[%s5 + $0x118] sm:$0xff]
        %v1128 = vld [vmem:[%s5 + $0x120] sm:$0xff]
        %v1129 = vld [vmem:[%s5 + $0x128] sm:$0xff]
        %v1130 = vld [vmem:[%s5 + $0x130] sm:$0xff]
        %v1131 = vld [vmem:[%s5 + $0x138] sm:$0xff]
        %v1132 = vld [vmem:[%s5 + $0x140] sm:$0xff]
        %v1133 = vld [vmem:[%s5 + $0x148] sm:$0xff]
        %v1134 = vld [vmem:[%s5 + $0x150] sm:$0xff]
        %v1135 = vld [vmem:[%s5 + $0x158] sm:$0xff]
        %v1136 = vld [vmem:[%s5 + $0x160] sm:$0xff]
        %v1137 = vld [vmem:[%s5 + $0x168] sm:$0xff]
        %v1138 = vld [vmem:[%s5 + $0x170] sm:$0xff]
        %v1139 = vld [vmem:[%s5 + $0x178] sm:$0xff]
        %v1140 = vld [vmem:[%s5 + $0x180] sm:$0xff]
        %v1141 = vld [vmem:[%s5 + $0x188] sm:$0xff]
        %v1142 = vld [vmem:[%s5 + $0x190] sm:$0xff]
        %v1143 = vld [vmem:[%s5 + $0x198] sm:$0xff]
        %v1144 = vld [vmem:[%s5 + $0x1a0] sm:$0xff]
        %v1145 = vld [vmem:[%s5 + $0x1a8] sm:$0xff]
        %v1146 = vld [vmem:[%s5 + $0x1b0] sm:$0xff]
        %v1147 = vld [vmem:[%s5 + $0x1b8] sm:$0xff]
        %v1148 = vld [vmem:[%s5 + $0x1c0] sm:$0xff]
        %v1149 = vld [vmem:[%s5 + $0x1c8] sm:$0xff]
        %v1150 = vld [vmem:[%s5 + $0x1d0] sm:$0xff]
        %v1151 = vld [vmem:[%s5 + $0x1d8] sm:$0xff]
        %v1152 = vld [vmem:[%s5 + $0x1e0] sm:$0xff]
        %v1153 = vld [vmem:[%s5 + $0x1e8] sm:$0xff]
        %v1154 = vld [vmem:[%s5 + $0x1f0] sm:$0xff]
        %v1155 = vld [vmem:[%s5 + $0x1f8] sm:$0xff]
        %1156 = vmatprep.subr.mxu0 %v1093
        %1157 = vmatpush1.msra.mxu0 %v1092
        %1158 = vmatprep.subr.mxu0 %v1095
        %1159 = vmatpush1.msra.mxu0 %v1094
        %1160 = vmatprep.subr.mxu0 %v1097
        %1161 = vmatpush1.msra.mxu0 %v1096
        %1162 = vmatprep.subr.mxu0 %v1099
        %1163 = vmatpush1.msra.mxu0 %v1098
        %1164 = vmatprep.subr.mxu0 %v1101
        %1165 = vmatpush1.msra.mxu0 %v1100
        %1166 = vmatprep.subr.mxu0 %v1103
        %1167 = vmatpush1.msra.mxu0 %v1102
        %1168 = vmatprep.subr.mxu0 %v1105
        %1169 = vmatpush1.msra.mxu0 %v1104
        %1170 = vmatprep.subr.mxu0 %v1107
        %1171 = vmatpush1.msra.mxu0 %v1106
        %1172 = vmatprep.subr.mxu0 %v1109
        %1173 = vmatpush1.msra.mxu0 %v1108
        %1174 = vmatprep.subr.mxu0 %v1111
        %1175 = vmatpush1.msra.mxu0 %v1110
        %1176 = vmatprep.subr.mxu0 %v1113
        %1177 = vmatpush1.msra.mxu0 %v1112
        %1178 = vmatprep.subr.mxu0 %v1115
        %1179 = vmatpush1.msra.mxu0 %v1114
        %1180 = vmatprep.subr.mxu0 %v1117
        %1181 = vmatpush1.msra.mxu0 %v1116
        %1182 = vmatprep.subr.mxu0 %v1119
        %1183 = vmatpush1.msra.mxu0 %v1118
        %1184 = vmatprep.subr.mxu0 %v1121
        %1185 = vmatpush1.msra.mxu0 %v1120
        %1186 = vmatprep.subr.mxu0 %v1123
        %1187 = vmatpush1.msra.mxu0 %v1122
        %1188 = vmatprep.subr.mxu0 %v1125
        %1189 = vmatpush1.msra.mxu0 %v1124
        %1190 = vmatprep.subr.mxu0 %v1127
        %1191 = vmatpush1.msra.mxu0 %v1126
        %1192 = vmatprep.subr.mxu0 %v1129
        %1193 = vmatpush1.msra.mxu0 %v1128
        %1194 = vmatprep.subr.mxu0 %v1131
        %1195 = vmatpush1.msra.mxu0 %v1130
        %1196 = vmatprep.subr.mxu0 %v1133
        %1197 = vmatpush1.msra.mxu0 %v1132
        %1198 = vmatprep.subr.mxu0 %v1135
        %1199 = vmatpush1.msra.mxu0 %v1134
        %1200 = vmatprep.subr.mxu0 %v1137
        %1201 = vmatpush1.msra.mxu0 %v1136
        %1202 = vmatprep.subr.mxu0 %v1139
        %1203 = vmatpush1.msra.mxu0 %v1138
        %1204 = vmatprep.subr.mxu0 %v1141
        %1205 = vmatpush1.msra.mxu0 %v1140
        %1206 = vmatprep.subr.mxu0 %v1143
        %1207 = vmatpush1.msra.mxu0 %v1142
        %1208 = vmatprep.subr.mxu0 %v1145
        %1209 = vmatpush1.msra.mxu0 %v1144
        %1210 = vmatprep.subr.mxu0 %v1147
        %1211 = vmatpush1.msra.mxu0 %v1146
        %1212 = vmatprep.subr.mxu0 %v1149
        %1213 = vmatpush1.msra.mxu0 %v1148
        %1214 = vmatprep.subr.mxu0 %v1151
        %1215 = vmatpush1.msra.mxu0 %v1150
        %1216 = vmatprep.subr.mxu0 %v1153
        %1217 = vmatpush1.msra.mxu0 %v1152
        %1218 = vmatprep.subr.mxu0 %v1155
        %1219 = vmatpush1.msra.mxu0 %v1154
        %1220 = vmatprep.mubr.f32.mxu0 %v1089
        %1221 = vmatmul.mubr.f32.gmra.mrb[0].mxu0 %v1088
        %v1222 = vpop.f32.mrb[0].mxu0
        %v1223 = vadd.f32 0.0, %v1222
        %v1224 = vpop.f32.mrb[0].mxu0
        %v1225 = vadd.f32 0.0, %v1224
        %1226 = vmatprep.mubr.f32.mxu0 %v1091
        %1227 = vmatmul.mubr.f32.gmra.mrb[0].mxu0 %v1090
        %v1228 = vpop.f32.mrb[0].mxu0
        %v1229 = vadd.f32 0.0, %v1228
        %v1230 = vpop.f32.mrb[0].mxu0
        %v1231 = vadd.f32 0.0, %v1230
        %1232 = vdwg.mxu0
        %1233 = vmatprep.subr.mxu0 %v1025
        %1234 = vmatpush1.msra.mxu0 %v1024
        %1235 = vmatprep.subr.mxu0 %v1027
        %1236 = vmatpush1.msra.mxu0 %v1026
        %1237 = vmatprep.subr.mxu0 %v1029
        %1238 = vmatpush1.msra.mxu0 %v1028
        %1239 = vmatprep.subr.mxu0 %v1031
        %1240 = vmatpush1.msra.mxu0 %v1030
        %1241 = vmatprep.subr.mxu0 %v1033
        %1242 = vmatpush1.msra.mxu0 %v1032
        %1243 = vmatprep.subr.mxu0 %v1035
        %1244 = vmatpush1.msra.mxu0 %v1034
        %1245 = vmatprep.subr.mxu0 %v1037
        %1246 = vmatpush1.msra.mxu0 %v1036
        %1247 = vmatprep.subr.mxu0 %v1039
        %1248 = vmatpush1.msra.mxu0 %v1038
        %1249 = vmatprep.subr.mxu0 %v1041
        %1250 = vmatpush1.msra.mxu0 %v1040
        %1251 = vmatprep.subr.mxu0 %v1043
        %1252 = vmatpush1.msra.mxu0 %v1042
        %1253 = vmatprep.subr.mxu0 %v1045
        %1254 = vmatpush1.msra.mxu0 %v1044
        %1255 = vmatprep.subr.mxu0 %v1047
        %1256 = vmatpush1.msra.mxu0 %v1046
        %1257 = vmatprep.subr.mxu0 %v1049
        %1258 = vmatpush1.msra.mxu0 %v1048
        %1259 = vmatprep.subr.mxu0 %v1051
        %1260 = vmatpush1.msra.mxu0 %v1050
        %1261 = vmatprep.subr.mxu0 %v1053
        %1262 = vmatpush1.msra.mxu0 %v1052
        %1263 = vmatprep.subr.mxu0 %v1055
        %1264 = vmatpush1.msra.mxu0 %v1054
        %1265 = vmatprep.subr.mxu0 %v1057
        %1266 = vmatpush1.msra.mxu0 %v1056
        %1267 = vmatprep.subr.mxu0 %v1059
        %1268 = vmatpush1.msra.mxu0 %v1058
        %1269 = vmatprep.subr.mxu0 %v1061
        %1270 = vmatpush1.msra.mxu0 %v1060
        %1271 = vmatprep.subr.mxu0 %v1063
        %1272 = vmatpush1.msra.mxu0 %v1062
        %1273 = vmatprep.subr.mxu0 %v1065
        %1274 = vmatpush1.msra.mxu0 %v1064
        %1275 = vmatprep.subr.mxu0 %v1067
        %1276 = vmatpush1.msra.mxu0 %v1066
        %1277 = vmatprep.subr.mxu0 %v1069
        %1278 = vmatpush1.msra.mxu0 %v1068
        %1279 = vmatprep.subr.mxu0 %v1071
        %1280 = vmatpush1.msra.mxu0 %v1070
        %1281 = vmatprep.subr.mxu0 %v1073
        %1282 = vmatpush1.msra.mxu0 %v1072
        %1283 = vmatprep.subr.mxu0 %v1075
        %1284 = vmatpush1.msra.mxu0 %v1074
        %1285 = vmatprep.subr.mxu0 %v1077
        %1286 = vmatpush1.msra.mxu0 %v1076
        %1287 = vmatprep.subr.mxu0 %v1079
        %1288 = vmatpush1.msra.mxu0 %v1078
        %1289 = vmatprep.subr.mxu0 %v1081
        %1290 = vmatpush1.msra.mxu0 %v1080
        %1291 = vmatprep.subr.mxu0 %v1083
        %1292 = vmatpush1.msra.mxu0 %v1082
        %1293 = vmatprep.subr.mxu0 %v1085
        %1294 = vmatpush1.msra.mxu0 %v1084
        %1295 = vmatprep.subr.mxu0 %v1087
        %1296 = vmatpush1.msra.mxu0 %v1086
        %1297 = vmatprep.mubr.f32.mxu0 %v994
        %1298 = vmatmul.mubr.f32.gmra.mrb[0].mxu0 %v993
        %v1299 = vpop.f32.mrb[0].mxu0
        %v1300 = vadd.f32 %v1223, %v1299
        %v1301 = vpop.f32.mrb[0].mxu0
        %v1302 = vadd.f32 %v1225, %v1301
        %1303 = vmatprep.mubr.f32.mxu0 %v996
        %1304 = vmatmul.mubr.f32.gmra.mrb[0].mxu0 %v995
        %v1305 = vpop.f32.mrb[0].mxu0
        %v1306 = vadd.f32 %v1229, %v1305
        %v1307 = vpop.f32.mrb[0].mxu0
        %v1308 = vadd.f32 %v1231, %v1307
        %1309 = vdwg.mxu0
        %v1310 = vld [vmem:[#allocation3] sm:$0xfc]
        %v1311 = vld [vmem:[#allocation3 + $0x8] sm:$0xfc]
        %v1312 = vld [vmem:[#allocation3 + $0x10] sm:$0xff]
        %v1313 = vld [vmem:[#allocation3 + $0x18] sm:$0xff]
        %v1314 = vld [vmem:[#allocation3 + $0x20] sm:$0x3]
        %v1315 = vld [vmem:[#allocation3 + $0x28] sm:$0x3]
        %v1316 = vld [vmem:[%s7] sm:$0xff]
        %v1317 = vld [vmem:[%s7 + $0x8] sm:$0xff]
        %v1318 = vld [vmem:[%s7 + $0x10] sm:$0xff]
        %v1319 = vld [vmem:[%s7 + $0x18] sm:$0xff]
        %v1320 = vld [vmem:[%s7 + $0x20] sm:$0xff]
        %v1321 = vld [vmem:[%s7 + $0x28] sm:$0xff]
        %v1322 = vld [vmem:[%s7 + $0x30] sm:$0xff]
        %v1323 = vld [vmem:[%s7 + $0x38] sm:$0xff]
        %v1324 = vld [vmem:[%s7 + $0x40] sm:$0xff]
        %v1325 = vld [vmem:[%s7 + $0x48] sm:$0xff]
        %v1326 = vld [vmem:[%s7 + $0x50] sm:$0xff]
        %v1327 = vld [vmem:[%s7 + $0x58] sm:$0xff]
        %v1328 = vld [vmem:[%s7 + $0x60] sm:$0xff]
        %v1329 = vld [vmem:[%s7 + $0x68] sm:$0xff]
        %v1330 = vld [vmem:[%s7 + $0x70] sm:$0xff]
        %v1331 = vld [vmem:[%s7 + $0x78] sm:$0xff]
        %v1332 = vld [vmem:[%s7 + $0x80] sm:$0xff]
        %v1333 = vld [vmem:[%s7 + $0x88] sm:$0xff]
        %v1334 = vld [vmem:[%s7 + $0x90] sm:$0xff]
        %v1335 = vld [vmem:[%s7 + $0x98] sm:$0xff]
        %v1336 = vld [vmem:[%s7 + $0xa0] sm:$0xff]
        %v1337 = vld [vmem:[%s7 + $0xa8] sm:$0xff]
        %v1338 = vld [vmem:[%s7 + $0xb0] sm:$0xff]
        %v1339 = vld [vmem:[%s7 + $0xb8] sm:$0xff]
        %v1340 = vld [vmem:[%s7 + $0xc0] sm:$0xff]
        %v1341 = vld [vmem:[%s7 + $0xc8] sm:$0xff]
        %v1342 = vld [vmem:[%s7 + $0xd0] sm:$0xff]
        %v1343 = vld [vmem:[%s7 + $0xd8] sm:$0xff]
        %v1344 = vld [vmem:[%s7 + $0xe0] sm:$0xff]
        %v1345 = vld [vmem:[%s7 + $0xe8] sm:$0xff]
        %v1346 = vld [vmem:[%s7 + $0xf0] sm:$0xff]
        %v1347 = vld [vmem:[%s7 + $0xf8] sm:$0xff]
        %v1348 = vld [vmem:[%s7 + $0x100] sm:$0xff]
        %v1349 = vld [vmem:[%s7 + $0x108] sm:$0xff]
        %v1350 = vld [vmem:[%s7 + $0x110] sm:$0xff]
        %v1351 = vld [vmem:[%s7 + $0x118] sm:$0xff]
        %v1352 = vld [vmem:[%s7 + $0x120] sm:$0xff]
        %v1353 = vld [vmem:[%s7 + $0x128] sm:$0xff]
        %v1354 = vld [vmem:[%s7 + $0x130] sm:$0xff]
        %v1355 = vld [vmem:[%s7 + $0x138] sm:$0xff]
        %v1356 = vld [vmem:[%s7 + $0x140] sm:$0xff]
        %v1357 = vld [vmem:[%s7 + $0x148] sm:$0xff]
        %v1358 = vld [vmem:[%s7 + $0x150] sm:$0xff]
        %v1359 = vld [vmem:[%s7 + $0x158] sm:$0xff]
        %v1360 = vld [vmem:[%s7 + $0x160] sm:$0xff]
        %v1361 = vld [vmem:[%s7 + $0x168] sm:$0xff]
        %v1362 = vld [vmem:[%s7 + $0x170] sm:$0xff]
        %v1363 = vld [vmem:[%s7 + $0x178] sm:$0xff]
        %v1364 = vld [vmem:[%s7 + $0x180] sm:$0xff]
        %v1365 = vld [vmem:[%s7 + $0x188] sm:$0xff]
        %v1366 = vld [vmem:[%s7 + $0x190] sm:$0xff]
        %v1367 = vld [vmem:[%s7 + $0x198] sm:$0xff]
        %v1368 = vld [vmem:[%s7 + $0x1a0] sm:$0xff]
        %v1369 = vld [vmem:[%s7 + $0x1a8] sm:$0xff]
        %v1370 = vld [vmem:[%s7 + $0x1b0] sm:$0xff]
        %v1371 = vld [vmem:[%s7 + $0x1b8] sm:$0xff]
        %v1372 = vld [vmem:[%s7 + $0x1c0] sm:$0xff]
        %v1373 = vld [vmem:[%s7 + $0x1c8] sm:$0xff]
        %v1374 = vld [vmem:[%s7 + $0x1d0] sm:$0xff]
        %v1375 = vld [vmem:[%s7 + $0x1d8] sm:$0xff]
        %v1376 = vld [vmem:[%s7 + $0x1e0] sm:$0xff]
        %v1377 = vld [vmem:[%s7 + $0x1e8] sm:$0xff]
        %v1378 = vld [vmem:[%s7 + $0x1f0] sm:$0xff]
        %v1379 = vld [vmem:[%s7 + $0x1f8] sm:$0xff]
        %v1386 = vrot.slane %v1310, 2
        %v1387 = vrot.slane %v1312, 2
        %v1388 = vsel %vm881, %v1386, %v1387
        %v1389 = vrot.slane %v1311, 2
        %v1390 = vrot.slane %v1313, 2
        %v1391 = vsel %vm881, %v1389, %v1390
        %v1392 = vrot.slane %v1314, 2
        %v1393 = vsel %vm881, %v1387, %v1392
        %v1394 = vrot.slane %v1315, 2
        %v1395 = vsel %vm881, %v1390, %v1394
        %1400 = vmatprep.subr.mxu0 %v1317
        %1401 = vmatpush1.msra.mxu0 %v1316
        %1402 = vmatprep.subr.mxu0 %v1319
        %1403 = vmatpush1.msra.mxu0 %v1318
        %1404 = vmatprep.subr.mxu0 %v1321
        %1405 = vmatpush1.msra.mxu0 %v1320
        %1406 = vmatprep.subr.mxu0 %v1323
        %1407 = vmatpush1.msra.mxu0 %v1322
        %1408 = vmatprep.subr.mxu0 %v1325
        %1409 = vmatpush1.msra.mxu0 %v1324
        %1410 = vmatprep.subr.mxu0 %v1327
        %1411 = vmatpush1.msra.mxu0 %v1326
        %1412 = vmatprep.subr.mxu0 %v1329
        %1413 = vmatpush1.msra.mxu0 %v1328
        %1414 = vmatprep.subr.mxu0 %v1331
        %1415 = vmatpush1.msra.mxu0 %v1330
        %1416 = vmatprep.subr.mxu0 %v1333
        %1417 = vmatpush1.msra.mxu0 %v1332
        %1418 = vmatprep.subr.mxu0 %v1335
        %1419 = vmatpush1.msra.mxu0 %v1334
        %1420 = vmatprep.subr.mxu0 %v1337
        %1421 = vmatpush1.msra.mxu0 %v1336
        %1422 = vmatprep.subr.mxu0 %v1339
        %1423 = vmatpush1.msra.mxu0 %v1338
        %1424 = vmatprep.subr.mxu0 %v1341
        %1425 = vmatpush1.msra.mxu0 %v1340
        %1426 = vmatprep.subr.mxu0 %v1343
        %1427 = vmatpush1.msra.mxu0 %v1342
        %1428 = vmatprep.subr.mxu0 %v1345
        %1429 = vmatpush1.msra.mxu0 %v1344
        %1430 = vmatprep.subr.mxu0 %v1347
        %1431 = vmatpush1.msra.mxu0 %v1346
        %1432 = vmatprep.subr.mxu0 %v1349
        %1433 = vmatpush1.msra.mxu0 %v1348
        %1434 = vmatprep.subr.mxu0 %v1351
        %1435 = vmatpush1.msra.mxu0 %v1350
        %1436 = vmatprep.subr.mxu0 %v1353
        %1437 = vmatpush1.msra.mxu0 %v1352
        %1438 = vmatprep.subr.mxu0 %v1355
        %1439 = vmatpush1.msra.mxu0 %v1354
        %1440 = vmatprep.subr.mxu0 %v1357
        %1441 = vmatpush1.msra.mxu0 %v1356
        %1442 = vmatprep.subr.mxu0 %v1359
        %1443 = vmatpush1.msra.mxu0 %v1358
        %1444 = vmatprep.subr.mxu0 %v1361
        %1445 = vmatpush1.msra.mxu0 %v1360
        %1446 = vmatprep.subr.mxu0 %v1363
        %1447 = vmatpush1.msra.mxu0 %v1362
        %1448 = vmatprep.subr.mxu0 %v1365
        %1449 = vmatpush1.msra.mxu0 %v1364
        %1450 = vmatprep.subr.mxu0 %v1367
        %1451 = vmatpush1.msra.mxu0 %v1366
        %1452 = vmatprep.subr.mxu0 %v1369
        %1453 = vmatpush1.msra.mxu0 %v1368
        %1454 = vmatprep.subr.mxu0 %v1371
        %1455 = vmatpush1.msra.mxu0 %v1370
        %1456 = vmatprep.subr.mxu0 %v1373
        %1457 = vmatpush1.msra.mxu0 %v1372
        %1458 = vmatprep.subr.mxu0 %v1375
        %1459 = vmatpush1.msra.mxu0 %v1374
        %1460 = vmatprep.subr.mxu0 %v1377
        %1461 = vmatpush1.msra.mxu0 %v1376
        %1462 = vmatprep.subr.mxu0 %v1379
        %1463 = vmatpush1.msra.mxu0 %v1378
        %1464 = vmatprep.mubr.f32.mxu0 %v1391
        %1465 = vmatmul.mubr.f32.gmra.mrb[0].mxu0 %v1388
        %v1466 = vpop.f32.mrb[0].mxu0
        %v1467 = vadd.f32 0.0, %v1466
        %v1468 = vpop.f32.mrb[0].mxu0
        %v1469 = vadd.f32 0.0, %v1468
        %1470 = vmatprep.mubr.f32.mxu0 %v1395
        %1471 = vmatmul.mubr.f32.gmra.mrb[0].mxu0 %v1393
        %v1472 = vpop.f32.mrb[0].mxu0
        %v1473 = vadd.f32 0.0, %v1472
        %v1474 = vpop.f32.mrb[0].mxu0
        %v1475 = vadd.f32 0.0, %v1474
        %1476 = vdwg.mxu0
        %v1477 = vadd.f32 %v1300, %v1467
        %v1478 = vadd.f32 %v1302, %v1469
        %v1479 = vadd.f32 %v1306, %v1473
        %v1480 = vadd.f32 %v1308, %v1475
        %v1481 = vld [vmem:[%s8] sm:$0x3]
        %v1483 = vlaneseq
        %v1484 = vshrl.u32 %v1483, 7
        %v1485 = vsub.s32 0, %v1484
        %v1486 = vrot.slane %v1481, %v1485
        %v1487 = vlaneseq
        %v1488 = vshrl.u32 %v1487, 7
        %v1489 = vsub.s32 1, %v1488
        %v1490 = vrot.slane %v1481, %v1489
        %v1493 = vadd.f32 %v1477, %v1486
        %v1494 = vadd.f32 %v1478, %v1490
        %v1495 = vadd.f32 %v1479, %v1486
        %v1496 = vadd.f32 %v1480, %v1490
        %1497 = vrot.lane.b32.xlu0 %v1493, 1
        %v1498 = vpop.permute.xlu0 %1497
        %1499 = vrot.lane.b32.xlu0 %v1495, 1
        %v1500 = vpop.permute.xlu0 %1499
        %1501 = vrot.lane.b32.xlu0 %v1494, 1
        %v1502 = vpop.permute.xlu0 %1501
        %1503 = vrot.lane.b32.xlu0 %v1496, 1
        %v1504 = vpop.permute.xlu0 %1503
        %v1505 = vlaneseq
        %v1506 = vand.u32 %v1505, 127
        %vm1507 = vcmp.lt.s32.totalorder %v1506, 1
        %v1508 = vsel %vm1507, %v1498, %v1502
        %v1509 = vsel %vm1507, %v1500, %v1504
        %v1510 = vsel %vm1507, %v1502, %v1498
        %v1511 = vsel %vm1507, %v1504, %v1500
        %v1512 = vmax.f32 %v1493, %v1510
        %v1513 = vmax.f32 %v1494, %v1508
        %v1514 = vmax.f32 %v1495, %v1511
        %v1515 = vmax.f32 %v1496, %v1509
        %1516 = vrot.lane.b32.xlu0 %v1512, 2
        %v1517 = vpop.permute.xlu0 %1516
        %1518 = vrot.lane.b32.xlu0 %v1514, 2
        %v1519 = vpop.permute.xlu0 %1518
        %1520 = vrot.lane.b32.xlu0 %v1513, 2
        %v1521 = vpop.permute.xlu0 %1520
        %1522 = vrot.lane.b32.xlu0 %v1515, 2
        %v1523 = vpop.permute.xlu0 %1522
        %vm1524 = vcmp.lt.s32.totalorder %v1506, 2
        %v1525 = vsel %vm1524, %v1517, %v1521
        %v1526 = vsel %vm1524, %v1519, %v1523
        %v1527 = vsel %vm1524, %v1521, %v1517
        %v1528 = vsel %vm1524, %v1523, %v1519
        %v1529 = vmax.f32 %v1512, %v1527
        %v1530 = vmax.f32 %v1513, %v1525
        %v1531 = vmax.f32 %v1514, %v1528
        %v1532 = vmax.f32 %v1515, %v1526
        %1533 = vrot.lane.b32.xlu0 %v1529, 4
        %v1534 = vpop.permute.xlu0 %1533
        %1535 = vrot.lane.b32.xlu0 %v1531, 4
        %v1536 = vpop.permute.xlu0 %1535
        %1537 = vrot.lane.b32.xlu0 %v1530, 4
        %v1538 = vpop.permute.xlu0 %1537
        %1539 = vrot.lane.b32.xlu0 %v1532, 4
        %v1540 = vpop.permute.xlu0 %1539
        %vm1541 = vcmp.lt.s32.totalorder %v1506, 4
        %v1542 = vsel %vm1541, %v1534, %v1538
        %v1543 = vsel %vm1541, %v1536, %v1540
        %v1544 = vsel %vm1541, %v1538, %v1534
        %v1545 = vsel %vm1541, %v1540, %v1536
        %v1546 = vmax.f32 %v1529, %v1544
        %v1547 = vmax.f32 %v1530, %v1542
        %v1548 = vmax.f32 %v1531, %v1545
        %v1549 = vmax.f32 %v1532, %v1543
        %1550 = vrot.lane.b32.xlu0 %v1546, 8
        %v1551 = vpop.permute.xlu0 %1550
        %1552 = vrot.lane.b32.xlu0 %v1548, 8
        %v1553 = vpop.permute.xlu0 %1552
        %1554 = vrot.lane.b32.xlu0 %v1547, 8
        %v1555 = vpop.permute.xlu0 %1554
        %1556 = vrot.lane.b32.xlu0 %v1549, 8
        %v1557 = vpop.permute.xlu0 %1556
        %vm1558 = vcmp.lt.s32.totalorder %v1506, 8
        %v1559 = vsel %vm1558, %v1551, %v1555
        %v1560 = vsel %vm1558, %v1553, %v1557
        %v1561 = vsel %vm1558, %v1555, %v1551
        %v1562 = vsel %vm1558, %v1557, %v1553
        %v1563 = vmax.f32 %v1546, %v1561
        %v1564 = vmax.f32 %v1547, %v1559
        %v1565 = vmax.f32 %v1548, %v1562
        %v1566 = vmax.f32 %v1549, %v1560
        %v1567 = vld [vmem:[%s9] sm:$0xff]
        %v1568 = vld [vmem:[%s9 + $0x8] sm:$0xff]
        %v1569 = vld [vmem:[%s9 + $0x10] sm:$0xff]
        %v1570 = vld [vmem:[%s9 + $0x18] sm:$0xff]
        %v1571 = vld [vmem:[%s9 + $0x20] sm:$0xff]
        %v1572 = vld [vmem:[%s9 + $0x28] sm:$0xff]
        %v1573 = vld [vmem:[%s9 + $0x30] sm:$0xff]
        %v1574 = vld [vmem:[%s9 + $0x38] sm:$0xff]
        %v1575 = vld [vmem:[%s9 + $0x40] sm:$0xff]
        %v1576 = vld [vmem:[%s9 + $0x48] sm:$0xff]
        %v1577 = vld [vmem:[%s9 + $0x50] sm:$0xff]
        %v1578 = vld [vmem:[%s9 + $0x58] sm:$0xff]
        %v1579 = vld [vmem:[%s9 + $0x60] sm:$0xff]
        %v1580 = vld [vmem:[%s9 + $0x68] sm:$0xff]
        %v1581 = vld [vmem:[%s9 + $0x70] sm:$0xff]
        %v1582 = vld [vmem:[%s9 + $0x78] sm:$0xff]
        %v1583 = vld [vmem:[%s9 + $0x80] sm:$0xff]
        %v1584 = vld [vmem:[%s9 + $0x88] sm:$0xff]
        %v1585 = vld [vmem:[%s9 + $0x90] sm:$0xff]
        %v1586 = vld [vmem:[%s9 + $0x98] sm:$0xff]
        %v1587 = vld [vmem:[%s9 + $0xa0] sm:$0xff]
        %v1588 = vld [vmem:[%s9 + $0xa8] sm:$0xff]
        %v1589 = vld [vmem:[%s9 + $0xb0] sm:$0xff]
        %v1590 = vld [vmem:[%s9 + $0xb8] sm:$0xff]
        %v1591 = vld [vmem:[%s9 + $0xc0] sm:$0xff]
        %v1592 = vld [vmem:[%s9 + $0xc8] sm:$0xff]
        %v1593 = vld [vmem:[%s9 + $0xd0] sm:$0xff]
        %v1594 = vld [vmem:[%s9 + $0xd8] sm:$0xff]
        %v1595 = vld [vmem:[%s9 + $0xe0] sm:$0xff]
        %v1596 = vld [vmem:[%s9 + $0xe8] sm:$0xff]
        %v1597 = vld [vmem:[%s9 + $0xf0] sm:$0xff]
        %v1598 = vld [vmem:[%s9 + $0xf8] sm:$0xff]
        %v1599 = vld [vmem:[%s10] sm:$0xff]
        %v1600 = vld [vmem:[%s10 + $0x8] sm:$0xff]
        %v1601 = vld [vmem:[%s10 + $0x10] sm:$0xff]
        %v1602 = vld [vmem:[%s10 + $0x18] sm:$0xff]
        %v1603 = vld [vmem:[%s10 + $0x20] sm:$0xff]
        %v1604 = vld [vmem:[%s10 + $0x28] sm:$0xff]
        %v1605 = vld [vmem:[%s10 + $0x30] sm:$0xff]
        %v1606 = vld [vmem:[%s10 + $0x38] sm:$0xff]
        %v1607 = vld [vmem:[%s10 + $0x40] sm:$0xff]
        %v1608 = vld [vmem:[%s10 + $0x48] sm:$0xff]
        %v1609 = vld [vmem:[%s10 + $0x50] sm:$0xff]
        %v1610 = vld [vmem:[%s10 + $0x58] sm:$0xff]
        %v1611 = vld [vmem:[%s10 + $0x60] sm:$0xff]
        %v1612 = vld [vmem:[%s10 + $0x68] sm:$0xff]
        %v1613 = vld [vmem:[%s10 + $0x70] sm:$0xff]
        %v1614 = vld [vmem:[%s10 + $0x78] sm:$0xff]
        %v1615 = vld [vmem:[%s10 + $0x80] sm:$0xff]
        %v1616 = vld [vmem:[%s10 + $0x88] sm:$0xff]
        %v1617 = vld [vmem:[%s10 + $0x90] sm:$0xff]
        %v1618 = vld [vmem:[%s10 + $0x98] sm:$0xff]
        %v1619 = vld [vmem:[%s10 + $0xa0] sm:$0xff]
        %v1620 = vld [vmem:[%s10 + $0xa8] sm:$0xff]
        %v1621 = vld [vmem:[%s10 + $0xb0] sm:$0xff]
        %v1622 = vld [vmem:[%s10 + $0xb8] sm:$0xff]
        %v1623 = vld [vmem:[%s10 + $0xc0] sm:$0xff]
        %v1624 = vld [vmem:[%s10 + $0xc8] sm:$0xff]
        %v1625 = vld [vmem:[%s10 + $0xd0] sm:$0xff]
        %v1626 = vld [vmem:[%s10 + $0xd8] sm:$0xff]
        %v1627 = vld [vmem:[%s10 + $0xe0] sm:$0xff]
        %v1628 = vld [vmem:[%s10 + $0xe8] sm:$0xff]
        %v1629 = vld [vmem:[%s10 + $0xf0] sm:$0xff]
        %v1630 = vld [vmem:[%s10 + $0xf8] sm:$0xff]
        %1631 = vmatprep.subr.mxu0 0.0
        %1632 = vmatpush1.msra.mxu0 %v1599
        %1633 = vmatprep.subr.mxu0 0.0
        %1634 = vmatpush1.msra.mxu0 %v1600
        %1635 = vmatprep.subr.mxu0 0.0
        %1636 = vmatpush1.msra.mxu0 %v1601
        %1637 = vmatprep.subr.mxu0 0.0
        %1638 = vmatpush1.msra.mxu0 %v1602
        %1639 = vmatprep.subr.mxu0 0.0
        %1640 = vmatpush1.msra.mxu0 %v1603
        %1641 = vmatprep.subr.mxu0 0.0
        %1642 = vmatpush1.msra.mxu0 %v1604
        %1643 = vmatprep.subr.mxu0 0.0
        %1644 = vmatpush1.msra.mxu0 %v1605
        %1645 = vmatprep.subr.mxu0 0.0
        %1646 = vmatpush1.msra.mxu0 %v1606
        %1647 = vmatprep.subr.mxu0 0.0
        %1648 = vmatpush1.msra.mxu0 %v1607
        %1649 = vmatprep.subr.mxu0 0.0
        %1650 = vmatpush1.msra.mxu0 %v1608
        %1651 = vmatprep.subr.mxu0 0.0
        %1652 = vmatpush1.msra.mxu0 %v1609
        %1653 = vmatprep.subr.mxu0 0.0
        %1654 = vmatpush1.msra.mxu0 %v1610
        %1655 = vmatprep.subr.mxu0 0.0
        %1656 = vmatpush1.msra.mxu0 %v1611
        %1657 = vmatprep.subr.mxu0 0.0
        %1658 = vmatpush1.msra.mxu0 %v1612
        %1659 = vmatprep.subr.mxu0 0.0
        %1660 = vmatpush1.msra.mxu0 %v1613
        %1661 = vmatprep.subr.mxu0 0.0
        %1662 = vmatpush1.msra.mxu0 %v1614
        %1663 = vmatprep.subr.mxu0 0.0
        %1664 = vmatpush1.msra.mxu0 %v1615
        %1665 = vmatprep.subr.mxu0 0.0
        %1666 = vmatpush1.msra.mxu0 %v1616
        %1667 = vmatprep.subr.mxu0 0.0
        %1668 = vmatpush1.msra.mxu0 %v1617
        %1669 = vmatprep.subr.mxu0 0.0
        %1670 = vmatpush1.msra.mxu0 %v1618
        %1671 = vmatprep.subr.mxu0 0.0
        %1672 = vmatpush1.msra.mxu0 %v1619
        %1673 = vmatprep.subr.mxu0 0.0
        %1674 = vmatpush1.msra.mxu0 %v1620
        %1675 = vmatprep.subr.mxu0 0.0
        %1676 = vmatpush1.msra.mxu0 %v1621
        %1677 = vmatprep.subr.mxu0 0.0
        %1678 = vmatpush1.msra.mxu0 %v1622
        %1679 = vmatprep.subr.mxu0 0.0
        %1680 = vmatpush1.msra.mxu0 %v1623
        %1681 = vmatprep.subr.mxu0 0.0
        %1682 = vmatpush1.msra.mxu0 %v1624
        %1683 = vmatprep.subr.mxu0 0.0
        %1684 = vmatpush1.msra.mxu0 %v1625
        %1685 = vmatprep.subr.mxu0 0.0
        %1686 = vmatpush1.msra.mxu0 %v1626
        %1687 = vmatprep.subr.mxu0 0.0
        %1688 = vmatpush1.msra.mxu0 %v1627
        %1689 = vmatprep.subr.mxu0 0.0
        %1690 = vmatpush1.msra.mxu0 %v1628
        %1691 = vmatprep.subr.mxu0 0.0
        %1692 = vmatpush1.msra.mxu0 %v1629
        %1693 = vmatprep.subr.mxu0 0.0
        %1694 = vmatpush1.msra.mxu0 %v1630
        %1695 = vmatprep.mubr.f32.mxu0 %v1564
        %1696 = vmatmul.mubr.f32.gmra.mrb[0].mxu0 %v1563
        %v1697 = vpop.f32.mrb[0].mxu0
        %v1698 = vadd.f32 0.0, %v1697
        %v1699 = vpop.f32.mrb[0].mxu0
        %1700 = vmatprep.mubr.f32.mxu0 %v1566
        %1701 = vmatmul.mubr.f32.gmra.mrb[0].mxu0 %v1565
        %v1702 = vpop.f32.mrb[0].mxu0
        %v1703 = vadd.f32 0.0, %v1702
        %v1704 = vpop.f32.mrb[0].mxu0
        %1705 = vdwg.mxu0
        %1706 = vmatprep.subr.mxu0 0.0
        %1707 = vmatpush1.msra.mxu0 %v1567
        %1708 = vmatprep.subr.mxu0 0.0
        %1709 = vmatpush1.msra.mxu0 %v1568
        %1710 = vmatprep.subr.mxu0 0.0
        %1711 = vmatpush1.msra.mxu0 %v1569
        %1712 = vmatprep.subr.mxu0 0.0
        %1713 = vmatpush1.msra.mxu0 %v1570
        %1714 = vmatprep.subr.mxu0 0.0
        %1715 = vmatpush1.msra.mxu0 %v1571
        %1716 = vmatprep.subr.mxu0 0.0
        %1717 = vmatpush1.msra.mxu0 %v1572
        %1718 = vmatprep.subr.mxu0 0.0
        %1719 = vmatpush1.msra.mxu0 %v1573
        %1720 = vmatprep.subr.mxu0 0.0
        %1721 = vmatpush1.msra.mxu0 %v1574
        %1722 = vmatprep.subr.mxu0 0.0
        %1723 = vmatpush1.msra.mxu0 %v1575
        %1724 = vmatprep.subr.mxu0 0.0
        %1725 = vmatpush1.msra.mxu0 %v1576
        %1726 = vmatprep.subr.mxu0 0.0
        %1727 = vmatpush1.msra.mxu0 %v1577
        %1728 = vmatprep.subr.mxu0 0.0
        %1729 = vmatpush1.msra.mxu0 %v1578
        %1730 = vmatprep.subr.mxu0 0.0
        %1731 = vmatpush1.msra.mxu0 %v1579
        %1732 = vmatprep.subr.mxu0 0.0
        %1733 = vmatpush1.msra.mxu0 %v1580
        %1734 = vmatprep.subr.mxu0 0.0
        %1735 = vmatpush1.msra.mxu0 %v1581
        %1736 = vmatprep.subr.mxu0 0.0
        %1737 = vmatpush1.msra.mxu0 %v1582
        %1738 = vmatprep.subr.mxu0 0.0
        %1739 = vmatpush1.msra.mxu0 %v1583
        %1740 = vmatprep.subr.mxu0 0.0
        %1741 = vmatpush1.msra.mxu0 %v1584
        %1742 = vmatprep.subr.mxu0 0.0
        %1743 = vmatpush1.msra.mxu0 %v1585
        %1744 = vmatprep.subr.mxu0 0.0
        %1745 = vmatpush1.msra.mxu0 %v1586
        %1746 = vmatprep.subr.mxu0 0.0
        %1747 = vmatpush1.msra.mxu0 %v1587
        %1748 = vmatprep.subr.mxu0 0.0
        %1749 = vmatpush1.msra.mxu0 %v1588
        %1750 = vmatprep.subr.mxu0 0.0
        %1751 = vmatpush1.msra.mxu0 %v1589
        %1752 = vmatprep.subr.mxu0 0.0
        %1753 = vmatpush1.msra.mxu0 %v1590
        %1754 = vmatprep.subr.mxu0 0.0
        %1755 = vmatpush1.msra.mxu0 %v1591
        %1756 = vmatprep.subr.mxu0 0.0
        %1757 = vmatpush1.msra.mxu0 %v1592
        %1758 = vmatprep.subr.mxu0 0.0
        %1759 = vmatpush1.msra.mxu0 %v1593
        %1760 = vmatprep.subr.mxu0 0.0
        %1761 = vmatpush1.msra.mxu0 %v1594
        %1762 = vmatprep.subr.mxu0 0.0
        %1763 = vmatpush1.msra.mxu0 %v1595
        %1764 = vmatprep.subr.mxu0 0.0
        %1765 = vmatpush1.msra.mxu0 %v1596
        %1766 = vmatprep.subr.mxu0 0.0
        %1767 = vmatpush1.msra.mxu0 %v1597
        %1768 = vmatprep.subr.mxu0 0.0
        %1769 = vmatpush1.msra.mxu0 %v1598
        %1770 = vmatprep.mubr.f32.mxu0 %v1494
        %1771 = vmatmul.mubr.f32.gmra.mrb[0].mxu0 %v1493
        %v1772 = vpop.f32.mrb[0].mxu0
        %v1773 = vadd.f32 %v1698, %v1772
        %v1774 = vpop.f32.mrb[0].mxu0
        %1775 = vmatprep.mubr.f32.mxu0 %v1496
        %1776 = vmatmul.mubr.f32.gmra.mrb[0].mxu0 %v1495
        %v1777 = vpop.f32.mrb[0].mxu0
        %v1778 = vadd.f32 %v1703, %v1777
        %v1779 = vpop.f32.mrb[0].mxu0
        %1780 = vdwg.mxu0
        %vm1781 = vcmask 256000
        %1782 = vst.msk [vmem:[#allocation4] sm:$0x7] %vm1781, 0.0
        %1783 = vst.msk [vmem:[#allocation4 + $0x13] sm:$0x7] %vm1781, 0.0
        %vm1784 = vcmask 261120
        %1785 = vst.msk [vmem:[#allocation4 + $0x3] sm:$0xff] %vm1784, %v1773
        %1786 = vst.msk [vmem:[#allocation4 + $0xb] sm:$0xff] %vm1784, %v1778
        %v1787 = vld [vmem:[#allocation4] sm:$0xff]
        %v1788 = vld [vmem:[#allocation4 + $0x8] sm:$0xff]
        %v1789 = vld [vmem:[%s11] sm:$0xff]
        %v1790 = vld [vmem:[%s11 + $0x8] sm:$0xff]
        %v1791 = vld [vmem:[%s11 + $0x10] sm:$0xff]
        %v1792 = vld [vmem:[%s11 + $0x18] sm:$0xff]
        %v1793 = vld [vmem:[#allocation4 + $0x1] sm:$0xff]
        %v1794 = vld [vmem:[#allocation4 + $0x9] sm:$0xff]
        %s1795 = scalar_lea.vmem %s11, 32
        %v1796 = vld [vmem:[%s1795] sm:$0xff]
        %v1797 = vld [vmem:[%s1795 + $0x8] sm:$0xff]
        %v1798 = vld [vmem:[%s1795 + $0x10] sm:$0xff]
        %v1799 = vld [vmem:[%s1795 + $0x18] sm:$0xff]
        %v1801 = vsel %vm1784, %v1793, 0
        %v1804 = vsel %vm1784, %v1794, 0
        %1806 = vmatprep.subr.mxu0 0.0
        %1807 = vmatpush1.msra.mxu0 %v1796
        %1808 = vmatprep.subr.mxu0 0.0
        %1809 = vmatpush1.msra.mxu0 %v1797
        %1810 = vmatprep.subr.mxu0 0.0
        %1811 = vmatpush1.msra.mxu0 %v1798
        %1812 = vmatprep.subr.mxu0 0.0
        %1813 = vmatpush1.msra.mxu0 %v1799
        %1814 = vmatprep.subr.mxu0 0.0
        %1815 = vmatpush1.msra.mxu0 0.0
        %1816 = vmatprep.subr.mxu0 0.0
        %1817 = vmatpush1.msra.mxu0 0.0
        %1818 = vmatprep.subr.mxu0 0.0
        %1819 = vmatpush1.msra.mxu0 0.0
        %1820 = vmatprep.subr.mxu0 0.0
        %1821 = vmatpush1.msra.mxu0 0.0
        %1822 = vmatprep.subr.mxu0 0.0
        %1823 = vmatpush1.msra.mxu0 0.0
        %1824 = vmatprep.subr.mxu0 0.0
        %1825 = vmatpush1.msra.mxu0 0.0
        %1826 = vmatprep.subr.mxu0 0.0
        %1827 = vmatpush1.msra.mxu0 0.0
        %1828 = vmatprep.subr.mxu0 0.0
        %1829 = vmatpush1.msra.mxu0 0.0
        %1830 = vmatprep.subr.mxu0 0.0
        %1831 = vmatpush1.msra.mxu0 0.0
        %1832 = vmatprep.subr.mxu0 0.0
        %1833 = vmatpush1.msra.mxu0 0.0
        %1834 = vmatprep.subr.mxu0 0.0
        %1835 = vmatpush1.msra.mxu0 0.0
        %1836 = vmatprep.subr.mxu0 0.0
        %1837 = vmatpush1.msra.mxu0 0.0
        %1838 = vmatprep.subr.mxu0 0.0
        %1839 = vmatpush1.msra.mxu0 0.0
        %1840 = vmatprep.subr.mxu0 0.0
        %1841 = vmatpush1.msra.mxu0 0.0
        %1842 = vmatprep.subr.mxu0 0.0
        %1843 = vmatpush1.msra.mxu0 0.0
        %1844 = vmatprep.subr.mxu0 0.0
        %1845 = vmatpush1.msra.mxu0 0.0
        %1846 = vmatprep.subr.mxu0 0.0
        %1847 = vmatpush1.msra.mxu0 0.0
        %1848 = vmatprep.subr.mxu0 0.0
        %1849 = vmatpush1.msra.mxu0 0.0
        %1850 = vmatprep.subr.mxu0 0.0
        %1851 = vmatpush1.msra.mxu0 0.0
        %1852 = vmatprep.subr.mxu0 0.0
        %1853 = vmatpush1.msra.mxu0 0.0
        %1854 = vmatprep.subr.mxu0 0.0
        %1855 = vmatpush1.msra.mxu0 0.0
        %1856 = vmatprep.subr.mxu0 0.0
        %1857 = vmatpush1.msra.mxu0 0.0
        %1858 = vmatprep.subr.mxu0 0.0
        %1859 = vmatpush1.msra.mxu0 0.0
        %1860 = vmatprep.subr.mxu0 0.0
        %1861 = vmatpush1.msra.mxu0 0.0
        %1862 = vmatprep.subr.mxu0 0.0
        %1863 = vmatpush1.msra.mxu0 0.0
        %1864 = vmatprep.subr.mxu0 0.0
        %1865 = vmatpush1.msra.mxu0 0.0
        %1866 = vmatprep.subr.mxu0 0.0
        %1867 = vmatpush1.msra.mxu0 0.0
        %1868 = vmatprep.subr.mxu0 0.0
        %1869 = vmatpush1.msra.mxu0 0.0
        %1870 = vmatprep.mubr.f32.mxu0 0.0
        %1871 = vmatmul.mubr.f32.gmra.mrb[0].mxu0 %v1801
        %v1872 = vpop.f32.mrb[0].mxu0
        %v1873 = vadd.f32 0.0, %v1872
        %v1874 = vpop.f32.mrb[0].mxu0
        %1875 = vmatprep.mubr.f32.mxu0 0.0
        %1876 = vmatmul.mubr.f32.gmra.mrb[0].mxu0 %v1804
        %v1877 = vpop.f32.mrb[0].mxu0
        %v1878 = vadd.f32 0.0, %v1877
        %v1879 = vpop.f32.mrb[0].mxu0
        %1880 = vdwg.mxu0
        %v1882 = vsel %vm1784, %v1787, 0
        %v1885 = vsel %vm1784, %v1788, 0
        %1887 = vmatprep.subr.mxu0 0.0
        %1888 = vmatpush1.msra.mxu0 %v1789
        %1889 = vmatprep.subr.mxu0 0.0
        %1890 = vmatpush1.msra.mxu0 %v1790
        %1891 = vmatprep.subr.mxu0 0.0
        %1892 = vmatpush1.msra.mxu0 %v1791
        %1893 = vmatprep.subr.mxu0 0.0
        %1894 = vmatpush1.msra.mxu0 %v1792
        %1895 = vmatprep.subr.mxu0 0.0
        %1896 = vmatpush1.msra.mxu0 0.0
        %1897 = vmatprep.subr.mxu0 0.0
        %1898 = vmatpush1.msra.mxu0 0.0
        %1899 = vmatprep.subr.mxu0 0.0
        %1900 = vmatpush1.msra.mxu0 0.0
        %1901 = vmatprep.subr.mxu0 0.0
        %1902 = vmatpush1.msra.mxu0 0.0
        %1903 = vmatprep.subr.mxu0 0.0
        %1904 = vmatpush1.msra.mxu0 0.0
        %1905 = vmatprep.subr.mxu0 0.0
        %1906 = vmatpush1.msra.mxu0 0.0
        %1907 = vmatprep.subr.mxu0 0.0
        %1908 = vmatpush1.msra.mxu0 0.0
        %1909 = vmatprep.subr.mxu0 0.0
        %1910 = vmatpush1.msra.mxu0 0.0
        %1911 = vmatprep.subr.mxu0 0.0
        %1912 = vmatpush1.msra.mxu0 0.0
        %1913 = vmatprep.subr.mxu0 0.0
        %1914 = vmatpush1.msra.mxu0 0.0
        %1915 = vmatprep.subr.mxu0 0.0
        %1916 = vmatpush1.msra.mxu0 0.0
        %1917 = vmatprep.subr.mxu0 0.0
        %1918 = vmatpush1.msra.mxu0 0.0
        %1919 = vmatprep.subr.mxu0 0.0
        %1920 = vmatpush1.msra.mxu0 0.0
        %1921 = vmatprep.subr.mxu0 0.0
        %1922 = vmatpush1.msra.mxu0 0.0
        %1923 = vmatprep.subr.mxu0 0.0
        %1924 = vmatpush1.msra.mxu0 0.0
        %1925 = vmatprep.subr.mxu0 0.0
        %1926 = vmatpush1.msra.mxu0 0.0
        %1927 = vmatprep.subr.mxu0 0.0
        %1928 = vmatpush1.msra.mxu0 0.0
        %1929 = vmatprep.subr.mxu0 0.0
        %1930 = vmatpush1.msra.mxu0 0.0
        %1931 = vmatprep.subr.mxu0 0.0
        %1932 = vmatpush1.msra.mxu0 0.0
        %1933 = vmatprep.subr.mxu0 0.0
        %1934 = vmatpush1.msra.mxu0 0.0
        %1935 = vmatprep.subr.mxu0 0.0
        %1936 = vmatpush1.msra.mxu0 0.0
        %1937 = vmatprep.subr.mxu0 0.0
        %1938 = vmatpush1.msra.mxu0 0.0
        %1939 = vmatprep.subr.mxu0 0.0
        %1940 = vmatpush1.msra.mxu0 0.0
        %1941 = vmatprep.subr.mxu0 0.0
        %1942 = vmatpush1.msra.mxu0 0.0
        %1943 = vmatprep.subr.mxu0 0.0
        %1944 = vmatpush1.msra.mxu0 0.0
        %1945 = vmatprep.subr.mxu0 0.0
        %1946 = vmatpush1.msra.mxu0 0.0
        %1947 = vmatprep.subr.mxu0 0.0
        %1948 = vmatpush1.msra.mxu0 0.0
        %1949 = vmatprep.subr.mxu0 0.0
        %1950 = vmatpush1.msra.mxu0 0.0
        %1951 = vmatprep.mubr.f32.mxu0 0.0
        %1952 = vmatmul.mubr.f32.gmra.mrb[0].mxu0 %v1882
        %v1953 = vpop.f32.mrb[0].mxu0
        %v1954 = vadd.f32 %v1873, %v1953
        %v1955 = vpop.f32.mrb[0].mxu0
        %1956 = vmatprep.mubr.f32.mxu0 0.0
        %1957 = vmatmul.mubr.f32.gmra.mrb[0].mxu0 %v1885
        %v1958 = vpop.f32.mrb[0].mxu0
        %v1959 = vadd.f32 %v1878, %v1958
        %v1960 = vpop.f32.mrb[0].mxu0
        %1961 = vdwg.mxu0
        %v1962 = vld [vmem:[#allocation4 + $0x2] sm:$0xff]
        %v1963 = vld [vmem:[#allocation4 + $0xa] sm:$0xff]
        %s1964 = scalar_lea.vmem %s11, 64
        %v1965 = vld [vmem:[%s1964] sm:$0xff]
        %v1966 = vld [vmem:[%s1964 + $0x8] sm:$0xff]
        %v1967 = vld [vmem:[%s1964 + $0x10] sm:$0xff]
        %v1968 = vld [vmem:[%s1964 + $0x18] sm:$0xff]
        %v1970 = vsel %vm1784, %v1962, 0
        %v1973 = vsel %vm1784, %v1963, 0
        %1975 = vmatprep.subr.mxu0 0.0
        %1976 = vmatpush1.msra.mxu0 %v1965
        %1977 = vmatprep.subr.mxu0 0.0
        %1978 = vmatpush1.msra.mxu0 %v1966
        %1979 = vmatprep.subr.mxu0 0.0
        %1980 = vmatpush1.msra.mxu0 %v1967
        %1981 = vmatprep.subr.mxu0 0.0
        %1982 = vmatpush1.msra.mxu0 %v1968
        %1983 = vmatprep.subr.mxu0 0.0
        %1984 = vmatpush1.msra.mxu0 0.0
        %1985 = vmatprep.subr.mxu0 0.0
        %1986 = vmatpush1.msra.mxu0 0.0
        %1987 = vmatprep.subr.mxu0 0.0
        %1988 = vmatpush1.msra.mxu0 0.0
        %1989 = vmatprep.subr.mxu0 0.0
        %1990 = vmatpush1.msra.mxu0 0.0
        %1991 = vmatprep.subr.mxu0 0.0
        %1992 = vmatpush1.msra.mxu0 0.0
        %1993 = vmatprep.subr.mxu0 0.0
        %1994 = vmatpush1.msra.mxu0 0.0
        %1995 = vmatprep.subr.mxu0 0.0
        %1996 = vmatpush1.msra.mxu0 0.0
        %1997 = vmatprep.subr.mxu0 0.0
        %1998 = vmatpush1.msra.mxu0 0.0
        %1999 = vmatprep.subr.mxu0 0.0
        %2000 = vmatpush1.msra.mxu0 0.0
        %2001 = vmatprep.subr.mxu0 0.0
        %2002 = vmatpush1.msra.mxu0 0.0
        %2003 = vmatprep.subr.mxu0 0.0
        %2004 = vmatpush1.msra.mxu0 0.0
        %2005 = vmatprep.subr.mxu0 0.0
        %2006 = vmatpush1.msra.mxu0 0.0
        %2007 = vmatprep.subr.mxu0 0.0
        %2008 = vmatpush1.msra.mxu0 0.0
        %2009 = vmatprep.subr.mxu0 0.0
        %2010 = vmatpush1.msra.mxu0 0.0
        %2011 = vmatprep.subr.mxu0 0.0
        %2012 = vmatpush1.msra.mxu0 0.0
        %2013 = vmatprep.subr.mxu0 0.0
        %2014 = vmatpush1.msra.mxu0 0.0
        %2015 = vmatprep.subr.mxu0 0.0
        %2016 = vmatpush1.msra.mxu0 0.0
        %2017 = vmatprep.subr.mxu0 0.0
        %2018 = vmatpush1.msra.mxu0 0.0
        %2019 = vmatprep.subr.mxu0 0.0
        %2020 = vmatpush1.msra.mxu0 0.0
        %2021 = vmatprep.subr.mxu0 0.0
        %2022 = vmatpush1.msra.mxu0 0.0
        %2023 = vmatprep.subr.mxu0 0.0
        %2024 = vmatpush1.msra.mxu0 0.0
        %2025 = vmatprep.subr.mxu0 0.0
        %2026 = vmatpush1.msra.mxu0 0.0
        %2027 = vmatprep.subr.mxu0 0.0
        %2028 = vmatpush1.msra.mxu0 0.0
        %2029 = vmatprep.subr.mxu0 0.0
        %2030 = vmatpush1.msra.mxu0 0.0
        %2031 = vmatprep.subr.mxu0 0.0
        %2032 = vmatpush1.msra.mxu0 0.0
        %2033 = vmatprep.subr.mxu0 0.0
        %2034 = vmatpush1.msra.mxu0 0.0
        %2035 = vmatprep.subr.mxu0 0.0
        %2036 = vmatpush1.msra.mxu0 0.0
        %2037 = vmatprep.subr.mxu0 0.0
        %2038 = vmatpush1.msra.mxu0 0.0
        %2039 = vmatprep.mubr.f32.mxu0 0.0
        %2040 = vmatmul.mubr.f32.gmra.mrb[0].mxu0 %v1970
        %v2041 = vpop.f32.mrb[0].mxu0
        %v2042 = vadd.f32 0.0, %v2041
        %v2043 = vpop.f32.mrb[0].mxu0
        %2044 = vmatprep.mubr.f32.mxu0 0.0
        %2045 = vmatmul.mubr.f32.gmra.mrb[0].mxu0 %v1973
        %v2046 = vpop.f32.mrb[0].mxu0
        %v2047 = vadd.f32 0.0, %v2046
        %v2048 = vpop.f32.mrb[0].mxu0
        %2049 = vdwg.mxu0
        %v2050 = vadd.f32 %v1954, %v2042
        %v2051 = vadd.f32 %v1959, %v2047
        %v2052 = vld [vmem:[#allocation4 + $0x3] sm:$0xff]
        %v2053 = vld [vmem:[#allocation4 + $0xb] sm:$0xff]
        %s2054 = scalar_lea.vmem %s11, 96
        %v2055 = vld [vmem:[%s2054] sm:$0xff]
        %v2056 = vld [vmem:[%s2054 + $0x8] sm:$0xff]
        %v2057 = vld [vmem:[%s2054 + $0x10] sm:$0xff]
        %v2058 = vld [vmem:[%s2054 + $0x18] sm:$0xff]
        %v2060 = vsel %vm1784, %v2052, 0
        %v2063 = vsel %vm1784, %v2053, 0
        %2065 = vmatprep.subr.mxu0 0.0
        %2066 = vmatpush1.msra.mxu0 %v2055
        %2067 = vmatprep.subr.mxu0 0.0
        %2068 = vmatpush1.msra.mxu0 %v2056
        %2069 = vmatprep.subr.mxu0 0.0
        %2070 = vmatpush1.msra.mxu0 %v2057
        %2071 = vmatprep.subr.mxu0 0.0
        %2072 = vmatpush1.msra.mxu0 %v2058
        %2073 = vmatprep.subr.mxu0 0.0
        %2074 = vmatpush1.msra.mxu0 0.0
        %2075 = vmatprep.subr.mxu0 0.0
        %2076 = vmatpush1.msra.mxu0 0.0
        %2077 = vmatprep.subr.mxu0 0.0
        %2078 = vmatpush1.msra.mxu0 0.0
        %2079 = vmatprep.subr.mxu0 0.0
        %2080 = vmatpush1.msra.mxu0 0.0
        %2081 = vmatprep.subr.mxu0 0.0
        %2082 = vmatpush1.msra.mxu0 0.0
        %2083 = vmatprep.subr.mxu0 0.0
        %2084 = vmatpush1.msra.mxu0 0.0
        %2085 = vmatprep.subr.mxu0 0.0
        %2086 = vmatpush1.msra.mxu0 0.0
        %2087 = vmatprep.subr.mxu0 0.0
        %2088 = vmatpush1.msra.mxu0 0.0
        %2089 = vmatprep.subr.mxu0 0.0
        %2090 = vmatpush1.msra.mxu0 0.0
        %2091 = vmatprep.subr.mxu0 0.0
        %2092 = vmatpush1.msra.mxu0 0.0
        %2093 = vmatprep.subr.mxu0 0.0
        %2094 = vmatpush1.msra.mxu0 0.0
        %2095 = vmatprep.subr.mxu0 0.0
        %2096 = vmatpush1.msra.mxu0 0.0
        %2097 = vmatprep.subr.mxu0 0.0
        %2098 = vmatpush1.msra.mxu0 0.0
        %2099 = vmatprep.subr.mxu0 0.0
        %2100 = vmatpush1.msra.mxu0 0.0
        %2101 = vmatprep.subr.mxu0 0.0
        %2102 = vmatpush1.msra.mxu0 0.0
        %2103 = vmatprep.subr.mxu0 0.0
        %2104 = vmatpush1.msra.mxu0 0.0
        %2105 = vmatprep.subr.mxu0 0.0
        %2106 = vmatpush1.msra.mxu0 0.0
        %2107 = vmatprep.subr.mxu0 0.0
        %2108 = vmatpush1.msra.mxu0 0.0
        %2109 = vmatprep.subr.mxu0 0.0
        %2110 = vmatpush1.msra.mxu0 0.0
        %2111 = vmatprep.subr.mxu0 0.0
        %2112 = vmatpush1.msra.mxu0 0.0
        %2113 = vmatprep.subr.mxu0 0.0
        %2114 = vmatpush1.msra.mxu0 0.0
        %2115 = vmatprep.subr.mxu0 0.0
        %2116 = vmatpush1.msra.mxu0 0.0
        %2117 = vmatprep.subr.mxu0 0.0
        %2118 = vmatpush1.msra.mxu0 0.0
        %2119 = vmatprep.subr.mxu0 0.0
        %2120 = vmatpush1.msra.mxu0 0.0
        %2121 = vmatprep.subr.mxu0 0.0
        %2122 = vmatpush1.msra.mxu0 0.0
        %2123 = vmatprep.subr.mxu0 0.0
        %2124 = vmatpush1.msra.mxu0 0.0
        %2125 = vmatprep.subr.mxu0 0.0
        %2126 = vmatpush1.msra.mxu0 0.0
        %2127 = vmatprep.subr.mxu0 0.0
        %2128 = vmatpush1.msra.mxu0 0.0
        %2129 = vmatprep.mubr.f32.mxu0 0.0
        %2130 = vmatmul.mubr.f32.gmra.mrb[0].mxu0 %v2060
        %v2131 = vpop.f32.mrb[0].mxu0
        %v2132 = vadd.f32 0.0, %v2131
        %v2133 = vpop.f32.mrb[0].mxu0
        %2134 = vmatprep.mubr.f32.mxu0 0.0
        %2135 = vmatmul.mubr.f32.gmra.mrb[0].mxu0 %v2063
        %v2136 = vpop.f32.mrb[0].mxu0
        %v2137 = vadd.f32 0.0, %v2136
        %v2138 = vpop.f32.mrb[0].mxu0
        %2139 = vdwg.mxu0
        %v2140 = vadd.f32 %v2050, %v2132
        %v2141 = vadd.f32 %v2051, %v2137
        %v2142 = vld [vmem:[#allocation4 + $0x4] sm:$0xff]
        %v2143 = vld [vmem:[#allocation4 + $0xc] sm:$0xff]
        %s2144 = scalar_lea.vmem %s11, 128
        %v2145 = vld [vmem:[%s2144] sm:$0xff]
        %v2146 = vld [vmem:[%s2144 + $0x8] sm:$0xff]
        %v2147 = vld [vmem:[%s2144 + $0x10] sm:$0xff]
        %v2148 = vld [vmem:[%s2144 + $0x18] sm:$0xff]
        %v2150 = vsel %vm1784, %v2142, 0
        %v2153 = vsel %vm1784, %v2143, 0
        %2155 = vmatprep.subr.mxu0 0.0
        %2156 = vmatpush1.msra.mxu0 %v2145
        %2157 = vmatprep.subr.mxu0 0.0
        %2158 = vmatpush1.msra.mxu0 %v2146
        %2159 = vmatprep.subr.mxu0 0.0
        %2160 = vmatpush1.msra.mxu0 %v2147
        %2161 = vmatprep.subr.mxu0 0.0
        %2162 = vmatpush1.msra.mxu0 %v2148
        %2163 = vmatprep.subr.mxu0 0.0
        %2164 = vmatpush1.msra.mxu0 0.0
        %2165 = vmatprep.subr.mxu0 0.0
        %2166 = vmatpush1.msra.mxu0 0.0
        %2167 = vmatprep.subr.mxu0 0.0
        %2168 = vmatpush1.msra.mxu0 0.0
        %2169 = vmatprep.subr.mxu0 0.0
        %2170 = vmatpush1.msra.mxu0 0.0
        %2171 = vmatprep.subr.mxu0 0.0
        %2172 = vmatpush1.msra.mxu0 0.0
        %2173 = vmatprep.subr.mxu0 0.0
        %2174 = vmatpush1.msra.mxu0 0.0
        %2175 = vmatprep.subr.mxu0 0.0
        %2176 = vmatpush1.msra.mxu0 0.0
        %2177 = vmatprep.subr.mxu0 0.0
        %2178 = vmatpush1.msra.mxu0 0.0
        %2179 = vmatprep.subr.mxu0 0.0
        %2180 = vmatpush1.msra.mxu0 0.0
        %2181 = vmatprep.subr.mxu0 0.0
        %2182 = vmatpush1.msra.mxu0 0.0
        %2183 = vmatprep.subr.mxu0 0.0
        %2184 = vmatpush1.msra.mxu0 0.0
        %2185 = vmatprep.subr.mxu0 0.0
        %2186 = vmatpush1.msra.mxu0 0.0
        %2187 = vmatprep.subr.mxu0 0.0
        %2188 = vmatpush1.msra.mxu0 0.0
        %2189 = vmatprep.subr.mxu0 0.0
        %2190 = vmatpush1.msra.mxu0 0.0
        %2191 = vmatprep.subr.mxu0 0.0
        %2192 = vmatpush1.msra.mxu0 0.0
        %2193 = vmatprep.subr.mxu0 0.0
        %2194 = vmatpush1.msra.mxu0 0.0
        %2195 = vmatprep.subr.mxu0 0.0
        %2196 = vmatpush1.msra.mxu0 0.0
        %2197 = vmatprep.subr.mxu0 0.0
        %2198 = vmatpush1.msra.mxu0 0.0
        %2199 = vmatprep.subr.mxu0 0.0
        %2200 = vmatpush1.msra.mxu0 0.0
        %2201 = vmatprep.subr.mxu0 0.0
        %2202 = vmatpush1.msra.mxu0 0.0
        %2203 = vmatprep.subr.mxu0 0.0
        %2204 = vmatpush1.msra.mxu0 0.0
        %2205 = vmatprep.subr.mxu0 0.0
        %2206 = vmatpush1.msra.mxu0 0.0
        %2207 = vmatprep.subr.mxu0 0.0
        %2208 = vmatpush1.msra.mxu0 0.0
        %2209 = vmatprep.subr.mxu0 0.0
        %2210 = vmatpush1.msra.mxu0 0.0
        %2211 = vmatprep.subr.mxu0 0.0
        %2212 = vmatpush1.msra.mxu0 0.0
        %2213 = vmatprep.subr.mxu0 0.0
        %2214 = vmatpush1.msra.mxu0 0.0
        %2215 = vmatprep.subr.mxu0 0.0
        %2216 = vmatpush1.msra.mxu0 0.0
        %2217 = vmatprep.subr.mxu0 0.0
        %2218 = vmatpush1.msra.mxu0 0.0
        %2219 = vmatprep.mubr.f32.mxu0 0.0
        %2220 = vmatmul.mubr.f32.gmra.mrb[0].mxu0 %v2150
        %v2221 = vpop.f32.mrb[0].mxu0
        %v2222 = vadd.f32 0.0, %v2221
        %v2223 = vpop.f32.mrb[0].mxu0
        %2224 = vmatprep.mubr.f32.mxu0 0.0
        %2225 = vmatmul.mubr.f32.gmra.mrb[0].mxu0 %v2153
        %v2226 = vpop.f32.mrb[0].mxu0
        %v2227 = vadd.f32 0.0, %v2226
        %v2228 = vpop.f32.mrb[0].mxu0
        %2229 = vdwg.mxu0
        %v2230 = vadd.f32 %v2140, %v2222
        %v2231 = vadd.f32 %v2141, %v2227
        %v2232 = vld [vmem:[#allocation4 + $0x5] sm:$0xff]
        %v2233 = vld [vmem:[#allocation4 + $0xd] sm:$0xff]
        %s2234 = scalar_lea.vmem %s11, 160
        %v2235 = vld [vmem:[%s2234] sm:$0xff]
        %v2236 = vld [vmem:[%s2234 + $0x8] sm:$0xff]
        %v2237 = vld [vmem:[%s2234 + $0x10] sm:$0xff]
        %v2238 = vld [vmem:[%s2234 + $0x18] sm:$0xff]
        %v2240 = vsel %vm1784, %v2232, 0
        %v2243 = vsel %vm1784, %v2233, 0
        %2245 = vmatprep.subr.mxu0 0.0
        %2246 = vmatpush1.msra.mxu0 %v2235
        %2247 = vmatprep.subr.mxu0 0.0
        %2248 = vmatpush1.msra.mxu0 %v2236
        %2249 = vmatprep.subr.mxu0 0.0
        %2250 = vmatpush1.msra.mxu0 %v2237
        %2251 = vmatprep.subr.mxu0 0.0
        %2252 = vmatpush1.msra.mxu0 %v2238
        %2253 = vmatprep.subr.mxu0 0.0
        %2254 = vmatpush1.msra.mxu0 0.0
        %2255 = vmatprep.subr.mxu0 0.0
        %2256 = vmatpush1.msra.mxu0 0.0
        %2257 = vmatprep.subr.mxu0 0.0
        %2258 = vmatpush1.msra.mxu0 0.0
        %2259 = vmatprep.subr.mxu0 0.0
        %2260 = vmatpush1.msra.mxu0 0.0
        %2261 = vmatprep.subr.mxu0 0.0
        %2262 = vmatpush1.msra.mxu0 0.0
        %2263 = vmatprep.subr.mxu0 0.0
        %2264 = vmatpush1.msra.mxu0 0.0
        %2265 = vmatprep.subr.mxu0 0.0
        %2266 = vmatpush1.msra.mxu0 0.0
        %2267 = vmatprep.subr.mxu0 0.0
        %2268 = vmatpush1.msra.mxu0 0.0
        %2269 = vmatprep.subr.mxu0 0.0
        %2270 = vmatpush1.msra.mxu0 0.0
        %2271 = vmatprep.subr.mxu0 0.0
        %2272 = vmatpush1.msra.mxu0 0.0
        %2273 = vmatprep.subr.mxu0 0.0
        %2274 = vmatpush1.msra.mxu0 0.0
        %2275 = vmatprep.subr.mxu0 0.0
        %2276 = vmatpush1.msra.mxu0 0.0
        %2277 = vmatprep.subr.mxu0 0.0
        %2278 = vmatpush1.msra.mxu0 0.0
        %2279 = vmatprep.subr.mxu0 0.0
        %2280 = vmatpush1.msra.mxu0 0.0
        %2281 = vmatprep.subr.mxu0 0.0
        %2282 = vmatpush1.msra.mxu0 0.0
        %2283 = vmatprep.subr.mxu0 0.0
        %2284 = vmatpush1.msra.mxu0 0.0
        %2285 = vmatprep.subr.mxu0 0.0
        %2286 = vmatpush1.msra.mxu0 0.0
        %2287 = vmatprep.subr.mxu0 0.0
        %2288 = vmatpush1.msra.mxu0 0.0
        %2289 = vmatprep.subr.mxu0 0.0
        %2290 = vmatpush1.msra.mxu0 0.0
        %2291 = vmatprep.subr.mxu0 0.0
        %2292 = vmatpush1.msra.mxu0 0.0
        %2293 = vmatprep.subr.mxu0 0.0
        %2294 = vmatpush1.msra.mxu0 0.0
        %2295 = vmatprep.subr.mxu0 0.0
        %2296 = vmatpush1.msra.mxu0 0.0
        %2297 = vmatprep.subr.mxu0 0.0
        %2298 = vmatpush1.msra.mxu0 0.0
        %2299 = vmatprep.subr.mxu0 0.0
        %2300 = vmatpush1.msra.mxu0 0.0
        %2301 = vmatprep.subr.mxu0 0.0
        %2302 = vmatpush1.msra.mxu0 0.0
        %2303 = vmatprep.subr.mxu0 0.0
        %2304 = vmatpush1.msra.mxu0 0.0
        %2305 = vmatprep.subr.mxu0 0.0
        %2306 = vmatpush1.msra.mxu0 0.0
        %2307 = vmatprep.subr.mxu0 0.0
        %2308 = vmatpush1.msra.mxu0 0.0
        %2309 = vmatprep.mubr.f32.mxu0 0.0
        %2310 = vmatmul.mubr.f32.gmra.mrb[0].mxu0 %v2240
        %v2311 = vpop.f32.mrb[0].mxu0
        %v2312 = vadd.f32 0.0, %v2311
        %v2313 = vpop.f32.mrb[0].mxu0
        %2314 = vmatprep.mubr.f32.mxu0 0.0
        %2315 = vmatmul.mubr.f32.gmra.mrb[0].mxu0 %v2243
        %v2316 = vpop.f32.mrb[0].mxu0
        %v2317 = vadd.f32 0.0, %v2316
        %v2318 = vpop.f32.mrb[0].mxu0
        %2319 = vdwg.mxu0
        %v2320 = vadd.f32 %v2230, %v2312
        %v2321 = vadd.f32 %v2231, %v2317
        %v2322 = vld [vmem:[#allocation4 + $0x6] sm:$0xff]
        %v2323 = vld [vmem:[#allocation4 + $0xe] sm:$0xff]
        %s2324 = scalar_lea.vmem %s11, 192
        %v2325 = vld [vmem:[%s2324] sm:$0xff]
        %v2326 = vld [vmem:[%s2324 + $0x8] sm:$0xff]
        %v2327 = vld [vmem:[%s2324 + $0x10] sm:$0xff]
        %v2328 = vld [vmem:[%s2324 + $0x18] sm:$0xff]
        %v2330 = vsel %vm1784, %v2322, 0
        %v2333 = vsel %vm1784, %v2323, 0
        %2335 = vmatprep.subr.mxu0 0.0
        %2336 = vmatpush1.msra.mxu0 %v2325
        %2337 = vmatprep.subr.mxu0 0.0
        %2338 = vmatpush1.msra.mxu0 %v2326
        %2339 = vmatprep.subr.mxu0 0.0
        %2340 = vmatpush1.msra.mxu0 %v2327
        %2341 = vmatprep.subr.mxu0 0.0
        %2342 = vmatpush1.msra.mxu0 %v2328
        %2343 = vmatprep.subr.mxu0 0.0
        %2344 = vmatpush1.msra.mxu0 0.0
        %2345 = vmatprep.subr.mxu0 0.0
        %2346 = vmatpush1.msra.mxu0 0.0
        %2347 = vmatprep.subr.mxu0 0.0
        %2348 = vmatpush1.msra.mxu0 0.0
        %2349 = vmatprep.subr.mxu0 0.0
        %2350 = vmatpush1.msra.mxu0 0.0
        %2351 = vmatprep.subr.mxu0 0.0
        %2352 = vmatpush1.msra.mxu0 0.0
        %2353 = vmatprep.subr.mxu0 0.0
        %2354 = vmatpush1.msra.mxu0 0.0
        %2355 = vmatprep.subr.mxu0 0.0
        %2356 = vmatpush1.msra.mxu0 0.0
        %2357 = vmatprep.subr.mxu0 0.0
        %2358 = vmatpush1.msra.mxu0 0.0
        %2359 = vmatprep.subr.mxu0 0.0
        %2360 = vmatpush1.msra.mxu0 0.0
        %2361 = vmatprep.subr.mxu0 0.0
        %2362 = vmatpush1.msra.mxu0 0.0
        %2363 = vmatprep.subr.mxu0 0.0
        %2364 = vmatpush1.msra.mxu0 0.0
        %2365 = vmatprep.subr.mxu0 0.0
        %2366 = vmatpush1.msra.mxu0 0.0
        %2367 = vmatprep.subr.mxu0 0.0
        %2368 = vmatpush1.msra.mxu0 0.0
        %2369 = vmatprep.subr.mxu0 0.0
        %2370 = vmatpush1.msra.mxu0 0.0
        %2371 = vmatprep.subr.mxu0 0.0
        %2372 = vmatpush1.msra.mxu0 0.0
        %2373 = vmatprep.subr.mxu0 0.0
        %2374 = vmatpush1.msra.mxu0 0.0
        %2375 = vmatprep.subr.mxu0 0.0
        %2376 = vmatpush1.msra.mxu0 0.0
        %2377 = vmatprep.subr.mxu0 0.0
        %2378 = vmatpush1.msra.mxu0 0.0
        %2379 = vmatprep.subr.mxu0 0.0
        %2380 = vmatpush1.msra.mxu0 0.0
        %2381 = vmatprep.subr.mxu0 0.0
        %2382 = vmatpush1.msra.mxu0 0.0
        %2383 = vmatprep.subr.mxu0 0.0
        %2384 = vmatpush1.msra.mxu0 0.0
        %2385 = vmatprep.subr.mxu0 0.0
        %2386 = vmatpush1.msra.mxu0 0.0
        %2387 = vmatprep.subr.mxu0 0.0
        %2388 = vmatpush1.msra.mxu0 0.0
        %2389 = vmatprep.subr.mxu0 0.0
        %2390 = vmatpush1.msra.mxu0 0.0
        %2391 = vmatprep.subr.mxu0 0.0
        %2392 = vmatpush1.msra.mxu0 0.0
        %2393 = vmatprep.subr.mxu0 0.0
        %2394 = vmatpush1.msra.mxu0 0.0
        %2395 = vmatprep.subr.mxu0 0.0
        %2396 = vmatpush1.msra.mxu0 0.0
        %2397 = vmatprep.subr.mxu0 0.0
        %2398 = vmatpush1.msra.mxu0 0.0
        %2399 = vmatprep.mubr.f32.mxu0 0.0
        %2400 = vmatmul.mubr.f32.gmra.mrb[0].mxu0 %v2330
        %v2401 = vpop.f32.mrb[0].mxu0
        %v2402 = vadd.f32 0.0, %v2401
        %v2403 = vpop.f32.mrb[0].mxu0
        %2404 = vmatprep.mubr.f32.mxu0 0.0
        %2405 = vmatmul.mubr.f32.gmra.mrb[0].mxu0 %v2333
        %v2406 = vpop.f32.mrb[0].mxu0
        %v2407 = vadd.f32 0.0, %v2406
        %v2408 = vpop.f32.mrb[0].mxu0
        %2409 = vdwg.mxu0
        %v2410 = vadd.f32 %v2320, %v2402
        %v2411 = vadd.f32 %v2321, %v2407
        %v2412 = vxor.u32 %v2410, 2147483648
        %v2413 = vxor.u32 %v2411, 2147483648
        %v2414 = vmul.f32 %v2412, 1.442695
        %v2415 = vpow.pop %v2414
        %v2416 = vmul.f32 %v2413, 1.442695
        %v2417 = vpow.pop %v2416
        %v2418 = vadd.f32 %v2415, 1.0
        %v2419 = vadd.f32 %v2417, 1.0
        %v2420 = vrcp.pop %v2418
        %v2421 = vmul.f32 1.0, %v2420
        %v2422 = vrcp.pop %v2419
        %v2423 = vmul.f32 1.0, %v2422
        %v2424 = vld [vmem:[%s12] sm:$0xff]
        %v2425 = vld [vmem:[%s12 + $0x8] sm:$0xff]
        %v2426 = vld [vmem:[%s12 + $0x10] sm:$0xff]
        %v2427 = vld [vmem:[%s12 + $0x18] sm:$0xff]
        %v2428 = vld [vmem:[%s13] sm:$0x3]
        %v2430 = vlaneseq
        %v2431 = vshrl.u32 %v2430, 7
        %v2432 = vsub.s32 0, %v2431
        %v2433 = vrot.slane %v2428, %v2432
        %v2434 = vlaneseq
        %v2435 = vshrl.u32 %v2434, 7
        %v2436 = vsub.s32 1, %v2435
        %v2437 = vrot.slane %v2428, %v2436
        %vm2440 = vcmask 130048
        %v2442 = vsel %vm2440, %v2421, 0
        %v2445 = vsel %vm2440, %v2423, 0
        %2447 = vmatprep.subr.mxu0 %v2425
        %2448 = vmatpush1.msra.mxu0 %v2424
        %2449 = vmatprep.subr.mxu0 %v2427
        %2450 = vmatpush1.msra.mxu0 %v2426
        %2451 = vmatprep.subr.mxu0 0.0
        %2452 = vmatpush1.msra.mxu0 0.0
        %2453 = vmatprep.subr.mxu0 0.0
        %2454 = vmatpush1.msra.mxu0 0.0
        %2455 = vmatprep.subr.mxu0 0.0
        %2456 = vmatpush1.msra.mxu0 0.0
        %2457 = vmatprep.subr.mxu0 0.0
        %2458 = vmatpush1.msra.mxu0 0.0
        %2459 = vmatprep.subr.mxu0 0.0
        %2460 = vmatpush1.msra.mxu0 0.0
        %2461 = vmatprep.subr.mxu0 0.0
        %2462 = vmatpush1.msra.mxu0 0.0
        %2463 = vmatprep.subr.mxu0 0.0
        %2464 = vmatpush1.msra.mxu0 0.0
        %2465 = vmatprep.subr.mxu0 0.0
        %2466 = vmatpush1.msra.mxu0 0.0
        %2467 = vmatprep.subr.mxu0 0.0
        %2468 = vmatpush1.msra.mxu0 0.0
        %2469 = vmatprep.subr.mxu0 0.0
        %2470 = vmatpush1.msra.mxu0 0.0
        %2471 = vmatprep.subr.mxu0 0.0
        %2472 = vmatpush1.msra.mxu0 0.0
        %2473 = vmatprep.subr.mxu0 0.0
        %2474 = vmatpush1.msra.mxu0 0.0
        %2475 = vmatprep.subr.mxu0 0.0
        %2476 = vmatpush1.msra.mxu0 0.0
        %2477 = vmatprep.subr.mxu0 0.0
        %2478 = vmatpush1.msra.mxu0 0.0
        %2479 = vmatprep.subr.mxu0 0.0
        %2480 = vmatpush1.msra.mxu0 0.0
        %2481 = vmatprep.subr.mxu0 0.0
        %2482 = vmatpush1.msra.mxu0 0.0
        %2483 = vmatprep.subr.mxu0 0.0
        %2484 = vmatpush1.msra.mxu0 0.0
        %2485 = vmatprep.subr.mxu0 0.0
        %2486 = vmatpush1.msra.mxu0 0.0
        %2487 = vmatprep.subr.mxu0 0.0
        %2488 = vmatpush1.msra.mxu0 0.0
        %2489 = vmatprep.subr.mxu0 0.0
        %2490 = vmatpush1.msra.mxu0 0.0
        %2491 = vmatprep.subr.mxu0 0.0
        %2492 = vmatpush1.msra.mxu0 0.0
        %2493 = vmatprep.subr.mxu0 0.0
        %2494 = vmatpush1.msra.mxu0 0.0
        %2495 = vmatprep.subr.mxu0 0.0
        %2496 = vmatpush1.msra.mxu0 0.0
        %2497 = vmatprep.subr.mxu0 0.0
        %2498 = vmatpush1.msra.mxu0 0.0
        %2499 = vmatprep.subr.mxu0 0.0
        %2500 = vmatpush1.msra.mxu0 0.0
        %2501 = vmatprep.subr.mxu0 0.0
        %2502 = vmatpush1.msra.mxu0 0.0
        %2503 = vmatprep.subr.mxu0 0.0
        %2504 = vmatpush1.msra.mxu0 0.0
        %2505 = vmatprep.subr.mxu0 0.0
        %2506 = vmatpush1.msra.mxu0 0.0
        %2507 = vmatprep.subr.mxu0 0.0
        %2508 = vmatpush1.msra.mxu0 0.0
        %2509 = vmatprep.subr.mxu0 0.0
        %2510 = vmatpush1.msra.mxu0 0.0
        %2511 = vmatprep.mubr.f32.mxu0 0.0
        %2512 = vmatmul.mubr.f32.gmra.mrb[0].mxu0 %v2442
        %v2513 = vpop.f32.mrb[0].mxu0
        %v2514 = vadd.f32 %v2433, %v2513
        %v2515 = vpop.f32.mrb[0].mxu0
        %v2516 = vadd.f32 %v2437, %v2515
        %2517 = vmatprep.mubr.f32.mxu0 0.0
        %2518 = vmatmul.mubr.f32.gmra.mrb[0].mxu0 %v2445
        %v2519 = vpop.f32.mrb[0].mxu0
        %v2520 = vadd.f32 %v2433, %v2519
        %v2521 = vpop.f32.mrb[0].mxu0
        %v2522 = vadd.f32 %v2437, %v2521
        %2523 = vdwg.mxu0
        %v2524 = vmul.f32 %v2514, %v1493
        %v2525 = vmul.f32 %v2516, %v1494
        %v2526 = vmul.f32 %v2520, %v1495
        %v2527 = vmul.f32 %v2522, %v1496
        %v2528 = vadd.f32 %v2524, %v483
        %v2529 = vadd.f32 %v2525, %v484
        %v2530 = vadd.f32 %v2526, %v485
        %v2531 = vadd.f32 %v2527, %v486
        %v2532 = vmax.f32 %v2528, 0.0
        %v2533 = vmax.f32 %v2529, 0.0
        %v2534 = vmax.f32 %v2530, 0.0
        %v2535 = vmax.f32 %v2531, 0.0
        %2536 = vst [vmem:[%s482] sm:$0xff] %v2532
        %2537 = vst [vmem:[%s482 + $0x8] sm:$0xff] %v2533
        %2538 = vst [vmem:[%s482 + $0x10] sm:$0xff] %v2534
        %2539 = vst [vmem:[%s482 + $0x18] sm:$0xff] %v2535
        %p2540 = scmp.lt.s32.totalorder %s26, 1
        %s2541 = scalar_select %p2540, %s26, 1
        %s2542 = smul.addr %s2541, 4
        %s2543 = smul.addr %s2542, 8
        %s2544 = scalar_lea.vmem %s14, %s2543
        // Predicated region
        $region81: #{_lambda_.3} parent=75 // pred_check
          %p2545 = pneg %p343
        $region82: #{_lambda_.3} parent=75 // pred_check_branch
          %2547 = sbr.rel (%p2545) target = $region84
        $region83: #{_lambda_.3} parent=75 // pred_region
          _
        $region84: #{_lambda_.3} parent=75 // pred_fallthru
          _
      $region76: #{_lambda_.3} parent=5 // pred_fallthru
        _
      %p2548 = scmp.le.s32.totalorder 2, %s21
      // Predicated region
      $region85: #{_lambda_.3} parent=5 // pred_check
        %p2549 = pneg %p2548
      $region86: #{_lambda_.3} parent=5 // pred_check_branch
        %2551 = sbr.rel (%p2549) target = $region88
      $region87: #{_lambda_.3} parent=5 // pred_region
        %s2552 = ssub.s32 %s21, 2
        // Predicated region
        $region89: #{_lambda_.3} parent=87 // pred_check
          %p2553 = pneg %p349
        $region90: #{_lambda_.3} parent=87 // pred_check_branch
          %2555 = sbr.rel (%p2553) target = $region92
        $region91: #{_lambda_.3} parent=87 // pred_region
          %p2556 = scmp.lt.s32.totalorder %s27, 1
          %s2557 = scalar_select %p2556, %s27, 1
          %s2558 = smul.addr %s2557, 4
          %s2559 = smul.addr %s2558, 8
          %s2560 = scalar_lea.vmem %s14, %s2559
        $region92: #{_lambda_.3} parent=87 // pred_fallthru
          _
      $region88: #{_lambda_.3} parent=5 // pred_fallthru
        _
    $region6: #{_lambda_.3} parent=1 // loop_footer
      %s25 = sadd.s32 1, %s21
    $region7: #{_lambda_.3} parent=1 // loop_footer_branch
      %20 = sbr.rel target = $region3
    $region8: #{_lambda_.3} parent=1 // loop_exit
      _
    %2561 = vsyncpa [#allocation6], 1
    %s2562 = scalar_lea.sflag [#allocation6], 1
    %2563 = vsyncpa %s2562, 1

// kernel: _lambda_.2
$region0: #{_lambda_.2}
  #allocation0 [shape = 'u32[]', space=smem, size = 0x4, offset = 0x4, fixed_abs, tag = 'smem constant byte address 0x4 - core index']
  #allocation1 [shape = 'u32[144,128]{1,0:T(1,128)}', space=vmem, size = 0x12000, scoped, tag = 'internal scratch']
  #allocation2 [shape = 'f32[18,64]{1,0:T(8,128)}', space=vmem, size = 0x3000, scoped, tag = 'scratch operand']
  #allocation3 [shape = 'f32[18,256]{1,0:T(8,128)}', space=vmem, size = 0x6000, scoped, tag = 'scratch operand']
  #allocation4 [shape = 'f32[22,32]{1,0:T(8,128)}', space=vmem, size = 0x3000, scoped, tag = 'scratch operand']
  %s0 = inlined_call_operand.vmem [shape: f32[2,16,64], index: 0, kind: input, shape index: {}]
  %s1 = inlined_call_operand.hbm [shape: f32[64,256], index: 1, kind: input, shape index: {}]
  %s2 = inlined_call_operand.hbm [shape: f32[64,512], index: 2, kind: input, shape index: {}]
  %s3 = inlined_call_operand.hbm [shape: f32[64,256], index: 3, kind: input, shape index: {}]
  %s4 = inlined_call_operand.hbm [shape: f32[1,256], index: 4, kind: input, shape index: {}]
  %s5 = inlined_call_operand.hbm [shape: f32[256,256], index: 5, kind: input, shape index: {}]
  %s6 = inlined_call_operand.hbm [shape: f32[256,256], index: 6, kind: input, shape index: {}]
  %s7 = inlined_call_operand.hbm [shape: f32[256,256], index: 7, kind: input, shape index: {}]
  %s8 = inlined_call_operand.hbm [shape: f32[1,256], index: 8, kind: input, shape index: {}]
  %s9 = inlined_call_operand.vmem [shape: f32[256,32], index: 9, kind: input, shape index: {}]
  %s10 = inlined_call_operand.vmem [shape: f32[256,32], index: 10, kind: input, shape index: {}]
  %s11 = inlined_call_operand.hbm [shape: f32[7,32,16], index: 11, kind: input, shape index: {}]
  %s12 = inlined_call_operand.hbm [shape: f32[16,256], index: 12, kind: input, shape index: {}]
  %s13 = inlined_call_operand.vmem [shape: f32[1,256], index: 13, kind: input, shape index: {}]
  %s14 = inlined_call_operand.vmem [shape: f32[1,256], index: 14, kind: input, shape index: {}]
  %s15 = inlined_call_operand.vmem [shape: f32[2,16,256], index: 15, kind: output, shape index: {}]
  %s16 = sld [smem:[#allocation0]]
  $region133: #{_lambda_.2} parent=0
    _
  %s18 = ssub.s32 1, %s16
  %s19 = scalar_select 0, %s18, %s16
  $region1: #{_lambda_.2} parent=0
    #allocation5 [shape = 'u8[65536]{0}', space=vmem, size = 0x10000, scoped, tag = 'input window, operand 1, single buffered']
    #allocation6 [shape = 's32[2]{0}', space=sflag, size = 0x8, scoped, tag = 'scoped memory for _lambda_.2']
    #allocation7 [shape = 'u8[131072]{0}', space=vmem, size = 0x20000, scoped, tag = 'input window, operand 2, single buffered']
    #allocation8 [shape = 's32[1]{0}', space=sflag, size = 0x4, scoped, tag = 'scoped memory for _lambda_.2']
    #allocation9 [shape = 'u8[65536]{0}', space=vmem, size = 0x10000, scoped, tag = 'input window, operand 3, single buffered']
    #allocation10 [shape = 'u8[1024]{0}', space=vmem, size = 0x400, scoped, tag = 'input window, operand 4, single buffered']
    #allocation11 [shape = 's32[1]{0}', space=sflag, size = 0x4, scoped, tag = 'scoped memory for _lambda_.2']
    #allocation12 [shape = 'u8[262144]{0}', space=vmem, size = 0x40000, scoped, tag = 'input window, operand 5, single buffered']
    #allocation13 [shape = 'u8[262144]{0}', space=vmem, size = 0x40000, scoped, tag = 'input window, operand 6, single buffered']
    #allocation14 [shape = 's32[1]{0}', space=sflag, size = 0x4, scoped, tag = 'scoped memory for _lambda_.2']
    #allocation15 [shape = 'u8[262144]{0}', space=vmem, size = 0x40000, scoped, tag = 'input window, operand 7, single buffered']
    #allocation16 [shape = 'u8[1024]{0}', space=vmem, size = 0x400, scoped, tag = 'input window, operand 8, single buffered']
    #allocation17 [shape = 's32[1]{0}', space=sflag, size = 0x4, scoped, tag = 'scoped memory for _lambda_.2']
    #allocation18 [shape = 'u8[114688]{0}', space=vmem, size = 0x1c000, scoped, tag = 'input window, operand 11, single buffered']
    #allocation19 [shape = 'u8[16384]{0}', space=vmem, size = 0x4000, scoped, tag = 'input window, operand 12, single buffered']
    #allocation20 [shape = 's32[1]{0}', space=sflag, size = 0x4, scoped, tag = 'scoped memory for _lambda_.2']
    %20 = vsyncpa [#allocation6], 0
    %21 = vsyncpa [#allocation8], 0
    %22 = vsyncpa [#allocation11], 0
    %23 = vsyncpa [#allocation14], 0
    %24 = vsyncpa [#allocation17], 0
    %25 = vsyncpa [#allocation20], 0
    loop: start=0, step=1, limit=4
    $region2: #{_lambda_.2} parent=1 // loop_pre_header
      _
    $region3: #{_lambda_.2} parent=1 // loop_header
      %s27 = sphi 0, %s31
      %p28 = scmp.ge.s32.totalorder %s27, 4
      %s37 = sphi 0, %s39
      %s40 = sphi 0, %s37
      %s41 = sphi 0, %s40
      %s57 = sphi 0, %s41
      %s61 = sphi 0, %s61
      %s63 = sphi 0, %s61
      %s64 = sphi 0, %s63
      %s78 = sphi 0, %s64
      %s82 = sphi 0, %s82
      %s84 = sphi 0, %s82
      %s85 = sphi 0, %s84
      %s99 = sphi 0, %s85
      %s103 = sphi 0, %s103
      %s105 = sphi 0, %s103
      %s106 = sphi 0, %s105
      %s120 = sphi 0, %s106
      %s124 = sphi 0, %s124
      %s126 = sphi 0, %s124
      %s127 = sphi 0, %s126
      %s141 = sphi 0, %s127
      %s145 = sphi 0, %s145
      %s147 = sphi 0, %s145
      %s148 = sphi 0, %s147
      %s162 = sphi 0, %s148
      %s166 = sphi 0, %s166
      %s168 = sphi 0, %s166
      %s169 = sphi 0, %s168
      %s183 = sphi 0, %s169
      %s187 = sphi 0, %s187
      %s189 = sphi 0, %s187
      %s190 = sphi 0, %s189
      %s204 = sphi 0, %s190
      %s208 = sphi 0, %s208
      %s210 = sphi 0, %s208
      %s211 = sphi 0, %s210
      %s225 = sphi 0, %s211
      %s229 = sphi 0, %s229
      %s231 = sphi 0, %s229
      %s232 = sphi 0, %s231
      %s246 = sphi 0, %s232
      %s250 = sphi 0, %s250
      %s252 = sphi 0, %s250
      %s253 = sphi 0, %s252
      %s267 = sphi 0, %s253
      %s271 = sphi 0, %s271
      %s273 = sphi 0, %s271
      %s274 = sphi 0, %s273
      %s288 = sphi 0, %s274
      %s292 = sphi 0, %s292
      %s294 = sphi 0, %s292
      %s295 = sphi 0, %s294
      %s309 = sphi 0, %s295
      %s313 = sphi 0, %s313
      %s315 = sphi 0, %s313
      %s316 = sphi 0, %s315
      %s330 = sphi 0, %s316
      %s334 = sphi 0, %s334
      %s336 = sphi 0, %s334
      %s337 = sphi 0, %s336
      %s351 = sphi 0, %s337
      %s357 = sphi 0, %s359
      %s360 = sphi 0, %s357
      %s361 = sphi 0, %s360
      %s377 = sphi 0, %s361
    $region4: #{_lambda_.2} parent=1 // loop_header_branch
      %30 = sbr.rel (%p28) target = $region8
    $region5: #{_lambda_.2} parent=1 // loop_body
      %s32 = ssub.s32 %s27, 1
      %s33 = ssub.s32 %s27, 2
      %s34 = sadd.s32 %s27, 1
      %s35 = ssub.s32 %s27, %s34
      %p36 = scmp.eq.s32.totalorder %s35, 0
      %s38 = sadd.s32 %s37, 1
      %s39 = scalar_select %p36, %s37, %s38
      %p42 = pneg %p36
      %p43 = scmp.eq.s32.totalorder %s27, 1
      %p44 = por %p42, %p43
      %p45 = scmp.ne.s32.totalorder %s37, %s40
      %p46 = scmp.eq.s32.totalorder %s27, 0
      %p47 = por %p45, %p46
      %p48 = scmp.ne.s32.totalorder %s37, %s40
      %p49 = scmp.eq.s32.totalorder %s32, 1
      %p50 = por %p48, %p49
      %p51 = scmp.ne.s32.totalorder %s40, %s41
      %p52 = scmp.eq.s32.totalorder %s32, 0
      %p53 = por %p51, %p52
      %p54 = scmp.ne.s32.totalorder %s40, %s41
      %p55 = scmp.eq.s32.totalorder %s33, 1
      %p56 = por %p54, %p55
      %p58 = scmp.ne.s32.totalorder %s41, %s57
      %p59 = scmp.eq.s32.totalorder %s33, 0
      %p60 = por %p58, %p59
      %s62 = sadd.s32 %s61, 1
      %p65 = scmp.eq.s32.totalorder %s27, 1
      %p66 = scmp.ne.s32.totalorder %s61, %s63
      %p67 = scmp.eq.s32.totalorder %s27, 0
      %p68 = por %p66, %p67
      %p69 = scmp.ne.s32.totalorder %s61, %s63
      %p70 = scmp.eq.s32.totalorder %s32, 1
      %p71 = por %p69, %p70
      %p72 = scmp.ne.s32.totalorder %s63, %s64
      %p73 = scmp.eq.s32.totalorder %s32, 0
      %p74 = por %p72, %p73
      %p75 = scmp.ne.s32.totalorder %s63, %s64
      %p76 = scmp.eq.s32.totalorder %s33, 1
      %p77 = por %p75, %p76
      %p79 = scmp.ne.s32.totalorder %s64, %s78
      %p80 = scmp.eq.s32.totalorder %s33, 0
      %p81 = por %p79, %p80
      %s83 = sadd.s32 %s82, 1
      %p86 = scmp.eq.s32.totalorder %s27, 1
      %p87 = scmp.ne.s32.totalorder %s82, %s84
      %p88 = scmp.eq.s32.totalorder %s27, 0
      %p89 = por %p87, %p88
      %p90 = scmp.ne.s32.totalorder %s82, %s84
      %p91 = scmp.eq.s32.totalorder %s32, 1
      %p92 = por %p90, %p91
      %p93 = scmp.ne.s32.totalorder %s84, %s85
      %p94 = scmp.eq.s32.totalorder %s32, 0
      %p95 = por %p93, %p94
      %p96 = scmp.ne.s32.totalorder %s84, %s85
      %p97 = scmp.eq.s32.totalorder %s33, 1
      %p98 = por %p96, %p97
      %p100 = scmp.ne.s32.totalorder %s85, %s99
      %p101 = scmp.eq.s32.totalorder %s33, 0
      %p102 = por %p100, %p101
      %s104 = sadd.s32 %s103, 1
      %p107 = scmp.eq.s32.totalorder %s27, 1
      %p108 = scmp.ne.s32.totalorder %s103, %s105
      %p109 = scmp.eq.s32.totalorder %s27, 0
      %p110 = por %p108, %p109
      %p111 = scmp.ne.s32.totalorder %s103, %s105
      %p112 = scmp.eq.s32.totalorder %s32, 1
      %p113 = por %p111, %p112
      %p114 = scmp.ne.s32.totalorder %s105, %s106
      %p115 = scmp.eq.s32.totalorder %s32, 0
      %p116 = por %p114, %p115
      %p117 = scmp.ne.s32.totalorder %s105, %s106
      %p118 = scmp.eq.s32.totalorder %s33, 1
      %p119 = por %p117, %p118
      %p121 = scmp.ne.s32.totalorder %s106, %s120
      %p122 = scmp.eq.s32.totalorder %s33, 0
      %p123 = por %p121, %p122
      %s125 = sadd.s32 %s124, 1
      %p128 = scmp.eq.s32.totalorder %s27, 1
      %p129 = scmp.ne.s32.totalorder %s124, %s126
      %p130 = scmp.eq.s32.totalorder %s27, 0
      %p131 = por %p129, %p130
      %p132 = scmp.ne.s32.totalorder %s124, %s126
      %p133 = scmp.eq.s32.totalorder %s32, 1
      %p134 = por %p132, %p133
      %p135 = scmp.ne.s32.totalorder %s126, %s127
      %p136 = scmp.eq.s32.totalorder %s32, 0
      %p137 = por %p135, %p136
      %p138 = scmp.ne.s32.totalorder %s126, %s127
      %p139 = scmp.eq.s32.totalorder %s33, 1
      %p140 = por %p138, %p139
      %p142 = scmp.ne.s32.totalorder %s127, %s141
      %p143 = scmp.eq.s32.totalorder %s33, 0
      %p144 = por %p142, %p143
      %s146 = sadd.s32 %s145, 1
      %p149 = scmp.eq.s32.totalorder %s27, 1
      %p150 = scmp.ne.s32.totalorder %s145, %s147
      %p151 = scmp.eq.s32.totalorder %s27, 0
      %p152 = por %p150, %p151
      %p153 = scmp.ne.s32.totalorder %s145, %s147
      %p154 = scmp.eq.s32.totalorder %s32, 1
      %p155 = por %p153, %p154
      %p156 = scmp.ne.s32.totalorder %s147, %s148
      %p157 = scmp.eq.s32.totalorder %s32, 0
      %p158 = por %p156, %p157
      %p159 = scmp.ne.s32.totalorder %s147, %s148
      %p160 = scmp.eq.s32.totalorder %s33, 1
      %p161 = por %p159, %p160
      %p163 = scmp.ne.s32.totalorder %s148, %s162
      %p164 = scmp.eq.s32.totalorder %s33, 0
      %p165 = por %p163, %p164
      %s167 = sadd.s32 %s166, 1
      %p170 = scmp.eq.s32.totalorder %s27, 1
      %p171 = scmp.ne.s32.totalorder %s166, %s168
      %p172 = scmp.eq.s32.totalorder %s27, 0
      %p173 = por %p171, %p172
      %p174 = scmp.ne.s32.totalorder %s166, %s168
      %p175 = scmp.eq.s32.totalorder %s32, 1
      %p176 = por %p174, %p175
      %p177 = scmp.ne.s32.totalorder %s168, %s169
      %p178 = scmp.eq.s32.totalorder %s32, 0
      %p179 = por %p177, %p178
      %p180 = scmp.ne.s32.totalorder %s168, %s169
      %p181 = scmp.eq.s32.totalorder %s33, 1
      %p182 = por %p180, %p181
      %p184 = scmp.ne.s32.totalorder %s169, %s183
      %p185 = scmp.eq.s32.totalorder %s33, 0
      %p186 = por %p184, %p185
      %s188 = sadd.s32 %s187, 1
      %p191 = scmp.eq.s32.totalorder %s27, 1
      %p192 = scmp.ne.s32.totalorder %s187, %s189
      %p193 = scmp.eq.s32.totalorder %s27, 0
      %p194 = por %p192, %p193
      %p195 = scmp.ne.s32.totalorder %s187, %s189
      %p196 = scmp.eq.s32.totalorder %s32, 1
      %p197 = por %p195, %p196
      %p198 = scmp.ne.s32.totalorder %s189, %s190
      %p199 = scmp.eq.s32.totalorder %s32, 0
      %p200 = por %p198, %p199
      %p201 = scmp.ne.s32.totalorder %s189, %s190
      %p202 = scmp.eq.s32.totalorder %s33, 1
      %p203 = por %p201, %p202
      %p205 = scmp.ne.s32.totalorder %s190, %s204
      %p206 = scmp.eq.s32.totalorder %s33, 0
      %p207 = por %p205, %p206
      %s209 = sadd.s32 %s208, 1
      %p212 = scmp.eq.s32.totalorder %s27, 1
      %p213 = scmp.ne.s32.totalorder %s208, %s210
      %p214 = scmp.eq.s32.totalorder %s27, 0
      %p215 = por %p213, %p214
      %p216 = scmp.ne.s32.totalorder %s208, %s210
      %p217 = scmp.eq.s32.totalorder %s32, 1
      %p218 = por %p216, %p217
      %p219 = scmp.ne.s32.totalorder %s210, %s211
      %p220 = scmp.eq.s32.totalorder %s32, 0
      %p221 = por %p219, %p220
      %p222 = scmp.ne.s32.totalorder %s210, %s211
      %p223 = scmp.eq.s32.totalorder %s33, 1
      %p224 = por %p222, %p223
      %p226 = scmp.ne.s32.totalorder %s211, %s225
      %p227 = scmp.eq.s32.totalorder %s33, 0
      %p228 = por %p226, %p227
      %s230 = sadd.s32 %s229, 1
      %p233 = scmp.eq.s32.totalorder %s27, 1
      %p234 = scmp.ne.s32.totalorder %s229, %s231
      %p235 = scmp.eq.s32.totalorder %s27, 0
      %p236 = por %p234, %p235
      %p237 = scmp.ne.s32.totalorder %s229, %s231
      %p238 = scmp.eq.s32.totalorder %s32, 1
      %p239 = por %p237, %p238
      %p240 = scmp.ne.s32.totalorder %s231, %s232
      %p241 = scmp.eq.s32.totalorder %s32, 0
      %p242 = por %p240, %p241
      %p243 = scmp.ne.s32.totalorder %s231, %s232
      %p244 = scmp.eq.s32.totalorder %s33, 1
      %p245 = por %p243, %p244
      %p247 = scmp.ne.s32.totalorder %s232, %s246
      %p248 = scmp.eq.s32.totalorder %s33, 0
      %p249 = por %p247, %p248
      %s251 = sadd.s32 %s250, 1
      %p254 = scmp.eq.s32.totalorder %s27, 1
      %p255 = scmp.ne.s32.totalorder %s250, %s252
      %p256 = scmp.eq.s32.totalorder %s27, 0
      %p257 = por %p255, %p256
      %p258 = scmp.ne.s32.totalorder %s250, %s252
      %p259 = scmp.eq.s32.totalorder %s32, 1
      %p260 = por %p258, %p259
      %p261 = scmp.ne.s32.totalorder %s252, %s253
      %p262 = scmp.eq.s32.totalorder %s32, 0
      %p263 = por %p261, %p262
      %p264 = scmp.ne.s32.totalorder %s252, %s253
      %p265 = scmp.eq.s32.totalorder %s33, 1
      %p266 = por %p264, %p265
      %p268 = scmp.ne.s32.totalorder %s253, %s267
      %p269 = scmp.eq.s32.totalorder %s33, 0
      %p270 = por %p268, %p269
      %s272 = sadd.s32 %s271, 1
      %p275 = scmp.eq.s32.totalorder %s27, 1
      %p276 = scmp.ne.s32.totalorder %s271, %s273
      %p277 = scmp.eq.s32.totalorder %s27, 0
      %p278 = por %p276, %p277
      %p279 = scmp.ne.s32.totalorder %s271, %s273
      %p280 = scmp.eq.s32.totalorder %s32, 1
      %p281 = por %p279, %p280
      %p282 = scmp.ne.s32.totalorder %s273, %s274
      %p283 = scmp.eq.s32.totalorder %s32, 0
      %p284 = por %p282, %p283
      %p285 = scmp.ne.s32.totalorder %s273, %s274
      %p286 = scmp.eq.s32.totalorder %s33, 1
      %p287 = por %p285, %p286
      %p289 = scmp.ne.s32.totalorder %s274, %s288
      %p290 = scmp.eq.s32.totalorder %s33, 0
      %p291 = por %p289, %p290
      %s293 = sadd.s32 %s292, 1
      %p296 = scmp.eq.s32.totalorder %s27, 1
      %p297 = scmp.ne.s32.totalorder %s292, %s294
      %p298 = scmp.eq.s32.totalorder %s27, 0
      %p299 = por %p297, %p298
      %p300 = scmp.ne.s32.totalorder %s292, %s294
      %p301 = scmp.eq.s32.totalorder %s32, 1
      %p302 = por %p300, %p301
      %p303 = scmp.ne.s32.totalorder %s294, %s295
      %p304 = scmp.eq.s32.totalorder %s32, 0
      %p305 = por %p303, %p304
      %p306 = scmp.ne.s32.totalorder %s294, %s295
      %p307 = scmp.eq.s32.totalorder %s33, 1
      %p308 = por %p306, %p307
      %p310 = scmp.ne.s32.totalorder %s295, %s309
      %p311 = scmp.eq.s32.totalorder %s33, 0
      %p312 = por %p310, %p311
      %s314 = sadd.s32 %s313, 1
      %p317 = scmp.eq.s32.totalorder %s27, 1
      %p318 = scmp.ne.s32.totalorder %s313, %s315
      %p319 = scmp.eq.s32.totalorder %s27, 0
      %p320 = por %p318, %p319
      %p321 = scmp.ne.s32.totalorder %s313, %s315
      %p322 = scmp.eq.s32.totalorder %s32, 1
      %p323 = por %p321, %p322
      %p324 = scmp.ne.s32.totalorder %s315, %s316
      %p325 = scmp.eq.s32.totalorder %s32, 0
      %p326 = por %p324, %p325
      %p327 = scmp.ne.s32.totalorder %s315, %s316
      %p328 = scmp.eq.s32.totalorder %s33, 1
      %p329 = por %p327, %p328
      %p331 = scmp.ne.s32.totalorder %s316, %s330
      %p332 = scmp.eq.s32.totalorder %s33, 0
      %p333 = por %p331, %p332
      %s335 = sadd.s32 %s334, 1
      %p338 = scmp.eq.s32.totalorder %s27, 1
      %p339 = scmp.ne.s32.totalorder %s334, %s336
      %p340 = scmp.eq.s32.totalorder %s27, 0
      %p341 = por %p339, %p340
      %p342 = scmp.ne.s32.totalorder %s334, %s336
      %p343 = scmp.eq.s32.totalorder %s32, 1
      %p344 = por %p342, %p343
      %p345 = scmp.ne.s32.totalorder %s336, %s337
      %p346 = scmp.eq.s32.totalorder %s32, 0
      %p347 = por %p345, %p346
      %p348 = scmp.ne.s32.totalorder %s336, %s337
      %p349 = scmp.eq.s32.totalorder %s33, 1
      %p350 = por %p348, %p349
      %p352 = scmp.ne.s32.totalorder %s337, %s351
      %p353 = scmp.eq.s32.totalorder %s33, 0
      %p354 = por %p352, %p353
      %s355 = ssub.s32 %s27, %s34
      %p356 = scmp.eq.s32.totalorder %s355, 0
      %s358 = sadd.s32 %s357, 1
      %s359 = scalar_select %p356, %s357, %s358
      %p362 = pneg %p356
      %p363 = scmp.eq.s32.totalorder %s27, 1
      %p364 = por %p362, %p363
      %p365 = scmp.ne.s32.totalorder %s357, %s360
      %p366 = scmp.eq.s32.totalorder %s27, 0
      %p367 = por %p365, %p366
      %p368 = scmp.ne.s32.totalorder %s357, %s360
      %p369 = scmp.eq.s32.totalorder %s32, 1
      %p370 = por %p368, %p369
      %p371 = scmp.ne.s32.totalorder %s360, %s361
      %p372 = scmp.eq.s32.totalorder %s32, 0
      %p373 = por %p371, %p372
      %p374 = scmp.ne.s32.totalorder %s360, %s361
      %p375 = scmp.eq.s32.totalorder %s33, 1
      %p376 = por %p374, %p375
      %p378 = scmp.ne.s32.totalorder %s361, %s377
      %p379 = scmp.eq.s32.totalorder %s33, 0
      %p380 = por %p378, %p379
      %p381 = scmp.le.s32.totalorder 1, %s27
      %p382 = scmp.lt.s32.totalorder %s27, 3
      %p383 = pnand %p381, %p382
      %p384 = pneg %p383
      // Predicated region
      $region9: #{_lambda_.2} parent=5 // pred_check
        _
      $region10: #{_lambda_.2} parent=5 // pred_check_branch
        %386 = sbr.rel (%p383) target = $region12
      $region11: #{_lambda_.2} parent=5 // pred_region
        %s387 = ssub.s32 %s27, 1
        // Predicated region
        $region13: #{_lambda_.2} parent=11 // pred_check
          %p388 = pneg %p74
        $region14: #{_lambda_.2} parent=11 // pred_check_branch
          %390 = sbr.rel (%p388) target = $region16
        $region15: #{_lambda_.2} parent=11 // pred_region
          %s392 = ssub.s32 2048, 2048
          %393 = vsyncadd [#allocation6], %s392
          %s394 = sshll.u32 [#allocation5], 4
          %s395 = int_to_ptr.vmem [resolvable:$true] %s394
          %400 = dma.hbm_to_vmem [thread:$0]  %s1, 2048, %s395, [#allocation6], 256, 256, 16
        $region16: #{_lambda_.2} parent=11 // pred_fallthru
          _
        // Predicated region
        $region17: #{_lambda_.2} parent=11 // pred_check
          %p401 = pneg %p95
        $region18: #{_lambda_.2} parent=11 // pred_check_branch
          %403 = sbr.rel (%p401) target = $region20
        $region19: #{_lambda_.2} parent=11 // pred_region
          %s405 = ssub.s32 4096, 4096
          %406 = vsyncadd [#allocation8], %s405
          %s407 = sshll.u32 [#allocation7], 4
          %s408 = int_to_ptr.vmem [resolvable:$true] %s407
          %413 = dma.hbm_to_vmem [thread:$0]  %s2, 4096, %s408, [#allocation8], 512, 512, 32
        $region20: #{_lambda_.2} parent=11 // pred_fallthru
          _
        // Predicated region
        $region21: #{_lambda_.2} parent=11 // pred_check
          %p414 = pneg %p116
        $region22: #{_lambda_.2} parent=11 // pred_check_branch
          %416 = sbr.rel (%p414) target = $region24
        $region23: #{_lambda_.2} parent=11 // pred_region
          %s418 = ssub.s32 2048, 2048
          %419 = vsyncadd [#allocation8], %s418
          %s420 = sshll.u32 [#allocation9], 4
          %s421 = int_to_ptr.vmem [resolvable:$true] %s420
          %426 = dma.hbm_to_vmem [thread:$0]  %s3, 2048, %s421, [#allocation8], 256, 256, 16
        $region24: #{_lambda_.2} parent=11 // pred_fallthru
          _
        // Predicated region
        $region25: #{_lambda_.2} parent=11 // pred_check
          %p427 = pneg %p137
        $region26: #{_lambda_.2} parent=11 // pred_check_branch
          %429 = sbr.rel (%p427) target = $region28
        $region27: #{_lambda_.2} parent=11 // pred_region
          %s431 = ssub.s32 32, 32
          %432 = vsyncadd [#allocation11], %s431
          %s434 = sshll.u32 [#allocation10], 4
          %s435 = int_to_ptr.vmem [resolvable:$true] %s434
          %437 = dma.hbm_to_vmem [thread:$0]  %s4, 32, %s435, [#allocation11]
        $region28: #{_lambda_.2} parent=11 // pred_fallthru
          _
        // Predicated region
        $region29: #{_lambda_.2} parent=11 // pred_check
          %p438 = pneg %p158
        $region30: #{_lambda_.2} parent=11 // pred_check_branch
          %440 = sbr.rel (%p438) target = $region32
        $region31: #{_lambda_.2} parent=11 // pred_region
          %s442 = ssub.s32 8192, 8192
          %443 = vsyncadd [#allocation11], %s442
          %s444 = sshll.u32 [#allocation12], 4
          %s445 = int_to_ptr.vmem [resolvable:$true] %s444
          %450 = dma.hbm_to_vmem [thread:$0]  %s5, 8192, %s445, [#allocation11], 256, 256, 16
        $region32: #{_lambda_.2} parent=11 // pred_fallthru
          _
        // Predicated region
        $region33: #{_lambda_.2} parent=11 // pred_check
          %p451 = pneg %p179
        $region34: #{_lambda_.2} parent=11 // pred_check_branch
          %453 = sbr.rel (%p451) target = $region36
        $region35: #{_lambda_.2} parent=11 // pred_region
          %s455 = ssub.s32 8192, 8192
          %456 = vsyncadd [#allocation14], %s455
          %s457 = sshll.u32 [#allocation13], 4
          %s458 = int_to_ptr.vmem [resolvable:$true] %s457
          %463 = dma.hbm_to_vmem [thread:$0]  %s6, 8192, %s458, [#allocation14], 256, 256, 16
        $region36: #{_lambda_.2} parent=11 // pred_fallthru
          _
        // Predicated region
        $region37: #{_lambda_.2} parent=11 // pred_check
          %p464 = pneg %p200
        $region38: #{_lambda_.2} parent=11 // pred_check_branch
          %466 = sbr.rel (%p464) target = $region40
        $region39: #{_lambda_.2} parent=11 // pred_region
          %s468 = ssub.s32 8192, 8192
          %469 = vsyncadd [#allocation14], %s468
          %s470 = sshll.u32 [#allocation15], 4
          %s471 = int_to_ptr.vmem [resolvable:$true] %s470
          %476 = dma.hbm_to_vmem [thread:$0]  %s7, 8192, %s471, [#allocation14], 256, 256, 16
        $region40: #{_lambda_.2} parent=11 // pred_fallthru
          _
        // Predicated region
        $region41: #{_lambda_.2} parent=11 // pred_check
          %p477 = pneg %p221
        $region42: #{_lambda_.2} parent=11 // pred_check_branch
          %479 = sbr.rel (%p477) target = $region44
        $region43: #{_lambda_.2} parent=11 // pred_region
          %s481 = ssub.s32 32, 32
          %482 = vsyncadd [#allocation17], %s481
          %s484 = sshll.u32 [#allocation16], 4
          %s485 = int_to_ptr.vmem [resolvable:$true] %s484
          %487 = dma.hbm_to_vmem [thread:$0]  %s8, 32, %s485, [#allocation17]
        $region44: #{_lambda_.2} parent=11 // pred_fallthru
          _
        // Predicated region
        $region45: #{_lambda_.2} parent=11 // pred_check
          %p488 = pneg %p242
        $region46: #{_lambda_.2} parent=11 // pred_check_branch
          %490 = sbr.rel (%p488) target = $region48
        $region47: #{_lambda_.2} parent=11 // pred_region
          _
        $region48: #{_lambda_.2} parent=11 // pred_fallthru
          _
        // Predicated region
        $region49: #{_lambda_.2} parent=11 // pred_check
          %p491 = pneg %p263
        $region50: #{_lambda_.2} parent=11 // pred_check_branch
          %493 = sbr.rel (%p491) target = $region52
        $region51: #{_lambda_.2} parent=11 // pred_region
          _
        $region52: #{_lambda_.2} parent=11 // pred_fallthru
          _
        // Predicated region
        $region53: #{_lambda_.2} parent=11 // pred_check
          %p494 = pneg %p284
        $region54: #{_lambda_.2} parent=11 // pred_check_branch
          %496 = sbr.rel (%p494) target = $region56
        $region55: #{_lambda_.2} parent=11 // pred_region
          %s498 = ssub.s32 3584, 3584
          %499 = vsyncadd [#allocation17], %s498
          %s500 = sshll.u32 [#allocation18], 4
          %s501 = int_to_ptr.vmem [resolvable:$true] %s500
          %506 = dma.hbm_to_vmem [thread:$0]  %s11, 3584, %s501, [#allocation17], 128, 128, 8
        $region56: #{_lambda_.2} parent=11 // pred_fallthru
          _
        // Predicated region
        $region57: #{_lambda_.2} parent=11 // pred_check
          %p507 = pneg %p305
        $region58: #{_lambda_.2} parent=11 // pred_check_branch
          %509 = sbr.rel (%p507) target = $region60
        $region59: #{_lambda_.2} parent=11 // pred_region
          %s511 = ssub.s32 512, 512
          %512 = vsyncadd [#allocation20], %s511
          %s513 = sshll.u32 [#allocation19], 4
          %s514 = int_to_ptr.vmem [resolvable:$true] %s513
          %519 = dma.hbm_to_vmem [thread:$0]  %s12, 512, %s514, [#allocation20], 256, 256, 16
        $region60: #{_lambda_.2} parent=11 // pred_fallthru
          _
        // Predicated region
        $region61: #{_lambda_.2} parent=11 // pred_check
          %p520 = pneg %p326
        $region62: #{_lambda_.2} parent=11 // pred_check_branch
          %522 = sbr.rel (%p520) target = $region64
        $region63: #{_lambda_.2} parent=11 // pred_region
          _
        $region64: #{_lambda_.2} parent=11 // pred_fallthru
          _
        // Predicated region
        $region65: #{_lambda_.2} parent=11 // pred_check
          %p523 = pneg %p347
        $region66: #{_lambda_.2} parent=11 // pred_check_branch
          %525 = sbr.rel (%p523) target = $region68
        $region67: #{_lambda_.2} parent=11 // pred_region
          _
        $region68: #{_lambda_.2} parent=11 // pred_fallthru
          _
      $region12: #{_lambda_.2} parent=5 // pred_fallthru
        _
      %p526 = scmp.lt.s32.totalorder %s27, 2
      // Predicated region
      $region69: #{_lambda_.2} parent=5 // pred_check
        %p527 = pneg %p526
      $region70: #{_lambda_.2} parent=5 // pred_check_branch
        %529 = sbr.rel (%p527) target = $region72
      $region71: #{_lambda_.2} parent=5 // pred_region
        // Predicated region
        $region73: #{_lambda_.2} parent=71 // pred_check
          %p530 = pneg %p47
        $region74: #{_lambda_.2} parent=71 // pred_check_branch
          %532 = sbr.rel (%p530) target = $region76
        $region75: #{_lambda_.2} parent=71 // pred_region
          %p533 = scmp.lt.s32.totalorder %s27, 1
          %s534 = scalar_select %p533, %s27, 1
          %s535 = smul.addr %s534, 2
          %s536 = smul.addr %s535, 8
          %s537 = scalar_lea.vmem %s0, %s536
        $region76: #{_lambda_.2} parent=71 // pred_fallthru
          _
      $region72: #{_lambda_.2} parent=5 // pred_fallthru
        _
      %p538 = scmp.le.s32.totalorder 1, %s27
      %p539 = scmp.lt.s32.totalorder %s27, 3
      %p540 = pnand %p538, %p539
      %p541 = pneg %p540
      // Predicated region
      $region77: #{_lambda_.2} parent=5 // pred_check
        _
      $region78: #{_lambda_.2} parent=5 // pred_check_branch
        %543 = sbr.rel (%p540) target = $region80
      $region79: #{_lambda_.2} parent=5 // pred_region
        %s544 = ssub.s32 %s27, 1
        // Predicated region
        $region81: #{_lambda_.2} parent=79 // pred_check
          %p545 = pneg %p74
        $region82: #{_lambda_.2} parent=79 // pred_check_branch
          %547 = sbr.rel (%p545) target = $region84
        $region83: #{_lambda_.2} parent=79 // pred_region
          %548 = dma.done [#allocation6], 2048
        $region84: #{_lambda_.2} parent=79 // pred_fallthru
          _
        // Predicated region
        $region85: #{_lambda_.2} parent=79 // pred_check
          %p549 = pneg %p95
        $region86: #{_lambda_.2} parent=79 // pred_check_branch
          %551 = sbr.rel (%p549) target = $region88
        $region87: #{_lambda_.2} parent=79 // pred_region
          %552 = dma.done [#allocation8], 4096
        $region88: #{_lambda_.2} parent=79 // pred_fallthru
          _
        // Predicated region
        $region89: #{_lambda_.2} parent=79 // pred_check
          %p553 = pneg %p116
        $region90: #{_lambda_.2} parent=79 // pred_check_branch
          %555 = sbr.rel (%p553) target = $region92
        $region91: #{_lambda_.2} parent=79 // pred_region
          %556 = dma.done [#allocation8], 2048
        $region92: #{_lambda_.2} parent=79 // pred_fallthru
          _
        // Predicated region
        $region93: #{_lambda_.2} parent=79 // pred_check
          %p557 = pneg %p137
        $region94: #{_lambda_.2} parent=79 // pred_check_branch
          %559 = sbr.rel (%p557) target = $region96
        $region95: #{_lambda_.2} parent=79 // pred_region
          %560 = dma.done [#allocation11], 32
        $region96: #{_lambda_.2} parent=79 // pred_fallthru
          _
        // Predicated region
        $region97: #{_lambda_.2} parent=79 // pred_check
          %p561 = pneg %p158
        $region98: #{_lambda_.2} parent=79 // pred_check_branch
          %563 = sbr.rel (%p561) target = $region100
        $region99: #{_lambda_.2} parent=79 // pred_region
          %564 = dma.done [#allocation11], 8192
        $region100: #{_lambda_.2} parent=79 // pred_fallthru
          _
        // Predicated region
        $region101: #{_lambda_.2} parent=79 // pred_check
          %p565 = pneg %p179
        $region102: #{_lambda_.2} parent=79 // pred_check_branch
          %567 = sbr.rel (%p565) target = $region104
        $region103: #{_lambda_.2} parent=79 // pred_region
          %568 = dma.done [#allocation14], 8192
        $region104: #{_lambda_.2} parent=79 // pred_fallthru
          _
        // Predicated region
        $region105: #{_lambda_.2} parent=79 // pred_check
          %p569 = pneg %p200
        $region106: #{_lambda_.2} parent=79 // pred_check_branch
          %571 = sbr.rel (%p569) target = $region108
        $region107: #{_lambda_.2} parent=79 // pred_region
          %572 = dma.done [#allocation14], 8192
        $region108: #{_lambda_.2} parent=79 // pred_fallthru
          _
        // Predicated region
        $region109: #{_lambda_.2} parent=79 // pred_check
          %p573 = pneg %p221
        $region110: #{_lambda_.2} parent=79 // pred_check_branch
          %575 = sbr.rel (%p573) target = $region112
        $region111: #{_lambda_.2} parent=79 // pred_region
          %576 = dma.done [#allocation17], 32
        $region112: #{_lambda_.2} parent=79 // pred_fallthru
          _
        // Predicated region
        $region113: #{_lambda_.2} parent=79 // pred_check
          %p577 = pneg %p284
        $region114: #{_lambda_.2} parent=79 // pred_check_branch
          %579 = sbr.rel (%p577) target = $region116
        $region115: #{_lambda_.2} parent=79 // pred_region
          %580 = dma.done [#allocation17], 3584
        $region116: #{_lambda_.2} parent=79 // pred_fallthru
          _
        // Predicated region
        $region117: #{_lambda_.2} parent=79 // pred_check
          %p581 = pneg %p305
        $region118: #{_lambda_.2} parent=79 // pred_check_branch
          %583 = sbr.rel (%p581) target = $region120
        $region119: #{_lambda_.2} parent=79 // pred_region
          %584 = dma.done [#allocation20], 512
        $region120: #{_lambda_.2} parent=79 // pred_fallthru
          _
        %p585 = scmp.lt.s32.totalorder %s32, 1
        %s586 = scalar_select %p585, %s32, 1
        %s587 = smul.addr %s586, 2
        %s588 = smul.addr %s587, 8
        %s589 = scalar_lea.vmem %s0, %s588
        %p590 = pneg %p53
        %p591 = pneg %p50
        %p592 = pneg %p74
        %p593 = pneg %p71
        %p594 = pneg %p95
        %p595 = pneg %p92
        %p596 = pneg %p116
        %p597 = pneg %p113
        %p598 = pneg %p137
        %p599 = pneg %p134
        %p600 = pneg %p158
        %p601 = pneg %p155
        %p602 = pneg %p179
        %p603 = pneg %p176
        %p604 = pneg %p200
        %p605 = pneg %p197
        %p606 = pneg %p221
        %p607 = pneg %p218
        %p608 = pneg %p242
        %p609 = pneg %p239
        %p610 = pneg %p263
        %p611 = pneg %p260
        %p612 = pneg %p284
        %p613 = pneg %p281
        %p614 = pneg %p305
        %p615 = pneg %p302
        %p616 = pneg %p326
        %p617 = pneg %p323
        %p618 = pneg %p347
        %p619 = pneg %p344
        %p620 = pneg %p373
        %p621 = pneg %p370
        %p622 = scmp.lt.s32.totalorder %s32, 1
        %s623 = scalar_select %p622, %s32, 1
        %s624 = smul.addr %s623, 4
        %s625 = smul.addr %s624, 8
        %s626 = scalar_lea.vmem %s15, %s625
        %p627 = scmp.lt.s32.totalorder %s32, 1
        %s628 = scalar_select %p627, %s32, 1
        %s629 = smul.addr %s628, 2
        %s630 = smul.addr %s629, 8
        %s631 = scalar_lea.vmem %s0, %s630
        %p632 = scmp.lt.s32.totalorder %s32, 1
        %s633 = scalar_select %p632, %s32, 1
        %s634 = smul.addr %s633, 4
        %s635 = smul.addr %s634, 8
        %s636 = scalar_lea.vmem %s15, %s635
        %v637 = vld [vmem:[%s631] sm:$0xff]
        %v638 = vld [vmem:[%s631 + $0x8] sm:$0xff]
        %vm639 = vcmask 516096
        %640 = vst.msk [vmem:[#allocation2] sm:$0x1] %vm639, 0.0
        %641 = vst.msk [vmem:[#allocation2 + $0x11] sm:$0x1] %vm639, 0.0
        %vm642 = vcmask 523264
        %643 = vst.msk [vmem:[#allocation2 + $0x1] sm:$0xff] %vm642, %v637
        %644 = vst.msk [vmem:[#allocation2 + $0x9] sm:$0xff] %vm642, %v638
        %v645 = vld [vmem:[#allocation7] sm:$0xff]
        %v646 = vld [vmem:[#allocation7 + $0x8] sm:$0xff]
        %v647 = vld [vmem:[#allocation7 + $0x10] sm:$0xff]
        %v648 = vld [vmem:[#allocation7 + $0x18] sm:$0xff]
        %v649 = vld [vmem:[#allocation7 + $0x20] sm:$0xff]
        %v650 = vld [vmem:[#allocation7 + $0x28] sm:$0xff]
        %v651 = vld [vmem:[#allocation7 + $0x30] sm:$0xff]
        %v652 = vld [vmem:[#allocation7 + $0x38] sm:$0xff]
        %v653 = vld [vmem:[#allocation7 + $0x40] sm:$0xff]
        %v654 = vld [vmem:[#allocation7 + $0x48] sm:$0xff]
        %v655 = vld [vmem:[#allocation7 + $0x50] sm:$0xff]
        %v656 = vld [vmem:[#allocation7 + $0x58] sm:$0xff]
        %v657 = vld [vmem:[#allocation7 + $0x60] sm:$0xff]
        %v658 = vld [vmem:[#allocation7 + $0x68] sm:$0xff]
        %v659 = vld [vmem:[#allocation7 + $0x70] sm:$0xff]
        %v660 = vld [vmem:[#allocation7 + $0x78] sm:$0xff]
        %v661 = vld [vmem:[#allocation7 + $0x80] sm:$0xff]
        %v662 = vld [vmem:[#allocation7 + $0x88] sm:$0xff]
        %v663 = vld [vmem:[#allocation7 + $0x90] sm:$0xff]
        %v664 = vld [vmem:[#allocation7 + $0x98] sm:$0xff]
        %v665 = vld [vmem:[#allocation7 + $0xa0] sm:$0xff]
        %v666 = vld [vmem:[#allocation7 + $0xa8] sm:$0xff]
        %v667 = vld [vmem:[#allocation7 + $0xb0] sm:$0xff]
        %v668 = vld [vmem:[#allocation7 + $0xb8] sm:$0xff]
        %v669 = vld [vmem:[#allocation7 + $0xc0] sm:$0xff]
        %v670 = vld [vmem:[#allocation7 + $0xc8] sm:$0xff]
        %v671 = vld [vmem:[#allocation7 + $0xd0] sm:$0xff]
        %v672 = vld [vmem:[#allocation7 + $0xd8] sm:$0xff]
        %v673 = vld [vmem:[#allocation7 + $0xe0] sm:$0xff]
        %v674 = vld [vmem:[#allocation7 + $0xe8] sm:$0xff]
        %v675 = vld [vmem:[#allocation7 + $0xf0] sm:$0xff]
        %v676 = vld [vmem:[#allocation7 + $0xf8] sm:$0xff]
        %v678 = vsel %vm642, %v637, 0
        %v681 = vsel %vm642, %v638, 0
        %683 = vmatprep.subr.mxu0 %v646
        %684 = vmatpush1.msra.mxu0 %v645
        %685 = vmatprep.subr.mxu0 %v650
        %686 = vmatpush1.msra.mxu0 %v649
        %687 = vmatprep.subr.mxu0 %v654
        %688 = vmatpush1.msra.mxu0 %v653
        %689 = vmatprep.subr.mxu0 %v658
        %690 = vmatpush1.msra.mxu0 %v657
        %691 = vmatprep.subr.mxu0 %v662
        %692 = vmatpush1.msra.mxu0 %v661
        %693 = vmatprep.subr.mxu0 %v666
        %694 = vmatpush1.msra.mxu0 %v665
        %695 = vmatprep.subr.mxu0 %v670
        %696 = vmatpush1.msra.mxu0 %v669
        %697 = vmatprep.subr.mxu0 %v674
        %698 = vmatpush1.msra.mxu0 %v673
        %699 = vmatprep.subr.mxu0 0.0
        %700 = vmatpush1.msra.mxu0 0.0
        %701 = vmatprep.subr.mxu0 0.0
        %702 = vmatpush1.msra.mxu0 0.0
        %703 = vmatprep.subr.mxu0 0.0
        %704 = vmatpush1.msra.mxu0 0.0
        %705 = vmatprep.subr.mxu0 0.0
        %706 = vmatpush1.msra.mxu0 0.0
        %707 = vmatprep.subr.mxu0 0.0
        %708 = vmatpush1.msra.mxu0 0.0
        %709 = vmatprep.subr.mxu0 0.0
        %710 = vmatpush1.msra.mxu0 0.0
        %711 = vmatprep.subr.mxu0 0.0
        %712 = vmatpush1.msra.mxu0 0.0
        %713 = vmatprep.subr.mxu0 0.0
        %714 = vmatpush1.msra.mxu0 0.0
        %715 = vmatprep.subr.mxu0 0.0
        %716 = vmatpush1.msra.mxu0 0.0
        %717 = vmatprep.subr.mxu0 0.0
        %718 = vmatpush1.msra.mxu0 0.0
        %719 = vmatprep.subr.mxu0 0.0
        %720 = vmatpush1.msra.mxu0 0.0
        %721 = vmatprep.subr.mxu0 0.0
        %722 = vmatpush1.msra.mxu0 0.0
        %723 = vmatprep.subr.mxu0 0.0
        %724 = vmatpush1.msra.mxu0 0.0
        %725 = vmatprep.subr.mxu0 0.0
        %726 = vmatpush1.msra.mxu0 0.0
        %727 = vmatprep.subr.mxu0 0.0
        %728 = vmatpush1.msra.mxu0 0.0
        %729 = vmatprep.subr.mxu0 0.0
        %730 = vmatpush1.msra.mxu0 0.0
        %731 = vmatprep.subr.mxu0 0.0
        %732 = vmatpush1.msra.mxu0 0.0
        %733 = vmatprep.subr.mxu0 0.0
        %734 = vmatpush1.msra.mxu0 0.0
        %735 = vmatprep.subr.mxu0 0.0
        %736 = vmatpush1.msra.mxu0 0.0
        %737 = vmatprep.subr.mxu0 0.0
        %738 = vmatpush1.msra.mxu0 0.0
        %739 = vmatprep.subr.mxu0 0.0
        %740 = vmatpush1.msra.mxu0 0.0
        %741 = vmatprep.subr.mxu0 0.0
        %742 = vmatpush1.msra.mxu0 0.0
        %743 = vmatprep.subr.mxu0 0.0
        %744 = vmatpush1.msra.mxu0 0.0
        %745 = vmatprep.subr.mxu0 0.0
        %746 = vmatpush1.msra.mxu0 0.0
        %747 = vmatprep.mubr.f32.mxu0 0.0
        %748 = vmatmul.mubr.f32.gmra.mrb[0].mxu0 %v678
        %v749 = vpop.f32.mrb[0].mxu0
        %v750 = vadd.f32 0.0, %v749
        %v751 = vpop.f32.mrb[0].mxu0
        %v752 = vadd.f32 0.0, %v751
        %753 = vmatprep.mubr.f32.mxu0 0.0
        %754 = vmatmul.mubr.f32.gmra.mrb[0].mxu0 %v681
        %v755 = vpop.f32.mrb[0].mxu0
        %v756 = vadd.f32 0.0, %v755
        %v757 = vpop.f32.mrb[0].mxu0
        %v758 = vadd.f32 0.0, %v757
        %759 = vdwg.mxu0
        %760 = vmatprep.subr.mxu0 %v648
        %761 = vmatpush1.msra.mxu0 %v647
        %762 = vmatprep.subr.mxu0 %v652
        %763 = vmatpush1.msra.mxu0 %v651
        %764 = vmatprep.subr.mxu0 %v656
        %765 = vmatpush1.msra.mxu0 %v655
        %766 = vmatprep.subr.mxu0 %v660
        %767 = vmatpush1.msra.mxu0 %v659
        %768 = vmatprep.subr.mxu0 %v664
        %769 = vmatpush1.msra.mxu0 %v663
        %770 = vmatprep.subr.mxu0 %v668
        %771 = vmatpush1.msra.mxu0 %v667
        %772 = vmatprep.subr.mxu0 %v672
        %773 = vmatpush1.msra.mxu0 %v671
        %774 = vmatprep.subr.mxu0 %v676
        %775 = vmatpush1.msra.mxu0 %v675
        %776 = vmatprep.subr.mxu0 0.0
        %777 = vmatpush1.msra.mxu0 0.0
        %778 = vmatprep.subr.mxu0 0.0
        %779 = vmatpush1.msra.mxu0 0.0
        %780 = vmatprep.subr.mxu0 0.0
        %781 = vmatpush1.msra.mxu0 0.0
        %782 = vmatprep.subr.mxu0 0.0
        %783 = vmatpush1.msra.mxu0 0.0
        %784 = vmatprep.subr.mxu0 0.0
        %785 = vmatpush1.msra.mxu0 0.0
        %786 = vmatprep.subr.mxu0 0.0
        %787 = vmatpush1.msra.mxu0 0.0
        %788 = vmatprep.subr.mxu0 0.0
        %789 = vmatpush1.msra.mxu0 0.0
        %790 = vmatprep.subr.mxu0 0.0
        %791 = vmatpush1.msra.mxu0 0.0
        %792 = vmatprep.subr.mxu0 0.0
        %793 = vmatpush1.msra.mxu0 0.0
        %794 = vmatprep.subr.mxu0 0.0
        %795 = vmatpush1.msra.mxu0 0.0
        %796 = vmatprep.subr.mxu0 0.0
        %797 = vmatpush1.msra.mxu0 0.0
        %798 = vmatprep.subr.mxu0 0.0
        %799 = vmatpush1.msra.mxu0 0.0
        %800 = vmatprep.subr.mxu0 0.0
        %801 = vmatpush1.msra.mxu0 0.0
        %802 = vmatprep.subr.mxu0 0.0
        %803 = vmatpush1.msra.mxu0 0.0
        %804 = vmatprep.subr.mxu0 0.0
        %805 = vmatpush1.msra.mxu0 0.0
        %806 = vmatprep.subr.mxu0 0.0
        %807 = vmatpush1.msra.mxu0 0.0
        %808 = vmatprep.subr.mxu0 0.0
        %809 = vmatpush1.msra.mxu0 0.0
        %810 = vmatprep.subr.mxu0 0.0
        %811 = vmatpush1.msra.mxu0 0.0
        %812 = vmatprep.subr.mxu0 0.0
        %813 = vmatpush1.msra.mxu0 0.0
        %814 = vmatprep.subr.mxu0 0.0
        %815 = vmatpush1.msra.mxu0 0.0
        %816 = vmatprep.subr.mxu0 0.0
        %817 = vmatpush1.msra.mxu0 0.0
        %818 = vmatprep.subr.mxu0 0.0
        %819 = vmatpush1.msra.mxu0 0.0
        %820 = vmatprep.subr.mxu0 0.0
        %821 = vmatpush1.msra.mxu0 0.0
        %822 = vmatprep.subr.mxu0 0.0
        %823 = vmatpush1.msra.mxu0 0.0
        %824 = vmatprep.mubr.f32.mxu0 0.0
        %825 = vmatmul.mubr.f32.gmra.mrb[0].mxu0 %v678
        %v826 = vpop.f32.mrb[0].mxu0
        %v827 = vadd.f32 0.0, %v826
        %v828 = vpop.f32.mrb[0].mxu0
        %v829 = vadd.f32 0.0, %v828
        %830 = vmatprep.mubr.f32.mxu0 0.0
        %831 = vmatmul.mubr.f32.gmra.mrb[0].mxu0 %v681
        %v832 = vpop.f32.mrb[0].mxu0
        %v833 = vadd.f32 0.0, %v832
        %v834 = vpop.f32.mrb[0].mxu0
        %v835 = vadd.f32 0.0, %v834
        %836 = vdwg.mxu0
        %v837 = vld [vmem:[%s14] sm:$0x3]
        %v839 = vlaneseq
        %v840 = vshrl.u32 %v839, 7
        %v841 = vsub.s32 0, %v840
        %v842 = vrot.slane %v837, %v841
        %v843 = vlaneseq
        %v844 = vshrl.u32 %v843, 7
        %v845 = vsub.s32 1, %v844
        %v846 = vrot.slane %v837, %v845
        %v849 = vadd.f32 %v827, %v842
        %v850 = vadd.f32 %v829, %v846
        %v851 = vadd.f32 %v833, %v842
        %v852 = vadd.f32 %v835, %v846
        %v853 = vld [vmem:[#allocation2] sm:$0xff]
        %v854 = vld [vmem:[#allocation2 + $0x8] sm:$0xff]
        %v855 = vld [vmem:[#allocation5] sm:$0xff]
        %v856 = vld [vmem:[#allocation5 + $0x8] sm:$0xff]
        %v857 = vld [vmem:[#allocation5 + $0x10] sm:$0xff]
        %v858 = vld [vmem:[#allocation5 + $0x18] sm:$0xff]
        %v859 = vld [vmem:[#allocation5 + $0x20] sm:$0xff]
        %v860 = vld [vmem:[#allocation5 + $0x28] sm:$0xff]
        %v861 = vld [vmem:[#allocation5 + $0x30] sm:$0xff]
        %v862 = vld [vmem:[#allocation5 + $0x38] sm:$0xff]
        %v863 = vld [vmem:[#allocation5 + $0x40] sm:$0xff]
        %v864 = vld [vmem:[#allocation5 + $0x48] sm:$0xff]
        %v865 = vld [vmem:[#allocation5 + $0x50] sm:$0xff]
        %v866 = vld [vmem:[#allocation5 + $0x58] sm:$0xff]
        %v867 = vld [vmem:[#allocation5 + $0x60] sm:$0xff]
        %v868 = vld [vmem:[#allocation5 + $0x68] sm:$0xff]
        %v869 = vld [vmem:[#allocation5 + $0x70] sm:$0xff]
        %v870 = vld [vmem:[#allocation5 + $0x78] sm:$0xff]
        %v872 = vsel %vm642, %v853, 0
        %v875 = vsel %vm642, %v854, 0
        %877 = vmatprep.subr.mxu0 %v856
        %878 = vmatpush1.msra.mxu0 %v855
        %879 = vmatprep.subr.mxu0 %v858
        %880 = vmatpush1.msra.mxu0 %v857
        %881 = vmatprep.subr.mxu0 %v860
        %882 = vmatpush1.msra.mxu0 %v859
        %883 = vmatprep.subr.mxu0 %v862
        %884 = vmatpush1.msra.mxu0 %v861
        %885 = vmatprep.subr.mxu0 %v864
        %886 = vmatpush1.msra.mxu0 %v863
        %887 = vmatprep.subr.mxu0 %v866
        %888 = vmatpush1.msra.mxu0 %v865
        %889 = vmatprep.subr.mxu0 %v868
        %890 = vmatpush1.msra.mxu0 %v867
        %891 = vmatprep.subr.mxu0 %v870
        %892 = vmatpush1.msra.mxu0 %v869
        %893 = vmatprep.subr.mxu0 0.0
        %894 = vmatpush1.msra.mxu0 0.0
        %895 = vmatprep.subr.mxu0 0.0
        %896 = vmatpush1.msra.mxu0 0.0
        %897 = vmatprep.subr.mxu0 0.0
        %898 = vmatpush1.msra.mxu0 0.0
        %899 = vmatprep.subr.mxu0 0.0
        %900 = vmatpush1.msra.mxu0 0.0
        %901 = vmatprep.subr.mxu0 0.0
        %902 = vmatpush1.msra.mxu0 0.0
        %903 = vmatprep.subr.mxu0 0.0
        %904 = vmatpush1.msra.mxu0 0.0
        %905 = vmatprep.subr.mxu0 0.0
        %906 = vmatpush1.msra.mxu0 0.0
        %907 = vmatprep.subr.mxu0 0.0
        %908 = vmatpush1.msra.mxu0 0.0
        %909 = vmatprep.subr.mxu0 0.0
        %910 = vmatpush1.msra.mxu0 0.0
        %911 = vmatprep.subr.mxu0 0.0
        %912 = vmatpush1.msra.mxu0 0.0
        %913 = vmatprep.subr.mxu0 0.0
        %914 = vmatpush1.msra.mxu0 0.0
        %915 = vmatprep.subr.mxu0 0.0
        %916 = vmatpush1.msra.mxu0 0.0
        %917 = vmatprep.subr.mxu0 0.0
        %918 = vmatpush1.msra.mxu0 0.0
        %919 = vmatprep.subr.mxu0 0.0
        %920 = vmatpush1.msra.mxu0 0.0
        %921 = vmatprep.subr.mxu0 0.0
        %922 = vmatpush1.msra.mxu0 0.0
        %923 = vmatprep.subr.mxu0 0.0
        %924 = vmatpush1.msra.mxu0 0.0
        %925 = vmatprep.subr.mxu0 0.0
        %926 = vmatpush1.msra.mxu0 0.0
        %927 = vmatprep.subr.mxu0 0.0
        %928 = vmatpush1.msra.mxu0 0.0
        %929 = vmatprep.subr.mxu0 0.0
        %930 = vmatpush1.msra.mxu0 0.0
        %931 = vmatprep.subr.mxu0 0.0
        %932 = vmatpush1.msra.mxu0 0.0
        %933 = vmatprep.subr.mxu0 0.0
        %934 = vmatpush1.msra.mxu0 0.0
        %935 = vmatprep.subr.mxu0 0.0
        %936 = vmatpush1.msra.mxu0 0.0
        %937 = vmatprep.subr.mxu0 0.0
        %938 = vmatpush1.msra.mxu0 0.0
        %939 = vmatprep.subr.mxu0 0.0
        %940 = vmatpush1.msra.mxu0 0.0
        %941 = vmatprep.mubr.f32.mxu0 0.0
        %942 = vmatmul.mubr.f32.gmra.mrb[0].mxu0 %v872
        %v943 = vpop.f32.mrb[0].mxu0
        %v944 = vadd.f32 0.0, %v943
        %v945 = vpop.f32.mrb[0].mxu0
        %v946 = vadd.f32 0.0, %v945
        %947 = vmatprep.mubr.f32.mxu0 0.0
        %948 = vmatmul.mubr.f32.gmra.mrb[0].mxu0 %v875
        %v949 = vpop.f32.mrb[0].mxu0
        %v950 = vadd.f32 0.0, %v949
        %v951 = vpop.f32.mrb[0].mxu0
        %v952 = vadd.f32 0.0, %v951
        %953 = vdwg.mxu0
        %v954 = vadd.f32 %v750, %v944
        %v955 = vadd.f32 %v752, %v946
        %v956 = vadd.f32 %v756, %v950
        %v957 = vadd.f32 %v758, %v952
        %v958 = vld [vmem:[#allocation2 + $0x2] sm:$0xff]
        %v959 = vld [vmem:[#allocation2 + $0xa] sm:$0xff]
        %v960 = vld [vmem:[#allocation9] sm:$0xff]
        %v961 = vld [vmem:[#allocation9 + $0x8] sm:$0xff]
        %v962 = vld [vmem:[#allocation9 + $0x10] sm:$0xff]
        %v963 = vld [vmem:[#allocation9 + $0x18] sm:$0xff]
        %v964 = vld [vmem:[#allocation9 + $0x20] sm:$0xff]
        %v965 = vld [vmem:[#allocation9 + $0x28] sm:$0xff]
        %v966 = vld [vmem:[#allocation9 + $0x30] sm:$0xff]
        %v967 = vld [vmem:[#allocation9 + $0x38] sm:$0xff]
        %v968 = vld [vmem:[#allocation9 + $0x40] sm:$0xff]
        %v969 = vld [vmem:[#allocation9 + $0x48] sm:$0xff]
        %v970 = vld [vmem:[#allocation9 + $0x50] sm:$0xff]
        %v971 = vld [vmem:[#allocation9 + $0x58] sm:$0xff]
        %v972 = vld [vmem:[#allocation9 + $0x60] sm:$0xff]
        %v973 = vld [vmem:[#allocation9 + $0x68] sm:$0xff]
        %v974 = vld [vmem:[#allocation9 + $0x70] sm:$0xff]
        %v975 = vld [vmem:[#allocation9 + $0x78] sm:$0xff]
        %v977 = vsel %vm642, %v958, 0
        %v980 = vsel %vm642, %v959, 0
        %982 = vmatprep.subr.mxu0 %v961
        %983 = vmatpush1.msra.mxu0 %v960
        %984 = vmatprep.subr.mxu0 %v963
        %985 = vmatpush1.msra.mxu0 %v962
        %986 = vmatprep.subr.mxu0 %v965
        %987 = vmatpush1.msra.mxu0 %v964
        %988 = vmatprep.subr.mxu0 %v967
        %989 = vmatpush1.msra.mxu0 %v966
        %990 = vmatprep.subr.mxu0 %v969
        %991 = vmatpush1.msra.mxu0 %v968
        %992 = vmatprep.subr.mxu0 %v971
        %993 = vmatpush1.msra.mxu0 %v970
        %994 = vmatprep.subr.mxu0 %v973
        %995 = vmatpush1.msra.mxu0 %v972
        %996 = vmatprep.subr.mxu0 %v975
        %997 = vmatpush1.msra.mxu0 %v974
        %998 = vmatprep.subr.mxu0 0.0
        %999 = vmatpush1.msra.mxu0 0.0
        %1000 = vmatprep.subr.mxu0 0.0
        %1001 = vmatpush1.msra.mxu0 0.0
        %1002 = vmatprep.subr.mxu0 0.0
        %1003 = vmatpush1.msra.mxu0 0.0
        %1004 = vmatprep.subr.mxu0 0.0
        %1005 = vmatpush1.msra.mxu0 0.0
        %1006 = vmatprep.subr.mxu0 0.0
        %1007 = vmatpush1.msra.mxu0 0.0
        %1008 = vmatprep.subr.mxu0 0.0
        %1009 = vmatpush1.msra.mxu0 0.0
        %1010 = vmatprep.subr.mxu0 0.0
        %1011 = vmatpush1.msra.mxu0 0.0
        %1012 = vmatprep.subr.mxu0 0.0
        %1013 = vmatpush1.msra.mxu0 0.0
        %1014 = vmatprep.subr.mxu0 0.0
        %1015 = vmatpush1.msra.mxu0 0.0
        %1016 = vmatprep.subr.mxu0 0.0
        %1017 = vmatpush1.msra.mxu0 0.0
        %1018 = vmatprep.subr.mxu0 0.0
        %1019 = vmatpush1.msra.mxu0 0.0
        %1020 = vmatprep.subr.mxu0 0.0
        %1021 = vmatpush1.msra.mxu0 0.0
        %1022 = vmatprep.subr.mxu0 0.0
        %1023 = vmatpush1.msra.mxu0 0.0
        %1024 = vmatprep.subr.mxu0 0.0
        %1025 = vmatpush1.msra.mxu0 0.0
        %1026 = vmatprep.subr.mxu0 0.0
        %1027 = vmatpush1.msra.mxu0 0.0
        %1028 = vmatprep.subr.mxu0 0.0
        %1029 = vmatpush1.msra.mxu0 0.0
        %1030 = vmatprep.subr.mxu0 0.0
        %1031 = vmatpush1.msra.mxu0 0.0
        %1032 = vmatprep.subr.mxu0 0.0
        %1033 = vmatpush1.msra.mxu0 0.0
        %1034 = vmatprep.subr.mxu0 0.0
        %1035 = vmatpush1.msra.mxu0 0.0
        %1036 = vmatprep.subr.mxu0 0.0
        %1037 = vmatpush1.msra.mxu0 0.0
        %1038 = vmatprep.subr.mxu0 0.0
        %1039 = vmatpush1.msra.mxu0 0.0
        %1040 = vmatprep.subr.mxu0 0.0
        %1041 = vmatpush1.msra.mxu0 0.0
        %1042 = vmatprep.subr.mxu0 0.0
        %1043 = vmatpush1.msra.mxu0 0.0
        %1044 = vmatprep.subr.mxu0 0.0
        %1045 = vmatpush1.msra.mxu0 0.0
        %1046 = vmatprep.mubr.f32.mxu0 0.0
        %1047 = vmatmul.mubr.f32.gmra.mrb[0].mxu0 %v977
        %v1048 = vpop.f32.mrb[0].mxu0
        %v1049 = vadd.f32 0.0, %v1048
        %v1050 = vpop.f32.mrb[0].mxu0
        %v1051 = vadd.f32 0.0, %v1050
        %1052 = vmatprep.mubr.f32.mxu0 0.0
        %1053 = vmatmul.mubr.f32.gmra.mrb[0].mxu0 %v980
        %v1054 = vpop.f32.mrb[0].mxu0
        %v1055 = vadd.f32 0.0, %v1054
        %v1056 = vpop.f32.mrb[0].mxu0
        %v1057 = vadd.f32 0.0, %v1056
        %1058 = vdwg.mxu0
        %v1059 = vadd.f32 %v954, %v1049
        %v1060 = vadd.f32 %v955, %v1051
        %v1061 = vadd.f32 %v956, %v1055
        %v1062 = vadd.f32 %v957, %v1057
        %v1063 = vld [vmem:[#allocation10] sm:$0x3]
        %v1065 = vlaneseq
        %v1066 = vshrl.u32 %v1065, 7
        %v1067 = vsub.s32 0, %v1066
        %v1068 = vrot.slane %v1063, %v1067
        %v1069 = vlaneseq
        %v1070 = vshrl.u32 %v1069, 7
        %v1071 = vsub.s32 1, %v1070
        %v1072 = vrot.slane %v1063, %v1071
        %v1075 = vadd.f32 %v1059, %v1068
        %v1076 = vadd.f32 %v1060, %v1072
        %v1077 = vadd.f32 %v1061, %v1068
        %v1078 = vadd.f32 %v1062, %v1072
        %v1079 = vmax.f32 %v1075, 0.0
        %v1080 = vmax.f32 %v1076, 0.0
        %v1081 = vmax.f32 %v1077, 0.0
        %v1082 = vmax.f32 %v1078, 0.0
        %v1083 = vlaneseq
        %vm1084 = vcmp.ge.s32.totalorder %v1083, 0
        %vm1085 = vcmp.lt.s32.totalorder %v1083, 256
        %vm1086 = vmand %vm1084, %vm1085
        %1087 = vst.msk [vmem:[#allocation3] ss:$8 sm:$0x3] %vm1086, 0.0
        %1088 = vst.msk [vmem:[#allocation3] ss:$8 sm:$0x0] %vm1086, 0.0
        %s1089 = scalar_lea.vmem [#allocation3], 33
        %1090 = vst.msk [vmem:[%s1089] ss:$8 sm:$0x3] %vm1086, 0.0
        %1091 = vst.msk [vmem:[%s1089] ss:$8 sm:$0x0] %vm1086, 0.0
        %vm1096 = vcmask 1040384
        %v1097 = vrot.slane %v1079, 7
        %v1098 = vrot.slane %v1080, 7
        %v1099 = vrot.slane %v1081, 7
        %v1100 = vsel %vm1096, %v1097, %v1099
        %v1101 = vrot.slane %v1082, 7
        %v1102 = vsel %vm1096, %v1098, %v1101
        %1109 = vst [vmem:[#allocation3] sm:$0xfe] %v1097
        %1110 = vst [vmem:[#allocation3 + $0x8] sm:$0xfe] %v1098
        %1111 = vst [vmem:[#allocation3 + $0x10] sm:$0xff] %v1100
        %1112 = vst [vmem:[#allocation3 + $0x18] sm:$0xff] %v1102
        %1113 = vst [vmem:[#allocation3 + $0x20] sm:$0x1] %v1099
        %1114 = vst [vmem:[#allocation3 + $0x28] sm:$0x1] %v1101
        %v1115 = vld [vmem:[#allocation13] sm:$0xff]
        %v1116 = vld [vmem:[#allocation13 + $0x8] sm:$0xff]
        %v1117 = vld [vmem:[#allocation13 + $0x10] sm:$0xff]
        %v1118 = vld [vmem:[#allocation13 + $0x18] sm:$0xff]
        %v1119 = vld [vmem:[#allocation13 + $0x20] sm:$0xff]
        %v1120 = vld [vmem:[#allocation13 + $0x28] sm:$0xff]
        %v1121 = vld [vmem:[#allocation13 + $0x30] sm:$0xff]
        %v1122 = vld [vmem:[#allocation13 + $0x38] sm:$0xff]
        %v1123 = vld [vmem:[#allocation13 + $0x40] sm:$0xff]
        %v1124 = vld [vmem:[#allocation13 + $0x48] sm:$0xff]
        %v1125 = vld [vmem:[#allocation13 + $0x50] sm:$0xff]
        %v1126 = vld [vmem:[#allocation13 + $0x58] sm:$0xff]
        %v1127 = vld [vmem:[#allocation13 + $0x60] sm:$0xff]
        %v1128 = vld [vmem:[#allocation13 + $0x68] sm:$0xff]
        %v1129 = vld [vmem:[#allocation13 + $0x70] sm:$0xff]
        %v1130 = vld [vmem:[#allocation13 + $0x78] sm:$0xff]
        %v1131 = vld [vmem:[#allocation13 + $0x80] sm:$0xff]
        %v1132 = vld [vmem:[#allocation13 + $0x88] sm:$0xff]
        %v1133 = vld [vmem:[#allocation13 + $0x90] sm:$0xff]
        %v1134 = vld [vmem:[#allocation13 + $0x98] sm:$0xff]
        %v1135 = vld [vmem:[#allocation13 + $0xa0] sm:$0xff]
        %v1136 = vld [vmem:[#allocation13 + $0xa8] sm:$0xff]
        %v1137 = vld [vmem:[#allocation13 + $0xb0] sm:$0xff]
        %v1138 = vld [vmem:[#allocation13 + $0xb8] sm:$0xff]
        %v1139 = vld [vmem:[#allocation13 + $0xc0] sm:$0xff]
        %v1140 = vld [vmem:[#allocation13 + $0xc8] sm:$0xff]
        %v1141 = vld [vmem:[#allocation13 + $0xd0] sm:$0xff]
        %v1142 = vld [vmem:[#allocation13 + $0xd8] sm:$0xff]
        %v1143 = vld [vmem:[#allocation13 + $0xe0] sm:$0xff]
        %v1144 = vld [vmem:[#allocation13 + $0xe8] sm:$0xff]
        %v1145 = vld [vmem:[#allocation13 + $0xf0] sm:$0xff]
        %v1146 = vld [vmem:[#allocation13 + $0xf8] sm:$0xff]
        %v1147 = vld [vmem:[#allocation13 + $0x100] sm:$0xff]
        %v1148 = vld [vmem:[#allocation13 + $0x108] sm:$0xff]
        %v1149 = vld [vmem:[#allocation13 + $0x110] sm:$0xff]
        %v1150 = vld [vmem:[#allocation13 + $0x118] sm:$0xff]
        %v1151 = vld [vmem:[#allocation13 + $0x120] sm:$0xff]
        %v1152 = vld [vmem:[#allocation13 + $0x128] sm:$0xff]
        %v1153 = vld [vmem:[#allocation13 + $0x130] sm:$0xff]
        %v1154 = vld [vmem:[#allocation13 + $0x138] sm:$0xff]
        %v1155 = vld [vmem:[#allocation13 + $0x140] sm:$0xff]
        %v1156 = vld [vmem:[#allocation13 + $0x148] sm:$0xff]
        %v1157 = vld [vmem:[#allocation13 + $0x150] sm:$0xff]
        %v1158 = vld [vmem:[#allocation13 + $0x158] sm:$0xff]
        %v1159 = vld [vmem:[#allocation13 + $0x160] sm:$0xff]
        %v1160 = vld [vmem:[#allocation13 + $0x168] sm:$0xff]
        %v1161 = vld [vmem:[#allocation13 + $0x170] sm:$0xff]
        %v1162 = vld [vmem:[#allocation13 + $0x178] sm:$0xff]
        %v1163 = vld [vmem:[#allocation13 + $0x180] sm:$0xff]
        %v1164 = vld [vmem:[#allocation13 + $0x188] sm:$0xff]
        %v1165 = vld [vmem:[#allocation13 + $0x190] sm:$0xff]
        %v1166 = vld [vmem:[#allocation13 + $0x198] sm:$0xff]
        %v1167 = vld [vmem:[#allocation13 + $0x1a0] sm:$0xff]
        %v1168 = vld [vmem:[#allocation13 + $0x1a8] sm:$0xff]
        %v1169 = vld [vmem:[#allocation13 + $0x1b0] sm:$0xff]
        %v1170 = vld [vmem:[#allocation13 + $0x1b8] sm:$0xff]
        %v1171 = vld [vmem:[#allocation13 + $0x1c0] sm:$0xff]
        %v1172 = vld [vmem:[#allocation13 + $0x1c8] sm:$0xff]
        %v1173 = vld [vmem:[#allocation13 + $0x1d0] sm:$0xff]
        %v1174 = vld [vmem:[#allocation13 + $0x1d8] sm:$0xff]
        %v1175 = vld [vmem:[#allocation13 + $0x1e0] sm:$0xff]
        %v1176 = vld [vmem:[#allocation13 + $0x1e8] sm:$0xff]
        %v1177 = vld [vmem:[#allocation13 + $0x1f0] sm:$0xff]
        %v1178 = vld [vmem:[#allocation13 + $0x1f8] sm:$0xff]
        %v1179 = vld [vmem:[#allocation3] sm:$0xff]
        %v1180 = vld [vmem:[#allocation3 + $0x8] sm:$0xff]
        %v1181 = vld [vmem:[#allocation3 + $0x10] sm:$0xff]
        %v1182 = vld [vmem:[#allocation3 + $0x18] sm:$0xff]
        %v1183 = vld [vmem:[#allocation12] sm:$0xff]
        %v1184 = vld [vmem:[#allocation12 + $0x8] sm:$0xff]
        %v1185 = vld [vmem:[#allocation12 + $0x10] sm:$0xff]
        %v1186 = vld [vmem:[#allocation12 + $0x18] sm:$0xff]
        %v1187 = vld [vmem:[#allocation12 + $0x20] sm:$0xff]
        %v1188 = vld [vmem:[#allocation12 + $0x28] sm:$0xff]
        %v1189 = vld [vmem:[#allocation12 + $0x30] sm:$0xff]
        %v1190 = vld [vmem:[#allocation12 + $0x38] sm:$0xff]
        %v1191 = vld [vmem:[#allocation12 + $0x40] sm:$0xff]
        %v1192 = vld [vmem:[#allocation12 + $0x48] sm:$0xff]
        %v1193 = vld [vmem:[#allocation12 + $0x50] sm:$0xff]
        %v1194 = vld [vmem:[#allocation12 + $0x58] sm:$0xff]
        %v1195 = vld [vmem:[#allocation12 + $0x60] sm:$0xff]
        %v1196 = vld [vmem:[#allocation12 + $0x68] sm:$0xff]
        %v1197 = vld [vmem:[#allocation12 + $0x70] sm:$0xff]
        %v1198 = vld [vmem:[#allocation12 + $0x78] sm:$0xff]
        %v1199 = vld [vmem:[#allocation12 + $0x80] sm:$0xff]
        %v1200 = vld [vmem:[#allocation12 + $0x88] sm:$0xff]
        %v1201 = vld [vmem:[#allocation12 + $0x90] sm:$0xff]
        %v1202 = vld [vmem:[#allocation12 + $0x98] sm:$0xff]
        %v1203 = vld [vmem:[#allocation12 + $0xa0] sm:$0xff]
        %v1204 = vld [vmem:[#allocation12 + $0xa8] sm:$0xff]
        %v1205 = vld [vmem:[#allocation12 + $0xb0] sm:$0xff]
        %v1206 = vld [vmem:[#allocation12 + $0xb8] sm:$0xff]
        %v1207 = vld [vmem:[#allocation12 + $0xc0] sm:$0xff]
        %v1208 = vld [vmem:[#allocation12 + $0xc8] sm:$0xff]
        %v1209 = vld [vmem:[#allocation12 + $0xd0] sm:$0xff]
        %v1210 = vld [vmem:[#allocation12 + $0xd8] sm:$0xff]
        %v1211 = vld [vmem:[#allocation12 + $0xe0] sm:$0xff]
        %v1212 = vld [vmem:[#allocation12 + $0xe8] sm:$0xff]
        %v1213 = vld [vmem:[#allocation12 + $0xf0] sm:$0xff]
        %v1214 = vld [vmem:[#allocation12 + $0xf8] sm:$0xff]
        %v1215 = vld [vmem:[#allocation12 + $0x100] sm:$0xff]
        %v1216 = vld [vmem:[#allocation12 + $0x108] sm:$0xff]
        %v1217 = vld [vmem:[#allocation12 + $0x110] sm:$0xff]
        %v1218 = vld [vmem:[#allocation12 + $0x118] sm:$0xff]
        %v1219 = vld [vmem:[#allocation12 + $0x120] sm:$0xff]
        %v1220 = vld [vmem:[#allocation12 + $0x128] sm:$0xff]
        %v1221 = vld [vmem:[#allocation12 + $0x130] sm:$0xff]
        %v1222 = vld [vmem:[#allocation12 + $0x138] sm:$0xff]
        %v1223 = vld [vmem:[#allocation12 + $0x140] sm:$0xff]
        %v1224 = vld [vmem:[#allocation12 + $0x148] sm:$0xff]
        %v1225 = vld [vmem:[#allocation12 + $0x150] sm:$0xff]
        %v1226 = vld [vmem:[#allocation12 + $0x158] sm:$0xff]
        %v1227 = vld [vmem:[#allocation12 + $0x160] sm:$0xff]
        %v1228 = vld [vmem:[#allocation12 + $0x168] sm:$0xff]
        %v1229 = vld [vmem:[#allocation12 + $0x170] sm:$0xff]
        %v1230 = vld [vmem:[#allocation12 + $0x178] sm:$0xff]
        %v1231 = vld [vmem:[#allocation12 + $0x180] sm:$0xff]
        %v1232 = vld [vmem:[#allocation12 + $0x188] sm:$0xff]
        %v1233 = vld [vmem:[#allocation12 + $0x190] sm:$0xff]
        %v1234 = vld [vmem:[#allocation12 + $0x198] sm:$0xff]
        %v1235 = vld [vmem:[#allocation12 + $0x1a0] sm:$0xff]
        %v1236 = vld [vmem:[#allocation12 + $0x1a8] sm:$0xff]
        %v1237 = vld [vmem:[#allocation12 + $0x1b0] sm:$0xff]
        %v1238 = vld [vmem:[#allocation12 + $0x1b8] sm:$0xff]
        %v1239 = vld [vmem:[#allocation12 + $0x1c0] sm:$0xff]
        %v1240 = vld [vmem:[#allocation12 + $0x1c8] sm:$0xff]
        %v1241 = vld [vmem:[#allocation12 + $0x1d0] sm:$0xff]
        %v1242 = vld [vmem:[#allocation12 + $0x1d8] sm:$0xff]
        %v1243 = vld [vmem:[#allocation12 + $0x1e0] sm:$0xff]
        %v1244 = vld [vmem:[#allocation12 + $0x1e8] sm:$0xff]
        %v1245 = vld [vmem:[#allocation12 + $0x1f0] sm:$0xff]
        %v1246 = vld [vmem:[#allocation12 + $0x1f8] sm:$0xff]
        %1247 = vmatprep.subr.mxu0 %v1184
        %1248 = vmatpush1.msra.mxu0 %v1183
        %1249 = vmatprep.subr.mxu0 %v1186
        %1250 = vmatpush1.msra.mxu0 %v1185
        %1251 = vmatprep.subr.mxu0 %v1188
        %1252 = vmatpush1.msra.mxu0 %v1187
        %1253 = vmatprep.subr.mxu0 %v1190
        %1254 = vmatpush1.msra.mxu0 %v1189
        %1255 = vmatprep.subr.mxu0 %v1192
        %1256 = vmatpush1.msra.mxu0 %v1191
        %1257 = vmatprep.subr.mxu0 %v1194
        %1258 = vmatpush1.msra.mxu0 %v1193
        %1259 = vmatprep.subr.mxu0 %v1196
        %1260 = vmatpush1.msra.mxu0 %v1195
        %1261 = vmatprep.subr.mxu0 %v1198
        %1262 = vmatpush1.msra.mxu0 %v1197
        %1263 = vmatprep.subr.mxu0 %v1200
        %1264 = vmatpush1.msra.mxu0 %v1199
        %1265 = vmatprep.subr.mxu0 %v1202
        %1266 = vmatpush1.msra.mxu0 %v1201
        %1267 = vmatprep.subr.mxu0 %v1204
        %1268 = vmatpush1.msra.mxu0 %v1203
        %1269 = vmatprep.subr.mxu0 %v1206
        %1270 = vmatpush1.msra.mxu0 %v1205
        %1271 = vmatprep.subr.mxu0 %v1208
        %1272 = vmatpush1.msra.mxu0 %v1207
        %1273 = vmatprep.subr.mxu0 %v1210
        %1274 = vmatpush1.msra.mxu0 %v1209
        %1275 = vmatprep.subr.mxu0 %v1212
        %1276 = vmatpush1.msra.mxu0 %v1211
        %1277 = vmatprep.subr.mxu0 %v1214
        %1278 = vmatpush1.msra.mxu0 %v1213
        %1279 = vmatprep.subr.mxu0 %v1216
        %1280 = vmatpush1.msra.mxu0 %v1215
        %1281 = vmatprep.subr.mxu0 %v1218
        %1282 = vmatpush1.msra.mxu0 %v1217
        %1283 = vmatprep.subr.mxu0 %v1220
        %1284 = vmatpush1.msra.mxu0 %v1219
        %1285 = vmatprep.subr.mxu0 %v1222
        %1286 = vmatpush1.msra.mxu0 %v1221
        %1287 = vmatprep.subr.mxu0 %v1224
        %1288 = vmatpush1.msra.mxu0 %v1223
        %1289 = vmatprep.subr.mxu0 %v1226
        %1290 = vmatpush1.msra.mxu0 %v1225
        %1291 = vmatprep.subr.mxu0 %v1228
        %1292 = vmatpush1.msra.mxu0 %v1227
        %1293 = vmatprep.subr.mxu0 %v1230
        %1294 = vmatpush1.msra.mxu0 %v1229
        %1295 = vmatprep.subr.mxu0 %v1232
        %1296 = vmatpush1.msra.mxu0 %v1231
        %1297 = vmatprep.subr.mxu0 %v1234
        %1298 = vmatpush1.msra.mxu0 %v1233
        %1299 = vmatprep.subr.mxu0 %v1236
        %1300 = vmatpush1.msra.mxu0 %v1235
        %1301 = vmatprep.subr.mxu0 %v1238
        %1302 = vmatpush1.msra.mxu0 %v1237
        %1303 = vmatprep.subr.mxu0 %v1240
        %1304 = vmatpush1.msra.mxu0 %v1239
        %1305 = vmatprep.subr.mxu0 %v1242
        %1306 = vmatpush1.msra.mxu0 %v1241
        %1307 = vmatprep.subr.mxu0 %v1244
        %1308 = vmatpush1.msra.mxu0 %v1243
        %1309 = vmatprep.subr.mxu0 %v1246
        %1310 = vmatpush1.msra.mxu0 %v1245
        %1311 = vmatprep.mubr.f32.mxu0 %v1180
        %1312 = vmatmul.mubr.f32.gmra.mrb[0].mxu0 %v1179
        %v1313 = vpop.f32.mrb[0].mxu0
        %v1314 = vadd.f32 0.0, %v1313
        %v1315 = vpop.f32.mrb[0].mxu0
        %v1316 = vadd.f32 0.0, %v1315
        %1317 = vmatprep.mubr.f32.mxu0 %v1182
        %1318 = vmatmul.mubr.f32.gmra.mrb[0].mxu0 %v1181
        %v1319 = vpop.f32.mrb[0].mxu0
        %v1320 = vadd.f32 0.0, %v1319
        %v1321 = vpop.f32.mrb[0].mxu0
        %v1322 = vadd.f32 0.0, %v1321
        %1323 = vdwg.mxu0
        %1324 = vmatprep.subr.mxu0 %v1116
        %1325 = vmatpush1.msra.mxu0 %v1115
        %1326 = vmatprep.subr.mxu0 %v1118
        %1327 = vmatpush1.msra.mxu0 %v1117
        %1328 = vmatprep.subr.mxu0 %v1120
        %1329 = vmatpush1.msra.mxu0 %v1119
        %1330 = vmatprep.subr.mxu0 %v1122
        %1331 = vmatpush1.msra.mxu0 %v1121
        %1332 = vmatprep.subr.mxu0 %v1124
        %1333 = vmatpush1.msra.mxu0 %v1123
        %1334 = vmatprep.subr.mxu0 %v1126
        %1335 = vmatpush1.msra.mxu0 %v1125
        %1336 = vmatprep.subr.mxu0 %v1128
        %1337 = vmatpush1.msra.mxu0 %v1127
        %1338 = vmatprep.subr.mxu0 %v1130
        %1339 = vmatpush1.msra.mxu0 %v1129
        %1340 = vmatprep.subr.mxu0 %v1132
        %1341 = vmatpush1.msra.mxu0 %v1131
        %1342 = vmatprep.subr.mxu0 %v1134
        %1343 = vmatpush1.msra.mxu0 %v1133
        %1344 = vmatprep.subr.mxu0 %v1136
        %1345 = vmatpush1.msra.mxu0 %v1135
        %1346 = vmatprep.subr.mxu0 %v1138
        %1347 = vmatpush1.msra.mxu0 %v1137
        %1348 = vmatprep.subr.mxu0 %v1140
        %1349 = vmatpush1.msra.mxu0 %v1139
        %1350 = vmatprep.subr.mxu0 %v1142
        %1351 = vmatpush1.msra.mxu0 %v1141
        %1352 = vmatprep.subr.mxu0 %v1144
        %1353 = vmatpush1.msra.mxu0 %v1143
        %1354 = vmatprep.subr.mxu0 %v1146
        %1355 = vmatpush1.msra.mxu0 %v1145
        %1356 = vmatprep.subr.mxu0 %v1148
        %1357 = vmatpush1.msra.mxu0 %v1147
        %1358 = vmatprep.subr.mxu0 %v1150
        %1359 = vmatpush1.msra.mxu0 %v1149
        %1360 = vmatprep.subr.mxu0 %v1152
        %1361 = vmatpush1.msra.mxu0 %v1151
        %1362 = vmatprep.subr.mxu0 %v1154
        %1363 = vmatpush1.msra.mxu0 %v1153
        %1364 = vmatprep.subr.mxu0 %v1156
        %1365 = vmatpush1.msra.mxu0 %v1155
        %1366 = vmatprep.subr.mxu0 %v1158
        %1367 = vmatpush1.msra.mxu0 %v1157
        %1368 = vmatprep.subr.mxu0 %v1160
        %1369 = vmatpush1.msra.mxu0 %v1159
        %1370 = vmatprep.subr.mxu0 %v1162
        %1371 = vmatpush1.msra.mxu0 %v1161
        %1372 = vmatprep.subr.mxu0 %v1164
        %1373 = vmatpush1.msra.mxu0 %v1163
        %1374 = vmatprep.subr.mxu0 %v1166
        %1375 = vmatpush1.msra.mxu0 %v1165
        %1376 = vmatprep.subr.mxu0 %v1168
        %1377 = vmatpush1.msra.mxu0 %v1167
        %1378 = vmatprep.subr.mxu0 %v1170
        %1379 = vmatpush1.msra.mxu0 %v1169
        %1380 = vmatprep.subr.mxu0 %v1172
        %1381 = vmatpush1.msra.mxu0 %v1171
        %1382 = vmatprep.subr.mxu0 %v1174
        %1383 = vmatpush1.msra.mxu0 %v1173
        %1384 = vmatprep.subr.mxu0 %v1176
        %1385 = vmatpush1.msra.mxu0 %v1175
        %1386 = vmatprep.subr.mxu0 %v1178
        %1387 = vmatpush1.msra.mxu0 %v1177
        %1388 = vmatprep.mubr.f32.mxu0 %v1080
        %1389 = vmatmul.mubr.f32.gmra.mrb[0].mxu0 %v1079
        %v1390 = vpop.f32.mrb[0].mxu0
        %v1391 = vadd.f32 %v1314, %v1390
        %v1392 = vpop.f32.mrb[0].mxu0
        %v1393 = vadd.f32 %v1316, %v1392
        %1394 = vmatprep.mubr.f32.mxu0 %v1082
        %1395 = vmatmul.mubr.f32.gmra.mrb[0].mxu0 %v1081
        %v1396 = vpop.f32.mrb[0].mxu0
        %v1397 = vadd.f32 %v1320, %v1396
        %v1398 = vpop.f32.mrb[0].mxu0
        %v1399 = vadd.f32 %v1322, %v1398
        %1400 = vdwg.mxu0
        %v1401 = vld [vmem:[#allocation3] sm:$0xfc]
        %v1402 = vld [vmem:[#allocation3 + $0x8] sm:$0xfc]
        %v1403 = vld [vmem:[#allocation3 + $0x10] sm:$0xff]
        %v1404 = vld [vmem:[#allocation3 + $0x18] sm:$0xff]
        %v1405 = vld [vmem:[#allocation3 + $0x20] sm:$0x3]
        %v1406 = vld [vmem:[#allocation3 + $0x28] sm:$0x3]
        %v1407 = vld [vmem:[#allocation15] sm:$0xff]
        %v1408 = vld [vmem:[#allocation15 + $0x8] sm:$0xff]
        %v1409 = vld [vmem:[#allocation15 + $0x10] sm:$0xff]
        %v1410 = vld [vmem:[#allocation15 + $0x18] sm:$0xff]
        %v1411 = vld [vmem:[#allocation15 + $0x20] sm:$0xff]
        %v1412 = vld [vmem:[#allocation15 + $0x28] sm:$0xff]
        %v1413 = vld [vmem:[#allocation15 + $0x30] sm:$0xff]
        %v1414 = vld [vmem:[#allocation15 + $0x38] sm:$0xff]
        %v1415 = vld [vmem:[#allocation15 + $0x40] sm:$0xff]
        %v1416 = vld [vmem:[#allocation15 + $0x48] sm:$0xff]
        %v1417 = vld [vmem:[#allocation15 + $0x50] sm:$0xff]
        %v1418 = vld [vmem:[#allocation15 + $0x58] sm:$0xff]
        %v1419 = vld [vmem:[#allocation15 + $0x60] sm:$0xff]
        %v1420 = vld [vmem:[#allocation15 + $0x68] sm:$0xff]
        %v1421 = vld [vmem:[#allocation15 + $0x70] sm:$0xff]
        %v1422 = vld [vmem:[#allocation15 + $0x78] sm:$0xff]
        %v1423 = vld [vmem:[#allocation15 + $0x80] sm:$0xff]
        %v1424 = vld [vmem:[#allocation15 + $0x88] sm:$0xff]
        %v1425 = vld [vmem:[#allocation15 + $0x90] sm:$0xff]
        %v1426 = vld [vmem:[#allocation15 + $0x98] sm:$0xff]
        %v1427 = vld [vmem:[#allocation15 + $0xa0] sm:$0xff]
        %v1428 = vld [vmem:[#allocation15 + $0xa8] sm:$0xff]
        %v1429 = vld [vmem:[#allocation15 + $0xb0] sm:$0xff]
        %v1430 = vld [vmem:[#allocation15 + $0xb8] sm:$0xff]
        %v1431 = vld [vmem:[#allocation15 + $0xc0] sm:$0xff]
        %v1432 = vld [vmem:[#allocation15 + $0xc8] sm:$0xff]
        %v1433 = vld [vmem:[#allocation15 + $0xd0] sm:$0xff]
        %v1434 = vld [vmem:[#allocation15 + $0xd8] sm:$0xff]
        %v1435 = vld [vmem:[#allocation15 + $0xe0] sm:$0xff]
        %v1436 = vld [vmem:[#allocation15 + $0xe8] sm:$0xff]
        %v1437 = vld [vmem:[#allocation15 + $0xf0] sm:$0xff]
        %v1438 = vld [vmem:[#allocation15 + $0xf8] sm:$0xff]
        %v1439 = vld [vmem:[#allocation15 + $0x100] sm:$0xff]
        %v1440 = vld [vmem:[#allocation15 + $0x108] sm:$0xff]
        %v1441 = vld [vmem:[#allocation15 + $0x110] sm:$0xff]
        %v1442 = vld [vmem:[#allocation15 + $0x118] sm:$0xff]
        %v1443 = vld [vmem:[#allocation15 + $0x120] sm:$0xff]
        %v1444 = vld [vmem:[#allocation15 + $0x128] sm:$0xff]
        %v1445 = vld [vmem:[#allocation15 + $0x130] sm:$0xff]
        %v1446 = vld [vmem:[#allocation15 + $0x138] sm:$0xff]
        %v1447 = vld [vmem:[#allocation15 + $0x140] sm:$0xff]
        %v1448 = vld [vmem:[#allocation15 + $0x148] sm:$0xff]
        %v1449 = vld [vmem:[#allocation15 + $0x150] sm:$0xff]
        %v1450 = vld [vmem:[#allocation15 + $0x158] sm:$0xff]
        %v1451 = vld [vmem:[#allocation15 + $0x160] sm:$0xff]
        %v1452 = vld [vmem:[#allocation15 + $0x168] sm:$0xff]
        %v1453 = vld [vmem:[#allocation15 + $0x170] sm:$0xff]
        %v1454 = vld [vmem:[#allocation15 + $0x178] sm:$0xff]
        %v1455 = vld [vmem:[#allocation15 + $0x180] sm:$0xff]
        %v1456 = vld [vmem:[#allocation15 + $0x188] sm:$0xff]
        %v1457 = vld [vmem:[#allocation15 + $0x190] sm:$0xff]
        %v1458 = vld [vmem:[#allocation15 + $0x198] sm:$0xff]
        %v1459 = vld [vmem:[#allocation15 + $0x1a0] sm:$0xff]
        %v1460 = vld [vmem:[#allocation15 + $0x1a8] sm:$0xff]
        %v1461 = vld [vmem:[#allocation15 + $0x1b0] sm:$0xff]
        %v1462 = vld [vmem:[#allocation15 + $0x1b8] sm:$0xff]
        %v1463 = vld [vmem:[#allocation15 + $0x1c0] sm:$0xff]
        %v1464 = vld [vmem:[#allocation15 + $0x1c8] sm:$0xff]
        %v1465 = vld [vmem:[#allocation15 + $0x1d0] sm:$0xff]
        %v1466 = vld [vmem:[#allocation15 + $0x1d8] sm:$0xff]
        %v1467 = vld [vmem:[#allocation15 + $0x1e0] sm:$0xff]
        %v1468 = vld [vmem:[#allocation15 + $0x1e8] sm:$0xff]
        %v1469 = vld [vmem:[#allocation15 + $0x1f0] sm:$0xff]
        %v1470 = vld [vmem:[#allocation15 + $0x1f8] sm:$0xff]
        %vm1477 = vcmask 1045504
        %v1478 = vrot.slane %v1401, 2
        %v1479 = vrot.slane %v1403, 2
        %v1480 = vsel %vm1477, %v1478, %v1479
        %v1481 = vrot.slane %v1402, 2
        %v1482 = vrot.slane %v1404, 2
        %v1483 = vsel %vm1477, %v1481, %v1482
        %v1484 = vrot.slane %v1405, 2
        %v1485 = vsel %vm1477, %v1479, %v1484
        %v1486 = vrot.slane %v1406, 2
        %v1487 = vsel %vm1477, %v1482, %v1486
        %1492 = vmatprep.subr.mxu0 %v1408
        %1493 = vmatpush1.msra.mxu0 %v1407
        %1494 = vmatprep.subr.mxu0 %v1410
        %1495 = vmatpush1.msra.mxu0 %v1409
        %1496 = vmatprep.subr.mxu0 %v1412
        %1497 = vmatpush1.msra.mxu0 %v1411
        %1498 = vmatprep.subr.mxu0 %v1414
        %1499 = vmatpush1.msra.mxu0 %v1413
        %1500 = vmatprep.subr.mxu0 %v1416
        %1501 = vmatpush1.msra.mxu0 %v1415
        %1502 = vmatprep.subr.mxu0 %v1418
        %1503 = vmatpush1.msra.mxu0 %v1417
        %1504 = vmatprep.subr.mxu0 %v1420
        %1505 = vmatpush1.msra.mxu0 %v1419
        %1506 = vmatprep.subr.mxu0 %v1422
        %1507 = vmatpush1.msra.mxu0 %v1421
        %1508 = vmatprep.subr.mxu0 %v1424
        %1509 = vmatpush1.msra.mxu0 %v1423
        %1510 = vmatprep.subr.mxu0 %v1426
        %1511 = vmatpush1.msra.mxu0 %v1425
        %1512 = vmatprep.subr.mxu0 %v1428
        %1513 = vmatpush1.msra.mxu0 %v1427
        %1514 = vmatprep.subr.mxu0 %v1430
        %1515 = vmatpush1.msra.mxu0 %v1429
        %1516 = vmatprep.subr.mxu0 %v1432
        %1517 = vmatpush1.msra.mxu0 %v1431
        %1518 = vmatprep.subr.mxu0 %v1434
        %1519 = vmatpush1.msra.mxu0 %v1433
        %1520 = vmatprep.subr.mxu0 %v1436
        %1521 = vmatpush1.msra.mxu0 %v1435
        %1522 = vmatprep.subr.mxu0 %v1438
        %1523 = vmatpush1.msra.mxu0 %v1437
        %1524 = vmatprep.subr.mxu0 %v1440
        %1525 = vmatpush1.msra.mxu0 %v1439
        %1526 = vmatprep.subr.mxu0 %v1442
        %1527 = vmatpush1.msra.mxu0 %v1441
        %1528 = vmatprep.subr.mxu0 %v1444
        %1529 = vmatpush1.msra.mxu0 %v1443
        %1530 = vmatprep.subr.mxu0 %v1446
        %1531 = vmatpush1.msra.mxu0 %v1445
        %1532 = vmatprep.subr.mxu0 %v1448
        %1533 = vmatpush1.msra.mxu0 %v1447
        %1534 = vmatprep.subr.mxu0 %v1450
        %1535 = vmatpush1.msra.mxu0 %v1449
        %1536 = vmatprep.subr.mxu0 %v1452
        %1537 = vmatpush1.msra.mxu0 %v1451
        %1538 = vmatprep.subr.mxu0 %v1454
        %1539 = vmatpush1.msra.mxu0 %v1453
        %1540 = vmatprep.subr.mxu0 %v1456
        %1541 = vmatpush1.msra.mxu0 %v1455
        %1542 = vmatprep.subr.mxu0 %v1458
        %1543 = vmatpush1.msra.mxu0 %v1457
        %1544 = vmatprep.subr.mxu0 %v1460
        %1545 = vmatpush1.msra.mxu0 %v1459
        %1546 = vmatprep.subr.mxu0 %v1462
        %1547 = vmatpush1.msra.mxu0 %v1461
        %1548 = vmatprep.subr.mxu0 %v1464
        %1549 = vmatpush1.msra.mxu0 %v1463
        %1550 = vmatprep.subr.mxu0 %v1466
        %1551 = vmatpush1.msra.mxu0 %v1465
        %1552 = vmatprep.subr.mxu0 %v1468
        %1553 = vmatpush1.msra.mxu0 %v1467
        %1554 = vmatprep.subr.mxu0 %v1470
        %1555 = vmatpush1.msra.mxu0 %v1469
        %1556 = vmatprep.mubr.f32.mxu0 %v1483
        %1557 = vmatmul.mubr.f32.gmra.mrb[0].mxu0 %v1480
        %v1558 = vpop.f32.mrb[0].mxu0
        %v1559 = vadd.f32 0.0, %v1558
        %v1560 = vpop.f32.mrb[0].mxu0
        %v1561 = vadd.f32 0.0, %v1560
        %1562 = vmatprep.mubr.f32.mxu0 %v1487
        %1563 = vmatmul.mubr.f32.gmra.mrb[0].mxu0 %v1485
        %v1564 = vpop.f32.mrb[0].mxu0
        %v1565 = vadd.f32 0.0, %v1564
        %v1566 = vpop.f32.mrb[0].mxu0
        %v1567 = vadd.f32 0.0, %v1566
        %1568 = vdwg.mxu0
        %v1569 = vadd.f32 %v1391, %v1559
        %v1570 = vadd.f32 %v1393, %v1561
        %v1571 = vadd.f32 %v1397, %v1565
        %v1572 = vadd.f32 %v1399, %v1567
        %v1573 = vld [vmem:[#allocation16] sm:$0x3]
        %v1575 = vlaneseq
        %v1576 = vshrl.u32 %v1575, 7
        %v1577 = vsub.s32 0, %v1576
        %v1578 = vrot.slane %v1573, %v1577
        %v1579 = vlaneseq
        %v1580 = vshrl.u32 %v1579, 7
        %v1581 = vsub.s32 1, %v1580
        %v1582 = vrot.slane %v1573, %v1581
        %v1585 = vadd.f32 %v1569, %v1578
        %v1586 = vadd.f32 %v1570, %v1582
        %v1587 = vadd.f32 %v1571, %v1578
        %v1588 = vadd.f32 %v1572, %v1582
        %1589 = vrot.lane.b32.xlu0 %v1585, 1
        %v1590 = vpop.permute.xlu0 %1589
        %1591 = vrot.lane.b32.xlu0 %v1587, 1
        %v1592 = vpop.permute.xlu0 %1591
        %1593 = vrot.lane.b32.xlu0 %v1586, 1
        %v1594 = vpop.permute.xlu0 %1593
        %1595 = vrot.lane.b32.xlu0 %v1588, 1
        %v1596 = vpop.permute.xlu0 %1595
        %v1597 = vlaneseq
        %v1598 = vand.u32 %v1597, 127
        %vm1599 = vcmp.lt.s32.totalorder %v1598, 1
        %v1600 = vsel %vm1599, %v1590, %v1594
        %v1601 = vsel %vm1599, %v1592, %v1596
        %v1602 = vsel %vm1599, %v1594, %v1590
        %v1603 = vsel %vm1599, %v1596, %v1592
        %v1604 = vmax.f32 %v1585, %v1602
        %v1605 = vmax.f32 %v1586, %v1600
        %v1606 = vmax.f32 %v1587, %v1603
        %v1607 = vmax.f32 %v1588, %v1601
        %1608 = vrot.lane.b32.xlu0 %v1604, 2
        %v1609 = vpop.permute.xlu0 %1608
        %1610 = vrot.lane.b32.xlu0 %v1606, 2
        %v1611 = vpop.permute.xlu0 %1610
        %1612 = vrot.lane.b32.xlu0 %v1605, 2
        %v1613 = vpop.permute.xlu0 %1612
        %1614 = vrot.lane.b32.xlu0 %v1607, 2
        %v1615 = vpop.permute.xlu0 %1614
        %vm1616 = vcmp.lt.s32.totalorder %v1598, 2
        %v1617 = vsel %vm1616, %v1609, %v1613
        %v1618 = vsel %vm1616, %v1611, %v1615
        %v1619 = vsel %vm1616, %v1613, %v1609
        %v1620 = vsel %vm1616, %v1615, %v1611
        %v1621 = vmax.f32 %v1604, %v1619
        %v1622 = vmax.f32 %v1605, %v1617
        %v1623 = vmax.f32 %v1606, %v1620
        %v1624 = vmax.f32 %v1607, %v1618
        %1625 = vrot.lane.b32.xlu0 %v1621, 4
        %v1626 = vpop.permute.xlu0 %1625
        %1627 = vrot.lane.b32.xlu0 %v1623, 4
        %v1628 = vpop.permute.xlu0 %1627
        %1629 = vrot.lane.b32.xlu0 %v1622, 4
        %v1630 = vpop.permute.xlu0 %1629
        %1631 = vrot.lane.b32.xlu0 %v1624, 4
        %v1632 = vpop.permute.xlu0 %1631
        %vm1633 = vcmp.lt.s32.totalorder %v1598, 4
        %v1634 = vsel %vm1633, %v1626, %v1630
        %v1635 = vsel %vm1633, %v1628, %v1632
        %v1636 = vsel %vm1633, %v1630, %v1626
        %v1637 = vsel %vm1633, %v1632, %v1628
        %v1638 = vmax.f32 %v1621, %v1636
        %v1639 = vmax.f32 %v1622, %v1634
        %v1640 = vmax.f32 %v1623, %v1637
        %v1641 = vmax.f32 %v1624, %v1635
        %1642 = vrot.lane.b32.xlu0 %v1638, 8
        %v1643 = vpop.permute.xlu0 %1642
        %1644 = vrot.lane.b32.xlu0 %v1640, 8
        %v1645 = vpop.permute.xlu0 %1644
        %1646 = vrot.lane.b32.xlu0 %v1639, 8
        %v1647 = vpop.permute.xlu0 %1646
        %1648 = vrot.lane.b32.xlu0 %v1641, 8
        %v1649 = vpop.permute.xlu0 %1648
        %vm1650 = vcmp.lt.s32.totalorder %v1598, 8
        %v1651 = vsel %vm1650, %v1643, %v1647
        %v1652 = vsel %vm1650, %v1645, %v1649
        %v1653 = vsel %vm1650, %v1647, %v1643
        %v1654 = vsel %vm1650, %v1649, %v1645
        %v1655 = vmax.f32 %v1638, %v1653
        %v1656 = vmax.f32 %v1639, %v1651
        %v1657 = vmax.f32 %v1640, %v1654
        %v1658 = vmax.f32 %v1641, %v1652
        %v1659 = vld [vmem:[%s9] sm:$0xff]
        %v1660 = vld [vmem:[%s9 + $0x8] sm:$0xff]
        %v1661 = vld [vmem:[%s9 + $0x10] sm:$0xff]
        %v1662 = vld [vmem:[%s9 + $0x18] sm:$0xff]
        %v1663 = vld [vmem:[%s9 + $0x20] sm:$0xff]
        %v1664 = vld [vmem:[%s9 + $0x28] sm:$0xff]
        %v1665 = vld [vmem:[%s9 + $0x30] sm:$0xff]
        %v1666 = vld [vmem:[%s9 + $0x38] sm:$0xff]
        %v1667 = vld [vmem:[%s9 + $0x40] sm:$0xff]
        %v1668 = vld [vmem:[%s9 + $0x48] sm:$0xff]
        %v1669 = vld [vmem:[%s9 + $0x50] sm:$0xff]
        %v1670 = vld [vmem:[%s9 + $0x58] sm:$0xff]
        %v1671 = vld [vmem:[%s9 + $0x60] sm:$0xff]
        %v1672 = vld [vmem:[%s9 + $0x68] sm:$0xff]
        %v1673 = vld [vmem:[%s9 + $0x70] sm:$0xff]
        %v1674 = vld [vmem:[%s9 + $0x78] sm:$0xff]
        %v1675 = vld [vmem:[%s9 + $0x80] sm:$0xff]
        %v1676 = vld [vmem:[%s9 + $0x88] sm:$0xff]
        %v1677 = vld [vmem:[%s9 + $0x90] sm:$0xff]
        %v1678 = vld [vmem:[%s9 + $0x98] sm:$0xff]
        %v1679 = vld [vmem:[%s9 + $0xa0] sm:$0xff]
        %v1680 = vld [vmem:[%s9 + $0xa8] sm:$0xff]
        %v1681 = vld [vmem:[%s9 + $0xb0] sm:$0xff]
        %v1682 = vld [vmem:[%s9 + $0xb8] sm:$0xff]
        %v1683 = vld [vmem:[%s9 + $0xc0] sm:$0xff]
        %v1684 = vld [vmem:[%s9 + $0xc8] sm:$0xff]
        %v1685 = vld [vmem:[%s9 + $0xd0] sm:$0xff]
        %v1686 = vld [vmem:[%s9 + $0xd8] sm:$0xff]
        %v1687 = vld [vmem:[%s9 + $0xe0] sm:$0xff]
        %v1688 = vld [vmem:[%s9 + $0xe8] sm:$0xff]
        %v1689 = vld [vmem:[%s9 + $0xf0] sm:$0xff]
        %v1690 = vld [vmem:[%s9 + $0xf8] sm:$0xff]
        %v1691 = vld [vmem:[%s10] sm:$0xff]
        %v1692 = vld [vmem:[%s10 + $0x8] sm:$0xff]
        %v1693 = vld [vmem:[%s10 + $0x10] sm:$0xff]
        %v1694 = vld [vmem:[%s10 + $0x18] sm:$0xff]
        %v1695 = vld [vmem:[%s10 + $0x20] sm:$0xff]
        %v1696 = vld [vmem:[%s10 + $0x28] sm:$0xff]
        %v1697 = vld [vmem:[%s10 + $0x30] sm:$0xff]
        %v1698 = vld [vmem:[%s10 + $0x38] sm:$0xff]
        %v1699 = vld [vmem:[%s10 + $0x40] sm:$0xff]
        %v1700 = vld [vmem:[%s10 + $0x48] sm:$0xff]
        %v1701 = vld [vmem:[%s10 + $0x50] sm:$0xff]
        %v1702 = vld [vmem:[%s10 + $0x58] sm:$0xff]
        %v1703 = vld [vmem:[%s10 + $0x60] sm:$0xff]
        %v1704 = vld [vmem:[%s10 + $0x68] sm:$0xff]
        %v1705 = vld [vmem:[%s10 + $0x70] sm:$0xff]
        %v1706 = vld [vmem:[%s10 + $0x78] sm:$0xff]
        %v1707 = vld [vmem:[%s10 + $0x80] sm:$0xff]
        %v1708 = vld [vmem:[%s10 + $0x88] sm:$0xff]
        %v1709 = vld [vmem:[%s10 + $0x90] sm:$0xff]
        %v1710 = vld [vmem:[%s10 + $0x98] sm:$0xff]
        %v1711 = vld [vmem:[%s10 + $0xa0] sm:$0xff]
        %v1712 = vld [vmem:[%s10 + $0xa8] sm:$0xff]
        %v1713 = vld [vmem:[%s10 + $0xb0] sm:$0xff]
        %v1714 = vld [vmem:[%s10 + $0xb8] sm:$0xff]
        %v1715 = vld [vmem:[%s10 + $0xc0] sm:$0xff]
        %v1716 = vld [vmem:[%s10 + $0xc8] sm:$0xff]
        %v1717 = vld [vmem:[%s10 + $0xd0] sm:$0xff]
        %v1718 = vld [vmem:[%s10 + $0xd8] sm:$0xff]
        %v1719 = vld [vmem:[%s10 + $0xe0] sm:$0xff]
        %v1720 = vld [vmem:[%s10 + $0xe8] sm:$0xff]
        %v1721 = vld [vmem:[%s10 + $0xf0] sm:$0xff]
        %v1722 = vld [vmem:[%s10 + $0xf8] sm:$0xff]
        %1723 = vmatprep.subr.mxu0 0.0
        %1724 = vmatpush1.msra.mxu0 %v1691
        %1725 = vmatprep.subr.mxu0 0.0
        %1726 = vmatpush1.msra.mxu0 %v1692
        %1727 = vmatprep.subr.mxu0 0.0
        %1728 = vmatpush1.msra.mxu0 %v1693
        %1729 = vmatprep.subr.mxu0 0.0
        %1730 = vmatpush1.msra.mxu0 %v1694
        %1731 = vmatprep.subr.mxu0 0.0
        %1732 = vmatpush1.msra.mxu0 %v1695
        %1733 = vmatprep.subr.mxu0 0.0
        %1734 = vmatpush1.msra.mxu0 %v1696
        %1735 = vmatprep.subr.mxu0 0.0
        %1736 = vmatpush1.msra.mxu0 %v1697
        %1737 = vmatprep.subr.mxu0 0.0
        %1738 = vmatpush1.msra.mxu0 %v1698
        %1739 = vmatprep.subr.mxu0 0.0
        %1740 = vmatpush1.msra.mxu0 %v1699
        %1741 = vmatprep.subr.mxu0 0.0
        %1742 = vmatpush1.msra.mxu0 %v1700
        %1743 = vmatprep.subr.mxu0 0.0
        %1744 = vmatpush1.msra.mxu0 %v1701
        %1745 = vmatprep.subr.mxu0 0.0
        %1746 = vmatpush1.msra.mxu0 %v1702
        %1747 = vmatprep.subr.mxu0 0.0
        %1748 = vmatpush1.msra.mxu0 %v1703
        %1749 = vmatprep.subr.mxu0 0.0
        %1750 = vmatpush1.msra.mxu0 %v1704
        %1751 = vmatprep.subr.mxu0 0.0
        %1752 = vmatpush1.msra.mxu0 %v1705
        %1753 = vmatprep.subr.mxu0 0.0
        %1754 = vmatpush1.msra.mxu0 %v1706
        %1755 = vmatprep.subr.mxu0 0.0
        %1756 = vmatpush1.msra.mxu0 %v1707
        %1757 = vmatprep.subr.mxu0 0.0
        %1758 = vmatpush1.msra.mxu0 %v1708
        %1759 = vmatprep.subr.mxu0 0.0
        %1760 = vmatpush1.msra.mxu0 %v1709
        %1761 = vmatprep.subr.mxu0 0.0
        %1762 = vmatpush1.msra.mxu0 %v1710
        %1763 = vmatprep.subr.mxu0 0.0
        %1764 = vmatpush1.msra.mxu0 %v1711
        %1765 = vmatprep.subr.mxu0 0.0
        %1766 = vmatpush1.msra.mxu0 %v1712
        %1767 = vmatprep.subr.mxu0 0.0
        %1768 = vmatpush1.msra.mxu0 %v1713
        %1769 = vmatprep.subr.mxu0 0.0
        %1770 = vmatpush1.msra.mxu0 %v1714
        %1771 = vmatprep.subr.mxu0 0.0
        %1772 = vmatpush1.msra.mxu0 %v1715
        %1773 = vmatprep.subr.mxu0 0.0
        %1774 = vmatpush1.msra.mxu0 %v1716
        %1775 = vmatprep.subr.mxu0 0.0
        %1776 = vmatpush1.msra.mxu0 %v1717
        %1777 = vmatprep.subr.mxu0 0.0
        %1778 = vmatpush1.msra.mxu0 %v1718
        %1779 = vmatprep.subr.mxu0 0.0
        %1780 = vmatpush1.msra.mxu0 %v1719
        %1781 = vmatprep.subr.mxu0 0.0
        %1782 = vmatpush1.msra.mxu0 %v1720
        %1783 = vmatprep.subr.mxu0 0.0
        %1784 = vmatpush1.msra.mxu0 %v1721
        %1785 = vmatprep.subr.mxu0 0.0
        %1786 = vmatpush1.msra.mxu0 %v1722
        %1787 = vmatprep.mubr.f32.mxu0 %v1656
        %1788 = vmatmul.mubr.f32.gmra.mrb[0].mxu0 %v1655
        %v1789 = vpop.f32.mrb[0].mxu0
        %v1790 = vadd.f32 0.0, %v1789
        %v1791 = vpop.f32.mrb[0].mxu0
        %1792 = vmatprep.mubr.f32.mxu0 %v1658
        %1793 = vmatmul.mubr.f32.gmra.mrb[0].mxu0 %v1657
        %v1794 = vpop.f32.mrb[0].mxu0
        %v1795 = vadd.f32 0.0, %v1794
        %v1796 = vpop.f32.mrb[0].mxu0
        %1797 = vdwg.mxu0
        %1798 = vmatprep.subr.mxu0 0.0
        %1799 = vmatpush1.msra.mxu0 %v1659
        %1800 = vmatprep.subr.mxu0 0.0
        %1801 = vmatpush1.msra.mxu0 %v1660
        %1802 = vmatprep.subr.mxu0 0.0
        %1803 = vmatpush1.msra.mxu0 %v1661
        %1804 = vmatprep.subr.mxu0 0.0
        %1805 = vmatpush1.msra.mxu0 %v1662
        %1806 = vmatprep.subr.mxu0 0.0
        %1807 = vmatpush1.msra.mxu0 %v1663
        %1808 = vmatprep.subr.mxu0 0.0
        %1809 = vmatpush1.msra.mxu0 %v1664
        %1810 = vmatprep.subr.mxu0 0.0
        %1811 = vmatpush1.msra.mxu0 %v1665
        %1812 = vmatprep.subr.mxu0 0.0
        %1813 = vmatpush1.msra.mxu0 %v1666
        %1814 = vmatprep.subr.mxu0 0.0
        %1815 = vmatpush1.msra.mxu0 %v1667
        %1816 = vmatprep.subr.mxu0 0.0
        %1817 = vmatpush1.msra.mxu0 %v1668
        %1818 = vmatprep.subr.mxu0 0.0
        %1819 = vmatpush1.msra.mxu0 %v1669
        %1820 = vmatprep.subr.mxu0 0.0
        %1821 = vmatpush1.msra.mxu0 %v1670
        %1822 = vmatprep.subr.mxu0 0.0
        %1823 = vmatpush1.msra.mxu0 %v1671
        %1824 = vmatprep.subr.mxu0 0.0
        %1825 = vmatpush1.msra.mxu0 %v1672
        %1826 = vmatprep.subr.mxu0 0.0
        %1827 = vmatpush1.msra.mxu0 %v1673
        %1828 = vmatprep.subr.mxu0 0.0
        %1829 = vmatpush1.msra.mxu0 %v1674
        %1830 = vmatprep.subr.mxu0 0.0
        %1831 = vmatpush1.msra.mxu0 %v1675
        %1832 = vmatprep.subr.mxu0 0.0
        %1833 = vmatpush1.msra.mxu0 %v1676
        %1834 = vmatprep.subr.mxu0 0.0
        %1835 = vmatpush1.msra.mxu0 %v1677
        %1836 = vmatprep.subr.mxu0 0.0
        %1837 = vmatpush1.msra.mxu0 %v1678
        %1838 = vmatprep.subr.mxu0 0.0
        %1839 = vmatpush1.msra.mxu0 %v1679
        %1840 = vmatprep.subr.mxu0 0.0
        %1841 = vmatpush1.msra.mxu0 %v1680
        %1842 = vmatprep.subr.mxu0 0.0
        %1843 = vmatpush1.msra.mxu0 %v1681
        %1844 = vmatprep.subr.mxu0 0.0
        %1845 = vmatpush1.msra.mxu0 %v1682
        %1846 = vmatprep.subr.mxu0 0.0
        %1847 = vmatpush1.msra.mxu0 %v1683
        %1848 = vmatprep.subr.mxu0 0.0
        %1849 = vmatpush1.msra.mxu0 %v1684
        %1850 = vmatprep.subr.mxu0 0.0
        %1851 = vmatpush1.msra.mxu0 %v1685
        %1852 = vmatprep.subr.mxu0 0.0
        %1853 = vmatpush1.msra.mxu0 %v1686
        %1854 = vmatprep.subr.mxu0 0.0
        %1855 = vmatpush1.msra.mxu0 %v1687
        %1856 = vmatprep.subr.mxu0 0.0
        %1857 = vmatpush1.msra.mxu0 %v1688
        %1858 = vmatprep.subr.mxu0 0.0
        %1859 = vmatpush1.msra.mxu0 %v1689
        %1860 = vmatprep.subr.mxu0 0.0
        %1861 = vmatpush1.msra.mxu0 %v1690
        %1862 = vmatprep.mubr.f32.mxu0 %v1586
        %1863 = vmatmul.mubr.f32.gmra.mrb[0].mxu0 %v1585
        %v1864 = vpop.f32.mrb[0].mxu0
        %v1865 = vadd.f32 %v1790, %v1864
        %v1866 = vpop.f32.mrb[0].mxu0
        %1867 = vmatprep.mubr.f32.mxu0 %v1588
        %1868 = vmatmul.mubr.f32.gmra.mrb[0].mxu0 %v1587
        %v1869 = vpop.f32.mrb[0].mxu0
        %v1870 = vadd.f32 %v1795, %v1869
        %v1871 = vpop.f32.mrb[0].mxu0
        %1872 = vdwg.mxu0
        %vm1873 = vcmask 256000
        %1874 = vst.msk [vmem:[#allocation4] sm:$0x7] %vm1873, 0.0
        %1875 = vst.msk [vmem:[#allocation4 + $0x13] sm:$0x7] %vm1873, 0.0
        %vm1876 = vcmask 261120
        %1877 = vst.msk [vmem:[#allocation4 + $0x3] sm:$0xff] %vm1876, %v1865
        %1878 = vst.msk [vmem:[#allocation4 + $0xb] sm:$0xff] %vm1876, %v1870
        %v1879 = vld [vmem:[#allocation4] sm:$0xff]
        %v1880 = vld [vmem:[#allocation4 + $0x8] sm:$0xff]
        %v1881 = vld [vmem:[#allocation18] sm:$0xff]
        %v1882 = vld [vmem:[#allocation18 + $0x8] sm:$0xff]
        %v1883 = vld [vmem:[#allocation18 + $0x10] sm:$0xff]
        %v1884 = vld [vmem:[#allocation18 + $0x18] sm:$0xff]
        %v1885 = vld [vmem:[#allocation4 + $0x1] sm:$0xff]
        %v1886 = vld [vmem:[#allocation4 + $0x9] sm:$0xff]
        %s1887 = scalar_lea.vmem [#allocation18], 32
        %v1888 = vld [vmem:[%s1887] sm:$0xff]
        %v1889 = vld [vmem:[%s1887 + $0x8] sm:$0xff]
        %v1890 = vld [vmem:[%s1887 + $0x10] sm:$0xff]
        %v1891 = vld [vmem:[%s1887 + $0x18] sm:$0xff]
        %v1893 = vsel %vm1876, %v1885, 0
        %v1896 = vsel %vm1876, %v1886, 0
        %1898 = vmatprep.subr.mxu0 0.0
        %1899 = vmatpush1.msra.mxu0 %v1888
        %1900 = vmatprep.subr.mxu0 0.0
        %1901 = vmatpush1.msra.mxu0 %v1889
        %1902 = vmatprep.subr.mxu0 0.0
        %1903 = vmatpush1.msra.mxu0 %v1890
        %1904 = vmatprep.subr.mxu0 0.0
        %1905 = vmatpush1.msra.mxu0 %v1891
        %1906 = vmatprep.subr.mxu0 0.0
        %1907 = vmatpush1.msra.mxu0 0.0
        %1908 = vmatprep.subr.mxu0 0.0
        %1909 = vmatpush1.msra.mxu0 0.0
        %1910 = vmatprep.subr.mxu0 0.0
        %1911 = vmatpush1.msra.mxu0 0.0
        %1912 = vmatprep.subr.mxu0 0.0
        %1913 = vmatpush1.msra.mxu0 0.0
        %1914 = vmatprep.subr.mxu0 0.0
        %1915 = vmatpush1.msra.mxu0 0.0
        %1916 = vmatprep.subr.mxu0 0.0
        %1917 = vmatpush1.msra.mxu0 0.0
        %1918 = vmatprep.subr.mxu0 0.0
        %1919 = vmatpush1.msra.mxu0 0.0
        %1920 = vmatprep.subr.mxu0 0.0
        %1921 = vmatpush1.msra.mxu0 0.0
        %1922 = vmatprep.subr.mxu0 0.0
        %1923 = vmatpush1.msra.mxu0 0.0
        %1924 = vmatprep.subr.mxu0 0.0
        %1925 = vmatpush1.msra.mxu0 0.0
        %1926 = vmatprep.subr.mxu0 0.0
        %1927 = vmatpush1.msra.mxu0 0.0
        %1928 = vmatprep.subr.mxu0 0.0
        %1929 = vmatpush1.msra.mxu0 0.0
        %1930 = vmatprep.subr.mxu0 0.0
        %1931 = vmatpush1.msra.mxu0 0.0
        %1932 = vmatprep.subr.mxu0 0.0
        %1933 = vmatpush1.msra.mxu0 0.0
        %1934 = vmatprep.subr.mxu0 0.0
        %1935 = vmatpush1.msra.mxu0 0.0
        %1936 = vmatprep.subr.mxu0 0.0
        %1937 = vmatpush1.msra.mxu0 0.0
        %1938 = vmatprep.subr.mxu0 0.0
        %1939 = vmatpush1.msra.mxu0 0.0
        %1940 = vmatprep.subr.mxu0 0.0
        %1941 = vmatpush1.msra.mxu0 0.0
        %1942 = vmatprep.subr.mxu0 0.0
        %1943 = vmatpush1.msra.mxu0 0.0
        %1944 = vmatprep.subr.mxu0 0.0
        %1945 = vmatpush1.msra.mxu0 0.0
        %1946 = vmatprep.subr.mxu0 0.0
        %1947 = vmatpush1.msra.mxu0 0.0
        %1948 = vmatprep.subr.mxu0 0.0
        %1949 = vmatpush1.msra.mxu0 0.0
        %1950 = vmatprep.subr.mxu0 0.0
        %1951 = vmatpush1.msra.mxu0 0.0
        %1952 = vmatprep.subr.mxu0 0.0
        %1953 = vmatpush1.msra.mxu0 0.0
        %1954 = vmatprep.subr.mxu0 0.0
        %1955 = vmatpush1.msra.mxu0 0.0
        %1956 = vmatprep.subr.mxu0 0.0
        %1957 = vmatpush1.msra.mxu0 0.0
        %1958 = vmatprep.subr.mxu0 0.0
        %1959 = vmatpush1.msra.mxu0 0.0
        %1960 = vmatprep.subr.mxu0 0.0
        %1961 = vmatpush1.msra.mxu0 0.0
        %1962 = vmatprep.mubr.f32.mxu0 0.0
        %1963 = vmatmul.mubr.f32.gmra.mrb[0].mxu0 %v1893
        %v1964 = vpop.f32.mrb[0].mxu0
        %v1965 = vadd.f32 0.0, %v1964
        %v1966 = vpop.f32.mrb[0].mxu0
        %1967 = vmatprep.mubr.f32.mxu0 0.0
        %1968 = vmatmul.mubr.f32.gmra.mrb[0].mxu0 %v1896
        %v1969 = vpop.f32.mrb[0].mxu0
        %v1970 = vadd.f32 0.0, %v1969
        %v1971 = vpop.f32.mrb[0].mxu0
        %1972 = vdwg.mxu0
        %v1974 = vsel %vm1876, %v1879, 0
        %v1977 = vsel %vm1876, %v1880, 0
        %1979 = vmatprep.subr.mxu0 0.0
        %1980 = vmatpush1.msra.mxu0 %v1881
        %1981 = vmatprep.subr.mxu0 0.0
        %1982 = vmatpush1.msra.mxu0 %v1882
        %1983 = vmatprep.subr.mxu0 0.0
        %1984 = vmatpush1.msra.mxu0 %v1883
        %1985 = vmatprep.subr.mxu0 0.0
        %1986 = vmatpush1.msra.mxu0 %v1884
        %1987 = vmatprep.subr.mxu0 0.0
        %1988 = vmatpush1.msra.mxu0 0.0
        %1989 = vmatprep.subr.mxu0 0.0
        %1990 = vmatpush1.msra.mxu0 0.0
        %1991 = vmatprep.subr.mxu0 0.0
        %1992 = vmatpush1.msra.mxu0 0.0
        %1993 = vmatprep.subr.mxu0 0.0
        %1994 = vmatpush1.msra.mxu0 0.0
        %1995 = vmatprep.subr.mxu0 0.0
        %1996 = vmatpush1.msra.mxu0 0.0
        %1997 = vmatprep.subr.mxu0 0.0
        %1998 = vmatpush1.msra.mxu0 0.0
        %1999 = vmatprep.subr.mxu0 0.0
        %2000 = vmatpush1.msra.mxu0 0.0
        %2001 = vmatprep.subr.mxu0 0.0
        %2002 = vmatpush1.msra.mxu0 0.0
        %2003 = vmatprep.subr.mxu0 0.0
        %2004 = vmatpush1.msra.mxu0 0.0
        %2005 = vmatprep.subr.mxu0 0.0
        %2006 = vmatpush1.msra.mxu0 0.0
        %2007 = vmatprep.subr.mxu0 0.0
        %2008 = vmatpush1.msra.mxu0 0.0
        %2009 = vmatprep.subr.mxu0 0.0
        %2010 = vmatpush1.msra.mxu0 0.0
        %2011 = vmatprep.subr.mxu0 0.0
        %2012 = vmatpush1.msra.mxu0 0.0
        %2013 = vmatprep.subr.mxu0 0.0
        %2014 = vmatpush1.msra.mxu0 0.0
        %2015 = vmatprep.subr.mxu0 0.0
        %2016 = vmatpush1.msra.mxu0 0.0
        %2017 = vmatprep.subr.mxu0 0.0
        %2018 = vmatpush1.msra.mxu0 0.0
        %2019 = vmatprep.subr.mxu0 0.0
        %2020 = vmatpush1.msra.mxu0 0.0
        %2021 = vmatprep.subr.mxu0 0.0
        %2022 = vmatpush1.msra.mxu0 0.0
        %2023 = vmatprep.subr.mxu0 0.0
        %2024 = vmatpush1.msra.mxu0 0.0
        %2025 = vmatprep.subr.mxu0 0.0
        %2026 = vmatpush1.msra.mxu0 0.0
        %2027 = vmatprep.subr.mxu0 0.0
        %2028 = vmatpush1.msra.mxu0 0.0
        %2029 = vmatprep.subr.mxu0 0.0
        %2030 = vmatpush1.msra.mxu0 0.0
        %2031 = vmatprep.subr.mxu0 0.0
        %2032 = vmatpush1.msra.mxu0 0.0
        %2033 = vmatprep.subr.mxu0 0.0
        %2034 = vmatpush1.msra.mxu0 0.0
        %2035 = vmatprep.subr.mxu0 0.0
        %2036 = vmatpush1.msra.mxu0 0.0
        %2037 = vmatprep.subr.mxu0 0.0
        %2038 = vmatpush1.msra.mxu0 0.0
        %2039 = vmatprep.subr.mxu0 0.0
        %2040 = vmatpush1.msra.mxu0 0.0
        %2041 = vmatprep.subr.mxu0 0.0
        %2042 = vmatpush1.msra.mxu0 0.0
        %2043 = vmatprep.mubr.f32.mxu0 0.0
        %2044 = vmatmul.mubr.f32.gmra.mrb[0].mxu0 %v1974
        %v2045 = vpop.f32.mrb[0].mxu0
        %v2046 = vadd.f32 %v1965, %v2045
        %v2047 = vpop.f32.mrb[0].mxu0
        %2048 = vmatprep.mubr.f32.mxu0 0.0
        %2049 = vmatmul.mubr.f32.gmra.mrb[0].mxu0 %v1977
        %v2050 = vpop.f32.mrb[0].mxu0
        %v2051 = vadd.f32 %v1970, %v2050
        %v2052 = vpop.f32.mrb[0].mxu0
        %2053 = vdwg.mxu0
        %v2054 = vld [vmem:[#allocation4 + $0x2] sm:$0xff]
        %v2055 = vld [vmem:[#allocation4 + $0xa] sm:$0xff]
        %s2056 = scalar_lea.vmem [#allocation18], 64
        %v2057 = vld [vmem:[%s2056] sm:$0xff]
        %v2058 = vld [vmem:[%s2056 + $0x8] sm:$0xff]
        %v2059 = vld [vmem:[%s2056 + $0x10] sm:$0xff]
        %v2060 = vld [vmem:[%s2056 + $0x18] sm:$0xff]
        %v2062 = vsel %vm1876, %v2054, 0
        %v2065 = vsel %vm1876, %v2055, 0
        %2067 = vmatprep.subr.mxu0 0.0
        %2068 = vmatpush1.msra.mxu0 %v2057
        %2069 = vmatprep.subr.mxu0 0.0
        %2070 = vmatpush1.msra.mxu0 %v2058
        %2071 = vmatprep.subr.mxu0 0.0
        %2072 = vmatpush1.msra.mxu0 %v2059
        %2073 = vmatprep.subr.mxu0 0.0
        %2074 = vmatpush1.msra.mxu0 %v2060
        %2075 = vmatprep.subr.mxu0 0.0
        %2076 = vmatpush1.msra.mxu0 0.0
        %2077 = vmatprep.subr.mxu0 0.0
        %2078 = vmatpush1.msra.mxu0 0.0
        %2079 = vmatprep.subr.mxu0 0.0
        %2080 = vmatpush1.msra.mxu0 0.0
        %2081 = vmatprep.subr.mxu0 0.0
        %2082 = vmatpush1.msra.mxu0 0.0
        %2083 = vmatprep.subr.mxu0 0.0
        %2084 = vmatpush1.msra.mxu0 0.0
        %2085 = vmatprep.subr.mxu0 0.0
        %2086 = vmatpush1.msra.mxu0 0.0
        %2087 = vmatprep.subr.mxu0 0.0
        %2088 = vmatpush1.msra.mxu0 0.0
        %2089 = vmatprep.subr.mxu0 0.0
        %2090 = vmatpush1.msra.mxu0 0.0
        %2091 = vmatprep.subr.mxu0 0.0
        %2092 = vmatpush1.msra.mxu0 0.0
        %2093 = vmatprep.subr.mxu0 0.0
        %2094 = vmatpush1.msra.mxu0 0.0
        %2095 = vmatprep.subr.mxu0 0.0
        %2096 = vmatpush1.msra.mxu0 0.0
        %2097 = vmatprep.subr.mxu0 0.0
        %2098 = vmatpush1.msra.mxu0 0.0
        %2099 = vmatprep.subr.mxu0 0.0
        %2100 = vmatpush1.msra.mxu0 0.0
        %2101 = vmatprep.subr.mxu0 0.0
        %2102 = vmatpush1.msra.mxu0 0.0
        %2103 = vmatprep.subr.mxu0 0.0
        %2104 = vmatpush1.msra.mxu0 0.0
        %2105 = vmatprep.subr.mxu0 0.0
        %2106 = vmatpush1.msra.mxu0 0.0
        %2107 = vmatprep.subr.mxu0 0.0
        %2108 = vmatpush1.msra.mxu0 0.0
        %2109 = vmatprep.subr.mxu0 0.0
        %2110 = vmatpush1.msra.mxu0 0.0
        %2111 = vmatprep.subr.mxu0 0.0
        %2112 = vmatpush1.msra.mxu0 0.0
        %2113 = vmatprep.subr.mxu0 0.0
        %2114 = vmatpush1.msra.mxu0 0.0
        %2115 = vmatprep.subr.mxu0 0.0
        %2116 = vmatpush1.msra.mxu0 0.0
        %2117 = vmatprep.subr.mxu0 0.0
        %2118 = vmatpush1.msra.mxu0 0.0
        %2119 = vmatprep.subr.mxu0 0.0
        %2120 = vmatpush1.msra.mxu0 0.0
        %2121 = vmatprep.subr.mxu0 0.0
        %2122 = vmatpush1.msra.mxu0 0.0
        %2123 = vmatprep.subr.mxu0 0.0
        %2124 = vmatpush1.msra.mxu0 0.0
        %2125 = vmatprep.subr.mxu0 0.0
        %2126 = vmatpush1.msra.mxu0 0.0
        %2127 = vmatprep.subr.mxu0 0.0
        %2128 = vmatpush1.msra.mxu0 0.0
        %2129 = vmatprep.subr.mxu0 0.0
        %2130 = vmatpush1.msra.mxu0 0.0
        %2131 = vmatprep.mubr.f32.mxu0 0.0
        %2132 = vmatmul.mubr.f32.gmra.mrb[0].mxu0 %v2062
        %v2133 = vpop.f32.mrb[0].mxu0
        %v2134 = vadd.f32 0.0, %v2133
        %v2135 = vpop.f32.mrb[0].mxu0
        %2136 = vmatprep.mubr.f32.mxu0 0.0
        %2137 = vmatmul.mubr.f32.gmra.mrb[0].mxu0 %v2065
        %v2138 = vpop.f32.mrb[0].mxu0
        %v2139 = vadd.f32 0.0, %v2138
        %v2140 = vpop.f32.mrb[0].mxu0
        %2141 = vdwg.mxu0
        %v2142 = vadd.f32 %v2046, %v2134
        %v2143 = vadd.f32 %v2051, %v2139
        %v2144 = vld [vmem:[#allocation4 + $0x3] sm:$0xff]
        %v2145 = vld [vmem:[#allocation4 + $0xb] sm:$0xff]
        %s2146 = scalar_lea.vmem [#allocation18], 96
        %v2147 = vld [vmem:[%s2146] sm:$0xff]
        %v2148 = vld [vmem:[%s2146 + $0x8] sm:$0xff]
        %v2149 = vld [vmem:[%s2146 + $0x10] sm:$0xff]
        %v2150 = vld [vmem:[%s2146 + $0x18] sm:$0xff]
        %v2152 = vsel %vm1876, %v2144, 0
        %v2155 = vsel %vm1876, %v2145, 0
        %2157 = vmatprep.subr.mxu0 0.0
        %2158 = vmatpush1.msra.mxu0 %v2147
        %2159 = vmatprep.subr.mxu0 0.0
        %2160 = vmatpush1.msra.mxu0 %v2148
        %2161 = vmatprep.subr.mxu0 0.0
        %2162 = vmatpush1.msra.mxu0 %v2149
        %2163 = vmatprep.subr.mxu0 0.0
        %2164 = vmatpush1.msra.mxu0 %v2150
        %2165 = vmatprep.subr.mxu0 0.0
        %2166 = vmatpush1.msra.mxu0 0.0
        %2167 = vmatprep.subr.mxu0 0.0
        %2168 = vmatpush1.msra.mxu0 0.0
        %2169 = vmatprep.subr.mxu0 0.0
        %2170 = vmatpush1.msra.mxu0 0.0
        %2171 = vmatprep.subr.mxu0 0.0
        %2172 = vmatpush1.msra.mxu0 0.0
        %2173 = vmatprep.subr.mxu0 0.0
        %2174 = vmatpush1.msra.mxu0 0.0
        %2175 = vmatprep.subr.mxu0 0.0
        %2176 = vmatpush1.msra.mxu0 0.0
        %2177 = vmatprep.subr.mxu0 0.0
        %2178 = vmatpush1.msra.mxu0 0.0
        %2179 = vmatprep.subr.mxu0 0.0
        %2180 = vmatpush1.msra.mxu0 0.0
        %2181 = vmatprep.subr.mxu0 0.0
        %2182 = vmatpush1.msra.mxu0 0.0
        %2183 = vmatprep.subr.mxu0 0.0
        %2184 = vmatpush1.msra.mxu0 0.0
        %2185 = vmatprep.subr.mxu0 0.0
        %2186 = vmatpush1.msra.mxu0 0.0
        %2187 = vmatprep.subr.mxu0 0.0
        %2188 = vmatpush1.msra.mxu0 0.0
        %2189 = vmatprep.subr.mxu0 0.0
        %2190 = vmatpush1.msra.mxu0 0.0
        %2191 = vmatprep.subr.mxu0 0.0
        %2192 = vmatpush1.msra.mxu0 0.0
        %2193 = vmatprep.subr.mxu0 0.0
        %2194 = vmatpush1.msra.mxu0 0.0
        %2195 = vmatprep.subr.mxu0 0.0
        %2196 = vmatpush1.msra.mxu0 0.0
        %2197 = vmatprep.subr.mxu0 0.0
        %2198 = vmatpush1.msra.mxu0 0.0
        %2199 = vmatprep.subr.mxu0 0.0
        %2200 = vmatpush1.msra.mxu0 0.0
        %2201 = vmatprep.subr.mxu0 0.0
        %2202 = vmatpush1.msra.mxu0 0.0
        %2203 = vmatprep.subr.mxu0 0.0
        %2204 = vmatpush1.msra.mxu0 0.0
        %2205 = vmatprep.subr.mxu0 0.0
        %2206 = vmatpush1.msra.mxu0 0.0
        %2207 = vmatprep.subr.mxu0 0.0
        %2208 = vmatpush1.msra.mxu0 0.0
        %2209 = vmatprep.subr.mxu0 0.0
        %2210 = vmatpush1.msra.mxu0 0.0
        %2211 = vmatprep.subr.mxu0 0.0
        %2212 = vmatpush1.msra.mxu0 0.0
        %2213 = vmatprep.subr.mxu0 0.0
        %2214 = vmatpush1.msra.mxu0 0.0
        %2215 = vmatprep.subr.mxu0 0.0
        %2216 = vmatpush1.msra.mxu0 0.0
        %2217 = vmatprep.subr.mxu0 0.0
        %2218 = vmatpush1.msra.mxu0 0.0
        %2219 = vmatprep.subr.mxu0 0.0
        %2220 = vmatpush1.msra.mxu0 0.0
        %2221 = vmatprep.mubr.f32.mxu0 0.0
        %2222 = vmatmul.mubr.f32.gmra.mrb[0].mxu0 %v2152
        %v2223 = vpop.f32.mrb[0].mxu0
        %v2224 = vadd.f32 0.0, %v2223
        %v2225 = vpop.f32.mrb[0].mxu0
        %2226 = vmatprep.mubr.f32.mxu0 0.0
        %2227 = vmatmul.mubr.f32.gmra.mrb[0].mxu0 %v2155
        %v2228 = vpop.f32.mrb[0].mxu0
        %v2229 = vadd.f32 0.0, %v2228
        %v2230 = vpop.f32.mrb[0].mxu0
        %2231 = vdwg.mxu0
        %v2232 = vadd.f32 %v2142, %v2224
        %v2233 = vadd.f32 %v2143, %v2229
        %v2234 = vld [vmem:[#allocation4 + $0x4] sm:$0xff]
        %v2235 = vld [vmem:[#allocation4 + $0xc] sm:$0xff]
        %s2236 = scalar_lea.vmem [#allocation18], 128
        %v2237 = vld [vmem:[%s2236] sm:$0xff]
        %v2238 = vld [vmem:[%s2236 + $0x8] sm:$0xff]
        %v2239 = vld [vmem:[%s2236 + $0x10] sm:$0xff]
        %v2240 = vld [vmem:[%s2236 + $0x18] sm:$0xff]
        %v2242 = vsel %vm1876, %v2234, 0
        %v2245 = vsel %vm1876, %v2235, 0
        %2247 = vmatprep.subr.mxu0 0.0
        %2248 = vmatpush1.msra.mxu0 %v2237
        %2249 = vmatprep.subr.mxu0 0.0
        %2250 = vmatpush1.msra.mxu0 %v2238
        %2251 = vmatprep.subr.mxu0 0.0
        %2252 = vmatpush1.msra.mxu0 %v2239
        %2253 = vmatprep.subr.mxu0 0.0
        %2254 = vmatpush1.msra.mxu0 %v2240
        %2255 = vmatprep.subr.mxu0 0.0
        %2256 = vmatpush1.msra.mxu0 0.0
        %2257 = vmatprep.subr.mxu0 0.0
        %2258 = vmatpush1.msra.mxu0 0.0
        %2259 = vmatprep.subr.mxu0 0.0
        %2260 = vmatpush1.msra.mxu0 0.0
        %2261 = vmatprep.subr.mxu0 0.0
        %2262 = vmatpush1.msra.mxu0 0.0
        %2263 = vmatprep.subr.mxu0 0.0
        %2264 = vmatpush1.msra.mxu0 0.0
        %2265 = vmatprep.subr.mxu0 0.0
        %2266 = vmatpush1.msra.mxu0 0.0
        %2267 = vmatprep.subr.mxu0 0.0
        %2268 = vmatpush1.msra.mxu0 0.0
        %2269 = vmatprep.subr.mxu0 0.0
        %2270 = vmatpush1.msra.mxu0 0.0
        %2271 = vmatprep.subr.mxu0 0.0
        %2272 = vmatpush1.msra.mxu0 0.0
        %2273 = vmatprep.subr.mxu0 0.0
        %2274 = vmatpush1.msra.mxu0 0.0
        %2275 = vmatprep.subr.mxu0 0.0
        %2276 = vmatpush1.msra.mxu0 0.0
        %2277 = vmatprep.subr.mxu0 0.0
        %2278 = vmatpush1.msra.mxu0 0.0
        %2279 = vmatprep.subr.mxu0 0.0
        %2280 = vmatpush1.msra.mxu0 0.0
        %2281 = vmatprep.subr.mxu0 0.0
        %2282 = vmatpush1.msra.mxu0 0.0
        %2283 = vmatprep.subr.mxu0 0.0
        %2284 = vmatpush1.msra.mxu0 0.0
        %2285 = vmatprep.subr.mxu0 0.0
        %2286 = vmatpush1.msra.mxu0 0.0
        %2287 = vmatprep.subr.mxu0 0.0
        %2288 = vmatpush1.msra.mxu0 0.0
        %2289 = vmatprep.subr.mxu0 0.0
        %2290 = vmatpush1.msra.mxu0 0.0
        %2291 = vmatprep.subr.mxu0 0.0
        %2292 = vmatpush1.msra.mxu0 0.0
        %2293 = vmatprep.subr.mxu0 0.0
        %2294 = vmatpush1.msra.mxu0 0.0
        %2295 = vmatprep.subr.mxu0 0.0
        %2296 = vmatpush1.msra.mxu0 0.0
        %2297 = vmatprep.subr.mxu0 0.0
        %2298 = vmatpush1.msra.mxu0 0.0
        %2299 = vmatprep.subr.mxu0 0.0
        %2300 = vmatpush1.msra.mxu0 0.0
        %2301 = vmatprep.subr.mxu0 0.0
        %2302 = vmatpush1.msra.mxu0 0.0
        %2303 = vmatprep.subr.mxu0 0.0
        %2304 = vmatpush1.msra.mxu0 0.0
        %2305 = vmatprep.subr.mxu0 0.0
        %2306 = vmatpush1.msra.mxu0 0.0
        %2307 = vmatprep.subr.mxu0 0.0
        %2308 = vmatpush1.msra.mxu0 0.0
        %2309 = vmatprep.subr.mxu0 0.0
        %2310 = vmatpush1.msra.mxu0 0.0
        %2311 = vmatprep.mubr.f32.mxu0 0.0
        %2312 = vmatmul.mubr.f32.gmra.mrb[0].mxu0 %v2242
        %v2313 = vpop.f32.mrb[0].mxu0
        %v2314 = vadd.f32 0.0, %v2313
        %v2315 = vpop.f32.mrb[0].mxu0
        %2316 = vmatprep.mubr.f32.mxu0 0.0
        %2317 = vmatmul.mubr.f32.gmra.mrb[0].mxu0 %v2245
        %v2318 = vpop.f32.mrb[0].mxu0
        %v2319 = vadd.f32 0.0, %v2318
        %v2320 = vpop.f32.mrb[0].mxu0
        %2321 = vdwg.mxu0
        %v2322 = vadd.f32 %v2232, %v2314
        %v2323 = vadd.f32 %v2233, %v2319
        %v2324 = vld [vmem:[#allocation4 + $0x5] sm:$0xff]
        %v2325 = vld [vmem:[#allocation4 + $0xd] sm:$0xff]
        %s2326 = scalar_lea.vmem [#allocation18], 160
        %v2327 = vld [vmem:[%s2326] sm:$0xff]
        %v2328 = vld [vmem:[%s2326 + $0x8] sm:$0xff]
        %v2329 = vld [vmem:[%s2326 + $0x10] sm:$0xff]
        %v2330 = vld [vmem:[%s2326 + $0x18] sm:$0xff]
        %v2332 = vsel %vm1876, %v2324, 0
        %v2335 = vsel %vm1876, %v2325, 0
        %2337 = vmatprep.subr.mxu0 0.0
        %2338 = vmatpush1.msra.mxu0 %v2327
        %2339 = vmatprep.subr.mxu0 0.0
        %2340 = vmatpush1.msra.mxu0 %v2328
        %2341 = vmatprep.subr.mxu0 0.0
        %2342 = vmatpush1.msra.mxu0 %v2329
        %2343 = vmatprep.subr.mxu0 0.0
        %2344 = vmatpush1.msra.mxu0 %v2330
        %2345 = vmatprep.subr.mxu0 0.0
        %2346 = vmatpush1.msra.mxu0 0.0
        %2347 = vmatprep.subr.mxu0 0.0
        %2348 = vmatpush1.msra.mxu0 0.0
        %2349 = vmatprep.subr.mxu0 0.0
        %2350 = vmatpush1.msra.mxu0 0.0
        %2351 = vmatprep.subr.mxu0 0.0
        %2352 = vmatpush1.msra.mxu0 0.0
        %2353 = vmatprep.subr.mxu0 0.0
        %2354 = vmatpush1.msra.mxu0 0.0
        %2355 = vmatprep.subr.mxu0 0.0
        %2356 = vmatpush1.msra.mxu0 0.0
        %2357 = vmatprep.subr.mxu0 0.0
        %2358 = vmatpush1.msra.mxu0 0.0
        %2359 = vmatprep.subr.mxu0 0.0
        %2360 = vmatpush1.msra.mxu0 0.0
        %2361 = vmatprep.subr.mxu0 0.0
        %2362 = vmatpush1.msra.mxu0 0.0
        %2363 = vmatprep.subr.mxu0 0.0
        %2364 = vmatpush1.msra.mxu0 0.0
        %2365 = vmatprep.subr.mxu0 0.0
        %2366 = vmatpush1.msra.mxu0 0.0
        %2367 = vmatprep.subr.mxu0 0.0
        %2368 = vmatpush1.msra.mxu0 0.0
        %2369 = vmatprep.subr.mxu0 0.0
        %2370 = vmatpush1.msra.mxu0 0.0
        %2371 = vmatprep.subr.mxu0 0.0
        %2372 = vmatpush1.msra.mxu0 0.0
        %2373 = vmatprep.subr.mxu0 0.0
        %2374 = vmatpush1.msra.mxu0 0.0
        %2375 = vmatprep.subr.mxu0 0.0
        %2376 = vmatpush1.msra.mxu0 0.0
        %2377 = vmatprep.subr.mxu0 0.0
        %2378 = vmatpush1.msra.mxu0 0.0
        %2379 = vmatprep.subr.mxu0 0.0
        %2380 = vmatpush1.msra.mxu0 0.0
        %2381 = vmatprep.subr.mxu0 0.0
        %2382 = vmatpush1.msra.mxu0 0.0
        %2383 = vmatprep.subr.mxu0 0.0
        %2384 = vmatpush1.msra.mxu0 0.0
        %2385 = vmatprep.subr.mxu0 0.0
        %2386 = vmatpush1.msra.mxu0 0.0
        %2387 = vmatprep.subr.mxu0 0.0
        %2388 = vmatpush1.msra.mxu0 0.0
        %2389 = vmatprep.subr.mxu0 0.0
        %2390 = vmatpush1.msra.mxu0 0.0
        %2391 = vmatprep.subr.mxu0 0.0
        %2392 = vmatpush1.msra.mxu0 0.0
        %2393 = vmatprep.subr.mxu0 0.0
        %2394 = vmatpush1.msra.mxu0 0.0
        %2395 = vmatprep.subr.mxu0 0.0
        %2396 = vmatpush1.msra.mxu0 0.0
        %2397 = vmatprep.subr.mxu0 0.0
        %2398 = vmatpush1.msra.mxu0 0.0
        %2399 = vmatprep.subr.mxu0 0.0
        %2400 = vmatpush1.msra.mxu0 0.0
        %2401 = vmatprep.mubr.f32.mxu0 0.0
        %2402 = vmatmul.mubr.f32.gmra.mrb[0].mxu0 %v2332
        %v2403 = vpop.f32.mrb[0].mxu0
        %v2404 = vadd.f32 0.0, %v2403
        %v2405 = vpop.f32.mrb[0].mxu0
        %2406 = vmatprep.mubr.f32.mxu0 0.0
        %2407 = vmatmul.mubr.f32.gmra.mrb[0].mxu0 %v2335
        %v2408 = vpop.f32.mrb[0].mxu0
        %v2409 = vadd.f32 0.0, %v2408
        %v2410 = vpop.f32.mrb[0].mxu0
        %2411 = vdwg.mxu0
        %v2412 = vadd.f32 %v2322, %v2404
        %v2413 = vadd.f32 %v2323, %v2409
        %v2414 = vld [vmem:[#allocation4 + $0x6] sm:$0xff]
        %v2415 = vld [vmem:[#allocation4 + $0xe] sm:$0xff]
        %s2416 = scalar_lea.vmem [#allocation18], 192
        %v2417 = vld [vmem:[%s2416] sm:$0xff]
        %v2418 = vld [vmem:[%s2416 + $0x8] sm:$0xff]
        %v2419 = vld [vmem:[%s2416 + $0x10] sm:$0xff]
        %v2420 = vld [vmem:[%s2416 + $0x18] sm:$0xff]
        %v2422 = vsel %vm1876, %v2414, 0
        %v2425 = vsel %vm1876, %v2415, 0
        %2427 = vmatprep.subr.mxu0 0.0
        %2428 = vmatpush1.msra.mxu0 %v2417
        %2429 = vmatprep.subr.mxu0 0.0
        %2430 = vmatpush1.msra.mxu0 %v2418
        %2431 = vmatprep.subr.mxu0 0.0
        %2432 = vmatpush1.msra.mxu0 %v2419
        %2433 = vmatprep.subr.mxu0 0.0
        %2434 = vmatpush1.msra.mxu0 %v2420
        %2435 = vmatprep.subr.mxu0 0.0
        %2436 = vmatpush1.msra.mxu0 0.0
        %2437 = vmatprep.subr.mxu0 0.0
        %2438 = vmatpush1.msra.mxu0 0.0
        %2439 = vmatprep.subr.mxu0 0.0
        %2440 = vmatpush1.msra.mxu0 0.0
        %2441 = vmatprep.subr.mxu0 0.0
        %2442 = vmatpush1.msra.mxu0 0.0
        %2443 = vmatprep.subr.mxu0 0.0
        %2444 = vmatpush1.msra.mxu0 0.0
        %2445 = vmatprep.subr.mxu0 0.0
        %2446 = vmatpush1.msra.mxu0 0.0
        %2447 = vmatprep.subr.mxu0 0.0
        %2448 = vmatpush1.msra.mxu0 0.0
        %2449 = vmatprep.subr.mxu0 0.0
        %2450 = vmatpush1.msra.mxu0 0.0
        %2451 = vmatprep.subr.mxu0 0.0
        %2452 = vmatpush1.msra.mxu0 0.0
        %2453 = vmatprep.subr.mxu0 0.0
        %2454 = vmatpush1.msra.mxu0 0.0
        %2455 = vmatprep.subr.mxu0 0.0
        %2456 = vmatpush1.msra.mxu0 0.0
        %2457 = vmatprep.subr.mxu0 0.0
        %2458 = vmatpush1.msra.mxu0 0.0
        %2459 = vmatprep.subr.mxu0 0.0
        %2460 = vmatpush1.msra.mxu0 0.0
        %2461 = vmatprep.subr.mxu0 0.0
        %2462 = vmatpush1.msra.mxu0 0.0
        %2463 = vmatprep.subr.mxu0 0.0
        %2464 = vmatpush1.msra.mxu0 0.0
        %2465 = vmatprep.subr.mxu0 0.0
        %2466 = vmatpush1.msra.mxu0 0.0
        %2467 = vmatprep.subr.mxu0 0.0
        %2468 = vmatpush1.msra.mxu0 0.0
        %2469 = vmatprep.subr.mxu0 0.0
        %2470 = vmatpush1.msra.mxu0 0.0
        %2471 = vmatprep.subr.mxu0 0.0
        %2472 = vmatpush1.msra.mxu0 0.0
        %2473 = vmatprep.subr.mxu0 0.0
        %2474 = vmatpush1.msra.mxu0 0.0
        %2475 = vmatprep.subr.mxu0 0.0
        %2476 = vmatpush1.msra.mxu0 0.0
        %2477 = vmatprep.subr.mxu0 0.0
        %2478 = vmatpush1.msra.mxu0 0.0
        %2479 = vmatprep.subr.mxu0 0.0
        %2480 = vmatpush1.msra.mxu0 0.0
        %2481 = vmatprep.subr.mxu0 0.0
        %2482 = vmatpush1.msra.mxu0 0.0
        %2483 = vmatprep.subr.mxu0 0.0
        %2484 = vmatpush1.msra.mxu0 0.0
        %2485 = vmatprep.subr.mxu0 0.0
        %2486 = vmatpush1.msra.mxu0 0.0
        %2487 = vmatprep.subr.mxu0 0.0
        %2488 = vmatpush1.msra.mxu0 0.0
        %2489 = vmatprep.subr.mxu0 0.0
        %2490 = vmatpush1.msra.mxu0 0.0
        %2491 = vmatprep.mubr.f32.mxu0 0.0
        %2492 = vmatmul.mubr.f32.gmra.mrb[0].mxu0 %v2422
        %v2493 = vpop.f32.mrb[0].mxu0
        %v2494 = vadd.f32 0.0, %v2493
        %v2495 = vpop.f32.mrb[0].mxu0
        %2496 = vmatprep.mubr.f32.mxu0 0.0
        %2497 = vmatmul.mubr.f32.gmra.mrb[0].mxu0 %v2425
        %v2498 = vpop.f32.mrb[0].mxu0
        %v2499 = vadd.f32 0.0, %v2498
        %v2500 = vpop.f32.mrb[0].mxu0
        %2501 = vdwg.mxu0
        %v2502 = vadd.f32 %v2412, %v2494
        %v2503 = vadd.f32 %v2413, %v2499
        %v2504 = vxor.u32 %v2502, 2147483648
        %v2505 = vxor.u32 %v2503, 2147483648
        %v2506 = vmul.f32 %v2504, 1.442695
        %v2507 = vpow.pop %v2506
        %v2508 = vmul.f32 %v2505, 1.442695
        %v2509 = vpow.pop %v2508
        %v2510 = vadd.f32 %v2507, 1.0
        %v2511 = vadd.f32 %v2509, 1.0
        %v2512 = vrcp.pop %v2510
        %v2513 = vmul.f32 1.0, %v2512
        %v2514 = vrcp.pop %v2511
        %v2515 = vmul.f32 1.0, %v2514
        %v2516 = vld [vmem:[#allocation19] sm:$0xff]
        %v2517 = vld [vmem:[#allocation19 + $0x8] sm:$0xff]
        %v2518 = vld [vmem:[#allocation19 + $0x10] sm:$0xff]
        %v2519 = vld [vmem:[#allocation19 + $0x18] sm:$0xff]
        %v2520 = vld [vmem:[%s13] sm:$0x3]
        %v2522 = vlaneseq
        %v2523 = vshrl.u32 %v2522, 7
        %v2524 = vsub.s32 0, %v2523
        %v2525 = vrot.slane %v2520, %v2524
        %v2526 = vlaneseq
        %v2527 = vshrl.u32 %v2526, 7
        %v2528 = vsub.s32 1, %v2527
        %v2529 = vrot.slane %v2520, %v2528
        %vm2532 = vcmask 130048
        %v2534 = vsel %vm2532, %v2513, 0
        %v2537 = vsel %vm2532, %v2515, 0
        %2539 = vmatprep.subr.mxu0 %v2517
        %2540 = vmatpush1.msra.mxu0 %v2516
        %2541 = vmatprep.subr.mxu0 %v2519
        %2542 = vmatpush1.msra.mxu0 %v2518
        %2543 = vmatprep.subr.mxu0 0.0
        %2544 = vmatpush1.msra.mxu0 0.0
        %2545 = vmatprep.subr.mxu0 0.0
        %2546 = vmatpush1.msra.mxu0 0.0
        %2547 = vmatprep.subr.mxu0 0.0
        %2548 = vmatpush1.msra.mxu0 0.0
        %2549 = vmatprep.subr.mxu0 0.0
        %2550 = vmatpush1.msra.mxu0 0.0
        %2551 = vmatprep.subr.mxu0 0.0
        %2552 = vmatpush1.msra.mxu0 0.0
        %2553 = vmatprep.subr.mxu0 0.0
        %2554 = vmatpush1.msra.mxu0 0.0
        %2555 = vmatprep.subr.mxu0 0.0
        %2556 = vmatpush1.msra.mxu0 0.0
        %2557 = vmatprep.subr.mxu0 0.0
        %2558 = vmatpush1.msra.mxu0 0.0
        %2559 = vmatprep.subr.mxu0 0.0
        %2560 = vmatpush1.msra.mxu0 0.0
        %2561 = vmatprep.subr.mxu0 0.0
        %2562 = vmatpush1.msra.mxu0 0.0
        %2563 = vmatprep.subr.mxu0 0.0
        %2564 = vmatpush1.msra.mxu0 0.0
        %2565 = vmatprep.subr.mxu0 0.0
        %2566 = vmatpush1.msra.mxu0 0.0
        %2567 = vmatprep.subr.mxu0 0.0
        %2568 = vmatpush1.msra.mxu0 0.0
        %2569 = vmatprep.subr.mxu0 0.0
        %2570 = vmatpush1.msra.mxu0 0.0
        %2571 = vmatprep.subr.mxu0 0.0
        %2572 = vmatpush1.msra.mxu0 0.0
        %2573 = vmatprep.subr.mxu0 0.0
        %2574 = vmatpush1.msra.mxu0 0.0
        %2575 = vmatprep.subr.mxu0 0.0
        %2576 = vmatpush1.msra.mxu0 0.0
        %2577 = vmatprep.subr.mxu0 0.0
        %2578 = vmatpush1.msra.mxu0 0.0
        %2579 = vmatprep.subr.mxu0 0.0
        %2580 = vmatpush1.msra.mxu0 0.0
        %2581 = vmatprep.subr.mxu0 0.0
        %2582 = vmatpush1.msra.mxu0 0.0
        %2583 = vmatprep.subr.mxu0 0.0
        %2584 = vmatpush1.msra.mxu0 0.0
        %2585 = vmatprep.subr.mxu0 0.0
        %2586 = vmatpush1.msra.mxu0 0.0
        %2587 = vmatprep.subr.mxu0 0.0
        %2588 = vmatpush1.msra.mxu0 0.0
        %2589 = vmatprep.subr.mxu0 0.0
        %2590 = vmatpush1.msra.mxu0 0.0
        %2591 = vmatprep.subr.mxu0 0.0
        %2592 = vmatpush1.msra.mxu0 0.0
        %2593 = vmatprep.subr.mxu0 0.0
        %2594 = vmatpush1.msra.mxu0 0.0
        %2595 = vmatprep.subr.mxu0 0.0
        %2596 = vmatpush1.msra.mxu0 0.0
        %2597 = vmatprep.subr.mxu0 0.0
        %2598 = vmatpush1.msra.mxu0 0.0
        %2599 = vmatprep.subr.mxu0 0.0
        %2600 = vmatpush1.msra.mxu0 0.0
        %2601 = vmatprep.subr.mxu0 0.0
        %2602 = vmatpush1.msra.mxu0 0.0
        %2603 = vmatprep.mubr.f32.mxu0 0.0
        %2604 = vmatmul.mubr.f32.gmra.mrb[0].mxu0 %v2534
        %v2605 = vpop.f32.mrb[0].mxu0
        %v2606 = vadd.f32 %v2525, %v2605
        %v2607 = vpop.f32.mrb[0].mxu0
        %v2608 = vadd.f32 %v2529, %v2607
        %2609 = vmatprep.mubr.f32.mxu0 0.0
        %2610 = vmatmul.mubr.f32.gmra.mrb[0].mxu0 %v2537
        %v2611 = vpop.f32.mrb[0].mxu0
        %v2612 = vadd.f32 %v2525, %v2611
        %v2613 = vpop.f32.mrb[0].mxu0
        %v2614 = vadd.f32 %v2529, %v2613
        %2615 = vdwg.mxu0
        %v2616 = vmul.f32 %v2606, %v1585
        %v2617 = vmul.f32 %v2608, %v1586
        %v2618 = vmul.f32 %v2612, %v1587
        %v2619 = vmul.f32 %v2614, %v1588
        %v2620 = vadd.f32 %v2616, %v849
        %v2621 = vadd.f32 %v2617, %v850
        %v2622 = vadd.f32 %v2618, %v851
        %v2623 = vadd.f32 %v2619, %v852
        %v2624 = vmax.f32 %v2620, 0.0
        %v2625 = vmax.f32 %v2621, 0.0
        %v2626 = vmax.f32 %v2622, 0.0
        %v2627 = vmax.f32 %v2623, 0.0
        %2628 = vst [vmem:[%s636] sm:$0xff] %v2624
        %2629 = vst [vmem:[%s636 + $0x8] sm:$0xff] %v2625
        %2630 = vst [vmem:[%s636 + $0x10] sm:$0xff] %v2626
        %2631 = vst [vmem:[%s636 + $0x18] sm:$0xff] %v2627
        %p2632 = scmp.lt.s32.totalorder %s32, 1
        %s2633 = scalar_select %p2632, %s32, 1
        %s2634 = smul.addr %s2633, 4
        %s2635 = smul.addr %s2634, 8
        %s2636 = scalar_lea.vmem %s15, %s2635
        // Predicated region
        $region121: #{_lambda_.2} parent=79 // pred_check
          %p2637 = pneg %p370
        $region122: #{_lambda_.2} parent=79 // pred_check_branch
          %2639 = sbr.rel (%p2637) target = $region124
        $region123: #{_lambda_.2} parent=79 // pred_region
          _
        $region124: #{_lambda_.2} parent=79 // pred_fallthru
          _
      $region80: #{_lambda_.2} parent=5 // pred_fallthru
        _
      %p2640 = scmp.le.s32.totalorder 2, %s27
      // Predicated region
      $region125: #{_lambda_.2} parent=5 // pred_check
        %p2641 = pneg %p2640
      $region126: #{_lambda_.2} parent=5 // pred_check_branch
        %2643 = sbr.rel (%p2641) target = $region128
      $region127: #{_lambda_.2} parent=5 // pred_region
        %s2644 = ssub.s32 %s27, 2
        // Predicated region
        $region129: #{_lambda_.2} parent=127 // pred_check
          %p2645 = pneg %p376
        $region130: #{_lambda_.2} parent=127 // pred_check_branch
          %2647 = sbr.rel (%p2645) target = $region132
        $region131: #{_lambda_.2} parent=127 // pred_region
          %p2648 = scmp.lt.s32.totalorder %s33, 1
          %s2649 = scalar_select %p2648, %s33, 1
          %s2650 = smul.addr %s2649, 4
          %s2651 = smul.addr %s2650, 8
          %s2652 = scalar_lea.vmem %s15, %s2651
        $region132: #{_lambda_.2} parent=127 // pred_fallthru
          _
      $region128: #{_lambda_.2} parent=5 // pred_fallthru
        _
    $region6: #{_lambda_.2} parent=1 // loop_footer
      %s31 = sadd.s32 1, %s27
    $region7: #{_lambda_.2} parent=1 // loop_footer_branch
      %26 = sbr.rel target = $region3
    $region8: #{_lambda_.2} parent=1 // loop_exit
      _
    %2653 = vsyncpa [#allocation6], 1
    %s2654 = scalar_lea.sflag [#allocation6], 1
    %2655 = vsyncpa %s2654, 1
    %2656 = vsyncpa [#allocation8], 1
    %2657 = vsyncpa [#allocation11], 1
    %2658 = vsyncpa [#allocation14], 1
    %2659 = vsyncpa [#allocation17], 1
    %2660 = vsyncpa [#allocation20], 1

</llo_original>
